<compile_context>
chip_gen: v6e
topology: v6e:2x2x1
jax: 0.10.0
libtpu: 0.0.40
codegen_flags: <defaults>
</compile_context>

<pallas_src>
import functools
import math

import jax
import jax.numpy as jnp
from jax import lax
from jax.experimental import pallas as pl
from jax.experimental.pallas import tpu as pltpu


# ---------------------------------------------------------------------------
# In-kernel helpers (traced inside the Pallas kernel body)
# ---------------------------------------------------------------------------
def _layer_norm(x, w, b, eps=1e-5):
    # x: (N, D) f32, w/b: (1, D) f32.  Two-pass stats for numerical robustness.
    mu = jnp.mean(x, axis=-1, keepdims=True)
    xc = x - mu
    var = jnp.mean(xc * xc, axis=-1, keepdims=True)
    return xc * lax.rsqrt(var + eps) * w + b


def _mha(q2, k2, v2, w_out, b_out, bb, Sq, Skv, nhead, dh):
    """Batched multi-head attention on flattened (bb*S, D) projections.

    q2: (bb*Sq, D) f32 — softmax scale already folded into the Q projection.
    k2, v2: (bb*Skv, D) f32.  w_out: (D, D) bf16, b_out: (1, D) f32.
    """
    D = nhead * dh
    q16 = q2.astype(jnp.bfloat16)
    k16 = k2.astype(jnp.bfloat16)
    v16 = v2.astype(jnp.bfloat16)

    def split_heads(t, S):
        # (bb*S, H*dh) -> (H*bb, S, dh): tile-aligned lane slices stacked on a
        # new leading (batch) axis; leading-dim reshapes are layout-only.
        hs = [t[:, h * dh:(h + 1) * dh].reshape(bb, S, dh) for h in range(nhead)]
        return jnp.stack(hs, axis=0).reshape(nhead * bb, S, dh)

    qh = split_heads(q16, Sq)     # (H*bb, Sq, dh)
    kh = split_heads(k16, Skv)    # (H*bb, Skv, dh)
    vh = split_heads(v16, Skv)    # (H*bb, Skv, dh)

    # Scores + softmax in f32 (scale pre-folded into Q).
    s = jnp.einsum('bqd,bkd->bqk', qh, kh, preferred_element_type=jnp.float32)
    s = s - jnp.max(s, axis=-1, keepdims=True)
    p = jnp.exp(s)
    p = p * pl.reciprocal(jnp.sum(p, axis=-1, keepdims=True), approx=True)

    o = jnp.einsum('bqk,bkd->bqd', p.astype(jnp.bfloat16), vh,
                   preferred_element_type=jnp.float32)     # (H*bb, Sq, dh) f32

    # Re-concatenate heads along tile-aligned lanes and apply the output
    # projection as ONE K=D MXU matmul (no per-head matmuls, no VPU sum).
    o = o.astype(jnp.bfloat16).reshape(nhead, bb * Sq, dh)
    o_cat = jnp.concatenate([o[h] for h in range(nhead)], axis=-1)  # (bb*Sq, D)
    return jnp.dot(o_cat, w_out, preferred_element_type=jnp.float32) + b_out


# ---------------------------------------------------------------------------
# Pallas kernel: full decoder stack, grid = (batch_block, layer)
# ---------------------------------------------------------------------------
def decoder_stack_kernel(nhead, dh,
                         tgt_ref, mem_ref,
                         sa_qkv_w, sa_qkv_b, sa_out_w, sa_out_b,
                         ca_q_w, ca_q_b, ca_kv_w, ca_kv_b, ca_out_w, ca_out_b,
                         ff_w1, ff_b1, ff_w2, ff_b2,
                         ln1_w, ln1_b, ln2_w, ln2_b, ln3_w, ln3_b,
                         out_ref, x_scr):
    l = pl.program_id(1)
    num_layers = pl.num_programs(1)
    bb, St, D = tgt_ref.shape
    Sm = mem_ref.shape[1]

    # Layer 0: seed the persistent activation scratch from the (bf16) input.
    @pl.when(l == 0)
    def _():
        x_scr[...] = tgt_ref[...].astype(jnp.float32).reshape(bb * St, D)

    x = x_scr[...]                                 # (bb*St, D) f32
    mem16 = mem_ref[...].reshape(bb * Sm, D)       # (bb*Sm, D) bf16 (cast in wrapper)

    # --- self-attention block (post-LN), fused QKV projection ---
    x16 = x.astype(jnp.bfloat16)
    qkv = jnp.dot(x16, sa_qkv_w[...],
                  preferred_element_type=jnp.float32) + sa_qkv_b[...]
    sa = _mha(qkv[:, :D], qkv[:, D:2 * D], qkv[:, 2 * D:],
              sa_out_w[...], sa_out_b[...], bb, St, St, nhead, dh)
    x = _layer_norm(x + sa, ln1_w[...], ln1_b[...])

    # --- cross-attention block: Q from x, fused KV from memory ---
    x16 = x.astype(jnp.bfloat16)
    q = jnp.dot(x16, ca_q_w[...],
                preferred_element_type=jnp.float32) + ca_q_b[...]
    kv = jnp.dot(mem16, ca_kv_w[...],
                 preferred_element_type=jnp.float32) + ca_kv_b[...]
    ca = _mha(q, kv[:, :D], kv[:, D:],
              ca_out_w[...], ca_out_b[...], bb, St, Sm, nhead, dh)
    x = _layer_norm(x + ca, ln2_w[...], ln2_b[...])

    # --- feed-forward block (relu), bf16 matmuls / f32 elementwise ---
    x16 = x.astype(jnp.bfloat16)
    h = jnp.dot(x16, ff_w1[...],
                preferred_element_type=jnp.float32) + ff_b1[...]
    h = jnp.maximum(h, 0.0).astype(jnp.bfloat16)
    f = jnp.dot(h, ff_w2[...],
                preferred_element_type=jnp.float32) + ff_b2[...]
    x = _layer_norm(x + f, ln3_w[...], ln3_b[...])

    # Persist the activation for the next layer; emit output at the last layer
    # (output block is resident across the "arbitrary" layer axis).
    x_scr[...] = x

    @pl.when(l == num_layers - 1)
    def _():
        out_ref[...] = x.reshape(bb, St, D).astype(out_ref.dtype)


# ---------------------------------------------------------------------------
# Wrapper helpers
# ---------------------------------------------------------------------------
def _pick_bb(B, target=8):
    """Largest divisor of B that is <= target and (if possible) keeps >= 2
    batch grid steps so both v7x TensorCores get work."""
    best = 1
    for d in range(1, B + 1):
        if B % d != 0 or d > target:
            continue
        if B >= 2 and B // d < 2:
            continue
        best = max(best, d)
    return best


def _vmem_limit_bytes(default=64 * 1024 * 1024):
    """Derive the Mosaic VMEM budget from the actual chip (v5e/v6e 128 MiB,
    v7x 64 MiB) instead of a hard-coded constant."""
    try:
        info = pltpu.get_tpu_info()
        cap = getattr(info, "vmem_capacity_bytes", None)
        if cap:
            return int(cap * 0.8)
    except Exception:
        pass
    return default


def _fold_softmax_scale(params, D, dh):
    """Fold 1/sqrt(dh) into the Q projections (weights + biases) so the kernel
    never scales the (Sq, Skv) score tensor on the VPU."""
    p = list(params)
    scale = 1.0 / math.sqrt(dh)
    qkv_w = p[0].astype(jnp.float32)
    p[0] = qkv_w.at[..., :D].multiply(scale).astype(params[0].dtype)
    p[1] = p[1].at[..., :D].multiply(scale)
    p[4] = (p[4].astype(jnp.float32) * scale).astype(params[4].dtype)
    p[5] = p[5] * scale
    return p


# ---------------------------------------------------------------------------
# Wrapper: equivalent of Decoder.forward(tgt, memory) with all masks = None
# ---------------------------------------------------------------------------
def decoder_forward(tgt, memory, params, nhead, bb_target=8):
    """params: list of arrays, each stacked with a leading num_layers axis."""
    B, St, D = tgt.shape
    _, Sm, _ = memory.shape
    L = params[0].shape[0]
    dh = D // nhead

    bb = _pick_bb(B, bb_target)
    # TODO(synk): pad the batch when B has no suitable divisor instead of bb=1.

    params = _fold_softmax_scale(params, D, dh)

    # bf16 inputs: halves tgt/memory HBM->VMEM DMA; matmuls are bf16 anyway.
    tgt_bf = tgt.astype(jnp.bfloat16)
    mem_bf = memory.astype(jnp.bfloat16)

    vmem_limit = _vmem_limit_bytes()
    per_layer_w_bytes = sum(
        math.prod(p.shape[1:]) * p.dtype.itemsize for p in params)
    # If double-buffered per-layer weights would eat more than ~half of VMEM
    # (e.g. D >= 1024 on v7x's 64 MiB), single-buffer the large FFN weights.
    ffn_single_buffer = 2 * per_layer_w_bytes > vmem_limit // 2
    FFN_W_IDX = (10, 12)   # ff_w1, ff_w2 positions in `params`

    def wspec(p, single_buffer=False):
        zeros = (0,) * (p.ndim - 1)
        kwargs = {}
        if single_buffer:
            kwargs = dict(pipeline_mode=pl.Buffered(1))
        return pl.BlockSpec((None,) + tuple(p.shape[1:]),
                            lambda g, l, zeros=zeros: (l,) + zeros,
                            **kwargs)

    in_specs = [
        pl.BlockSpec((bb, St, D), lambda g, l: (g, 0, 0)),   # tgt (bf16)
        pl.BlockSpec((bb, Sm, D), lambda g, l: (g, 0, 0)),   # memory (bf16)
    ] + [wspec(p, ffn_single_buffer and i in FFN_W_IDX)
         for i, p in enumerate(params)]
    out_spec = pl.BlockSpec((bb, St, D), lambda g, l: (g, 0, 0))

    kernel = functools.partial(decoder_stack_kernel, nhead, dh)
    return pl.pallas_call(
        kernel,
        out_shape=jax.ShapeDtypeStruct((B, St, D), jnp.float32),
        grid_spec=pltpu.PrefetchScalarGridSpec(
            num_scalar_prefetch=0,
            grid=(B // bb, L),                      # layer axis innermost
            in_specs=in_specs,
            out_specs=out_spec,
            scratch_shapes=[pltpu.VMEM((bb * St, D), jnp.float32)],
        ),
        compiler_params=pltpu.CompilerParams(
            dimension_semantics=("parallel", "arbitrary"),
            vmem_limit_bytes=vmem_limit,
        ),
    )(tgt_bf, mem_bf, *params)


# ---------------------------------------------------------------------------
# Deterministic synthetic parameter initialization (weights bf16, LN/bias f32)
# ---------------------------------------------------------------------------
def init_params(key, d_model, nhead, num_layers):
    D, L = d_model, num_layers
    ks = jax.random.split(key, 7)

    def w(k, shape):
        return (jax.random.normal(k, (L,) + shape, jnp.float32) * 0.02
                ).astype(jnp.bfloat16)

    def zeros(shape):
        return jnp.zeros((L,) + shape, jnp.float32)

    def ones(shape):
        return jnp.ones((L,) + shape, jnp.float32)

    sa_qkv_w = w(ks[0], (D, 3 * D)); sa_qkv_b = zeros((1, 3 * D))
    sa_out_w = w(ks[1], (D, D));     sa_out_b = zeros((1, D))
    ca_q_w   = w(ks[2], (D, D));     ca_q_b   = zeros((1, D))
    ca_kv_w  = w(ks[3], (D, 2 * D)); ca_kv_b  = zeros((1, 2 * D))
    ca_out_w = w(ks[4], (D, D));     ca_out_b = zeros((1, D))
    ff_w1 = w(ks[5], (D, 4 * D));    ff_b1 = zeros((1, 4 * D))
    ff_w2 = w(ks[6], (4 * D, D));    ff_b2 = zeros((1, D))
    ln1_w = ones((1, D)); ln1_b = zeros((1, D))
    ln2_w = ones((1, D)); ln2_b = zeros((1, D))
    ln3_w = ones((1, D)); ln3_b = zeros((1, D))
    return [sa_qkv_w, sa_qkv_b, sa_out_w, sa_out_b,
            ca_q_w, ca_q_b, ca_kv_w, ca_kv_b, ca_out_w, ca_out_b,
            ff_w1, ff_b1, ff_w2, ff_b2,
            ln1_w, ln1_b, ln2_w, ln2_b, ln3_w, ln3_b]


# ---------------------------------------------------------------------------
# Pure-JAX reference (f32) for a loose parity check
# ---------------------------------------------------------------------------
def reference_forward(tgt, memory, params, nhead):
    (sa_qkv_w, sa_qkv_b, sa_out_w, sa_out_b,
     ca_q_w, ca_q_b, ca_kv_w, ca_kv_b, ca_out_w, ca_out_b,
     ff_w1, ff_b1, ff_w2, ff_b2,
     ln1_w, ln1_b, ln2_w, ln2_b, ln3_w, ln3_b) = params
    L = sa_qkv_w.shape[0]
    D = tgt.shape[-1]
    dh = D // nhead
    f32 = jnp.float32

    def ln(x, w, b, eps=1e-5):
        mu = x.mean(-1, keepdims=True)
        var = ((x - mu) ** 2).mean(-1, keepdims=True)
        return (x - mu) / jnp.sqrt(var + eps) * w + b

    def attn(q, k, v, w_out, b_out):
        B, Sq, _ = q.shape
        Skv = k.shape[1]
        qh = q.reshape(B, Sq, nhead, dh).transpose(0, 2, 1, 3)
        kh = k.reshape(B, Skv, nhead, dh).transpose(0, 2, 1, 3)
        vh = v.reshape(B, Skv, nhead, dh).transpose(0, 2, 1, 3)
        s = jnp.einsum('bhqd,bhkd->bhqk', qh, kh) / math.sqrt(dh)
        p = jax.nn.softmax(s, axis=-1)
        o = jnp.einsum('bhqk,bhkd->bhqd', p, vh)
        o = o.transpose(0, 2, 1, 3).reshape(B, Sq, D)
        return o @ w_out.astype(f32) + b_out

    x = tgt
    for l in range(L):
        qkv = x @ sa_qkv_w[l].astype(f32) + sa_qkv_b[l]
        x = ln(x + attn(qkv[..., :D], qkv[..., D:2 * D], qkv[..., 2 * D:],
                        sa_out_w[l], sa_out_b[l]), ln1_w[l], ln1_b[l])
        q = x @ ca_q_w[l].astype(f32) + ca_q_b[l]
        kv = memory @ ca_kv_w[l].astype(f32) + ca_kv_b[l]
        x = ln(x + attn(q, kv[..., :D], kv[..., D:],
                        ca_out_w[l], ca_out_b[l]), ln2_w[l], ln2_b[l])
        h = jnp.maximum(x @ ff_w1[l].astype(f32) + ff_b1[l], 0.0)
        x = ln(x + h @ ff_w2[l].astype(f32) + ff_b2[l], ln3_w[l], ln3_b[l])
    return x


if __name__ == "__main__":
    # Small but lane-dense shapes: D multiple of 128, head_dim = 128, seq % 8 == 0,
    # batch divisible so batch folding (bb=2) and the parallel grid axis (2) engage.
    d_model, nhead, num_layers = 256, 2, 2
    B, St, Sm = 4, 16, 16

    key = jax.random.PRNGKey(0)
    k_tgt, k_mem, k_par = jax.random.split(key, 3)
    tgt = jax.random.normal(k_tgt, (B, St, d_model), jnp.float32)
    memory = jax.random.normal(k_mem, (B, Sm, d_model), jnp.float32)
    params = init_params(k_par, d_model, nhead, num_layers)

    out = decoder_forward(tgt, memory, params, nhead)
    out = jax.block_until_ready(out)
    assert out.shape == (B, St, d_model)
    assert bool(jnp.all(jnp.isfinite(out)))

    # Loose parity vs. an f32 reference (bf16 inputs/matmuls + approx reciprocal).
    ref = reference_forward(tgt, memory, params, nhead)
    max_err = float(jnp.max(jnp.abs(out - ref)))
    assert max_err < 0.25, f"max abs err {max_err}"

    print("KERNEL_OK")
</pallas_src>

<mosaic_0001>
module attributes {stable_mosaic.version = 11 : i64} {
  func.func @decoder_stack_kernel(%arg0: i32, %arg1: i32, %arg2: memref<2x16x256xbf16, #tpu.memory_space<vmem>>, %arg3: memref<2x16x256xbf16, #tpu.memory_space<vmem>>, %arg4: memref<1x256x768xbf16, #tpu.memory_space<vmem>>, %arg5: memref<1x1x768xf32, #tpu.memory_space<vmem>>, %arg6: memref<1x256x256xbf16, #tpu.memory_space<vmem>>, %arg7: memref<1x1x256xf32, #tpu.memory_space<vmem>>, %arg8: memref<1x256x256xbf16, #tpu.memory_space<vmem>>, %arg9: memref<1x1x256xf32, #tpu.memory_space<vmem>>, %arg10: memref<1x256x512xbf16, #tpu.memory_space<vmem>>, %arg11: memref<1x1x512xf32, #tpu.memory_space<vmem>>, %arg12: memref<1x256x256xbf16, #tpu.memory_space<vmem>>, %arg13: memref<1x1x256xf32, #tpu.memory_space<vmem>>, %arg14: memref<1x256x1024xbf16, #tpu.memory_space<vmem>>, %arg15: memref<1x1x1024xf32, #tpu.memory_space<vmem>>, %arg16: memref<1x1024x256xbf16, #tpu.memory_space<vmem>>, %arg17: memref<1x1x256xf32, #tpu.memory_space<vmem>>, %arg18: memref<1x1x256xf32, #tpu.memory_space<vmem>>, %arg19: memref<1x1x256xf32, #tpu.memory_space<vmem>>, %arg20: memref<1x1x256xf32, #tpu.memory_space<vmem>>, %arg21: memref<1x1x256xf32, #tpu.memory_space<vmem>>, %arg22: memref<1x1x256xf32, #tpu.memory_space<vmem>>, %arg23: memref<1x1x256xf32, #tpu.memory_space<vmem>>, %arg24: memref<2x16x256xf32, #tpu.memory_space<vmem>>, %arg25: memref<32x256xf32, #tpu.memory_space<vmem>>) attributes {dimension_semantics = [#tpu.dimension_semantics<parallel>, #tpu.dimension_semantics<arbitrary>], iteration_bounds = array<i64: 2, 2>, scalar_prefetch = 0 : i64, scratch_operands = 1 : i64, tpu.core_type = #tpu.core_type<tc>, window_params = [{transform_indices = @transform_0, window_bounds = array<i64: 2, 16, 256>}, {transform_indices = @transform_1, window_bounds = array<i64: 2, 16, 256>}, {transform_indices = @transform_2, window_bounds = array<i64: 1, 256, 768>}, {transform_indices = @transform_3, window_bounds = array<i64: 1, 1, 768>}, {transform_indices = @transform_4, window_bounds = array<i64: 1, 256, 256>}, {transform_indices = @transform_5, window_bounds = array<i64: 1, 1, 256>}, {transform_indices = @transform_6, window_bounds = array<i64: 1, 256, 256>}, {transform_indices = @transform_7, window_bounds = array<i64: 1, 1, 256>}, {transform_indices = @transform_8, window_bounds = array<i64: 1, 256, 512>}, {transform_indices = @transform_9, window_bounds = array<i64: 1, 1, 512>}, {transform_indices = @transform_10, window_bounds = array<i64: 1, 256, 256>}, {transform_indices = @transform_11, window_bounds = array<i64: 1, 1, 256>}, {transform_indices = @transform_12, window_bounds = array<i64: 1, 256, 1024>}, {transform_indices = @transform_13, window_bounds = array<i64: 1, 1, 1024>}, {transform_indices = @transform_14, window_bounds = array<i64: 1, 1024, 256>}, {transform_indices = @transform_15, window_bounds = array<i64: 1, 1, 256>}, {transform_indices = @transform_16, window_bounds = array<i64: 1, 1, 256>}, {transform_indices = @transform_17, window_bounds = array<i64: 1, 1, 256>}, {transform_indices = @transform_18, window_bounds = array<i64: 1, 1, 256>}, {transform_indices = @transform_19, window_bounds = array<i64: 1, 1, 256>}, {transform_indices = @transform_20, window_bounds = array<i64: 1, 1, 256>}, {transform_indices = @transform_21, window_bounds = array<i64: 1, 1, 256>}, {transform_indices = @transform_22, window_bounds = array<i64: 2, 16, 256>}]} {
    %c0_i32 = arith.constant 0 : i32
    %0 = arith.cmpi eq, %arg1, %c0_i32 : i32
    %1 = arith.extui %0 : i1 to i32
    %c0_i32_0 = arith.constant 0 : i32
    %2 = arith.cmpi ne, %1, %c0_i32_0 : i32
    scf.if %2 {
      %c0_98 = arith.constant 0 : index
      %c0_99 = arith.constant 0 : index
      %c0_100 = arith.constant 0 : index
      %239 = vector.load %arg2[%c0_98, %c0_99, %c0_100] : memref<2x16x256xbf16, #tpu.memory_space<vmem>>, vector<2x16x256xbf16>
      %240 = arith.extf %239 : vector<2x16x256xbf16> to vector<2x16x256xf32>
      %241 = vector.shape_cast %240 : vector<2x16x256xf32> to vector<32x256xf32>
      %c0_101 = arith.constant 0 : index
      %c0_102 = arith.constant 0 : index
      %242 = vector.load %arg25[%c0_101, %c0_102] : memref<32x256xf32, #tpu.memory_space<vmem>>, vector<32x256xf32>
      tpu.vector_store %arg25[%c0_101, %c0_102], %241 {strides = array<i32>} : memref<32x256xf32, #tpu.memory_space<vmem>>, vector<32x256xf32>,
    } else {
    }
    %c0 = arith.constant 0 : index
    %c0_1 = arith.constant 0 : index
    %3 = vector.load %arg25[%c0, %c0_1] : memref<32x256xf32, #tpu.memory_space<vmem>>, vector<32x256xf32>
    %c0_2 = arith.constant 0 : index
    %c0_3 = arith.constant 0 : index
    %c0_4 = arith.constant 0 : index
    %4 = vector.load %arg3[%c0_2, %c0_3, %c0_4] : memref<2x16x256xbf16, #tpu.memory_space<vmem>>, vector<2x16x256xbf16>
    %5 = vector.shape_cast %4 : vector<2x16x256xbf16> to vector<32x256xbf16>
    %6 = arith.truncf %3 : vector<32x256xf32> to vector<32x256xbf16>
    %c0_5 = arith.constant 0 : index
    %c0_6 = arith.constant 0 : index
    %c0_7 = arith.constant 0 : index
    %7 = vector.load %arg4[%c0_5, %c0_6, %c0_7] : memref<1x256x768xbf16, #tpu.memory_space<vmem>>, vector<1x256x768xbf16>
    %8 = vector.shape_cast %7 : vector<1x256x768xbf16> to vector<256x768xbf16>
    %cst = arith.constant dense<0.000000e+00> : vector<32x768xf32>
    %9 = tpu.matmul %6, %8, %cst {dimension_numbers = #tpu.dot_dimension_numbers<[1], [0], [0], [1], [0, 0, 1, 1], [], []>} : vector<32x256xbf16>, vector<256x768xbf16>, vector<32x768xf32> -> vector<32x768xf32>
    %c0_8 = arith.constant 0 : index
    %c0_9 = arith.constant 0 : index
    %c0_10 = arith.constant 0 : index
    %10 = vector.load %arg5[%c0_8, %c0_9, %c0_10] : memref<1x1x768xf32, #tpu.memory_space<vmem>>, vector<1x1x768xf32>
    %11 = vector.shape_cast %10 : vector<1x1x768xf32> to vector<1x768xf32>
    %12 = vector.broadcast %11 : vector<1x768xf32> to vector<32x768xf32>
    %13 = arith.addf %9, %12 : vector<32x768xf32>
    %14 = vector.extract_strided_slice %13 {offsets = [0, 0], sizes = [32, 256], strides = [1, 1]} : vector<32x768xf32> to vector<32x256xf32>
    %15 = vector.extract_strided_slice %13 {offsets = [0, 256], sizes = [32, 256], strides = [1, 1]} : vector<32x768xf32> to vector<32x256xf32>
    %16 = vector.extract_strided_slice %13 {offsets = [0, 512], sizes = [32, 256], strides = [1, 1]} : vector<32x768xf32> to vector<32x256xf32>
    %c0_11 = arith.constant 0 : index
    %c0_12 = arith.constant 0 : index
    %c0_13 = arith.constant 0 : index
    %17 = vector.load %arg6[%c0_11, %c0_12, %c0_13] : memref<1x256x256xbf16, #tpu.memory_space<vmem>>, vector<1x256x256xbf16>
    %18 = vector.shape_cast %17 : vector<1x256x256xbf16> to vector<256x256xbf16>
    %c0_14 = arith.constant 0 : index
    %c0_15 = arith.constant 0 : index
    %c0_16 = arith.constant 0 : index
    %19 = vector.load %arg7[%c0_14, %c0_15, %c0_16] : memref<1x1x256xf32, #tpu.memory_space<vmem>>, vector<1x1x256xf32>
    %20 = vector.shape_cast %19 : vector<1x1x256xf32> to vector<1x256xf32>
    %21 = arith.truncf %14 : vector<32x256xf32> to vector<32x256xbf16>
    %22 = arith.truncf %15 : vector<32x256xf32> to vector<32x256xbf16>
    %23 = arith.truncf %16 : vector<32x256xf32> to vector<32x256xbf16>
    %24 = vector.extract_strided_slice %21 {offsets = [0, 0], sizes = [32, 128], strides = [1, 1]} : vector<32x256xbf16> to vector<32x128xbf16>
    %25 = vector.shape_cast %24 : vector<32x128xbf16> to vector<2x16x128xbf16>
    %26 = vector.extract_strided_slice %21 {offsets = [0, 128], sizes = [32, 128], strides = [1, 1]} : vector<32x256xbf16> to vector<32x128xbf16>
    %27 = vector.shape_cast %26 : vector<32x128xbf16> to vector<2x16x128xbf16>
    %28 = vector.shape_cast %25 : vector<2x16x128xbf16> to vector<1x2x16x128xbf16>
    %29 = vector.shape_cast %27 : vector<2x16x128xbf16> to vector<1x2x16x128xbf16>
    %30 = tpu.concatenate %28, %29 in 0 : vector<1x2x16x128xbf16>, vector<1x2x16x128xbf16> -> vector<2x2x16x128xbf16>
    %31 = vector.shape_cast %30 : vector<2x2x16x128xbf16> to vector<4x16x128xbf16>
    %32 = vector.extract_strided_slice %22 {offsets = [0, 0], sizes = [32, 128], strides = [1, 1]} : vector<32x256xbf16> to vector<32x128xbf16>
    %33 = vector.shape_cast %32 : vector<32x128xbf16> to vector<2x16x128xbf16>
    %34 = vector.extract_strided_slice %22 {offsets = [0, 128], sizes = [32, 128], strides = [1, 1]} : vector<32x256xbf16> to vector<32x128xbf16>
    %35 = vector.shape_cast %34 : vector<32x128xbf16> to vector<2x16x128xbf16>
    %36 = vector.shape_cast %33 : vector<2x16x128xbf16> to vector<1x2x16x128xbf16>
    %37 = vector.shape_cast %35 : vector<2x16x128xbf16> to vector<1x2x16x128xbf16>
    %38 = tpu.concatenate %36, %37 in 0 : vector<1x2x16x128xbf16>, vector<1x2x16x128xbf16> -> vector<2x2x16x128xbf16>
    %39 = vector.shape_cast %38 : vector<2x2x16x128xbf16> to vector<4x16x128xbf16>
    %40 = vector.extract_strided_slice %23 {offsets = [0, 0], sizes = [32, 128], strides = [1, 1]} : vector<32x256xbf16> to vector<32x128xbf16>
    %41 = vector.shape_cast %40 : vector<32x128xbf16> to vector<2x16x128xbf16>
    %42 = vector.extract_strided_slice %23 {offsets = [0, 128], sizes = [32, 128], strides = [1, 1]} : vector<32x256xbf16> to vector<32x128xbf16>
    %43 = vector.shape_cast %42 : vector<32x128xbf16> to vector<2x16x128xbf16>
    %44 = vector.shape_cast %41 : vector<2x16x128xbf16> to vector<1x2x16x128xbf16>
    %45 = vector.shape_cast %43 : vector<2x16x128xbf16> to vector<1x2x16x128xbf16>
    %46 = tpu.concatenate %44, %45 in 0 : vector<1x2x16x128xbf16>, vector<1x2x16x128xbf16> -> vector<2x2x16x128xbf16>
    %47 = vector.shape_cast %46 : vector<2x2x16x128xbf16> to vector<4x16x128xbf16>
    "tpu.trace_start"() <{level = 10 : i32, message = "bqd,bkd->bqk"}> : () -> ()
    %cst_17 = arith.constant dense<0.000000e+00> : vector<4x16x16xf32>
    %48 = tpu.matmul %31, %39, %cst_17 {dimension_numbers = #tpu.dot_dimension_numbers<[2], [2], [1], [1], [0, 0, 0, 1, 1, 1], [0], [0]>} : vector<4x16x128xbf16>, vector<4x16x128xbf16>, vector<4x16x16xf32> -> vector<4x16x16xf32>
    "tpu.trace_stop"() : () -> ()
    %cst_18 = arith.constant dense<0xFF800000> : vector<4x16xf32>
    %49 = vector.multi_reduction <maximumf>, %48, %cst_18 [2] : vector<4x16x16xf32> to vector<4x16xf32>
    %50 = vector.shape_cast %49 : vector<4x16xf32> to vector<4x16x1xf32>
    %51 = vector.broadcast %50 : vector<4x16x1xf32> to vector<4x16x16xf32>
    %52 = arith.subf %48, %51 : vector<4x16x16xf32>
    %53 = math.exp %52 : vector<4x16x16xf32>
    %cst_19 = arith.constant dense<0.000000e+00> : vector<4x16xf32>
    %54 = vector.multi_reduction <add>, %53, %cst_19 [2] : vector<4x16x16xf32> to vector<4x16xf32>
    %55 = vector.shape_cast %54 : vector<4x16xf32> to vector<4x16x1xf32>
    %56 = tpu.reciprocal %55 {approx = true} : vector<4x16x1xf32> -> vector<4x16x1xf32>
    %57 = vector.broadcast %56 : vector<4x16x1xf32> to vector<4x16x16xf32>
    %58 = arith.mulf %53, %57 : vector<4x16x16xf32>
    %59 = arith.truncf %58 : vector<4x16x16xf32> to vector<4x16x16xbf16>
    "tpu.trace_start"() <{level = 10 : i32, message = "bqk,bkd->bqd"}> : () -> ()
    %cst_20 = arith.constant dense<0.000000e+00> : vector<4x16x128xf32>
    %60 = tpu.matmul %59, %47, %cst_20 {dimension_numbers = #tpu.dot_dimension_numbers<[2], [1], [1], [2], [0, 0, 0, 1, 1, 2], [0], [0]>} : vector<4x16x16xbf16>, vector<4x16x128xbf16>, vector<4x16x128xf32> -> vector<4x16x128xf32>
    "tpu.trace_stop"() : () -> ()
    %61 = arith.truncf %60 : vector<4x16x128xf32> to vector<4x16x128xbf16>
    %62 = vector.shape_cast %61 : vector<4x16x128xbf16> to vector<2x32x128xbf16>
    %63 = vector.extract_strided_slice %62 {offsets = [0, 0, 0], sizes = [1, 32, 128], strides = [1, 1, 1]} : vector<2x32x128xbf16> to vector<1x32x128xbf16>
    %64 = vector.shape_cast %63 : vector<1x32x128xbf16> to vector<32x128xbf16>
    %65 = vector.extract_strided_slice %62 {offsets = [1, 0, 0], sizes = [1, 32, 128], strides = [1, 1, 1]} : vector<2x32x128xbf16> to vector<1x32x128xbf16>
    %66 = vector.shape_cast %65 : vector<1x32x128xbf16> to vector<32x128xbf16>
    %67 = tpu.concatenate %64, %66 in 1 : vector<32x128xbf16>, vector<32x128xbf16> -> vector<32x256xbf16>
    %cst_21 = arith.constant dense<0.000000e+00> : vector<32x256xf32>
    %68 = tpu.matmul %67, %18, %cst_21 {dimension_numbers = #tpu.dot_dimension_numbers<[1], [0], [0], [1], [0, 0, 1, 1], [], []>} : vector<32x256xbf16>, vector<256x256xbf16>, vector<32x256xf32> -> vector<32x256xf32>
    %69 = vector.broadcast %20 : vector<1x256xf32> to vector<32x256xf32>
    %70 = arith.addf %68, %69 : vector<32x256xf32>
    %71 = arith.addf %3, %70 : vector<32x256xf32>
    %c0_22 = arith.constant 0 : index
    %c0_23 = arith.constant 0 : index
    %c0_24 = arith.constant 0 : index
    %72 = vector.load %arg18[%c0_22, %c0_23, %c0_24] : memref<1x1x256xf32, #tpu.memory_space<vmem>>, vector<1x1x256xf32>
    %73 = vector.shape_cast %72 : vector<1x1x256xf32> to vector<1x256xf32>
    %c0_25 = arith.constant 0 : index
    %c0_26 = arith.constant 0 : index
    %c0_27 = arith.constant 0 : index
    %74 = vector.load %arg19[%c0_25, %c0_26, %c0_27] : memref<1x1x256xf32, #tpu.memory_space<vmem>>, vector<1x1x256xf32>
    %75 = vector.shape_cast %74 : vector<1x1x256xf32> to vector<1x256xf32>
    %cst_28 = arith.constant dense<0.000000e+00> : vector<32xf32>
    %76 = vector.multi_reduction <add>, %71, %cst_28 [1] : vector<32x256xf32> to vector<32xf32>
    %77 = vector.shape_cast %76 : vector<32xf32> to vector<32x1xf32>
    %cst_29 = arith.constant 2.560000e+02 : f32
    %78 = vector.broadcast %cst_29 : f32 to vector<32x1xf32>
    %79 = arith.divf %77, %78 : vector<32x1xf32>
    %80 = vector.broadcast %79 : vector<32x1xf32> to vector<32x256xf32>
    %81 = arith.subf %71, %80 : vector<32x256xf32>
    %82 = arith.mulf %81, %81 : vector<32x256xf32>
    %cst_30 = arith.constant dense<0.000000e+00> : vector<32xf32>
    %83 = vector.multi_reduction <add>, %82, %cst_30 [1] : vector<32x256xf32> to vector<32xf32>
    %84 = vector.shape_cast %83 : vector<32xf32> to vector<32x1xf32>
    %cst_31 = arith.constant 2.560000e+02 : f32
    %85 = vector.broadcast %cst_31 : f32 to vector<32x1xf32>
    %86 = arith.divf %84, %85 : vector<32x1xf32>
    %cst_32 = arith.constant 9.99999974E-6 : f32
    %87 = vector.broadcast %cst_32 : f32 to vector<32x1xf32>
    %88 = arith.addf %86, %87 : vector<32x1xf32>
    %89 = math.rsqrt %88 : vector<32x1xf32>
    %90 = vector.broadcast %89 : vector<32x1xf32> to vector<32x256xf32>
    %91 = arith.mulf %81, %90 : vector<32x256xf32>
    %92 = vector.broadcast %73 : vector<1x256xf32> to vector<32x256xf32>
    %93 = arith.mulf %91, %92 : vector<32x256xf32>
    %94 = vector.broadcast %75 : vector<1x256xf32> to vector<32x256xf32>
    %95 = arith.addf %93, %94 : vector<32x256xf32>
    %96 = arith.truncf %95 : vector<32x256xf32> to vector<32x256xbf16>
    %c0_33 = arith.constant 0 : index
    %c0_34 = arith.constant 0 : index
    %c0_35 = arith.constant 0 : index
    %97 = vector.load %arg8[%c0_33, %c0_34, %c0_35] : memref<1x256x256xbf16, #tpu.memory_space<vmem>>, vector<1x256x256xbf16>
    %98 = vector.shape_cast %97 : vector<1x256x256xbf16> to vector<256x256xbf16>
    %cst_36 = arith.constant dense<0.000000e+00> : vector<32x256xf32>
    %99 = tpu.matmul %96, %98, %cst_36 {dimension_numbers = #tpu.dot_dimension_numbers<[1], [0], [0], [1], [0, 0, 1, 1], [], []>} : vector<32x256xbf16>, vector<256x256xbf16>, vector<32x256xf32> -> vector<32x256xf32>
    %c0_37 = arith.constant 0 : index
    %c0_38 = arith.constant 0 : index
    %c0_39 = arith.constant 0 : index
    %100 = vector.load %arg9[%c0_37, %c0_38, %c0_39] : memref<1x1x256xf32, #tpu.memory_space<vmem>>, vector<1x1x256xf32>
    %101 = vector.shape_cast %100 : vector<1x1x256xf32> to vector<1x256xf32>
    %102 = vector.broadcast %101 : vector<1x256xf32> to vector<32x256xf32>
    %103 = arith.addf %99, %102 : vector<32x256xf32>
    %c0_40 = arith.constant 0 : index
    %c0_41 = arith.constant 0 : index
    %c0_42 = arith.constant 0 : index
    %104 = vector.load %arg10[%c0_40, %c0_41, %c0_42] : memref<1x256x512xbf16, #tpu.memory_space<vmem>>, vector<1x256x512xbf16>
    %105 = vector.shape_cast %104 : vector<1x256x512xbf16> to vector<256x512xbf16>
    %cst_43 = arith.constant dense<0.000000e+00> : vector<32x512xf32>
    %106 = tpu.matmul %5, %105, %cst_43 {dimension_numbers = #tpu.dot_dimension_numbers<[1], [0], [0], [1], [0, 0, 1, 1], [], []>} : vector<32x256xbf16>, vector<256x512xbf16>, vector<32x512xf32> -> vector<32x512xf32>
    %c0_44 = arith.constant 0 : index
    %c0_45 = arith.constant 0 : index
    %c0_46 = arith.constant 0 : index
    %107 = vector.load %arg11[%c0_44, %c0_45, %c0_46] : memref<1x1x512xf32, #tpu.memory_space<vmem>>, vector<1x1x512xf32>
    %108 = vector.shape_cast %107 : vector<1x1x512xf32> to vector<1x512xf32>
    %109 = vector.broadcast %108 : vector<1x512xf32> to vector<32x512xf32>
    %110 = arith.addf %106, %109 : vector<32x512xf32>
    %111 = vector.extract_strided_slice %110 {offsets = [0, 0], sizes = [32, 256], strides = [1, 1]} : vector<32x512xf32> to vector<32x256xf32>
    %112 = vector.extract_strided_slice %110 {offsets = [0, 256], sizes = [32, 256], strides = [1, 1]} : vector<32x512xf32> to vector<32x256xf32>
    %c0_47 = arith.constant 0 : index
    %c0_48 = arith.constant 0 : index
    %c0_49 = arith.constant 0 : index
    %113 = vector.load %arg12[%c0_47, %c0_48, %c0_49] : memref<1x256x256xbf16, #tpu.memory_space<vmem>>, vector<1x256x256xbf16>
    %114 = vector.shape_cast %113 : vector<1x256x256xbf16> to vector<256x256xbf16>
    %c0_50 = arith.constant 0 : index
    %c0_51 = arith.constant 0 : index
    %c0_52 = arith.constant 0 : index
    %115 = vector.load %arg13[%c0_50, %c0_51, %c0_52] : memref<1x1x256xf32, #tpu.memory_space<vmem>>, vector<1x1x256xf32>
    %116 = vector.shape_cast %115 : vector<1x1x256xf32> to vector<1x256xf32>
    %117 = arith.truncf %103 : vector<32x256xf32> to vector<32x256xbf16>
    %118 = arith.truncf %111 : vector<32x256xf32> to vector<32x256xbf16>
    %119 = arith.truncf %112 : vector<32x256xf32> to vector<32x256xbf16>
    %120 = vector.extract_strided_slice %117 {offsets = [0, 0], sizes = [32, 128], strides = [1, 1]} : vector<32x256xbf16> to vector<32x128xbf16>
    %121 = vector.shape_cast %120 : vector<32x128xbf16> to vector<2x16x128xbf16>
    %122 = vector.extract_strided_slice %117 {offsets = [0, 128], sizes = [32, 128], strides = [1, 1]} : vector<32x256xbf16> to vector<32x128xbf16>
    %123 = vector.shape_cast %122 : vector<32x128xbf16> to vector<2x16x128xbf16>
    %124 = vector.shape_cast %121 : vector<2x16x128xbf16> to vector<1x2x16x128xbf16>
    %125 = vector.shape_cast %123 : vector<2x16x128xbf16> to vector<1x2x16x128xbf16>
    %126 = tpu.concatenate %124, %125 in 0 : vector<1x2x16x128xbf16>, vector<1x2x16x128xbf16> -> vector<2x2x16x128xbf16>
    %127 = vector.shape_cast %126 : vector<2x2x16x128xbf16> to vector<4x16x128xbf16>
    %128 = vector.extract_strided_slice %118 {offsets = [0, 0], sizes = [32, 128], strides = [1, 1]} : vector<32x256xbf16> to vector<32x128xbf16>
    %129 = vector.shape_cast %128 : vector<32x128xbf16> to vector<2x16x128xbf16>
    %130 = vector.extract_strided_slice %118 {offsets = [0, 128], sizes = [32, 128], strides = [1, 1]} : vector<32x256xbf16> to vector<32x128xbf16>
    %131 = vector.shape_cast %130 : vector<32x128xbf16> to vector<2x16x128xbf16>
    %132 = vector.shape_cast %129 : vector<2x16x128xbf16> to vector<1x2x16x128xbf16>
    %133 = vector.shape_cast %131 : vector<2x16x128xbf16> to vector<1x2x16x128xbf16>
    %134 = tpu.concatenate %132, %133 in 0 : vector<1x2x16x128xbf16>, vector<1x2x16x128xbf16> -> vector<2x2x16x128xbf16>
    %135 = vector.shape_cast %134 : vector<2x2x16x128xbf16> to vector<4x16x128xbf16>
    %136 = vector.extract_strided_slice %119 {offsets = [0, 0], sizes = [32, 128], strides = [1, 1]} : vector<32x256xbf16> to vector<32x128xbf16>
    %137 = vector.shape_cast %136 : vector<32x128xbf16> to vector<2x16x128xbf16>
    %138 = vector.extract_strided_slice %119 {offsets = [0, 128], sizes = [32, 128], strides = [1, 1]} : vector<32x256xbf16> to vector<32x128xbf16>
    %139 = vector.shape_cast %138 : vector<32x128xbf16> to vector<2x16x128xbf16>
    %140 = vector.shape_cast %137 : vector<2x16x128xbf16> to vector<1x2x16x128xbf16>
    %141 = vector.shape_cast %139 : vector<2x16x128xbf16> to vector<1x2x16x128xbf16>
    %142 = tpu.concatenate %140, %141 in 0 : vector<1x2x16x128xbf16>, vector<1x2x16x128xbf16> -> vector<2x2x16x128xbf16>
    %143 = vector.shape_cast %142 : vector<2x2x16x128xbf16> to vector<4x16x128xbf16>
    "tpu.trace_start"() <{level = 10 : i32, message = "bqd,bkd->bqk"}> : () -> ()
    %cst_53 = arith.constant dense<0.000000e+00> : vector<4x16x16xf32>
    %144 = tpu.matmul %127, %135, %cst_53 {dimension_numbers = #tpu.dot_dimension_numbers<[2], [2], [1], [1], [0, 0, 0, 1, 1, 1], [0], [0]>} : vector<4x16x128xbf16>, vector<4x16x128xbf16>, vector<4x16x16xf32> -> vector<4x16x16xf32>
    "tpu.trace_stop"() : () -> ()
    %cst_54 = arith.constant dense<0xFF800000> : vector<4x16xf32>
    %145 = vector.multi_reduction <maximumf>, %144, %cst_54 [2] : vector<4x16x16xf32> to vector<4x16xf32>
    %146 = vector.shape_cast %145 : vector<4x16xf32> to vector<4x16x1xf32>
    %147 = vector.broadcast %146 : vector<4x16x1xf32> to vector<4x16x16xf32>
    %148 = arith.subf %144, %147 : vector<4x16x16xf32>
    %149 = math.exp %148 : vector<4x16x16xf32>
    %cst_55 = arith.constant dense<0.000000e+00> : vector<4x16xf32>
    %150 = vector.multi_reduction <add>, %149, %cst_55 [2] : vector<4x16x16xf32> to vector<4x16xf32>
    %151 = vector.shape_cast %150 : vector<4x16xf32> to vector<4x16x1xf32>
    %152 = tpu.reciprocal %151 {approx = true} : vector<4x16x1xf32> -> vector<4x16x1xf32>
    %153 = vector.broadcast %152 : vector<4x16x1xf32> to vector<4x16x16xf32>
    %154 = arith.mulf %149, %153 : vector<4x16x16xf32>
    %155 = arith.truncf %154 : vector<4x16x16xf32> to vector<4x16x16xbf16>
    "tpu.trace_start"() <{level = 10 : i32, message = "bqk,bkd->bqd"}> : () -> ()
    %cst_56 = arith.constant dense<0.000000e+00> : vector<4x16x128xf32>
    %156 = tpu.matmul %155, %143, %cst_56 {dimension_numbers = #tpu.dot_dimension_numbers<[2], [1], [1], [2], [0, 0, 0, 1, 1, 2], [0], [0]>} : vector<4x16x16xbf16>, vector<4x16x128xbf16>, vector<4x16x128xf32> -> vector<4x16x128xf32>
    "tpu.trace_stop"() : () -> ()
    %157 = arith.truncf %156 : vector<4x16x128xf32> to vector<4x16x128xbf16>
    %158 = vector.shape_cast %157 : vector<4x16x128xbf16> to vector<2x32x128xbf16>
    %159 = vector.extract_strided_slice %158 {offsets = [0, 0, 0], sizes = [1, 32, 128], strides = [1, 1, 1]} : vector<2x32x128xbf16> to vector<1x32x128xbf16>
    %160 = vector.shape_cast %159 : vector<1x32x128xbf16> to vector<32x128xbf16>
    %161 = vector.extract_strided_slice %158 {offsets = [1, 0, 0], sizes = [1, 32, 128], strides = [1, 1, 1]} : vector<2x32x128xbf16> to vector<1x32x128xbf16>
    %162 = vector.shape_cast %161 : vector<1x32x128xbf16> to vector<32x128xbf16>
    %163 = tpu.concatenate %160, %162 in 1 : vector<32x128xbf16>, vector<32x128xbf16> -> vector<32x256xbf16>
    %cst_57 = arith.constant dense<0.000000e+00> : vector<32x256xf32>
    %164 = tpu.matmul %163, %114, %cst_57 {dimension_numbers = #tpu.dot_dimension_numbers<[1], [0], [0], [1], [0, 0, 1, 1], [], []>} : vector<32x256xbf16>, vector<256x256xbf16>, vector<32x256xf32> -> vector<32x256xf32>
    %165 = vector.broadcast %116 : vector<1x256xf32> to vector<32x256xf32>
    %166 = arith.addf %164, %165 : vector<32x256xf32>
    %167 = arith.addf %95, %166 : vector<32x256xf32>
    %c0_58 = arith.constant 0 : index
    %c0_59 = arith.constant 0 : index
    %c0_60 = arith.constant 0 : index
    %168 = vector.load %arg20[%c0_58, %c0_59, %c0_60] : memref<1x1x256xf32, #tpu.memory_space<vmem>>, vector<1x1x256xf32>
    %169 = vector.shape_cast %168 : vector<1x1x256xf32> to vector<1x256xf32>
    %c0_61 = arith.constant 0 : index
    %c0_62 = arith.constant 0 : index
    %c0_63 = arith.constant 0 : index
    %170 = vector.load %arg21[%c0_61, %c0_62, %c0_63] : memref<1x1x256xf32, #tpu.memory_space<vmem>>, vector<1x1x256xf32>
    %171 = vector.shape_cast %170 : vector<1x1x256xf32> to vector<1x256xf32>
    %cst_64 = arith.constant dense<0.000000e+00> : vector<32xf32>
    %172 = vector.multi_reduction <add>, %167, %cst_64 [1] : vector<32x256xf32> to vector<32xf32>
    %173 = vector.shape_cast %172 : vector<32xf32> to vector<32x1xf32>
    %cst_65 = arith.constant 2.560000e+02 : f32
    %174 = vector.broadcast %cst_65 : f32 to vector<32x1xf32>
    %175 = arith.divf %173, %174 : vector<32x1xf32>
    %176 = vector.broadcast %175 : vector<32x1xf32> to vector<32x256xf32>
    %177 = arith.subf %167, %176 : vector<32x256xf32>
    %178 = arith.mulf %177, %177 : vector<32x256xf32>
    %cst_66 = arith.constant dense<0.000000e+00> : vector<32xf32>
    %179 = vector.multi_reduction <add>, %178, %cst_66 [1] : vector<32x256xf32> to vector<32xf32>
    %180 = vector.shape_cast %179 : vector<32xf32> to vector<32x1xf32>
    %cst_67 = arith.constant 2.560000e+02 : f32
    %181 = vector.broadcast %cst_67 : f32 to vector<32x1xf32>
    %182 = arith.divf %180, %181 : vector<32x1xf32>
    %cst_68 = arith.constant 9.99999974E-6 : f32
    %183 = vector.broadcast %cst_68 : f32 to vector<32x1xf32>
    %184 = arith.addf %182, %183 : vector<32x1xf32>
    %185 = math.rsqrt %184 : vector<32x1xf32>
    %186 = vector.broadcast %185 : vector<32x1xf32> to vector<32x256xf32>
    %187 = arith.mulf %177, %186 : vector<32x256xf32>
    %188 = vector.broadcast %169 : vector<1x256xf32> to vector<32x256xf32>
    %189 = arith.mulf %187, %188 : vector<32x256xf32>
    %190 = vector.broadcast %171 : vector<1x256xf32> to vector<32x256xf32>
    %191 = arith.addf %189, %190 : vector<32x256xf32>
    %192 = arith.truncf %191 : vector<32x256xf32> to vector<32x256xbf16>
    %c0_69 = arith.constant 0 : index
    %c0_70 = arith.constant 0 : index
    %c0_71 = arith.constant 0 : index
    %193 = vector.load %arg14[%c0_69, %c0_70, %c0_71] : memref<1x256x1024xbf16, #tpu.memory_space<vmem>>, vector<1x256x1024xbf16>
    %194 = vector.shape_cast %193 : vector<1x256x1024xbf16> to vector<256x1024xbf16>
    %cst_72 = arith.constant dense<0.000000e+00> : vector<32x1024xf32>
    %195 = tpu.matmul %192, %194, %cst_72 {dimension_numbers = #tpu.dot_dimension_numbers<[1], [0], [0], [1], [0, 0, 1, 1], [], []>} : vector<32x256xbf16>, vector<256x1024xbf16>, vector<32x1024xf32> -> vector<32x1024xf32>
    %c0_73 = arith.constant 0 : index
    %c0_74 = arith.constant 0 : index
    %c0_75 = arith.constant 0 : index
    %196 = vector.load %arg15[%c0_73, %c0_74, %c0_75] : memref<1x1x1024xf32, #tpu.memory_space<vmem>>, vector<1x1x1024xf32>
    %197 = vector.shape_cast %196 : vector<1x1x1024xf32> to vector<1x1024xf32>
    %198 = vector.broadcast %197 : vector<1x1024xf32> to vector<32x1024xf32>
    %199 = arith.addf %195, %198 : vector<32x1024xf32>
    %cst_76 = arith.constant 0.000000e+00 : f32
    %200 = vector.broadcast %cst_76 : f32 to vector<32x1024xf32>
    %201 = arith.maximumf %199, %200 : vector<32x1024xf32>
    %202 = arith.truncf %201 : vector<32x1024xf32> to vector<32x1024xbf16>
    %c0_77 = arith.constant 0 : index
    %c0_78 = arith.constant 0 : index
    %c0_79 = arith.constant 0 : index
    %203 = vector.load %arg16[%c0_77, %c0_78, %c0_79] : memref<1x1024x256xbf16, #tpu.memory_space<vmem>>, vector<1x1024x256xbf16>
    %204 = vector.shape_cast %203 : vector<1x1024x256xbf16> to vector<1024x256xbf16>
    %cst_80 = arith.constant dense<0.000000e+00> : vector<32x256xf32>
    %205 = tpu.matmul %202, %204, %cst_80 {dimension_numbers = #tpu.dot_dimension_numbers<[1], [0], [0], [1], [0, 0, 1, 1], [], []>} : vector<32x1024xbf16>, vector<1024x256xbf16>, vector<32x256xf32> -> vector<32x256xf32>
    %c0_81 = arith.constant 0 : index
    %c0_82 = arith.constant 0 : index
    %c0_83 = arith.constant 0 : index
    %206 = vector.load %arg17[%c0_81, %c0_82, %c0_83] : memref<1x1x256xf32, #tpu.memory_space<vmem>>, vector<1x1x256xf32>
    %207 = vector.shape_cast %206 : vector<1x1x256xf32> to vector<1x256xf32>
    %208 = vector.broadcast %207 : vector<1x256xf32> to vector<32x256xf32>
    %209 = arith.addf %205, %208 : vector<32x256xf32>
    %210 = arith.addf %191, %209 : vector<32x256xf32>
    %c0_84 = arith.constant 0 : index
    %c0_85 = arith.constant 0 : index
    %c0_86 = arith.constant 0 : index
    %211 = vector.load %arg22[%c0_84, %c0_85, %c0_86] : memref<1x1x256xf32, #tpu.memory_space<vmem>>, vector<1x1x256xf32>
    %212 = vector.shape_cast %211 : vector<1x1x256xf32> to vector<1x256xf32>
    %c0_87 = arith.constant 0 : index
    %c0_88 = arith.constant 0 : index
    %c0_89 = arith.constant 0 : index
    %213 = vector.load %arg23[%c0_87, %c0_88, %c0_89] : memref<1x1x256xf32, #tpu.memory_space<vmem>>, vector<1x1x256xf32>
    %214 = vector.shape_cast %213 : vector<1x1x256xf32> to vector<1x256xf32>
    %cst_90 = arith.constant dense<0.000000e+00> : vector<32xf32>
    %215 = vector.multi_reduction <add>, %210, %cst_90 [1] : vector<32x256xf32> to vector<32xf32>
    %216 = vector.shape_cast %215 : vector<32xf32> to vector<32x1xf32>
    %cst_91 = arith.constant 2.560000e+02 : f32
    %217 = vector.broadcast %cst_91 : f32 to vector<32x1xf32>
    %218 = arith.divf %216, %217 : vector<32x1xf32>
    %219 = vector.broadcast %218 : vector<32x1xf32> to vector<32x256xf32>
    %220 = arith.subf %210, %219 : vector<32x256xf32>
    %221 = arith.mulf %220, %220 : vector<32x256xf32>
    %cst_92 = arith.constant dense<0.000000e+00> : vector<32xf32>
    %222 = vector.multi_reduction <add>, %221, %cst_92 [1] : vector<32x256xf32> to vector<32xf32>
    %223 = vector.shape_cast %222 : vector<32xf32> to vector<32x1xf32>
    %cst_93 = arith.constant 2.560000e+02 : f32
    %224 = vector.broadcast %cst_93 : f32 to vector<32x1xf32>
    %225 = arith.divf %223, %224 : vector<32x1xf32>
    %cst_94 = arith.constant 9.99999974E-6 : f32
    %226 = vector.broadcast %cst_94 : f32 to vector<32x1xf32>
    %227 = arith.addf %225, %226 : vector<32x1xf32>
    %228 = math.rsqrt %227 : vector<32x1xf32>
    %229 = vector.broadcast %228 : vector<32x1xf32> to vector<32x256xf32>
    %230 = arith.mulf %220, %229 : vector<32x256xf32>
    %231 = vector.broadcast %212 : vector<1x256xf32> to vector<32x256xf32>
    %232 = arith.mulf %230, %231 : vector<32x256xf32>
    %233 = vector.broadcast %214 : vector<1x256xf32> to vector<32x256xf32>
    %234 = arith.addf %232, %233 : vector<32x256xf32>
    %c0_95 = arith.constant 0 : index
    %c0_96 = arith.constant 0 : index
    %235 = vector.load %arg25[%c0_95, %c0_96] : memref<32x256xf32, #tpu.memory_space<vmem>>, vector<32x256xf32>
    tpu.vector_store %arg25[%c0_95, %c0_96], %234 {strides = array<i32>} : memref<32x256xf32, #tpu.memory_space<vmem>>, vector<32x256xf32>,
    %c1_i32 = arith.constant 1 : i32
    %236 = arith.cmpi eq, %arg1, %c1_i32 : i32
    %237 = arith.extui %236 : i1 to i32
    %c0_i32_97 = arith.constant 0 : i32
    %238 = arith.cmpi ne, %237, %c0_i32_97 : i32
    scf.if %238 {
      %239 = vector.shape_cast %234 : vector<32x256xf32> to vector<2x16x256xf32>
      %c0_98 = arith.constant 0 : index
      %c0_99 = arith.constant 0 : index
      %c0_100 = arith.constant 0 : index
      %240 = vector.load %arg24[%c0_98, %c0_99, %c0_100] : memref<2x16x256xf32, #tpu.memory_space<vmem>>, vector<2x16x256xf32>
      tpu.vector_store %arg24[%c0_98, %c0_99, %c0_100], %239 {strides = array<i32>} : memref<2x16x256xf32, #tpu.memory_space<vmem>>, vector<2x16x256xf32>,
    } else {
    }
    return
  }
  func.func @transform_0(%arg0: i32, %arg1: i32) -> (i32, i32, i32) {
    %c0_i32 = arith.constant 0 : i32
    %c0_i32_0 = arith.constant 0 : i32
    %c0_i32_1 = arith.constant 0 : i32
    return %arg0, %c0_i32, %c0_i32_0 : i32, i32, i32
  }
  func.func @transform_1(%arg0: i32, %arg1: i32) -> (i32, i32, i32) {
    %c0_i32 = arith.constant 0 : i32
    %c0_i32_0 = arith.constant 0 : i32
    %c0_i32_1 = arith.constant 0 : i32
    return %arg0, %c0_i32, %c0_i32_0 : i32, i32, i32
  }
  func.func @transform_2(%arg0: i32, %arg1: i32) -> (i32, i32, i32) {
    %c0_i32 = arith.constant 0 : i32
    %c0_i32_0 = arith.constant 0 : i32
    %c0_i32_1 = arith.constant 0 : i32
    return %arg1, %c0_i32, %c0_i32_0 : i32, i32, i32
  }
  func.func @transform_3(%arg0: i32, %arg1: i32) -> (i32, i32, i32) {
    %c0_i32 = arith.constant 0 : i32
    %c0_i32_0 = arith.constant 0 : i32
    %c0_i32_1 = arith.constant 0 : i32
    return %arg1, %c0_i32, %c0_i32_0 : i32, i32, i32
  }
  func.func @transform_4(%arg0: i32, %arg1: i32) -> (i32, i32, i32) {
    %c0_i32 = arith.constant 0 : i32
    %c0_i32_0 = arith.constant 0 : i32
    %c0_i32_1 = arith.constant 0 : i32
    return %arg1, %c0_i32, %c0_i32_0 : i32, i32, i32
  }
  func.func @transform_5(%arg0: i32, %arg1: i32) -> (i32, i32, i32) {
    %c0_i32 = arith.constant 0 : i32
    %c0_i32_0 = arith.constant 0 : i32
    %c0_i32_1 = arith.constant 0 : i32
    return %arg1, %c0_i32, %c0_i32_0 : i32, i32, i32
  }
  func.func @transform_6(%arg0: i32, %arg1: i32) -> (i32, i32, i32) {
    %c0_i32 = arith.constant 0 : i32
    %c0_i32_0 = arith.constant 0 : i32
    %c0_i32_1 = arith.constant 0 : i32
    return %arg1, %c0_i32, %c0_i32_0 : i32, i32, i32
  }
  func.func @transform_7(%arg0: i32, %arg1: i32) -> (i32, i32, i32) {
    %c0_i32 = arith.constant 0 : i32
    %c0_i32_0 = arith.constant 0 : i32
    %c0_i32_1 = arith.constant 0 : i32
    return %arg1, %c0_i32, %c0_i32_0 : i32, i32, i32
  }
  func.func @transform_8(%arg0: i32, %arg1: i32) -> (i32, i32, i32) {
    %c0_i32 = arith.constant 0 : i32
    %c0_i32_0 = arith.constant 0 : i32
    %c0_i32_1 = arith.constant 0 : i32
    return %arg1, %c0_i32, %c0_i32_0 : i32, i32, i32
  }
  func.func @transform_9(%arg0: i32, %arg1: i32) -> (i32, i32, i32) {
    %c0_i32 = arith.constant 0 : i32
    %c0_i32_0 = arith.constant 0 : i32
    %c0_i32_1 = arith.constant 0 : i32
    return %arg1, %c0_i32, %c0_i32_0 : i32, i32, i32
  }
  func.func @transform_10(%arg0: i32, %arg1: i32) -> (i32, i32, i32) {
    %c0_i32 = arith.constant 0 : i32
    %c0_i32_0 = arith.constant 0 : i32
    %c0_i32_1 = arith.constant 0 : i32
    return %arg1, %c0_i32, %c0_i32_0 : i32, i32, i32
  }
  func.func @transform_11(%arg0: i32, %arg1: i32) -> (i32, i32, i32) {
    %c0_i32 = arith.constant 0 : i32
    %c0_i32_0 = arith.constant 0 : i32
    %c0_i32_1 = arith.constant 0 : i32
    return %arg1, %c0_i32, %c0_i32_0 : i32, i32, i32
  }
  func.func @transform_12(%arg0: i32, %arg1: i32) -> (i32, i32, i32) {
    %c0_i32 = arith.constant 0 : i32
    %c0_i32_0 = arith.constant 0 : i32
    %c0_i32_1 = arith.constant 0 : i32
    return %arg1, %c0_i32, %c0_i32_0 : i32, i32, i32
  }
  func.func @transform_13(%arg0: i32, %arg1: i32) -> (i32, i32, i32) {
    %c0_i32 = arith.constant 0 : i32
    %c0_i32_0 = arith.constant 0 : i32
    %c0_i32_1 = arith.constant 0 : i32
    return %arg1, %c0_i32, %c0_i32_0 : i32, i32, i32
  }
  func.func @transform_14(%arg0: i32, %arg1: i32) -> (i32, i32, i32) {
    %c0_i32 = arith.constant 0 : i32
    %c0_i32_0 = arith.constant 0 : i32
    %c0_i32_1 = arith.constant 0 : i32
    return %arg1, %c0_i32, %c0_i32_0 : i32, i32, i32
  }
  func.func @transform_15(%arg0: i32, %arg1: i32) -> (i32, i32, i32) {
    %c0_i32 = arith.constant 0 : i32
    %c0_i32_0 = arith.constant 0 : i32
    %c0_i32_1 = arith.constant 0 : i32
    return %arg1, %c0_i32, %c0_i32_0 : i32, i32, i32
  }
  func.func @transform_16(%arg0: i32, %arg1: i32) -> (i32, i32, i32) {
    %c0_i32 = arith.constant 0 : i32
    %c0_i32_0 = arith.constant 0 : i32
    %c0_i32_1 = arith.constant 0 : i32
    return %arg1, %c0_i32, %c0_i32_0 : i32, i32, i32
  }
  func.func @transform_17(%arg0: i32, %arg1: i32) -> (i32, i32, i32) {
    %c0_i32 = arith.constant 0 : i32
    %c0_i32_0 = arith.constant 0 : i32
    %c0_i32_1 = arith.constant 0 : i32
    return %arg1, %c0_i32, %c0_i32_0 : i32, i32, i32
  }
  func.func @transform_18(%arg0: i32, %arg1: i32) -> (i32, i32, i32) {
    %c0_i32 = arith.constant 0 : i32
    %c0_i32_0 = arith.constant 0 : i32
    %c0_i32_1 = arith.constant 0 : i32
    return %arg1, %c0_i32, %c0_i32_0 : i32, i32, i32
  }
  func.func @transform_19(%arg0: i32, %arg1: i32) -> (i32, i32, i32) {
    %c0_i32 = arith.constant 0 : i32
    %c0_i32_0 = arith.constant 0 : i32
    %c0_i32_1 = arith.constant 0 : i32
    return %arg1, %c0_i32, %c0_i32_0 : i32, i32, i32
  }
  func.func @transform_20(%arg0: i32, %arg1: i32) -> (i32, i32, i32) {
    %c0_i32 = arith.constant 0 : i32
    %c0_i32_0 = arith.constant 0 : i32
    %c0_i32_1 = arith.constant 0 : i32
    return %arg1, %c0_i32, %c0_i32_0 : i32, i32, i32
  }
  func.func @transform_21(%arg0: i32, %arg1: i32) -> (i32, i32, i32) {
    %c0_i32 = arith.constant 0 : i32
    %c0_i32_0 = arith.constant 0 : i32
    %c0_i32_1 = arith.constant 0 : i32
    return %arg1, %c0_i32, %c0_i32_0 : i32, i32, i32
  }
  func.func @transform_22(%arg0: i32, %arg1: i32) -> (i32, i32, i32) {
    %c0_i32 = arith.constant 0 : i32
    %c0_i32_0 = arith.constant 0 : i32
    %c0_i32_1 = arith.constant 0 : i32
    return %arg0, %c0_i32, %c0_i32_0 : i32, i32, i32
  }
}

</mosaic_0001>

<llo_original>
// kernel: tpu_custom_call.1
$region0: #{tpu_custom_call.1}
  #allocation0 [shape = 'u32[]', space=smem, size = 0x4, offset = 0x4, fixed_abs, tag = 'smem constant byte address 0x4 - core index']
  #allocation1 [shape = 'u32[144,128]{1,0:T(1,128)}', space=vmem, size = 0x12000, scoped, tag = 'internal scratch']
  #allocation2 [shape = 'f32[32,256]{1,0:T(8,128)}', space=vmem, size = 0x8000, scoped, tag = 'scratch operand']
  %s0 = inlined_call_operand.hbm [shape: bf16[4,16,256], index: 0, kind: input, shape index: {}]
  %s1 = inlined_call_operand.hbm [shape: bf16[4,16,256], index: 1, kind: input, shape index: {}]
  %s2 = inlined_call_operand.hbm [shape: bf16[2,256,768], index: 2, kind: input, shape index: {}]
  %s3 = inlined_call_operand.hbm [shape: f32[2,1,768], index: 3, kind: input, shape index: {}]
  %s4 = inlined_call_operand.hbm [shape: bf16[2,256,256], index: 4, kind: input, shape index: {}]
  %s5 = inlined_call_operand.vmem [shape: f32[2,1,256], index: 5, kind: input, shape index: {}]
  %s6 = inlined_call_operand.hbm [shape: bf16[2,256,256], index: 6, kind: input, shape index: {}]
  %s7 = inlined_call_operand.hbm [shape: f32[2,1,256], index: 7, kind: input, shape index: {}]
  %s8 = inlined_call_operand.hbm [shape: bf16[2,256,512], index: 8, kind: input, shape index: {}]
  %s9 = inlined_call_operand.hbm [shape: f32[2,1,512], index: 9, kind: input, shape index: {}]
  %s10 = inlined_call_operand.hbm [shape: bf16[2,256,256], index: 10, kind: input, shape index: {}]
  %s11 = inlined_call_operand.hbm [shape: f32[2,1,256], index: 11, kind: input, shape index: {}]
  %s12 = inlined_call_operand.hbm [shape: bf16[2,256,1024], index: 12, kind: input, shape index: {}]
  %s13 = inlined_call_operand.vmem [shape: f32[2,1,1024], index: 13, kind: input, shape index: {}]
  %s14 = inlined_call_operand.hbm [shape: bf16[2,1024,256], index: 14, kind: input, shape index: {}]
  %s15 = inlined_call_operand.vmem [shape: f32[2,1,256], index: 15, kind: input, shape index: {}]
  %s16 = inlined_call_operand.vmem [shape: f32[2,1,256], index: 16, kind: input, shape index: {}]
  %s17 = inlined_call_operand.hbm [shape: f32[2,1,256], index: 17, kind: input, shape index: {}]
  %s18 = inlined_call_operand.vmem [shape: f32[2,1,256], index: 18, kind: input, shape index: {}]
  %s19 = inlined_call_operand.hbm [shape: f32[2,1,256], index: 19, kind: input, shape index: {}]
  %s20 = inlined_call_operand.vmem [shape: f32[2,1,256], index: 20, kind: input, shape index: {}]
  %s21 = inlined_call_operand.hbm [shape: f32[2,1,256], index: 21, kind: input, shape index: {}]
  %s22 = inlined_call_operand.hbm [shape: f32[4,16,256], index: 22, kind: output, shape index: {}]
  %s23 = sld [smem:[#allocation0]]
  $region193: #{tpu_custom_call.1} parent=0
    _
  %s25 = ssub.s32 1, %s23
  %s26 = scalar_select 0, %s25, %s23
  $region1: #{tpu_custom_call.1} parent=0
    #allocation3 [shape = 'u8[32768]{0}', space=vmem, size = 0x8000, scoped, tag = 'input window, operand 0']
    #allocation4 [shape = 's32[2]{0}', space=sflag, size = 0x8, scoped, tag = 'scoped memory for tpu_custom_call.1']
    #allocation5 [shape = 's32[2]{0}', space=sflag, size = 0x8, scoped, tag = 'scoped memory for tpu_custom_call.1']
    #allocation6 [shape = 'u8[32768]{0}', space=vmem, size = 0x8000, scoped, tag = 'input window, operand 1']
    #allocation7 [shape = 's32[2]{0}', space=sflag, size = 0x8, scoped, tag = 'scoped memory for tpu_custom_call.1']
    #allocation8 [shape = 'u8[786432]{0}', space=vmem, size = 0xc0000, scoped, tag = 'input window, operand 2']
    #allocation9 [shape = 'u8[6144]{0}', space=vmem, size = 0x1800, scoped, tag = 'input window, operand 3']
    #allocation10 [shape = 's32[2]{0}', space=sflag, size = 0x8, scoped, tag = 'scoped memory for tpu_custom_call.1']
    #allocation11 [shape = 'u8[262144]{0}', space=vmem, size = 0x40000, scoped, tag = 'input window, operand 4']
    #allocation12 [shape = 'u8[262144]{0}', space=vmem, size = 0x40000, scoped, tag = 'input window, operand 6']
    #allocation13 [shape = 's32[2]{0}', space=sflag, size = 0x8, scoped, tag = 'scoped memory for tpu_custom_call.1']
    #allocation14 [shape = 'u8[2048]{0}', space=vmem, size = 0x800, scoped, tag = 'input window, operand 7']
    #allocation15 [shape = 'u8[524288]{0}', space=vmem, size = 0x80000, scoped, tag = 'input window, operand 8']
    #allocation16 [shape = 's32[2]{0}', space=sflag, size = 0x8, scoped, tag = 'scoped memory for tpu_custom_call.1']
    #allocation17 [shape = 'u8[4096]{0}', space=vmem, size = 0x1000, scoped, tag = 'input window, operand 9']
    #allocation18 [shape = 'u8[262144]{0}', space=vmem, size = 0x40000, scoped, tag = 'input window, operand 10']
    #allocation19 [shape = 's32[2]{0}', space=sflag, size = 0x8, scoped, tag = 'scoped memory for tpu_custom_call.1']
    #allocation20 [shape = 'u8[2048]{0}', space=vmem, size = 0x800, scoped, tag = 'input window, operand 11']
    #allocation21 [shape = 'u8[1048576]{0}', space=vmem, size = 0x100000, scoped, tag = 'input window, operand 12']
    #allocation22 [shape = 's32[2]{0}', space=sflag, size = 0x8, scoped, tag = 'scoped memory for tpu_custom_call.1']
    #allocation23 [shape = 'u8[1048576]{0}', space=vmem, size = 0x100000, scoped, tag = 'input window, operand 14']
    #allocation24 [shape = 'u8[2048]{0}', space=vmem, size = 0x800, scoped, tag = 'input window, operand 17']
    #allocation25 [shape = 's32[2]{0}', space=sflag, size = 0x8, scoped, tag = 'scoped memory for tpu_custom_call.1']
    #allocation26 [shape = 'u8[2048]{0}', space=vmem, size = 0x800, scoped, tag = 'input window, operand 19']
    #allocation27 [shape = 'u8[2048]{0}', space=vmem, size = 0x800, scoped, tag = 'input window, operand 21']
    #allocation28 [shape = 's32[2]{0}', space=sflag, size = 0x8, scoped, tag = 'scoped memory for tpu_custom_call.1']
    #allocation29 [shape = 'u8[65536]{0}', space=vmem, size = 0x10000, scoped, tag = 'output window, operand 0']
    %27 = vsyncpa [#allocation4], 0
    %s28 = scalar_lea.sflag [#allocation4], 1
    %29 = vsyncpa %s28, 0
    %30 = vsyncpa [#allocation7], 0
    %s31 = scalar_lea.sflag [#allocation7], 1
    %32 = vsyncpa %s31, 0
    %33 = vsyncpa [#allocation10], 0
    %s34 = scalar_lea.sflag [#allocation10], 1
    %35 = vsyncpa %s34, 0
    %36 = vsyncpa [#allocation13], 0
    %s37 = scalar_lea.sflag [#allocation13], 1
    %38 = vsyncpa %s37, 0
    %39 = vsyncpa [#allocation16], 0
    %s40 = scalar_lea.sflag [#allocation16], 1
    %41 = vsyncpa %s40, 0
    %42 = vsyncpa [#allocation19], 0
    %s43 = scalar_lea.sflag [#allocation19], 1
    %44 = vsyncpa %s43, 0
    %45 = vsyncpa [#allocation22], 0
    %s46 = scalar_lea.sflag [#allocation22], 1
    %47 = vsyncpa %s46, 0
    %48 = vsyncpa [#allocation25], 0
    %s49 = scalar_lea.sflag [#allocation25], 1
    %50 = vsyncpa %s49, 0
    %51 = vsyncpa [#allocation28], 0
    %s52 = scalar_lea.sflag [#allocation28], 1
    %53 = vsyncpa %s52, 0
    %54 = vsyncpa [#allocation5], 0
    %s55 = scalar_lea.sflag [#allocation5], 1
    %56 = vsyncpa %s55, 0
    loop: start=0, step=1, limit=6
    $region2: #{tpu_custom_call.1} parent=1 // loop_pre_header
      _
    $region3: #{tpu_custom_call.1} parent=1 // loop_header
      %s58 = sphi 0, %s62
      %p59 = scmp.ge.s32.totalorder %s58, 6
      %s65 = sphi 0, %s77
      %s66 = sphi 0, %s73
      %s67 = sphi 0, %s65
      %s68 = sphi 0, %s66
      %s69 = sphi 0, %s67
      %s70 = sphi 0, %s68
      %s80 = sphi 0, %s82
      %s83 = sphi 0, %s80
      %s84 = sphi 0, %s83
      %s100 = sphi 0, %s84
      %s106 = sphi 0, %s108
      %s109 = sphi 0, %s106
      %s110 = sphi 0, %s109
      %s126 = sphi 0, %s110
      %s132 = sphi 0, %s134
      %s135 = sphi 0, %s132
      %s136 = sphi 0, %s135
      %s152 = sphi 0, %s136
      %s158 = sphi 0, %s160
      %s161 = sphi 0, %s158
      %s162 = sphi 0, %s161
      %s178 = sphi 0, %s162
      %s184 = sphi 0, %s186
      %s187 = sphi 0, %s184
      %s188 = sphi 0, %s187
      %s204 = sphi 0, %s188
      %s210 = sphi 0, %s212
      %s213 = sphi 0, %s210
      %s214 = sphi 0, %s213
      %s230 = sphi 0, %s214
      %s236 = sphi 0, %s238
      %s239 = sphi 0, %s236
      %s240 = sphi 0, %s239
      %s256 = sphi 0, %s240
      %s262 = sphi 0, %s264
      %s265 = sphi 0, %s262
      %s266 = sphi 0, %s265
      %s282 = sphi 0, %s266
      %s288 = sphi 0, %s290
      %s291 = sphi 0, %s288
      %s292 = sphi 0, %s291
      %s308 = sphi 0, %s292
      %s314 = sphi 0, %s316
      %s317 = sphi 0, %s314
      %s318 = sphi 0, %s317
      %s334 = sphi 0, %s318
      %s340 = sphi 0, %s342
      %s343 = sphi 0, %s340
      %s344 = sphi 0, %s343
      %s360 = sphi 0, %s344
      %s366 = sphi 0, %s368
      %s369 = sphi 0, %s366
      %s370 = sphi 0, %s369
      %s386 = sphi 0, %s370
      %s392 = sphi 0, %s394
      %s395 = sphi 0, %s392
      %s396 = sphi 0, %s395
      %s412 = sphi 0, %s396
      %s418 = sphi 0, %s420
      %s421 = sphi 0, %s418
      %s422 = sphi 0, %s421
      %s438 = sphi 0, %s422
      %s444 = sphi 0, %s446
      %s447 = sphi 0, %s444
      %s448 = sphi 0, %s447
      %s464 = sphi 0, %s448
      %s470 = sphi 0, %s472
      %s473 = sphi 0, %s470
      %s474 = sphi 0, %s473
      %s490 = sphi 0, %s474
      %s496 = sphi 0, %s498
      %s499 = sphi 0, %s496
      %s500 = sphi 0, %s499
      %s516 = sphi 0, %s500
      %s522 = sphi 0, %s524
      %s525 = sphi 0, %s522
      %s526 = sphi 0, %s525
      %s542 = sphi 0, %s526
      %s548 = sphi 0, %s550
      %s551 = sphi 0, %s548
      %s552 = sphi 0, %s551
      %s568 = sphi 0, %s552
      %s574 = sphi 0, %s576
      %s577 = sphi 0, %s574
      %s578 = sphi 0, %s577
      %s594 = sphi 0, %s578
      %s600 = sphi 0, %s602
      %s603 = sphi 0, %s600
      %s604 = sphi 0, %s603
      %s620 = sphi 0, %s604
      %s626 = sphi 0, %s628
      %s629 = sphi 0, %s626
      %s630 = sphi 0, %s629
      %s646 = sphi 0, %s630
      %s652 = sphi 0, %s654
      %s655 = sphi 0, %s652
      %s656 = sphi 0, %s655
      %s672 = sphi 0, %s656
    $region4: #{tpu_custom_call.1} parent=1 // loop_header_branch
      %61 = sbr.rel (%p59) target = $region8
    $region5: #{tpu_custom_call.1} parent=1 // loop_body
      %s63 = ssub.s32 %s58, 1
      %s64 = ssub.s32 %s58, 2
      %s71 = sadd.s32 1, %s66
      %p72 = scmp.ge.s32.totalorder %s71, 2
      %s73 = scalar_select %p72, 0, %s71
      %s74 = sadd.s32 1, %s65
      %s75 = scalar_select %p72, %s74, %s65
      %p76 = scmp.ge.s32.totalorder %s75, 2
      %s77 = scalar_select %p76, 0, %s75
      %s78 = ssub.s32 %s65, %s77
      %p79 = scmp.eq.s32.totalorder %s78, 0
      %s81 = sadd.s32 %s80, 1
      %s82 = scalar_select %p79, %s80, %s81
      %p85 = pneg %p79
      %p86 = scmp.eq.s32.totalorder %s58, 3
      %p87 = por %p85, %p86
      %p88 = scmp.ne.s32.totalorder %s80, %s83
      %p89 = scmp.eq.s32.totalorder %s58, 0
      %p90 = por %p88, %p89
      %p91 = scmp.ne.s32.totalorder %s80, %s83
      %p92 = scmp.eq.s32.totalorder %s63, 3
      %p93 = por %p91, %p92
      %p94 = scmp.ne.s32.totalorder %s83, %s84
      %p95 = scmp.eq.s32.totalorder %s63, 0
      %p96 = por %p94, %p95
      %p97 = scmp.ne.s32.totalorder %s83, %s84
      %p98 = scmp.eq.s32.totalorder %s64, 3
      %p99 = por %p97, %p98
      %p101 = scmp.ne.s32.totalorder %s84, %s100
      %p102 = scmp.eq.s32.totalorder %s64, 0
      %p103 = por %p101, %p102
      %s104 = ssub.s32 %s65, %s77
      %p105 = scmp.eq.s32.totalorder %s104, 0
      %s107 = sadd.s32 %s106, 1
      %s108 = scalar_select %p105, %s106, %s107
      %p111 = pneg %p105
      %p112 = scmp.eq.s32.totalorder %s58, 3
      %p113 = por %p111, %p112
      %p114 = scmp.ne.s32.totalorder %s106, %s109
      %p115 = scmp.eq.s32.totalorder %s58, 0
      %p116 = por %p114, %p115
      %p117 = scmp.ne.s32.totalorder %s106, %s109
      %p118 = scmp.eq.s32.totalorder %s63, 3
      %p119 = por %p117, %p118
      %p120 = scmp.ne.s32.totalorder %s109, %s110
      %p121 = scmp.eq.s32.totalorder %s63, 0
      %p122 = por %p120, %p121
      %p123 = scmp.ne.s32.totalorder %s109, %s110
      %p124 = scmp.eq.s32.totalorder %s64, 3
      %p125 = por %p123, %p124
      %p127 = scmp.ne.s32.totalorder %s110, %s126
      %p128 = scmp.eq.s32.totalorder %s64, 0
      %p129 = por %p127, %p128
      %s130 = ssub.s32 %s66, %s73
      %p131 = scmp.eq.s32.totalorder %s130, 0
      %s133 = sadd.s32 %s132, 1
      %s134 = scalar_select %p131, %s132, %s133
      %p137 = pneg %p131
      %p138 = scmp.eq.s32.totalorder %s58, 3
      %p139 = por %p137, %p138
      %p140 = scmp.ne.s32.totalorder %s132, %s135
      %p141 = scmp.eq.s32.totalorder %s58, 0
      %p142 = por %p140, %p141
      %p143 = scmp.ne.s32.totalorder %s132, %s135
      %p144 = scmp.eq.s32.totalorder %s63, 3
      %p145 = por %p143, %p144
      %p146 = scmp.ne.s32.totalorder %s135, %s136
      %p147 = scmp.eq.s32.totalorder %s63, 0
      %p148 = por %p146, %p147
      %p149 = scmp.ne.s32.totalorder %s135, %s136
      %p150 = scmp.eq.s32.totalorder %s64, 3
      %p151 = por %p149, %p150
      %p153 = scmp.ne.s32.totalorder %s136, %s152
      %p154 = scmp.eq.s32.totalorder %s64, 0
      %p155 = por %p153, %p154
      %s156 = ssub.s32 %s66, %s73
      %p157 = scmp.eq.s32.totalorder %s156, 0
      %s159 = sadd.s32 %s158, 1
      %s160 = scalar_select %p157, %s158, %s159
      %p163 = pneg %p157
      %p164 = scmp.eq.s32.totalorder %s58, 3
      %p165 = por %p163, %p164
      %p166 = scmp.ne.s32.totalorder %s158, %s161
      %p167 = scmp.eq.s32.totalorder %s58, 0
      %p168 = por %p166, %p167
      %p169 = scmp.ne.s32.totalorder %s158, %s161
      %p170 = scmp.eq.s32.totalorder %s63, 3
      %p171 = por %p169, %p170
      %p172 = scmp.ne.s32.totalorder %s161, %s162
      %p173 = scmp.eq.s32.totalorder %s63, 0
      %p174 = por %p172, %p173
      %p175 = scmp.ne.s32.totalorder %s161, %s162
      %p176 = scmp.eq.s32.totalorder %s64, 3
      %p177 = por %p175, %p176
      %p179 = scmp.ne.s32.totalorder %s162, %s178
      %p180 = scmp.eq.s32.totalorder %s64, 0
      %p181 = por %p179, %p180
      %s182 = ssub.s32 %s66, %s73
      %p183 = scmp.eq.s32.totalorder %s182, 0
      %s185 = sadd.s32 %s184, 1
      %s186 = scalar_select %p183, %s184, %s185
      %p189 = pneg %p183
      %p190 = scmp.eq.s32.totalorder %s58, 3
      %p191 = por %p189, %p190
      %p192 = scmp.ne.s32.totalorder %s184, %s187
      %p193 = scmp.eq.s32.totalorder %s58, 0
      %p194 = por %p192, %p193
      %p195 = scmp.ne.s32.totalorder %s184, %s187
      %p196 = scmp.eq.s32.totalorder %s63, 3
      %p197 = por %p195, %p196
      %p198 = scmp.ne.s32.totalorder %s187, %s188
      %p199 = scmp.eq.s32.totalorder %s63, 0
      %p200 = por %p198, %p199
      %p201 = scmp.ne.s32.totalorder %s187, %s188
      %p202 = scmp.eq.s32.totalorder %s64, 3
      %p203 = por %p201, %p202
      %p205 = scmp.ne.s32.totalorder %s188, %s204
      %p206 = scmp.eq.s32.totalorder %s64, 0
      %p207 = por %p205, %p206
      %s208 = ssub.s32 %s66, %s73
      %p209 = scmp.eq.s32.totalorder %s208, 0
      %s211 = sadd.s32 %s210, 1
      %s212 = scalar_select %p209, %s210, %s211
      %p215 = pneg %p209
      %p216 = scmp.eq.s32.totalorder %s58, 3
      %p217 = por %p215, %p216
      %p218 = scmp.ne.s32.totalorder %s210, %s213
      %p219 = scmp.eq.s32.totalorder %s58, 0
      %p220 = por %p218, %p219
      %p221 = scmp.ne.s32.totalorder %s210, %s213
      %p222 = scmp.eq.s32.totalorder %s63, 3
      %p223 = por %p221, %p222
      %p224 = scmp.ne.s32.totalorder %s213, %s214
      %p225 = scmp.eq.s32.totalorder %s63, 0
      %p226 = por %p224, %p225
      %p227 = scmp.ne.s32.totalorder %s213, %s214
      %p228 = scmp.eq.s32.totalorder %s64, 3
      %p229 = por %p227, %p228
      %p231 = scmp.ne.s32.totalorder %s214, %s230
      %p232 = scmp.eq.s32.totalorder %s64, 0
      %p233 = por %p231, %p232
      %s234 = ssub.s32 %s66, %s73
      %p235 = scmp.eq.s32.totalorder %s234, 0
      %s237 = sadd.s32 %s236, 1
      %s238 = scalar_select %p235, %s236, %s237
      %p241 = pneg %p235
      %p242 = scmp.eq.s32.totalorder %s58, 3
      %p243 = por %p241, %p242
      %p244 = scmp.ne.s32.totalorder %s236, %s239
      %p245 = scmp.eq.s32.totalorder %s58, 0
      %p246 = por %p244, %p245
      %p247 = scmp.ne.s32.totalorder %s236, %s239
      %p248 = scmp.eq.s32.totalorder %s63, 3
      %p249 = por %p247, %p248
      %p250 = scmp.ne.s32.totalorder %s239, %s240
      %p251 = scmp.eq.s32.totalorder %s63, 0
      %p252 = por %p250, %p251
      %p253 = scmp.ne.s32.totalorder %s239, %s240
      %p254 = scmp.eq.s32.totalorder %s64, 3
      %p255 = por %p253, %p254
      %p257 = scmp.ne.s32.totalorder %s240, %s256
      %p258 = scmp.eq.s32.totalorder %s64, 0
      %p259 = por %p257, %p258
      %s260 = ssub.s32 %s66, %s73
      %p261 = scmp.eq.s32.totalorder %s260, 0
      %s263 = sadd.s32 %s262, 1
      %s264 = scalar_select %p261, %s262, %s263
      %p267 = pneg %p261
      %p268 = scmp.eq.s32.totalorder %s58, 3
      %p269 = por %p267, %p268
      %p270 = scmp.ne.s32.totalorder %s262, %s265
      %p271 = scmp.eq.s32.totalorder %s58, 0
      %p272 = por %p270, %p271
      %p273 = scmp.ne.s32.totalorder %s262, %s265
      %p274 = scmp.eq.s32.totalorder %s63, 3
      %p275 = por %p273, %p274
      %p276 = scmp.ne.s32.totalorder %s265, %s266
      %p277 = scmp.eq.s32.totalorder %s63, 0
      %p278 = por %p276, %p277
      %p279 = scmp.ne.s32.totalorder %s265, %s266
      %p280 = scmp.eq.s32.totalorder %s64, 3
      %p281 = por %p279, %p280
      %p283 = scmp.ne.s32.totalorder %s266, %s282
      %p284 = scmp.eq.s32.totalorder %s64, 0
      %p285 = por %p283, %p284
      %s286 = ssub.s32 %s66, %s73
      %p287 = scmp.eq.s32.totalorder %s286, 0
      %s289 = sadd.s32 %s288, 1
      %s290 = scalar_select %p287, %s288, %s289
      %p293 = pneg %p287
      %p294 = scmp.eq.s32.totalorder %s58, 3
      %p295 = por %p293, %p294
      %p296 = scmp.ne.s32.totalorder %s288, %s291
      %p297 = scmp.eq.s32.totalorder %s58, 0
      %p298 = por %p296, %p297
      %p299 = scmp.ne.s32.totalorder %s288, %s291
      %p300 = scmp.eq.s32.totalorder %s63, 3
      %p301 = por %p299, %p300
      %p302 = scmp.ne.s32.totalorder %s291, %s292
      %p303 = scmp.eq.s32.totalorder %s63, 0
      %p304 = por %p302, %p303
      %p305 = scmp.ne.s32.totalorder %s291, %s292
      %p306 = scmp.eq.s32.totalorder %s64, 3
      %p307 = por %p305, %p306
      %p309 = scmp.ne.s32.totalorder %s292, %s308
      %p310 = scmp.eq.s32.totalorder %s64, 0
      %p311 = por %p309, %p310
      %s312 = ssub.s32 %s66, %s73
      %p313 = scmp.eq.s32.totalorder %s312, 0
      %s315 = sadd.s32 %s314, 1
      %s316 = scalar_select %p313, %s314, %s315
      %p319 = pneg %p313
      %p320 = scmp.eq.s32.totalorder %s58, 3
      %p321 = por %p319, %p320
      %p322 = scmp.ne.s32.totalorder %s314, %s317
      %p323 = scmp.eq.s32.totalorder %s58, 0
      %p324 = por %p322, %p323
      %p325 = scmp.ne.s32.totalorder %s314, %s317
      %p326 = scmp.eq.s32.totalorder %s63, 3
      %p327 = por %p325, %p326
      %p328 = scmp.ne.s32.totalorder %s317, %s318
      %p329 = scmp.eq.s32.totalorder %s63, 0
      %p330 = por %p328, %p329
      %p331 = scmp.ne.s32.totalorder %s317, %s318
      %p332 = scmp.eq.s32.totalorder %s64, 3
      %p333 = por %p331, %p332
      %p335 = scmp.ne.s32.totalorder %s318, %s334
      %p336 = scmp.eq.s32.totalorder %s64, 0
      %p337 = por %p335, %p336
      %s338 = ssub.s32 %s66, %s73
      %p339 = scmp.eq.s32.totalorder %s338, 0
      %s341 = sadd.s32 %s340, 1
      %s342 = scalar_select %p339, %s340, %s341
      %p345 = pneg %p339
      %p346 = scmp.eq.s32.totalorder %s58, 3
      %p347 = por %p345, %p346
      %p348 = scmp.ne.s32.totalorder %s340, %s343
      %p349 = scmp.eq.s32.totalorder %s58, 0
      %p350 = por %p348, %p349
      %p351 = scmp.ne.s32.totalorder %s340, %s343
      %p352 = scmp.eq.s32.totalorder %s63, 3
      %p353 = por %p351, %p352
      %p354 = scmp.ne.s32.totalorder %s343, %s344
      %p355 = scmp.eq.s32.totalorder %s63, 0
      %p356 = por %p354, %p355
      %p357 = scmp.ne.s32.totalorder %s343, %s344
      %p358 = scmp.eq.s32.totalorder %s64, 3
      %p359 = por %p357, %p358
      %p361 = scmp.ne.s32.totalorder %s344, %s360
      %p362 = scmp.eq.s32.totalorder %s64, 0
      %p363 = por %p361, %p362
      %s364 = ssub.s32 %s66, %s73
      %p365 = scmp.eq.s32.totalorder %s364, 0
      %s367 = sadd.s32 %s366, 1
      %s368 = scalar_select %p365, %s366, %s367
      %p371 = pneg %p365
      %p372 = scmp.eq.s32.totalorder %s58, 3
      %p373 = por %p371, %p372
      %p374 = scmp.ne.s32.totalorder %s366, %s369
      %p375 = scmp.eq.s32.totalorder %s58, 0
      %p376 = por %p374, %p375
      %p377 = scmp.ne.s32.totalorder %s366, %s369
      %p378 = scmp.eq.s32.totalorder %s63, 3
      %p379 = por %p377, %p378
      %p380 = scmp.ne.s32.totalorder %s369, %s370
      %p381 = scmp.eq.s32.totalorder %s63, 0
      %p382 = por %p380, %p381
      %p383 = scmp.ne.s32.totalorder %s369, %s370
      %p384 = scmp.eq.s32.totalorder %s64, 3
      %p385 = por %p383, %p384
      %p387 = scmp.ne.s32.totalorder %s370, %s386
      %p388 = scmp.eq.s32.totalorder %s64, 0
      %p389 = por %p387, %p388
      %s390 = ssub.s32 %s66, %s73
      %p391 = scmp.eq.s32.totalorder %s390, 0
      %s393 = sadd.s32 %s392, 1
      %s394 = scalar_select %p391, %s392, %s393
      %p397 = pneg %p391
      %p398 = scmp.eq.s32.totalorder %s58, 3
      %p399 = por %p397, %p398
      %p400 = scmp.ne.s32.totalorder %s392, %s395
      %p401 = scmp.eq.s32.totalorder %s58, 0
      %p402 = por %p400, %p401
      %p403 = scmp.ne.s32.totalorder %s392, %s395
      %p404 = scmp.eq.s32.totalorder %s63, 3
      %p405 = por %p403, %p404
      %p406 = scmp.ne.s32.totalorder %s395, %s396
      %p407 = scmp.eq.s32.totalorder %s63, 0
      %p408 = por %p406, %p407
      %p409 = scmp.ne.s32.totalorder %s395, %s396
      %p410 = scmp.eq.s32.totalorder %s64, 3
      %p411 = por %p409, %p410
      %p413 = scmp.ne.s32.totalorder %s396, %s412
      %p414 = scmp.eq.s32.totalorder %s64, 0
      %p415 = por %p413, %p414
      %s416 = ssub.s32 %s66, %s73
      %p417 = scmp.eq.s32.totalorder %s416, 0
      %s419 = sadd.s32 %s418, 1
      %s420 = scalar_select %p417, %s418, %s419
      %p423 = pneg %p417
      %p424 = scmp.eq.s32.totalorder %s58, 3
      %p425 = por %p423, %p424
      %p426 = scmp.ne.s32.totalorder %s418, %s421
      %p427 = scmp.eq.s32.totalorder %s58, 0
      %p428 = por %p426, %p427
      %p429 = scmp.ne.s32.totalorder %s418, %s421
      %p430 = scmp.eq.s32.totalorder %s63, 3
      %p431 = por %p429, %p430
      %p432 = scmp.ne.s32.totalorder %s421, %s422
      %p433 = scmp.eq.s32.totalorder %s63, 0
      %p434 = por %p432, %p433
      %p435 = scmp.ne.s32.totalorder %s421, %s422
      %p436 = scmp.eq.s32.totalorder %s64, 3
      %p437 = por %p435, %p436
      %p439 = scmp.ne.s32.totalorder %s422, %s438
      %p440 = scmp.eq.s32.totalorder %s64, 0
      %p441 = por %p439, %p440
      %s442 = ssub.s32 %s66, %s73
      %p443 = scmp.eq.s32.totalorder %s442, 0
      %s445 = sadd.s32 %s444, 1
      %s446 = scalar_select %p443, %s444, %s445
      %p449 = pneg %p443
      %p450 = scmp.eq.s32.totalorder %s58, 3
      %p451 = por %p449, %p450
      %p452 = scmp.ne.s32.totalorder %s444, %s447
      %p453 = scmp.eq.s32.totalorder %s58, 0
      %p454 = por %p452, %p453
      %p455 = scmp.ne.s32.totalorder %s444, %s447
      %p456 = scmp.eq.s32.totalorder %s63, 3
      %p457 = por %p455, %p456
      %p458 = scmp.ne.s32.totalorder %s447, %s448
      %p459 = scmp.eq.s32.totalorder %s63, 0
      %p460 = por %p458, %p459
      %p461 = scmp.ne.s32.totalorder %s447, %s448
      %p462 = scmp.eq.s32.totalorder %s64, 3
      %p463 = por %p461, %p462
      %p465 = scmp.ne.s32.totalorder %s448, %s464
      %p466 = scmp.eq.s32.totalorder %s64, 0
      %p467 = por %p465, %p466
      %s468 = ssub.s32 %s66, %s73
      %p469 = scmp.eq.s32.totalorder %s468, 0
      %s471 = sadd.s32 %s470, 1
      %s472 = scalar_select %p469, %s470, %s471
      %p475 = pneg %p469
      %p476 = scmp.eq.s32.totalorder %s58, 3
      %p477 = por %p475, %p476
      %p478 = scmp.ne.s32.totalorder %s470, %s473
      %p479 = scmp.eq.s32.totalorder %s58, 0
      %p480 = por %p478, %p479
      %p481 = scmp.ne.s32.totalorder %s470, %s473
      %p482 = scmp.eq.s32.totalorder %s63, 3
      %p483 = por %p481, %p482
      %p484 = scmp.ne.s32.totalorder %s473, %s474
      %p485 = scmp.eq.s32.totalorder %s63, 0
      %p486 = por %p484, %p485
      %p487 = scmp.ne.s32.totalorder %s473, %s474
      %p488 = scmp.eq.s32.totalorder %s64, 3
      %p489 = por %p487, %p488
      %p491 = scmp.ne.s32.totalorder %s474, %s490
      %p492 = scmp.eq.s32.totalorder %s64, 0
      %p493 = por %p491, %p492
      %s494 = ssub.s32 %s66, %s73
      %p495 = scmp.eq.s32.totalorder %s494, 0
      %s497 = sadd.s32 %s496, 1
      %s498 = scalar_select %p495, %s496, %s497
      %p501 = pneg %p495
      %p502 = scmp.eq.s32.totalorder %s58, 3
      %p503 = por %p501, %p502
      %p504 = scmp.ne.s32.totalorder %s496, %s499
      %p505 = scmp.eq.s32.totalorder %s58, 0
      %p506 = por %p504, %p505
      %p507 = scmp.ne.s32.totalorder %s496, %s499
      %p508 = scmp.eq.s32.totalorder %s63, 3
      %p509 = por %p507, %p508
      %p510 = scmp.ne.s32.totalorder %s499, %s500
      %p511 = scmp.eq.s32.totalorder %s63, 0
      %p512 = por %p510, %p511
      %p513 = scmp.ne.s32.totalorder %s499, %s500
      %p514 = scmp.eq.s32.totalorder %s64, 3
      %p515 = por %p513, %p514
      %p517 = scmp.ne.s32.totalorder %s500, %s516
      %p518 = scmp.eq.s32.totalorder %s64, 0
      %p519 = por %p517, %p518
      %s520 = ssub.s32 %s66, %s73
      %p521 = scmp.eq.s32.totalorder %s520, 0
      %s523 = sadd.s32 %s522, 1
      %s524 = scalar_select %p521, %s522, %s523
      %p527 = pneg %p521
      %p528 = scmp.eq.s32.totalorder %s58, 3
      %p529 = por %p527, %p528
      %p530 = scmp.ne.s32.totalorder %s522, %s525
      %p531 = scmp.eq.s32.totalorder %s58, 0
      %p532 = por %p530, %p531
      %p533 = scmp.ne.s32.totalorder %s522, %s525
      %p534 = scmp.eq.s32.totalorder %s63, 3
      %p535 = por %p533, %p534
      %p536 = scmp.ne.s32.totalorder %s525, %s526
      %p537 = scmp.eq.s32.totalorder %s63, 0
      %p538 = por %p536, %p537
      %p539 = scmp.ne.s32.totalorder %s525, %s526
      %p540 = scmp.eq.s32.totalorder %s64, 3
      %p541 = por %p539, %p540
      %p543 = scmp.ne.s32.totalorder %s526, %s542
      %p544 = scmp.eq.s32.totalorder %s64, 0
      %p545 = por %p543, %p544
      %s546 = ssub.s32 %s66, %s73
      %p547 = scmp.eq.s32.totalorder %s546, 0
      %s549 = sadd.s32 %s548, 1
      %s550 = scalar_select %p547, %s548, %s549
      %p553 = pneg %p547
      %p554 = scmp.eq.s32.totalorder %s58, 3
      %p555 = por %p553, %p554
      %p556 = scmp.ne.s32.totalorder %s548, %s551
      %p557 = scmp.eq.s32.totalorder %s58, 0
      %p558 = por %p556, %p557
      %p559 = scmp.ne.s32.totalorder %s548, %s551
      %p560 = scmp.eq.s32.totalorder %s63, 3
      %p561 = por %p559, %p560
      %p562 = scmp.ne.s32.totalorder %s551, %s552
      %p563 = scmp.eq.s32.totalorder %s63, 0
      %p564 = por %p562, %p563
      %p565 = scmp.ne.s32.totalorder %s551, %s552
      %p566 = scmp.eq.s32.totalorder %s64, 3
      %p567 = por %p565, %p566
      %p569 = scmp.ne.s32.totalorder %s552, %s568
      %p570 = scmp.eq.s32.totalorder %s64, 0
      %p571 = por %p569, %p570
      %s572 = ssub.s32 %s66, %s73
      %p573 = scmp.eq.s32.totalorder %s572, 0
      %s575 = sadd.s32 %s574, 1
      %s576 = scalar_select %p573, %s574, %s575
      %p579 = pneg %p573
      %p580 = scmp.eq.s32.totalorder %s58, 3
      %p581 = por %p579, %p580
      %p582 = scmp.ne.s32.totalorder %s574, %s577
      %p583 = scmp.eq.s32.totalorder %s58, 0
      %p584 = por %p582, %p583
      %p585 = scmp.ne.s32.totalorder %s574, %s577
      %p586 = scmp.eq.s32.totalorder %s63, 3
      %p587 = por %p585, %p586
      %p588 = scmp.ne.s32.totalorder %s577, %s578
      %p589 = scmp.eq.s32.totalorder %s63, 0
      %p590 = por %p588, %p589
      %p591 = scmp.ne.s32.totalorder %s577, %s578
      %p592 = scmp.eq.s32.totalorder %s64, 3
      %p593 = por %p591, %p592
      %p595 = scmp.ne.s32.totalorder %s578, %s594
      %p596 = scmp.eq.s32.totalorder %s64, 0
      %p597 = por %p595, %p596
      %s598 = ssub.s32 %s66, %s73
      %p599 = scmp.eq.s32.totalorder %s598, 0
      %s601 = sadd.s32 %s600, 1
      %s602 = scalar_select %p599, %s600, %s601
      %p605 = pneg %p599
      %p606 = scmp.eq.s32.totalorder %s58, 3
      %p607 = por %p605, %p606
      %p608 = scmp.ne.s32.totalorder %s600, %s603
      %p609 = scmp.eq.s32.totalorder %s58, 0
      %p610 = por %p608, %p609
      %p611 = scmp.ne.s32.totalorder %s600, %s603
      %p612 = scmp.eq.s32.totalorder %s63, 3
      %p613 = por %p611, %p612
      %p614 = scmp.ne.s32.totalorder %s603, %s604
      %p615 = scmp.eq.s32.totalorder %s63, 0
      %p616 = por %p614, %p615
      %p617 = scmp.ne.s32.totalorder %s603, %s604
      %p618 = scmp.eq.s32.totalorder %s64, 3
      %p619 = por %p617, %p618
      %p621 = scmp.ne.s32.totalorder %s604, %s620
      %p622 = scmp.eq.s32.totalorder %s64, 0
      %p623 = por %p621, %p622
      %s624 = ssub.s32 %s66, %s73
      %p625 = scmp.eq.s32.totalorder %s624, 0
      %s627 = sadd.s32 %s626, 1
      %s628 = scalar_select %p625, %s626, %s627
      %p631 = pneg %p625
      %p632 = scmp.eq.s32.totalorder %s58, 3
      %p633 = por %p631, %p632
      %p634 = scmp.ne.s32.totalorder %s626, %s629
      %p635 = scmp.eq.s32.totalorder %s58, 0
      %p636 = por %p634, %p635
      %p637 = scmp.ne.s32.totalorder %s626, %s629
      %p638 = scmp.eq.s32.totalorder %s63, 3
      %p639 = por %p637, %p638
      %p640 = scmp.ne.s32.totalorder %s629, %s630
      %p641 = scmp.eq.s32.totalorder %s63, 0
      %p642 = por %p640, %p641
      %p643 = scmp.ne.s32.totalorder %s629, %s630
      %p644 = scmp.eq.s32.totalorder %s64, 3
      %p645 = por %p643, %p644
      %p647 = scmp.ne.s32.totalorder %s630, %s646
      %p648 = scmp.eq.s32.totalorder %s64, 0
      %p649 = por %p647, %p648
      %s650 = ssub.s32 %s65, %s77
      %p651 = scmp.eq.s32.totalorder %s650, 0
      %s653 = sadd.s32 %s652, 1
      %s654 = scalar_select %p651, %s652, %s653
      %p657 = pneg %p651
      %p658 = scmp.eq.s32.totalorder %s58, 3
      %p659 = por %p657, %p658
      %p660 = scmp.ne.s32.totalorder %s652, %s655
      %p661 = scmp.eq.s32.totalorder %s58, 0
      %p662 = por %p660, %p661
      %p663 = scmp.ne.s32.totalorder %s652, %s655
      %p664 = scmp.eq.s32.totalorder %s63, 3
      %p665 = por %p663, %p664
      %p666 = scmp.ne.s32.totalorder %s655, %s656
      %p667 = scmp.eq.s32.totalorder %s63, 0
      %p668 = por %p666, %p667
      %p669 = scmp.ne.s32.totalorder %s655, %s656
      %p670 = scmp.eq.s32.totalorder %s64, 3
      %p671 = por %p669, %p670
      %p673 = scmp.ne.s32.totalorder %s656, %s672
      %p674 = scmp.eq.s32.totalorder %s64, 0
      %p675 = por %p673, %p674
      %p676 = scmp.le.s32.totalorder 1, %s58
      %p677 = scmp.lt.s32.totalorder %s58, 5
      %p678 = pnand %p676, %p677
      %p679 = pneg %p678
      // Predicated region
      $region9: #{tpu_custom_call.1} parent=5 // pred_check
        _
      $region10: #{tpu_custom_call.1} parent=5 // pred_check_branch
        %681 = sbr.rel (%p678) target = $region12
      $region11: #{tpu_custom_call.1} parent=5 // pred_region
        %s682 = ssub.s32 %s58, 1
      $region12: #{tpu_custom_call.1} parent=5 // pred_fallthru
        _
      %p683 = scmp.lt.s32.totalorder %s58, 4
      // Predicated region
      $region13: #{tpu_custom_call.1} parent=5 // pred_check
        %p684 = pneg %p683
      $region14: #{tpu_custom_call.1} parent=5 // pred_check_branch
        %686 = sbr.rel (%p684) target = $region16
      $region15: #{tpu_custom_call.1} parent=5 // pred_region
        // Predicated region
        $region17: #{tpu_custom_call.1} parent=15 // pred_check
          %p687 = pneg %p90
        $region18: #{tpu_custom_call.1} parent=15 // pred_check_branch
          %689 = sbr.rel (%p687) target = $region20
        $region19: #{tpu_custom_call.1} parent=15 // pred_region
          %s690 = sand.u32 %s80, 1
          %s691 = scalar_lea.sflag [#allocation4], %s690
          %s692 = sand.u32 %s80, 1
          %s693 = smul.addr %s692, 32
          %s694 = scalar_lea.vmem [#allocation3], %s693
          %s695 = smul.u32 2, %s65
          %s697 = ssub.s32 512, 512
          %698 = vsyncadd %s691, %s697
          %s699 = smul.addr %s695, 4
          %s700 = smul.addr %s699, 64
          %s701 = scalar_lea.hbm %s0, %s700
          %s702 = sshll.u32 %s694, 4
          %s703 = int_to_ptr.vmem [resolvable:$true] %s702
          %708 = dma.hbm_to_vmem [thread:$0]  %s701, 512, %s703, %s691, 128, 128, 8
        $region20: #{tpu_custom_call.1} parent=15 // pred_fallthru
          _
        // Predicated region
        $region21: #{tpu_custom_call.1} parent=15 // pred_check
          %p709 = pneg %p116
        $region22: #{tpu_custom_call.1} parent=15 // pred_check_branch
          %711 = sbr.rel (%p709) target = $region24
        $region23: #{tpu_custom_call.1} parent=15 // pred_region
          %s712 = sand.u32 %s58, 1
          %s713 = scalar_lea.sflag [#allocation7], %s712
          %s714 = sand.u32 %s106, 1
          %s715 = smul.addr %s714, 32
          %s716 = scalar_lea.vmem [#allocation6], %s715
          %s717 = smul.u32 2, %s65
          %s719 = ssub.s32 512, 512
          %720 = vsyncadd %s713, %s719
          %s721 = smul.addr %s717, 4
          %s722 = smul.addr %s721, 64
          %s723 = scalar_lea.hbm %s1, %s722
          %s724 = sshll.u32 %s716, 4
          %s725 = int_to_ptr.vmem [resolvable:$true] %s724
          %730 = dma.hbm_to_vmem [thread:$0]  %s723, 512, %s725, %s713, 128, 128, 8
        $region24: #{tpu_custom_call.1} parent=15 // pred_fallthru
          _
        // Predicated region
        $region25: #{tpu_custom_call.1} parent=15 // pred_check
          %p731 = pneg %p142
        $region26: #{tpu_custom_call.1} parent=15 // pred_check_branch
          %733 = sbr.rel (%p731) target = $region28
        $region27: #{tpu_custom_call.1} parent=15 // pred_region
          %s734 = sand.u32 %s58, 1
          %s735 = scalar_lea.sflag [#allocation7], %s734
          %s736 = sand.u32 %s132, 1
          %s737 = smul.addr %s736, 768
          %s738 = scalar_lea.vmem [#allocation8], %s737
          %s740 = ssub.s32 12288, 12288
          %741 = vsyncadd %s735, %s740
          %s742 = smul.addr %s66, 192
          %s743 = smul.addr %s742, 64
          %s744 = scalar_lea.hbm %s2, %s743
          %s745 = sshll.u32 %s738, 4
          %s746 = int_to_ptr.vmem [resolvable:$true] %s745
          %751 = dma.hbm_to_vmem [thread:$0]  %s744, 12288, %s746, %s735, 384, 384, 24
        $region28: #{tpu_custom_call.1} parent=15 // pred_fallthru
          _
        // Predicated region
        $region29: #{tpu_custom_call.1} parent=15 // pred_check
          %p752 = pneg %p168
        $region30: #{tpu_custom_call.1} parent=15 // pred_check_branch
          %754 = sbr.rel (%p752) target = $region32
        $region31: #{tpu_custom_call.1} parent=15 // pred_region
          %s755 = sand.u32 %s58, 1
          %s756 = scalar_lea.sflag [#allocation10], %s755
          %s757 = sand.u32 %s158, 1
          %s758 = smul.addr %s757, 6
          %s759 = scalar_lea.vmem [#allocation9], %s758
          %s761 = ssub.s32 96, 96
          %762 = vsyncadd %s756, %s761
          %s763 = smul.addr %s66, 6
          %s764 = smul.addr %s763, 16
          %s765 = scalar_lea.hbm %s3, %s764
          %s767 = sshll.u32 %s759, 4
          %s768 = int_to_ptr.vmem [resolvable:$true] %s767
          %770 = dma.hbm_to_vmem [thread:$0]  %s765, 96, %s768, %s756
        $region32: #{tpu_custom_call.1} parent=15 // pred_fallthru
          _
        // Predicated region
        $region33: #{tpu_custom_call.1} parent=15 // pred_check
          %p771 = pneg %p194
        $region34: #{tpu_custom_call.1} parent=15 // pred_check_branch
          %773 = sbr.rel (%p771) target = $region36
        $region35: #{tpu_custom_call.1} parent=15 // pred_region
          %s774 = sand.u32 %s58, 1
          %s775 = scalar_lea.sflag [#allocation10], %s774
          %s776 = sand.u32 %s184, 1
          %s777 = smul.addr %s776, 256
          %s778 = scalar_lea.vmem [#allocation11], %s777
          %s780 = ssub.s32 4096, 4096
          %781 = vsyncadd %s775, %s780
          %s782 = smul.addr %s66, 64
          %s783 = smul.addr %s782, 64
          %s784 = scalar_lea.hbm %s4, %s783
          %s785 = sshll.u32 %s778, 4
          %s786 = int_to_ptr.vmem [resolvable:$true] %s785
          %791 = dma.hbm_to_vmem [thread:$0]  %s784, 4096, %s786, %s775, 128, 128, 8
        $region36: #{tpu_custom_call.1} parent=15 // pred_fallthru
          _
        // Predicated region
        $region37: #{tpu_custom_call.1} parent=15 // pred_check
          %p792 = pneg %p220
        $region38: #{tpu_custom_call.1} parent=15 // pred_check_branch
          %794 = sbr.rel (%p792) target = $region40
        $region39: #{tpu_custom_call.1} parent=15 // pred_region
          %p795 = scmp.lt.s32.totalorder %s66, 1
          %s796 = scalar_select %p795, %s66, 1
          %s797 = smul.addr %s796, 2
          %s798 = scalar_lea.vmem %s5, %s797
        $region40: #{tpu_custom_call.1} parent=15 // pred_fallthru
          _
        // Predicated region
        $region41: #{tpu_custom_call.1} parent=15 // pred_check
          %p799 = pneg %p246
        $region42: #{tpu_custom_call.1} parent=15 // pred_check_branch
          %801 = sbr.rel (%p799) target = $region44
        $region43: #{tpu_custom_call.1} parent=15 // pred_region
          %s802 = sand.u32 %s58, 1
          %s803 = scalar_lea.sflag [#allocation13], %s802
          %s804 = sand.u32 %s236, 1
          %s805 = smul.addr %s804, 256
          %s806 = scalar_lea.vmem [#allocation12], %s805
          %s808 = ssub.s32 4096, 4096
          %809 = vsyncadd %s803, %s808
          %s810 = smul.addr %s66, 64
          %s811 = smul.addr %s810, 64
          %s812 = scalar_lea.hbm %s6, %s811
          %s813 = sshll.u32 %s806, 4
          %s814 = int_to_ptr.vmem [resolvable:$true] %s813
          %819 = dma.hbm_to_vmem [thread:$0]  %s812, 4096, %s814, %s803, 128, 128, 8
        $region44: #{tpu_custom_call.1} parent=15 // pred_fallthru
          _
        // Predicated region
        $region45: #{tpu_custom_call.1} parent=15 // pred_check
          %p820 = pneg %p272
        $region46: #{tpu_custom_call.1} parent=15 // pred_check_branch
          %822 = sbr.rel (%p820) target = $region48
        $region47: #{tpu_custom_call.1} parent=15 // pred_region
          %s823 = sand.u32 %s58, 1
          %s824 = scalar_lea.sflag [#allocation13], %s823
          %s825 = sand.u32 %s262, 1
          %s826 = smul.addr %s825, 2
          %s827 = scalar_lea.vmem [#allocation14], %s826
          %s829 = ssub.s32 32, 32
          %830 = vsyncadd %s824, %s829
          %s831 = smul.addr %s66, 2
          %s832 = smul.addr %s831, 16
          %s833 = scalar_lea.hbm %s7, %s832
          %s835 = sshll.u32 %s827, 4
          %s836 = int_to_ptr.vmem [resolvable:$true] %s835
          %838 = dma.hbm_to_vmem [thread:$0]  %s833, 32, %s836, %s824
        $region48: #{tpu_custom_call.1} parent=15 // pred_fallthru
          _
        // Predicated region
        $region49: #{tpu_custom_call.1} parent=15 // pred_check
          %p839 = pneg %p298
        $region50: #{tpu_custom_call.1} parent=15 // pred_check_branch
          %841 = sbr.rel (%p839) target = $region52
        $region51: #{tpu_custom_call.1} parent=15 // pred_region
          %s842 = sand.u32 %s58, 1
          %s843 = scalar_lea.sflag [#allocation16], %s842
          %s844 = sand.u32 %s288, 1
          %s845 = smul.addr %s844, 512
          %s846 = scalar_lea.vmem [#allocation15], %s845
          %s848 = ssub.s32 8192, 8192
          %849 = vsyncadd %s843, %s848
          %s850 = smul.addr %s66, 128
          %s851 = smul.addr %s850, 64
          %s852 = scalar_lea.hbm %s8, %s851
          %s853 = sshll.u32 %s846, 4
          %s854 = int_to_ptr.vmem [resolvable:$true] %s853
          %859 = dma.hbm_to_vmem [thread:$0]  %s852, 8192, %s854, %s843, 256, 256, 16
        $region52: #{tpu_custom_call.1} parent=15 // pred_fallthru
          _
        // Predicated region
        $region53: #{tpu_custom_call.1} parent=15 // pred_check
          %p860 = pneg %p324
        $region54: #{tpu_custom_call.1} parent=15 // pred_check_branch
          %862 = sbr.rel (%p860) target = $region56
        $region55: #{tpu_custom_call.1} parent=15 // pred_region
          %s863 = sand.u32 %s58, 1
          %s864 = scalar_lea.sflag [#allocation16], %s863
          %s865 = sand.u32 %s314, 1
          %s866 = smul.addr %s865, 4
          %s867 = scalar_lea.vmem [#allocation17], %s866
          %s869 = ssub.s32 64, 64
          %870 = vsyncadd %s864, %s869
          %s871 = smul.addr %s66, 4
          %s872 = smul.addr %s871, 16
          %s873 = scalar_lea.hbm %s9, %s872
          %s875 = sshll.u32 %s867, 4
          %s876 = int_to_ptr.vmem [resolvable:$true] %s875
          %878 = dma.hbm_to_vmem [thread:$0]  %s873, 64, %s876, %s864
        $region56: #{tpu_custom_call.1} parent=15 // pred_fallthru
          _
        // Predicated region
        $region57: #{tpu_custom_call.1} parent=15 // pred_check
          %p879 = pneg %p350
        $region58: #{tpu_custom_call.1} parent=15 // pred_check_branch
          %881 = sbr.rel (%p879) target = $region60
        $region59: #{tpu_custom_call.1} parent=15 // pred_region
          %s882 = sand.u32 %s58, 1
          %s883 = scalar_lea.sflag [#allocation19], %s882
          %s884 = sand.u32 %s340, 1
          %s885 = smul.addr %s884, 256
          %s886 = scalar_lea.vmem [#allocation18], %s885
          %s888 = ssub.s32 4096, 4096
          %889 = vsyncadd %s883, %s888
          %s890 = smul.addr %s66, 64
          %s891 = smul.addr %s890, 64
          %s892 = scalar_lea.hbm %s10, %s891
          %s893 = sshll.u32 %s886, 4
          %s894 = int_to_ptr.vmem [resolvable:$true] %s893
          %899 = dma.hbm_to_vmem [thread:$0]  %s892, 4096, %s894, %s883, 128, 128, 8
        $region60: #{tpu_custom_call.1} parent=15 // pred_fallthru
          _
        // Predicated region
        $region61: #{tpu_custom_call.1} parent=15 // pred_check
          %p900 = pneg %p376
        $region62: #{tpu_custom_call.1} parent=15 // pred_check_branch
          %902 = sbr.rel (%p900) target = $region64
        $region63: #{tpu_custom_call.1} parent=15 // pred_region
          %s903 = sand.u32 %s58, 1
          %s904 = scalar_lea.sflag [#allocation19], %s903
          %s905 = sand.u32 %s366, 1
          %s906 = smul.addr %s905, 2
          %s907 = scalar_lea.vmem [#allocation20], %s906
          %s909 = ssub.s32 32, 32
          %910 = vsyncadd %s904, %s909
          %s911 = smul.addr %s66, 2
          %s912 = smul.addr %s911, 16
          %s913 = scalar_lea.hbm %s11, %s912
          %s915 = sshll.u32 %s907, 4
          %s916 = int_to_ptr.vmem [resolvable:$true] %s915
          %918 = dma.hbm_to_vmem [thread:$0]  %s913, 32, %s916, %s904
        $region64: #{tpu_custom_call.1} parent=15 // pred_fallthru
          _
        // Predicated region
        $region65: #{tpu_custom_call.1} parent=15 // pred_check
          %p919 = pneg %p402
        $region66: #{tpu_custom_call.1} parent=15 // pred_check_branch
          %921 = sbr.rel (%p919) target = $region68
        $region67: #{tpu_custom_call.1} parent=15 // pred_region
          %s922 = sand.u32 %s58, 1
          %s923 = scalar_lea.sflag [#allocation22], %s922
          %s924 = sand.u32 %s392, 1
          %s925 = smul.addr %s924, 1024
          %s926 = scalar_lea.vmem [#allocation21], %s925
          %s928 = ssub.s32 16384, 16384
          %929 = vsyncadd %s923, %s928
          %s930 = smul.addr %s66, 256
          %s931 = smul.addr %s930, 64
          %s932 = scalar_lea.hbm %s12, %s931
          %s933 = sshll.u32 %s926, 4
          %s934 = int_to_ptr.vmem [resolvable:$true] %s933
          %939 = dma.hbm_to_vmem [thread:$0]  %s932, 16384, %s934, %s923, 512, 512, 32
        $region68: #{tpu_custom_call.1} parent=15 // pred_fallthru
          _
        // Predicated region
        $region69: #{tpu_custom_call.1} parent=15 // pred_check
          %p940 = pneg %p428
        $region70: #{tpu_custom_call.1} parent=15 // pred_check_branch
          %942 = sbr.rel (%p940) target = $region72
        $region71: #{tpu_custom_call.1} parent=15 // pred_region
          %p943 = scmp.lt.s32.totalorder %s66, 1
          %s944 = scalar_select %p943, %s66, 1
          %s945 = smul.addr %s944, 8
          %s946 = scalar_lea.vmem %s13, %s945
        $region72: #{tpu_custom_call.1} parent=15 // pred_fallthru
          _
        // Predicated region
        $region73: #{tpu_custom_call.1} parent=15 // pred_check
          %p947 = pneg %p454
        $region74: #{tpu_custom_call.1} parent=15 // pred_check_branch
          %949 = sbr.rel (%p947) target = $region76
        $region75: #{tpu_custom_call.1} parent=15 // pred_region
          %s950 = sand.u32 %s58, 1
          %s951 = scalar_lea.sflag [#allocation22], %s950
          %s952 = sand.u32 %s444, 1
          %s953 = smul.addr %s952, 1024
          %s954 = scalar_lea.vmem [#allocation23], %s953
          %s956 = ssub.s32 16384, 16384
          %957 = vsyncadd %s951, %s956
          %s958 = smul.addr %s66, 256
          %s959 = smul.addr %s958, 64
          %s960 = scalar_lea.hbm %s14, %s959
          %s961 = sshll.u32 %s954, 4
          %s962 = int_to_ptr.vmem [resolvable:$true] %s961
          %967 = dma.hbm_to_vmem [thread:$0]  %s960, 16384, %s962, %s951, 128, 128, 8
        $region76: #{tpu_custom_call.1} parent=15 // pred_fallthru
          _
        // Predicated region
        $region77: #{tpu_custom_call.1} parent=15 // pred_check
          %p968 = pneg %p480
        $region78: #{tpu_custom_call.1} parent=15 // pred_check_branch
          %970 = sbr.rel (%p968) target = $region80
        $region79: #{tpu_custom_call.1} parent=15 // pred_region
          %p971 = scmp.lt.s32.totalorder %s66, 1
          %s972 = scalar_select %p971, %s66, 1
          %s973 = smul.addr %s972, 2
          %s974 = scalar_lea.vmem %s15, %s973
        $region80: #{tpu_custom_call.1} parent=15 // pred_fallthru
          _
        // Predicated region
        $region81: #{tpu_custom_call.1} parent=15 // pred_check
          %p975 = pneg %p506
        $region82: #{tpu_custom_call.1} parent=15 // pred_check_branch
          %977 = sbr.rel (%p975) target = $region84
        $region83: #{tpu_custom_call.1} parent=15 // pred_region
          %p978 = scmp.lt.s32.totalorder %s66, 1
          %s979 = scalar_select %p978, %s66, 1
          %s980 = smul.addr %s979, 2
          %s981 = scalar_lea.vmem %s16, %s980
        $region84: #{tpu_custom_call.1} parent=15 // pred_fallthru
          _
        // Predicated region
        $region85: #{tpu_custom_call.1} parent=15 // pred_check
          %p982 = pneg %p532
        $region86: #{tpu_custom_call.1} parent=15 // pred_check_branch
          %984 = sbr.rel (%p982) target = $region88
        $region87: #{tpu_custom_call.1} parent=15 // pred_region
          %s985 = sand.u32 %s58, 1
          %s986 = scalar_lea.sflag [#allocation25], %s985
          %s987 = sand.u32 %s522, 1
          %s988 = smul.addr %s987, 2
          %s989 = scalar_lea.vmem [#allocation24], %s988
          %s991 = ssub.s32 32, 32
          %992 = vsyncadd %s986, %s991
          %s993 = smul.addr %s66, 2
          %s994 = smul.addr %s993, 16
          %s995 = scalar_lea.hbm %s17, %s994
          %s997 = sshll.u32 %s989, 4
          %s998 = int_to_ptr.vmem [resolvable:$true] %s997
          %1000 = dma.hbm_to_vmem [thread:$0]  %s995, 32, %s998, %s986
        $region88: #{tpu_custom_call.1} parent=15 // pred_fallthru
          _
        // Predicated region
        $region89: #{tpu_custom_call.1} parent=15 // pred_check
          %p1001 = pneg %p558
        $region90: #{tpu_custom_call.1} parent=15 // pred_check_branch
          %1003 = sbr.rel (%p1001) target = $region92
        $region91: #{tpu_custom_call.1} parent=15 // pred_region
          %p1004 = scmp.lt.s32.totalorder %s66, 1
          %s1005 = scalar_select %p1004, %s66, 1
          %s1006 = smul.addr %s1005, 2
          %s1007 = scalar_lea.vmem %s18, %s1006
        $region92: #{tpu_custom_call.1} parent=15 // pred_fallthru
          _
        // Predicated region
        $region93: #{tpu_custom_call.1} parent=15 // pred_check
          %p1008 = pneg %p584
        $region94: #{tpu_custom_call.1} parent=15 // pred_check_branch
          %1010 = sbr.rel (%p1008) target = $region96
        $region95: #{tpu_custom_call.1} parent=15 // pred_region
          %s1011 = sand.u32 %s58, 1
          %s1012 = scalar_lea.sflag [#allocation25], %s1011
          %s1013 = sand.u32 %s574, 1
          %s1014 = smul.addr %s1013, 2
          %s1015 = scalar_lea.vmem [#allocation26], %s1014
          %s1017 = ssub.s32 32, 32
          %1018 = vsyncadd %s1012, %s1017
          %s1019 = smul.addr %s66, 2
          %s1020 = smul.addr %s1019, 16
          %s1021 = scalar_lea.hbm %s19, %s1020
          %s1023 = sshll.u32 %s1015, 4
          %s1024 = int_to_ptr.vmem [resolvable:$true] %s1023
          %1026 = dma.hbm_to_vmem [thread:$0]  %s1021, 32, %s1024, %s1012
        $region96: #{tpu_custom_call.1} parent=15 // pred_fallthru
          _
        // Predicated region
        $region97: #{tpu_custom_call.1} parent=15 // pred_check
          %p1027 = pneg %p610
        $region98: #{tpu_custom_call.1} parent=15 // pred_check_branch
          %1029 = sbr.rel (%p1027) target = $region100
        $region99: #{tpu_custom_call.1} parent=15 // pred_region
          %p1030 = scmp.lt.s32.totalorder %s66, 1
          %s1031 = scalar_select %p1030, %s66, 1
          %s1032 = smul.addr %s1031, 2
          %s1033 = scalar_lea.vmem %s20, %s1032
        $region100: #{tpu_custom_call.1} parent=15 // pred_fallthru
          _
        // Predicated region
        $region101: #{tpu_custom_call.1} parent=15 // pred_check
          %p1034 = pneg %p636
        $region102: #{tpu_custom_call.1} parent=15 // pred_check_branch
          %1036 = sbr.rel (%p1034) target = $region104
        $region103: #{tpu_custom_call.1} parent=15 // pred_region
          %s1037 = sand.u32 %s626, 1
          %s1038 = scalar_lea.sflag [#allocation28], %s1037
          %s1039 = sand.u32 %s626, 1
          %s1040 = smul.addr %s1039, 2
          %s1041 = scalar_lea.vmem [#allocation27], %s1040
          %s1043 = ssub.s32 32, 32
          %1044 = vsyncadd %s1038, %s1043
          %s1045 = smul.addr %s66, 2
          %s1046 = smul.addr %s1045, 16
          %s1047 = scalar_lea.hbm %s21, %s1046
          %s1049 = sshll.u32 %s1041, 4
          %s1050 = int_to_ptr.vmem [resolvable:$true] %s1049
          %1052 = dma.hbm_to_vmem [thread:$0]  %s1047, 32, %s1050, %s1038
        $region104: #{tpu_custom_call.1} parent=15 // pred_fallthru
          _
      $region16: #{tpu_custom_call.1} parent=5 // pred_fallthru
        _
      %p1053 = scmp.le.s32.totalorder 1, %s58
      %p1054 = scmp.lt.s32.totalorder %s58, 5
      %p1055 = pnand %p1053, %p1054
      %p1056 = pneg %p1055
      // Predicated region
      $region105: #{tpu_custom_call.1} parent=5 // pred_check
        _
      $region106: #{tpu_custom_call.1} parent=5 // pred_check_branch
        %1058 = sbr.rel (%p1055) target = $region108
      $region107: #{tpu_custom_call.1} parent=5 // pred_region
        %s1059 = ssub.s32 %s58, 1
        %s1060 = sand.u32 %s83, 1
        %s1061 = scalar_lea.sflag [#allocation4], %s1060
        %s1062 = sand.u32 %s83, 1
        %s1063 = smul.addr %s1062, 32
        %s1064 = scalar_lea.vmem [#allocation3], %s1063
        // Predicated region
        $region109: #{tpu_custom_call.1} parent=107 // pred_check
          %p1065 = pneg %p96
        $region110: #{tpu_custom_call.1} parent=107 // pred_check_branch
          %1067 = sbr.rel (%p1065) target = $region112
        $region111: #{tpu_custom_call.1} parent=107 // pred_region
          %1068 = dma.done %s1061, 512
        $region112: #{tpu_custom_call.1} parent=107 // pred_fallthru
          _
        %s1069 = sand.u32 %s63, 1
        %s1070 = scalar_lea.sflag [#allocation7], %s1069
        %s1071 = sand.u32 %s109, 1
        %s1072 = smul.addr %s1071, 32
        %s1073 = scalar_lea.vmem [#allocation6], %s1072
        // Predicated region
        $region113: #{tpu_custom_call.1} parent=107 // pred_check
          %p1074 = pneg %p122
        $region114: #{tpu_custom_call.1} parent=107 // pred_check_branch
          %1076 = sbr.rel (%p1074) target = $region116
        $region115: #{tpu_custom_call.1} parent=107 // pred_region
          %1077 = dma.done %s1070, 512
        $region116: #{tpu_custom_call.1} parent=107 // pred_fallthru
          _
        %s1078 = sand.u32 %s63, 1
        %s1079 = scalar_lea.sflag [#allocation7], %s1078
        %s1080 = sand.u32 %s135, 1
        %s1081 = smul.addr %s1080, 768
        %s1082 = scalar_lea.vmem [#allocation8], %s1081
        // Predicated region
        $region117: #{tpu_custom_call.1} parent=107 // pred_check
          %p1083 = pneg %p148
        $region118: #{tpu_custom_call.1} parent=107 // pred_check_branch
          %1085 = sbr.rel (%p1083) target = $region120
        $region119: #{tpu_custom_call.1} parent=107 // pred_region
          %1086 = dma.done %s1079, 12288
        $region120: #{tpu_custom_call.1} parent=107 // pred_fallthru
          _
        %s1087 = sand.u32 %s63, 1
        %s1088 = scalar_lea.sflag [#allocation10], %s1087
        %s1089 = sand.u32 %s161, 1
        %s1090 = smul.addr %s1089, 6
        %s1091 = scalar_lea.vmem [#allocation9], %s1090
        // Predicated region
        $region121: #{tpu_custom_call.1} parent=107 // pred_check
          %p1092 = pneg %p174
        $region122: #{tpu_custom_call.1} parent=107 // pred_check_branch
          %1094 = sbr.rel (%p1092) target = $region124
        $region123: #{tpu_custom_call.1} parent=107 // pred_region
          %1095 = dma.done %s1088, 96
        $region124: #{tpu_custom_call.1} parent=107 // pred_fallthru
          _
        %s1096 = sand.u32 %s63, 1
        %s1097 = scalar_lea.sflag [#allocation10], %s1096
        %s1098 = sand.u32 %s187, 1
        %s1099 = smul.addr %s1098, 256
        %s1100 = scalar_lea.vmem [#allocation11], %s1099
        // Predicated region
        $region125: #{tpu_custom_call.1} parent=107 // pred_check
          %p1101 = pneg %p200
        $region126: #{tpu_custom_call.1} parent=107 // pred_check_branch
          %1103 = sbr.rel (%p1101) target = $region128
        $region127: #{tpu_custom_call.1} parent=107 // pred_region
          %1104 = dma.done %s1097, 4096
        $region128: #{tpu_custom_call.1} parent=107 // pred_fallthru
          _
        %s1105 = sand.u32 %s63, 1
        %s1106 = scalar_lea.sflag [#allocation13], %s1105
        %s1107 = sand.u32 %s239, 1
        %s1108 = smul.addr %s1107, 256
        %s1109 = scalar_lea.vmem [#allocation12], %s1108
        // Predicated region
        $region129: #{tpu_custom_call.1} parent=107 // pred_check
          %p1110 = pneg %p252
        $region130: #{tpu_custom_call.1} parent=107 // pred_check_branch
          %1112 = sbr.rel (%p1110) target = $region132
        $region131: #{tpu_custom_call.1} parent=107 // pred_region
          %1113 = dma.done %s1106, 4096
        $region132: #{tpu_custom_call.1} parent=107 // pred_fallthru
          _
        %s1114 = sand.u32 %s63, 1
        %s1115 = scalar_lea.sflag [#allocation13], %s1114
        %s1116 = sand.u32 %s265, 1
        %s1117 = smul.addr %s1116, 2
        %s1118 = scalar_lea.vmem [#allocation14], %s1117
        // Predicated region
        $region133: #{tpu_custom_call.1} parent=107 // pred_check
          %p1119 = pneg %p278
        $region134: #{tpu_custom_call.1} parent=107 // pred_check_branch
          %1121 = sbr.rel (%p1119) target = $region136
        $region135: #{tpu_custom_call.1} parent=107 // pred_region
          %1122 = dma.done %s1115, 32
        $region136: #{tpu_custom_call.1} parent=107 // pred_fallthru
          _
        %s1123 = sand.u32 %s63, 1
        %s1124 = scalar_lea.sflag [#allocation16], %s1123
        %s1125 = sand.u32 %s291, 1
        %s1126 = smul.addr %s1125, 512
        %s1127 = scalar_lea.vmem [#allocation15], %s1126
        // Predicated region
        $region137: #{tpu_custom_call.1} parent=107 // pred_check
          %p1128 = pneg %p304
        $region138: #{tpu_custom_call.1} parent=107 // pred_check_branch
          %1130 = sbr.rel (%p1128) target = $region140
        $region139: #{tpu_custom_call.1} parent=107 // pred_region
          %1131 = dma.done %s1124, 8192
        $region140: #{tpu_custom_call.1} parent=107 // pred_fallthru
          _
        %s1132 = sand.u32 %s63, 1
        %s1133 = scalar_lea.sflag [#allocation16], %s1132
        %s1134 = sand.u32 %s317, 1
        %s1135 = smul.addr %s1134, 4
        %s1136 = scalar_lea.vmem [#allocation17], %s1135
        // Predicated region
        $region141: #{tpu_custom_call.1} parent=107 // pred_check
          %p1137 = pneg %p330
        $region142: #{tpu_custom_call.1} parent=107 // pred_check_branch
          %1139 = sbr.rel (%p1137) target = $region144
        $region143: #{tpu_custom_call.1} parent=107 // pred_region
          %1140 = dma.done %s1133, 64
        $region144: #{tpu_custom_call.1} parent=107 // pred_fallthru
          _
        %s1141 = sand.u32 %s63, 1
        %s1142 = scalar_lea.sflag [#allocation19], %s1141
        %s1143 = sand.u32 %s343, 1
        %s1144 = smul.addr %s1143, 256
        %s1145 = scalar_lea.vmem [#allocation18], %s1144
        // Predicated region
        $region145: #{tpu_custom_call.1} parent=107 // pred_check
          %p1146 = pneg %p356
        $region146: #{tpu_custom_call.1} parent=107 // pred_check_branch
          %1148 = sbr.rel (%p1146) target = $region148
        $region147: #{tpu_custom_call.1} parent=107 // pred_region
          %1149 = dma.done %s1142, 4096
        $region148: #{tpu_custom_call.1} parent=107 // pred_fallthru
          _
        %s1150 = sand.u32 %s63, 1
        %s1151 = scalar_lea.sflag [#allocation19], %s1150
        %s1152 = sand.u32 %s369, 1
        %s1153 = smul.addr %s1152, 2
        %s1154 = scalar_lea.vmem [#allocation20], %s1153
        // Predicated region
        $region149: #{tpu_custom_call.1} parent=107 // pred_check
          %p1155 = pneg %p382
        $region150: #{tpu_custom_call.1} parent=107 // pred_check_branch
          %1157 = sbr.rel (%p1155) target = $region152
        $region151: #{tpu_custom_call.1} parent=107 // pred_region
          %1158 = dma.done %s1151, 32
        $region152: #{tpu_custom_call.1} parent=107 // pred_fallthru
          _
        %s1159 = sand.u32 %s63, 1
        %s1160 = scalar_lea.sflag [#allocation22], %s1159
        %s1161 = sand.u32 %s395, 1
        %s1162 = smul.addr %s1161, 1024
        %s1163 = scalar_lea.vmem [#allocation21], %s1162
        // Predicated region
        $region153: #{tpu_custom_call.1} parent=107 // pred_check
          %p1164 = pneg %p408
        $region154: #{tpu_custom_call.1} parent=107 // pred_check_branch
          %1166 = sbr.rel (%p1164) target = $region156
        $region155: #{tpu_custom_call.1} parent=107 // pred_region
          %1167 = dma.done %s1160, 16384
        $region156: #{tpu_custom_call.1} parent=107 // pred_fallthru
          _
        %s1168 = sand.u32 %s63, 1
        %s1169 = scalar_lea.sflag [#allocation22], %s1168
        %s1170 = sand.u32 %s447, 1
        %s1171 = smul.addr %s1170, 1024
        %s1172 = scalar_lea.vmem [#allocation23], %s1171
        // Predicated region
        $region157: #{tpu_custom_call.1} parent=107 // pred_check
          %p1173 = pneg %p460
        $region158: #{tpu_custom_call.1} parent=107 // pred_check_branch
          %1175 = sbr.rel (%p1173) target = $region160
        $region159: #{tpu_custom_call.1} parent=107 // pred_region
          %1176 = dma.done %s1169, 16384
        $region160: #{tpu_custom_call.1} parent=107 // pred_fallthru
          _
        %s1177 = sand.u32 %s63, 1
        %s1178 = scalar_lea.sflag [#allocation25], %s1177
        %s1179 = sand.u32 %s525, 1
        %s1180 = smul.addr %s1179, 2
        %s1181 = scalar_lea.vmem [#allocation24], %s1180
        // Predicated region
        $region161: #{tpu_custom_call.1} parent=107 // pred_check
          %p1182 = pneg %p538
        $region162: #{tpu_custom_call.1} parent=107 // pred_check_branch
          %1184 = sbr.rel (%p1182) target = $region164
        $region163: #{tpu_custom_call.1} parent=107 // pred_region
          %1185 = dma.done %s1178, 32
        $region164: #{tpu_custom_call.1} parent=107 // pred_fallthru
          _
        %s1186 = sand.u32 %s63, 1
        %s1187 = scalar_lea.sflag [#allocation25], %s1186
        %s1188 = sand.u32 %s577, 1
        %s1189 = smul.addr %s1188, 2
        %s1190 = scalar_lea.vmem [#allocation26], %s1189
        // Predicated region
        $region165: #{tpu_custom_call.1} parent=107 // pred_check
          %p1191 = pneg %p590
        $region166: #{tpu_custom_call.1} parent=107 // pred_check_branch
          %1193 = sbr.rel (%p1191) target = $region168
        $region167: #{tpu_custom_call.1} parent=107 // pred_region
          %1194 = dma.done %s1187, 32
        $region168: #{tpu_custom_call.1} parent=107 // pred_fallthru
          _
        %s1195 = sand.u32 %s629, 1
        %s1196 = scalar_lea.sflag [#allocation28], %s1195
        %s1197 = sand.u32 %s629, 1
        %s1198 = smul.addr %s1197, 2
        %s1199 = scalar_lea.vmem [#allocation27], %s1198
        // Predicated region
        $region169: #{tpu_custom_call.1} parent=107 // pred_check
          %p1200 = pneg %p642
        $region170: #{tpu_custom_call.1} parent=107 // pred_check_branch
          %1202 = sbr.rel (%p1200) target = $region172
        $region171: #{tpu_custom_call.1} parent=107 // pred_region
          %1203 = dma.done %s1196, 32
        $region172: #{tpu_custom_call.1} parent=107 // pred_fallthru
          _
        %s1204 = sand.u32 %s83, 1
        %s1205 = scalar_lea.sflag [#allocation4], %s1204
        %s1206 = sand.u32 %s83, 1
        %s1207 = smul.addr %s1206, 32
        %s1208 = scalar_lea.vmem [#allocation3], %s1207
        %p1209 = pneg %p96
        %p1210 = pneg %p93
        %s1211 = sand.u32 %s63, 1
        %s1212 = scalar_lea.sflag [#allocation7], %s1211
        %s1213 = sand.u32 %s109, 1
        %s1214 = smul.addr %s1213, 32
        %s1215 = scalar_lea.vmem [#allocation6], %s1214
        %p1216 = pneg %p122
        %p1217 = pneg %p119
        %s1218 = sand.u32 %s63, 1
        %s1219 = scalar_lea.sflag [#allocation7], %s1218
        %s1220 = sand.u32 %s135, 1
        %s1221 = smul.addr %s1220, 768
        %s1222 = scalar_lea.vmem [#allocation8], %s1221
        %p1223 = pneg %p148
        %p1224 = pneg %p145
        %s1225 = sand.u32 %s63, 1
        %s1226 = scalar_lea.sflag [#allocation10], %s1225
        %s1227 = sand.u32 %s161, 1
        %s1228 = smul.addr %s1227, 6
        %s1229 = scalar_lea.vmem [#allocation9], %s1228
        %p1230 = pneg %p174
        %p1231 = pneg %p171
        %s1232 = sand.u32 %s63, 1
        %s1233 = scalar_lea.sflag [#allocation10], %s1232
        %s1234 = sand.u32 %s187, 1
        %s1235 = smul.addr %s1234, 256
        %s1236 = scalar_lea.vmem [#allocation11], %s1235
        %p1237 = pneg %p200
        %p1238 = pneg %p197
        %p1239 = scmp.lt.s32.totalorder %s68, 1
        %s1240 = scalar_select %p1239, %s68, 1
        %s1241 = smul.addr %s1240, 2
        %s1242 = scalar_lea.vmem %s5, %s1241
        %p1243 = pneg %p226
        %p1244 = pneg %p223
        %s1245 = sand.u32 %s63, 1
        %s1246 = scalar_lea.sflag [#allocation13], %s1245
        %s1247 = sand.u32 %s239, 1
        %s1248 = smul.addr %s1247, 256
        %s1249 = scalar_lea.vmem [#allocation12], %s1248
        %p1250 = pneg %p252
        %p1251 = pneg %p249
        %s1252 = sand.u32 %s63, 1
        %s1253 = scalar_lea.sflag [#allocation13], %s1252
        %s1254 = sand.u32 %s265, 1
        %s1255 = smul.addr %s1254, 2
        %s1256 = scalar_lea.vmem [#allocation14], %s1255
        %p1257 = pneg %p278
        %p1258 = pneg %p275
        %s1259 = sand.u32 %s63, 1
        %s1260 = scalar_lea.sflag [#allocation16], %s1259
        %s1261 = sand.u32 %s291, 1
        %s1262 = smul.addr %s1261, 512
        %s1263 = scalar_lea.vmem [#allocation15], %s1262
        %p1264 = pneg %p304
        %p1265 = pneg %p301
        %s1266 = sand.u32 %s63, 1
        %s1267 = scalar_lea.sflag [#allocation16], %s1266
        %s1268 = sand.u32 %s317, 1
        %s1269 = smul.addr %s1268, 4
        %s1270 = scalar_lea.vmem [#allocation17], %s1269
        %p1271 = pneg %p330
        %p1272 = pneg %p327
        %s1273 = sand.u32 %s63, 1
        %s1274 = scalar_lea.sflag [#allocation19], %s1273
        %s1275 = sand.u32 %s343, 1
        %s1276 = smul.addr %s1275, 256
        %s1277 = scalar_lea.vmem [#allocation18], %s1276
        %p1278 = pneg %p356
        %p1279 = pneg %p353
        %s1280 = sand.u32 %s63, 1
        %s1281 = scalar_lea.sflag [#allocation19], %s1280
        %s1282 = sand.u32 %s369, 1
        %s1283 = smul.addr %s1282, 2
        %s1284 = scalar_lea.vmem [#allocation20], %s1283
        %p1285 = pneg %p382
        %p1286 = pneg %p379
        %s1287 = sand.u32 %s63, 1
        %s1288 = scalar_lea.sflag [#allocation22], %s1287
        %s1289 = sand.u32 %s395, 1
        %s1290 = smul.addr %s1289, 1024
        %s1291 = scalar_lea.vmem [#allocation21], %s1290
        %p1292 = pneg %p408
        %p1293 = pneg %p405
        %p1294 = scmp.lt.s32.totalorder %s68, 1
        %s1295 = scalar_select %p1294, %s68, 1
        %s1296 = smul.addr %s1295, 8
        %s1297 = scalar_lea.vmem %s13, %s1296
        %p1298 = pneg %p434
        %p1299 = pneg %p431
        %s1300 = sand.u32 %s63, 1
        %s1301 = scalar_lea.sflag [#allocation22], %s1300
        %s1302 = sand.u32 %s447, 1
        %s1303 = smul.addr %s1302, 1024
        %s1304 = scalar_lea.vmem [#allocation23], %s1303
        %p1305 = pneg %p460
        %p1306 = pneg %p457
        %p1307 = scmp.lt.s32.totalorder %s68, 1
        %s1308 = scalar_select %p1307, %s68, 1
        %s1309 = smul.addr %s1308, 2
        %s1310 = scalar_lea.vmem %s15, %s1309
        %p1311 = pneg %p486
        %p1312 = pneg %p483
        %p1313 = scmp.lt.s32.totalorder %s68, 1
        %s1314 = scalar_select %p1313, %s68, 1
        %s1315 = smul.addr %s1314, 2
        %s1316 = scalar_lea.vmem %s16, %s1315
        %p1317 = pneg %p512
        %p1318 = pneg %p509
        %s1319 = sand.u32 %s63, 1
        %s1320 = scalar_lea.sflag [#allocation25], %s1319
        %s1321 = sand.u32 %s525, 1
        %s1322 = smul.addr %s1321, 2
        %s1323 = scalar_lea.vmem [#allocation24], %s1322
        %p1324 = pneg %p538
        %p1325 = pneg %p535
        %p1326 = scmp.lt.s32.totalorder %s68, 1
        %s1327 = scalar_select %p1326, %s68, 1
        %s1328 = smul.addr %s1327, 2
        %s1329 = scalar_lea.vmem %s18, %s1328
        %p1330 = pneg %p564
        %p1331 = pneg %p561
        %s1332 = sand.u32 %s63, 1
        %s1333 = scalar_lea.sflag [#allocation25], %s1332
        %s1334 = sand.u32 %s577, 1
        %s1335 = smul.addr %s1334, 2
        %s1336 = scalar_lea.vmem [#allocation26], %s1335
        %p1337 = pneg %p590
        %p1338 = pneg %p587
        %p1339 = scmp.lt.s32.totalorder %s68, 1
        %s1340 = scalar_select %p1339, %s68, 1
        %s1341 = smul.addr %s1340, 2
        %s1342 = scalar_lea.vmem %s20, %s1341
        %p1343 = pneg %p616
        %p1344 = pneg %p613
        %s1345 = sand.u32 %s629, 1
        %s1346 = scalar_lea.sflag [#allocation28], %s1345
        %s1347 = sand.u32 %s629, 1
        %s1348 = smul.addr %s1347, 2
        %s1349 = scalar_lea.vmem [#allocation27], %s1348
        %p1350 = pneg %p642
        %p1351 = pneg %p639
        %p1352 = pneg %p668
        %p1353 = pneg %p665
        %s1354 = sand.u32 %s655, 1
        %s1355 = scalar_lea.sflag [#allocation5], %s1354
        %s1356 = sand.u32 %s655, 1
        %s1357 = smul.addr %s1356, 64
        %s1358 = scalar_lea.vmem [#allocation29], %s1357
        %s1359 = smul.u32 2, %s67
        %s1360 = smul.u32 2, %s67
        %p1361 = scmp.lt.s32.totalorder %s68, 1
        %s1362 = scalar_select %p1361, %s68, 1
        %s1363 = smul.addr %s1362, 2
        %s1364 = scalar_lea.vmem %s5, %s1363
        %p1365 = scmp.lt.s32.totalorder %s68, 1
        %s1366 = scalar_select %p1365, %s68, 1
        %s1367 = smul.addr %s1366, 8
        %s1368 = scalar_lea.vmem %s13, %s1367
        %p1369 = scmp.lt.s32.totalorder %s68, 1
        %s1370 = scalar_select %p1369, %s68, 1
        %s1371 = smul.addr %s1370, 2
        %s1372 = scalar_lea.vmem %s15, %s1371
        %p1373 = scmp.lt.s32.totalorder %s68, 1
        %s1374 = scalar_select %p1373, %s68, 1
        %s1375 = smul.addr %s1374, 2
        %s1376 = scalar_lea.vmem %s16, %s1375
        %p1377 = scmp.lt.s32.totalorder %s68, 1
        %s1378 = scalar_select %p1377, %s68, 1
        %s1379 = smul.addr %s1378, 2
        %s1380 = scalar_lea.vmem %s18, %s1379
        %p1381 = scmp.lt.s32.totalorder %s68, 1
        %s1382 = scalar_select %p1381, %s68, 1
        %s1383 = smul.addr %s1382, 2
        %s1384 = scalar_lea.vmem %s20, %s1383
        %s1385 = smul.u32 2, %s67
        %p1387 = scmp.eq.s32.totalorder %s68, 0
        // Predicated region
        $region173: #{tpu_custom_call.1} parent=107 // pred_check
          %p1388 = pneg %p1387
        $region174: #{tpu_custom_call.1} parent=107 // pred_check_branch
          %1390 = sbr.rel (%p1388) target = $region176
        $region175: #{tpu_custom_call.1} parent=107 // pred_region
          %v1391 = vld [vmem:[%s1064] sm:$0xff]
          %v1392 = vld [vmem:[%s1064 + $0x8] sm:$0xff]
          %v1393 = vld [vmem:[%s1064 + $0x10] sm:$0xff]
          %v1394 = vld [vmem:[%s1064 + $0x18] sm:$0xff]
          %v1395 = vunpack.c.l.bf16 %v1391
          %v1396 = vunpack.c.h.bf16 %v1391
          %v1397 = vunpack.c.l.bf16 %v1392
          %v1398 = vunpack.c.h.bf16 %v1392
          %v1399 = vunpack.c.l.bf16 %v1393
          %v1400 = vunpack.c.h.bf16 %v1393
          %v1401 = vunpack.c.l.bf16 %v1394
          %v1402 = vunpack.c.h.bf16 %v1394
          %1403 = vst [vmem:[#allocation2] sm:$0xff] %v1395
          %1404 = vst [vmem:[#allocation2 + $0x8] sm:$0xff] %v1396
          %1405 = vst [vmem:[#allocation2 + $0x10] sm:$0xff] %v1397
          %1406 = vst [vmem:[#allocation2 + $0x18] sm:$0xff] %v1398
          %1407 = vst [vmem:[#allocation2 + $0x20] sm:$0xff] %v1399
          %1408 = vst [vmem:[#allocation2 + $0x28] sm:$0xff] %v1400
          %1409 = vst [vmem:[#allocation2 + $0x30] sm:$0xff] %v1401
          %1410 = vst [vmem:[#allocation2 + $0x38] sm:$0xff] %v1402
        $region176: #{tpu_custom_call.1} parent=107 // pred_fallthru
          _
        %v1411 = vld [vmem:[#allocation2] sm:$0xff]
        %v1412 = vld [vmem:[#allocation2 + $0x8] sm:$0xff]
        %v1413 = vld [vmem:[#allocation2 + $0x10] sm:$0xff]
        %v1414 = vld [vmem:[#allocation2 + $0x18] sm:$0xff]
        %v1415 = vld [vmem:[#allocation2 + $0x20] sm:$0xff]
        %v1416 = vld [vmem:[#allocation2 + $0x28] sm:$0xff]
        %v1417 = vld [vmem:[#allocation2 + $0x30] sm:$0xff]
        %v1418 = vld [vmem:[#allocation2 + $0x38] sm:$0xff]
        %v1419 = vld [vmem:[%s1073] sm:$0xff]
        %v1420 = vld [vmem:[%s1073 + $0x8] sm:$0xff]
        %v1421 = vld [vmem:[%s1073 + $0x10] sm:$0xff]
        %v1422 = vld [vmem:[%s1073 + $0x18] sm:$0xff]
        %v1423 = vpack.c.bf16 %v1413, %v1411
        %v1424 = vpack.c.bf16 %v1414, %v1412
        %v1425 = vpack.c.bf16 %v1417, %v1415
        %v1426 = vpack.c.bf16 %v1418, %v1416
        %v1427 = vld [vmem:[%s1082] sm:$0xff]
        %v1428 = vld [vmem:[%s1082 + $0x8] sm:$0xff]
        %v1429 = vld [vmem:[%s1082 + $0x10] sm:$0xff]
        %v1430 = vld [vmem:[%s1082 + $0x18] sm:$0xff]
        %v1431 = vld [vmem:[%s1082 + $0x20] sm:$0xff]
        %v1432 = vld [vmem:[%s1082 + $0x28] sm:$0xff]
        %v1433 = vld [vmem:[%s1082 + $0x30] sm:$0xff]
        %v1434 = vld [vmem:[%s1082 + $0x38] sm:$0xff]
        %v1435 = vld [vmem:[%s1082 + $0x40] sm:$0xff]
        %v1436 = vld [vmem:[%s1082 + $0x48] sm:$0xff]
        %v1437 = vld [vmem:[%s1082 + $0x50] sm:$0xff]
        %v1438 = vld [vmem:[%s1082 + $0x58] sm:$0xff]
        %v1439 = vld [vmem:[%s1082 + $0x60] sm:$0xff]
        %v1440 = vld [vmem:[%s1082 + $0x68] sm:$0xff]
        %v1441 = vld [vmem:[%s1082 + $0x70] sm:$0xff]
        %v1442 = vld [vmem:[%s1082 + $0x78] sm:$0xff]
        %v1443 = vld [vmem:[%s1082 + $0x80] sm:$0xff]
        %v1444 = vld [vmem:[%s1082 + $0x88] sm:$0xff]
        %v1445 = vld [vmem:[%s1082 + $0x90] sm:$0xff]
        %v1446 = vld [vmem:[%s1082 + $0x98] sm:$0xff]
        %v1447 = vld [vmem:[%s1082 + $0xa0] sm:$0xff]
        %v1448 = vld [vmem:[%s1082 + $0xa8] sm:$0xff]
        %v1449 = vld [vmem:[%s1082 + $0xb0] sm:$0xff]
        %v1450 = vld [vmem:[%s1082 + $0xb8] sm:$0xff]
        %v1451 = vld [vmem:[%s1082 + $0xc0] sm:$0xff]
        %v1452 = vld [vmem:[%s1082 + $0xc8] sm:$0xff]
        %v1453 = vld [vmem:[%s1082 + $0xd0] sm:$0xff]
        %v1454 = vld [vmem:[%s1082 + $0xd8] sm:$0xff]
        %v1455 = vld [vmem:[%s1082 + $0xe0] sm:$0xff]
        %v1456 = vld [vmem:[%s1082 + $0xe8] sm:$0xff]
        %v1457 = vld [vmem:[%s1082 + $0xf0] sm:$0xff]
        %v1458 = vld [vmem:[%s1082 + $0xf8] sm:$0xff]
        %v1459 = vld [vmem:[%s1082 + $0x100] sm:$0xff]
        %v1460 = vld [vmem:[%s1082 + $0x108] sm:$0xff]
        %v1461 = vld [vmem:[%s1082 + $0x110] sm:$0xff]
        %v1462 = vld [vmem:[%s1082 + $0x118] sm:$0xff]
        %v1463 = vld [vmem:[%s1082 + $0x120] sm:$0xff]
        %v1464 = vld [vmem:[%s1082 + $0x128] sm:$0xff]
        %v1465 = vld [vmem:[%s1082 + $0x130] sm:$0xff]
        %v1466 = vld [vmem:[%s1082 + $0x138] sm:$0xff]
        %v1467 = vld [vmem:[%s1082 + $0x140] sm:$0xff]
        %v1468 = vld [vmem:[%s1082 + $0x148] sm:$0xff]
        %v1469 = vld [vmem:[%s1082 + $0x150] sm:$0xff]
        %v1470 = vld [vmem:[%s1082 + $0x158] sm:$0xff]
        %v1471 = vld [vmem:[%s1082 + $0x160] sm:$0xff]
        %v1472 = vld [vmem:[%s1082 + $0x168] sm:$0xff]
        %v1473 = vld [vmem:[%s1082 + $0x170] sm:$0xff]
        %v1474 = vld [vmem:[%s1082 + $0x178] sm:$0xff]
        %v1475 = vld [vmem:[%s1082 + $0x180] sm:$0xff]
        %v1476 = vld [vmem:[%s1082 + $0x188] sm:$0xff]
        %v1477 = vld [vmem:[%s1082 + $0x190] sm:$0xff]
        %v1478 = vld [vmem:[%s1082 + $0x198] sm:$0xff]
        %v1479 = vld [vmem:[%s1082 + $0x1a0] sm:$0xff]
        %v1480 = vld [vmem:[%s1082 + $0x1a8] sm:$0xff]
        %v1481 = vld [vmem:[%s1082 + $0x1b0] sm:$0xff]
        %v1482 = vld [vmem:[%s1082 + $0x1b8] sm:$0xff]
        %v1483 = vld [vmem:[%s1082 + $0x1c0] sm:$0xff]
        %v1484 = vld [vmem:[%s1082 + $0x1c8] sm:$0xff]
        %v1485 = vld [vmem:[%s1082 + $0x1d0] sm:$0xff]
        %v1486 = vld [vmem:[%s1082 + $0x1d8] sm:$0xff]
        %v1487 = vld [vmem:[%s1082 + $0x1e0] sm:$0xff]
        %v1488 = vld [vmem:[%s1082 + $0x1e8] sm:$0xff]
        %v1489 = vld [vmem:[%s1082 + $0x1f0] sm:$0xff]
        %v1490 = vld [vmem:[%s1082 + $0x1f8] sm:$0xff]
        %v1491 = vld [vmem:[%s1082 + $0x200] sm:$0xff]
        %v1492 = vld [vmem:[%s1082 + $0x208] sm:$0xff]
        %v1493 = vld [vmem:[%s1082 + $0x210] sm:$0xff]
        %v1494 = vld [vmem:[%s1082 + $0x218] sm:$0xff]
        %v1495 = vld [vmem:[%s1082 + $0x220] sm:$0xff]
        %v1496 = vld [vmem:[%s1082 + $0x228] sm:$0xff]
        %v1497 = vld [vmem:[%s1082 + $0x230] sm:$0xff]
        %v1498 = vld [vmem:[%s1082 + $0x238] sm:$0xff]
        %v1499 = vld [vmem:[%s1082 + $0x240] sm:$0xff]
        %v1500 = vld [vmem:[%s1082 + $0x248] sm:$0xff]
        %v1501 = vld [vmem:[%s1082 + $0x250] sm:$0xff]
        %v1502 = vld [vmem:[%s1082 + $0x258] sm:$0xff]
        %v1503 = vld [vmem:[%s1082 + $0x260] sm:$0xff]
        %v1504 = vld [vmem:[%s1082 + $0x268] sm:$0xff]
        %v1505 = vld [vmem:[%s1082 + $0x270] sm:$0xff]
        %v1506 = vld [vmem:[%s1082 + $0x278] sm:$0xff]
        %v1507 = vld [vmem:[%s1082 + $0x280] sm:$0xff]
        %v1508 = vld [vmem:[%s1082 + $0x288] sm:$0xff]
        %v1509 = vld [vmem:[%s1082 + $0x290] sm:$0xff]
        %v1510 = vld [vmem:[%s1082 + $0x298] sm:$0xff]
        %v1511 = vld [vmem:[%s1082 + $0x2a0] sm:$0xff]
        %v1512 = vld [vmem:[%s1082 + $0x2a8] sm:$0xff]
        %v1513 = vld [vmem:[%s1082 + $0x2b0] sm:$0xff]
        %v1514 = vld [vmem:[%s1082 + $0x2b8] sm:$0xff]
        %v1515 = vld [vmem:[%s1082 + $0x2c0] sm:$0xff]
        %v1516 = vld [vmem:[%s1082 + $0x2c8] sm:$0xff]
        %v1517 = vld [vmem:[%s1082 + $0x2d0] sm:$0xff]
        %v1518 = vld [vmem:[%s1082 + $0x2d8] sm:$0xff]
        %v1519 = vld [vmem:[%s1082 + $0x2e0] sm:$0xff]
        %v1520 = vld [vmem:[%s1082 + $0x2e8] sm:$0xff]
        %v1521 = vld [vmem:[%s1082 + $0x2f0] sm:$0xff]
        %v1522 = vld [vmem:[%s1082 + $0x2f8] sm:$0xff]
        %v1523 = vld [vmem:[%s1091] sm:$0x3f]
        %v1525 = vlaneseq
        %v1526 = vshrl.u32 %v1525, 7
        %v1527 = vsub.s32 0, %v1526
        %v1528 = vrot.slane %v1523, %v1527
        %v1529 = vlaneseq
        %v1530 = vshrl.u32 %v1529, 7
        %v1531 = vsub.s32 1, %v1530
        %v1532 = vrot.slane %v1523, %v1531
        %v1533 = vlaneseq
        %v1534 = vshrl.u32 %v1533, 7
        %v1535 = vsub.s32 2, %v1534
        %v1536 = vrot.slane %v1523, %v1535
        %v1537 = vlaneseq
        %v1538 = vshrl.u32 %v1537, 7
        %v1539 = vsub.s32 3, %v1538
        %v1540 = vrot.slane %v1523, %v1539
        %v1541 = vlaneseq
        %v1542 = vshrl.u32 %v1541, 7
        %v1543 = vsub.s32 4, %v1542
        %v1544 = vrot.slane %v1523, %v1543
        %v1545 = vlaneseq
        %v1546 = vshrl.u32 %v1545, 7
        %v1547 = vsub.s32 5, %v1546
        %v1548 = vrot.slane %v1523, %v1547
        %v1651 = vunpack.c.l.b16 %v1427
        %v1652 = vunpack.c.h.b16 %v1427
        %v1653 = vunpack.c.l.b16 %v1428
        %v1654 = vunpack.c.h.b16 %v1428
        %v1655 = vunpack.c.l.b16 %v1429
        %v1656 = vunpack.c.h.b16 %v1429
        %v1657 = vunpack.c.l.b16 %v1430
        %v1658 = vunpack.c.h.b16 %v1430
        %v1659 = vunpack.c.l.b16 %v1431
        %v1660 = vunpack.c.h.b16 %v1431
        %v1661 = vunpack.c.l.b16 %v1432
        %v1662 = vunpack.c.h.b16 %v1432
        %v1663 = vunpack.c.l.b16 %v1433
        %v1664 = vunpack.c.h.b16 %v1433
        %v1665 = vunpack.c.l.b16 %v1434
        %v1666 = vunpack.c.h.b16 %v1434
        %v1667 = vunpack.c.l.b16 %v1435
        %v1668 = vunpack.c.h.b16 %v1435
        %v1669 = vunpack.c.l.b16 %v1436
        %v1670 = vunpack.c.h.b16 %v1436
        %v1671 = vunpack.c.l.b16 %v1437
        %v1672 = vunpack.c.h.b16 %v1437
        %v1673 = vunpack.c.l.b16 %v1438
        %v1674 = vunpack.c.h.b16 %v1438
        %v1675 = vunpack.c.l.b16 %v1439
        %v1676 = vunpack.c.h.b16 %v1439
        %v1677 = vunpack.c.l.b16 %v1440
        %v1678 = vunpack.c.h.b16 %v1440
        %v1679 = vunpack.c.l.b16 %v1441
        %v1680 = vunpack.c.h.b16 %v1441
        %v1681 = vunpack.c.l.b16 %v1442
        %v1682 = vunpack.c.h.b16 %v1442
        %v1683 = vunpack.c.l.b16 %v1443
        %v1684 = vunpack.c.h.b16 %v1443
        %v1685 = vunpack.c.l.b16 %v1444
        %v1686 = vunpack.c.h.b16 %v1444
        %v1687 = vunpack.c.l.b16 %v1445
        %v1688 = vunpack.c.h.b16 %v1445
        %v1689 = vunpack.c.l.b16 %v1446
        %v1690 = vunpack.c.h.b16 %v1446
        %v1691 = vunpack.c.l.b16 %v1447
        %v1692 = vunpack.c.h.b16 %v1447
        %v1693 = vunpack.c.l.b16 %v1448
        %v1694 = vunpack.c.h.b16 %v1448
        %v1695 = vunpack.c.l.b16 %v1449
        %v1696 = vunpack.c.h.b16 %v1449
        %v1697 = vunpack.c.l.b16 %v1450
        %v1698 = vunpack.c.h.b16 %v1450
        %v1699 = vunpack.c.l.b16 %v1451
        %v1700 = vunpack.c.h.b16 %v1451
        %v1701 = vunpack.c.l.b16 %v1452
        %v1702 = vunpack.c.h.b16 %v1452
        %v1703 = vunpack.c.l.b16 %v1453
        %v1704 = vunpack.c.h.b16 %v1453
        %v1705 = vunpack.c.l.b16 %v1454
        %v1706 = vunpack.c.h.b16 %v1454
        %v1707 = vunpack.c.l.b16 %v1455
        %v1708 = vunpack.c.h.b16 %v1455
        %v1709 = vunpack.c.l.b16 %v1456
        %v1710 = vunpack.c.h.b16 %v1456
        %v1711 = vunpack.c.l.b16 %v1457
        %v1712 = vunpack.c.h.b16 %v1457
        %v1713 = vunpack.c.l.b16 %v1458
        %v1714 = vunpack.c.h.b16 %v1458
        %v1715 = vunpack.c.l.b16 %v1459
        %v1716 = vunpack.c.h.b16 %v1459
        %v1717 = vunpack.c.l.b16 %v1460
        %v1718 = vunpack.c.h.b16 %v1460
        %v1719 = vunpack.c.l.b16 %v1461
        %v1720 = vunpack.c.h.b16 %v1461
        %v1721 = vunpack.c.l.b16 %v1462
        %v1722 = vunpack.c.h.b16 %v1462
        %v1723 = vunpack.c.l.b16 %v1463
        %v1724 = vunpack.c.h.b16 %v1463
        %v1725 = vunpack.c.l.b16 %v1464
        %v1726 = vunpack.c.h.b16 %v1464
        %v1727 = vunpack.c.l.b16 %v1465
        %v1728 = vunpack.c.h.b16 %v1465
        %v1729 = vunpack.c.l.b16 %v1466
        %v1730 = vunpack.c.h.b16 %v1466
        %v1731 = vunpack.c.l.b16 %v1467
        %v1732 = vunpack.c.h.b16 %v1467
        %v1733 = vunpack.c.l.b16 %v1468
        %v1734 = vunpack.c.h.b16 %v1468
        %v1735 = vunpack.c.l.b16 %v1469
        %v1736 = vunpack.c.h.b16 %v1469
        %v1737 = vunpack.c.l.b16 %v1470
        %v1738 = vunpack.c.h.b16 %v1470
        %v1739 = vunpack.c.l.b16 %v1471
        %v1740 = vunpack.c.h.b16 %v1471
        %v1741 = vunpack.c.l.b16 %v1472
        %v1742 = vunpack.c.h.b16 %v1472
        %v1743 = vunpack.c.l.b16 %v1473
        %v1744 = vunpack.c.h.b16 %v1473
        %v1745 = vunpack.c.l.b16 %v1474
        %v1746 = vunpack.c.h.b16 %v1474
        %v1747 = vunpack.c.l.b16 %v1475
        %v1748 = vunpack.c.h.b16 %v1475
        %v1749 = vunpack.c.l.b16 %v1476
        %v1750 = vunpack.c.h.b16 %v1476
        %v1751 = vunpack.c.l.b16 %v1477
        %v1752 = vunpack.c.h.b16 %v1477
        %v1753 = vunpack.c.l.b16 %v1478
        %v1754 = vunpack.c.h.b16 %v1478
        %v1755 = vunpack.c.l.b16 %v1479
        %v1756 = vunpack.c.h.b16 %v1479
        %v1757 = vunpack.c.l.b16 %v1480
        %v1758 = vunpack.c.h.b16 %v1480
        %v1759 = vunpack.c.l.b16 %v1481
        %v1760 = vunpack.c.h.b16 %v1481
        %v1761 = vunpack.c.l.b16 %v1482
        %v1762 = vunpack.c.h.b16 %v1482
        %v1763 = vunpack.c.l.b16 %v1483
        %v1764 = vunpack.c.h.b16 %v1483
        %v1765 = vunpack.c.l.b16 %v1484
        %v1766 = vunpack.c.h.b16 %v1484
        %v1767 = vunpack.c.l.b16 %v1485
        %v1768 = vunpack.c.h.b16 %v1485
        %v1769 = vunpack.c.l.b16 %v1486
        %v1770 = vunpack.c.h.b16 %v1486
        %v1771 = vunpack.c.l.b16 %v1487
        %v1772 = vunpack.c.h.b16 %v1487
        %v1773 = vunpack.c.l.b16 %v1488
        %v1774 = vunpack.c.h.b16 %v1488
        %v1775 = vunpack.c.l.b16 %v1489
        %v1776 = vunpack.c.h.b16 %v1489
        %v1777 = vunpack.c.l.b16 %v1490
        %v1778 = vunpack.c.h.b16 %v1490
        %v1779 = vunpack.c.l.b16 %v1491
        %v1780 = vunpack.c.h.b16 %v1491
        %v1781 = vunpack.c.l.b16 %v1492
        %v1782 = vunpack.c.h.b16 %v1492
        %v1783 = vunpack.c.l.b16 %v1493
        %v1784 = vunpack.c.h.b16 %v1493
        %v1785 = vunpack.c.l.b16 %v1494
        %v1786 = vunpack.c.h.b16 %v1494
        %v1787 = vunpack.c.l.b16 %v1495
        %v1788 = vunpack.c.h.b16 %v1495
        %v1789 = vunpack.c.l.b16 %v1496
        %v1790 = vunpack.c.h.b16 %v1496
        %v1791 = vunpack.c.l.b16 %v1497
        %v1792 = vunpack.c.h.b16 %v1497
        %v1793 = vunpack.c.l.b16 %v1498
        %v1794 = vunpack.c.h.b16 %v1498
        %v1795 = vunpack.c.l.b16 %v1499
        %v1796 = vunpack.c.h.b16 %v1499
        %v1797 = vunpack.c.l.b16 %v1500
        %v1798 = vunpack.c.h.b16 %v1500
        %v1799 = vunpack.c.l.b16 %v1501
        %v1800 = vunpack.c.h.b16 %v1501
        %v1801 = vunpack.c.l.b16 %v1502
        %v1802 = vunpack.c.h.b16 %v1502
        %v1803 = vunpack.c.l.b16 %v1503
        %v1804 = vunpack.c.h.b16 %v1503
        %v1805 = vunpack.c.l.b16 %v1504
        %v1806 = vunpack.c.h.b16 %v1504
        %v1807 = vunpack.c.l.b16 %v1505
        %v1808 = vunpack.c.h.b16 %v1505
        %v1809 = vunpack.c.l.b16 %v1506
        %v1810 = vunpack.c.h.b16 %v1506
        %v1811 = vunpack.c.l.b16 %v1507
        %v1812 = vunpack.c.h.b16 %v1507
        %v1813 = vunpack.c.l.b16 %v1508
        %v1814 = vunpack.c.h.b16 %v1508
        %v1815 = vunpack.c.l.b16 %v1509
        %v1816 = vunpack.c.h.b16 %v1509
        %v1817 = vunpack.c.l.b16 %v1510
        %v1818 = vunpack.c.h.b16 %v1510
        %v1819 = vunpack.c.l.b16 %v1511
        %v1820 = vunpack.c.h.b16 %v1511
        %v1821 = vunpack.c.l.b16 %v1512
        %v1822 = vunpack.c.h.b16 %v1512
        %v1823 = vunpack.c.l.b16 %v1513
        %v1824 = vunpack.c.h.b16 %v1513
        %v1825 = vunpack.c.l.b16 %v1514
        %v1826 = vunpack.c.h.b16 %v1514
        %v1827 = vunpack.c.l.b16 %v1515
        %v1828 = vunpack.c.h.b16 %v1515
        %v1829 = vunpack.c.l.b16 %v1516
        %v1830 = vunpack.c.h.b16 %v1516
        %v1831 = vunpack.c.l.b16 %v1517
        %v1832 = vunpack.c.h.b16 %v1517
        %v1833 = vunpack.c.l.b16 %v1518
        %v1834 = vunpack.c.h.b16 %v1518
        %v1835 = vunpack.c.l.b16 %v1519
        %v1836 = vunpack.c.h.b16 %v1519
        %v1837 = vunpack.c.l.b16 %v1520
        %v1838 = vunpack.c.h.b16 %v1520
        %v1839 = vunpack.c.l.b16 %v1521
        %v1840 = vunpack.c.h.b16 %v1521
        %v1841 = vunpack.c.l.b16 %v1522
        %v1842 = vunpack.c.h.b16 %v1522
        %v1843 = vpack.c.b16 %v1657, %v1651
        %v1844 = vpack.c.b16 %v1658, %v1652
        %v1845 = vpack.c.b16 %v1659, %v1653
        %v1846 = vpack.c.b16 %v1660, %v1654
        %v1847 = vpack.c.b16 %v1661, %v1655
        %v1848 = vpack.c.b16 %v1662, %v1656
        %v1849 = vpack.c.b16 %v1669, %v1663
        %v1850 = vpack.c.b16 %v1670, %v1664
        %v1851 = vpack.c.b16 %v1671, %v1665
        %v1852 = vpack.c.b16 %v1672, %v1666
        %v1853 = vpack.c.b16 %v1673, %v1667
        %v1854 = vpack.c.b16 %v1674, %v1668
        %v1855 = vpack.c.b16 %v1681, %v1675
        %v1856 = vpack.c.b16 %v1682, %v1676
        %v1857 = vpack.c.b16 %v1683, %v1677
        %v1858 = vpack.c.b16 %v1684, %v1678
        %v1859 = vpack.c.b16 %v1685, %v1679
        %v1860 = vpack.c.b16 %v1686, %v1680
        %v1861 = vpack.c.b16 %v1693, %v1687
        %v1862 = vpack.c.b16 %v1694, %v1688
        %v1863 = vpack.c.b16 %v1695, %v1689
        %v1864 = vpack.c.b16 %v1696, %v1690
        %v1865 = vpack.c.b16 %v1697, %v1691
        %v1866 = vpack.c.b16 %v1698, %v1692
        %v1867 = vpack.c.b16 %v1705, %v1699
        %v1868 = vpack.c.b16 %v1706, %v1700
        %v1869 = vpack.c.b16 %v1707, %v1701
        %v1870 = vpack.c.b16 %v1708, %v1702
        %v1871 = vpack.c.b16 %v1709, %v1703
        %v1872 = vpack.c.b16 %v1710, %v1704
        %v1873 = vpack.c.b16 %v1717, %v1711
        %v1874 = vpack.c.b16 %v1718, %v1712
        %v1875 = vpack.c.b16 %v1719, %v1713
        %v1876 = vpack.c.b16 %v1720, %v1714
        %v1877 = vpack.c.b16 %v1721, %v1715
        %v1878 = vpack.c.b16 %v1722, %v1716
        %v1879 = vpack.c.b16 %v1729, %v1723
        %v1880 = vpack.c.b16 %v1730, %v1724
        %v1881 = vpack.c.b16 %v1731, %v1725
        %v1882 = vpack.c.b16 %v1732, %v1726
        %v1883 = vpack.c.b16 %v1733, %v1727
        %v1884 = vpack.c.b16 %v1734, %v1728
        %v1885 = vpack.c.b16 %v1741, %v1735
        %v1886 = vpack.c.b16 %v1742, %v1736
        %v1887 = vpack.c.b16 %v1743, %v1737
        %v1888 = vpack.c.b16 %v1744, %v1738
        %v1889 = vpack.c.b16 %v1745, %v1739
        %v1890 = vpack.c.b16 %v1746, %v1740
        %v1891 = vpack.c.b16 %v1753, %v1747
        %v1892 = vpack.c.b16 %v1754, %v1748
        %v1893 = vpack.c.b16 %v1755, %v1749
        %v1894 = vpack.c.b16 %v1756, %v1750
        %v1895 = vpack.c.b16 %v1757, %v1751
        %v1896 = vpack.c.b16 %v1758, %v1752
        %v1897 = vpack.c.b16 %v1765, %v1759
        %v1898 = vpack.c.b16 %v1766, %v1760
        %v1899 = vpack.c.b16 %v1767, %v1761
        %v1900 = vpack.c.b16 %v1768, %v1762
        %v1901 = vpack.c.b16 %v1769, %v1763
        %v1902 = vpack.c.b16 %v1770, %v1764
        %v1903 = vpack.c.b16 %v1777, %v1771
        %v1904 = vpack.c.b16 %v1778, %v1772
        %v1905 = vpack.c.b16 %v1779, %v1773
        %v1906 = vpack.c.b16 %v1780, %v1774
        %v1907 = vpack.c.b16 %v1781, %v1775
        %v1908 = vpack.c.b16 %v1782, %v1776
        %v1909 = vpack.c.b16 %v1789, %v1783
        %v1910 = vpack.c.b16 %v1790, %v1784
        %v1911 = vpack.c.b16 %v1791, %v1785
        %v1912 = vpack.c.b16 %v1792, %v1786
        %v1913 = vpack.c.b16 %v1793, %v1787
        %v1914 = vpack.c.b16 %v1794, %v1788
        %v1915 = vpack.c.b16 %v1801, %v1795
        %v1916 = vpack.c.b16 %v1802, %v1796
        %v1917 = vpack.c.b16 %v1803, %v1797
        %v1918 = vpack.c.b16 %v1804, %v1798
        %v1919 = vpack.c.b16 %v1805, %v1799
        %v1920 = vpack.c.b16 %v1806, %v1800
        %v1921 = vpack.c.b16 %v1813, %v1807
        %v1922 = vpack.c.b16 %v1814, %v1808
        %v1923 = vpack.c.b16 %v1815, %v1809
        %v1924 = vpack.c.b16 %v1816, %v1810
        %v1925 = vpack.c.b16 %v1817, %v1811
        %v1926 = vpack.c.b16 %v1818, %v1812
        %v1927 = vpack.c.b16 %v1825, %v1819
        %v1928 = vpack.c.b16 %v1826, %v1820
        %v1929 = vpack.c.b16 %v1827, %v1821
        %v1930 = vpack.c.b16 %v1828, %v1822
        %v1931 = vpack.c.b16 %v1829, %v1823
        %v1932 = vpack.c.b16 %v1830, %v1824
        %v1933 = vpack.c.b16 %v1837, %v1831
        %v1934 = vpack.c.b16 %v1838, %v1832
        %v1935 = vpack.c.b16 %v1839, %v1833
        %v1936 = vpack.c.b16 %v1840, %v1834
        %v1937 = vpack.c.b16 %v1841, %v1835
        %v1938 = vpack.c.b16 %v1842, %v1836
        %2035 = vmatprep.subr.bf16.mxu0 %v1886
        %2036 = vmatpush1.bf16.msra.mxu0 %v1885
        %2037 = vmatprep.subr.bf16.mxu0 %v1880
        %2038 = vmatpush1.bf16.msra.mxu0 %v1879
        %2039 = vmatprep.subr.bf16.mxu0 %v1874
        %2040 = vmatpush1.bf16.msra.mxu0 %v1873
        %2041 = vmatprep.subr.bf16.mxu0 %v1868
        %2042 = vmatpush1.bf16.msra.mxu0 %v1867
        %2043 = vmatprep.subr.bf16.mxu0 %v1862
        %2044 = vmatpush1.bf16.msra.mxu0 %v1861
        %2045 = vmatprep.subr.bf16.mxu0 %v1856
        %2046 = vmatpush1.bf16.msra.mxu0 %v1855
        %2047 = vmatprep.subr.bf16.mxu0 %v1850
        %2048 = vmatpush1.bf16.msra.mxu0 %v1849
        %2049 = vmatprep.subr.bf16.mxu0 %v1844
        %2050 = vmatpush1.bf16.msra.mxu0 %v1843
        %2051 = vmatprep.subr.bf16.mxu0 %v1934
        %2052 = vmatpush2.bf16.msra.mxu0 %v1933
        %2053 = vmatprep.subr.bf16.mxu0 %v1928
        %2054 = vmatpush2.bf16.msra.mxu0 %v1927
        %2055 = vmatprep.subr.bf16.mxu0 %v1922
        %2056 = vmatpush2.bf16.msra.mxu0 %v1921
        %2057 = vmatprep.subr.bf16.mxu0 %v1916
        %2058 = vmatpush2.bf16.msra.mxu0 %v1915
        %2059 = vmatprep.subr.bf16.mxu0 %v1910
        %2060 = vmatpush2.bf16.msra.mxu0 %v1909
        %2061 = vmatprep.subr.bf16.mxu0 %v1904
        %2062 = vmatpush2.bf16.msra.mxu0 %v1903
        %2063 = vmatprep.subr.bf16.mxu0 %v1898
        %2064 = vmatpush2.bf16.msra.mxu0 %v1897
        %2065 = vmatprep.subr.bf16.mxu0 %v1892
        %2066 = vmatpush2.bf16.msra.mxu0 %v1891
        %2067 = vmatprep.mubr.bf16.mxu0 %v1424
        %2068 = vmatmul.mubr.bf16.gmra.mxu0 %v1423
        %v2069 = vpop.f32.mrf.mxu0
        %v2070 = vadd.f32 %v1528, %v2069
        %v2071 = vpop.f32.mrf.mxu0
        %v2072 = vadd.f32 %v1532, %v2071
        %v2073 = vpop.f32.mrf.mxu0
        %v2074 = vadd.f32 %v1528, %v2073
        %v2075 = vpop.f32.mrf.mxu0
        %v2076 = vadd.f32 %v1532, %v2075
        %2077 = vmatprep.mubr.bf16.mxu0 %v1426
        %2078 = vmatmul.mubr.bf16.gmra.mxu0 %v1425
        %v2079 = vpop.f32.mrf.mxu0
        %v2080 = vadd.f32 %v1528, %v2079
        %v2081 = vpop.f32.mrf.mxu0
        %v2082 = vadd.f32 %v1532, %v2081
        %v2083 = vpop.f32.mrf.mxu0
        %v2084 = vadd.f32 %v1528, %v2083
        %v2085 = vpop.f32.mrf.mxu0
        %v2086 = vadd.f32 %v1532, %v2085
        %2087 = vdwg.mxu0
        %2088 = vmatprep.subr.bf16.mxu0 %v1888
        %2089 = vmatpush1.bf16.msra.mxu0 %v1887
        %2090 = vmatprep.subr.bf16.mxu0 %v1882
        %2091 = vmatpush1.bf16.msra.mxu0 %v1881
        %2092 = vmatprep.subr.bf16.mxu0 %v1876
        %2093 = vmatpush1.bf16.msra.mxu0 %v1875
        %2094 = vmatprep.subr.bf16.mxu0 %v1870
        %2095 = vmatpush1.bf16.msra.mxu0 %v1869
        %2096 = vmatprep.subr.bf16.mxu0 %v1864
        %2097 = vmatpush1.bf16.msra.mxu0 %v1863
        %2098 = vmatprep.subr.bf16.mxu0 %v1858
        %2099 = vmatpush1.bf16.msra.mxu0 %v1857
        %2100 = vmatprep.subr.bf16.mxu0 %v1852
        %2101 = vmatpush1.bf16.msra.mxu0 %v1851
        %2102 = vmatprep.subr.bf16.mxu0 %v1846
        %2103 = vmatpush1.bf16.msra.mxu0 %v1845
        %2104 = vmatprep.subr.bf16.mxu0 %v1936
        %2105 = vmatpush2.bf16.msra.mxu0 %v1935
        %2106 = vmatprep.subr.bf16.mxu0 %v1930
        %2107 = vmatpush2.bf16.msra.mxu0 %v1929
        %2108 = vmatprep.subr.bf16.mxu0 %v1924
        %2109 = vmatpush2.bf16.msra.mxu0 %v1923
        %2110 = vmatprep.subr.bf16.mxu0 %v1918
        %2111 = vmatpush2.bf16.msra.mxu0 %v1917
        %2112 = vmatprep.subr.bf16.mxu0 %v1912
        %2113 = vmatpush2.bf16.msra.mxu0 %v1911
        %2114 = vmatprep.subr.bf16.mxu0 %v1906
        %2115 = vmatpush2.bf16.msra.mxu0 %v1905
        %2116 = vmatprep.subr.bf16.mxu0 %v1900
        %2117 = vmatpush2.bf16.msra.mxu0 %v1899
        %2118 = vmatprep.subr.bf16.mxu0 %v1894
        %2119 = vmatpush2.bf16.msra.mxu0 %v1893
        %2120 = vmatprep.mubr.bf16.mxu0 %v1424
        %2121 = vmatmul.mubr.bf16.gmra.mxu0 %v1423
        %v2122 = vpop.f32.mrf.mxu0
        %v2123 = vadd.f32 %v1536, %v2122
        %v2124 = vpop.f32.mrf.mxu0
        %v2125 = vadd.f32 %v1540, %v2124
        %v2126 = vpop.f32.mrf.mxu0
        %v2127 = vadd.f32 %v1536, %v2126
        %v2128 = vpop.f32.mrf.mxu0
        %v2129 = vadd.f32 %v1540, %v2128
        %2130 = vmatprep.mubr.bf16.mxu0 %v1426
        %2131 = vmatmul.mubr.bf16.gmra.mxu0 %v1425
        %v2132 = vpop.f32.mrf.mxu0
        %v2133 = vadd.f32 %v1536, %v2132
        %v2134 = vpop.f32.mrf.mxu0
        %v2135 = vadd.f32 %v1540, %v2134
        %v2136 = vpop.f32.mrf.mxu0
        %v2137 = vadd.f32 %v1536, %v2136
        %v2138 = vpop.f32.mrf.mxu0
        %v2139 = vadd.f32 %v1540, %v2138
        %2140 = vdwg.mxu0
        %2141 = vmatprep.subr.bf16.mxu0 %v1890
        %2142 = vmatpush1.bf16.msra.mxu0 %v1889
        %2143 = vmatprep.subr.bf16.mxu0 %v1884
        %2144 = vmatpush1.bf16.msra.mxu0 %v1883
        %2145 = vmatprep.subr.bf16.mxu0 %v1878
        %2146 = vmatpush1.bf16.msra.mxu0 %v1877
        %2147 = vmatprep.subr.bf16.mxu0 %v1872
        %2148 = vmatpush1.bf16.msra.mxu0 %v1871
        %2149 = vmatprep.subr.bf16.mxu0 %v1866
        %2150 = vmatpush1.bf16.msra.mxu0 %v1865
        %2151 = vmatprep.subr.bf16.mxu0 %v1860
        %2152 = vmatpush1.bf16.msra.mxu0 %v1859
        %2153 = vmatprep.subr.bf16.mxu0 %v1854
        %2154 = vmatpush1.bf16.msra.mxu0 %v1853
        %2155 = vmatprep.subr.bf16.mxu0 %v1848
        %2156 = vmatpush1.bf16.msra.mxu0 %v1847
        %2157 = vmatprep.subr.bf16.mxu0 %v1938
        %2158 = vmatpush2.bf16.msra.mxu0 %v1937
        %2159 = vmatprep.subr.bf16.mxu0 %v1932
        %2160 = vmatpush2.bf16.msra.mxu0 %v1931
        %2161 = vmatprep.subr.bf16.mxu0 %v1926
        %2162 = vmatpush2.bf16.msra.mxu0 %v1925
        %2163 = vmatprep.subr.bf16.mxu0 %v1920
        %2164 = vmatpush2.bf16.msra.mxu0 %v1919
        %2165 = vmatprep.subr.bf16.mxu0 %v1914
        %2166 = vmatpush2.bf16.msra.mxu0 %v1913
        %2167 = vmatprep.subr.bf16.mxu0 %v1908
        %2168 = vmatpush2.bf16.msra.mxu0 %v1907
        %2169 = vmatprep.subr.bf16.mxu0 %v1902
        %2170 = vmatpush2.bf16.msra.mxu0 %v1901
        %2171 = vmatprep.subr.bf16.mxu0 %v1896
        %2172 = vmatpush2.bf16.msra.mxu0 %v1895
        %2173 = vmatprep.mubr.bf16.mxu0 %v1424
        %2174 = vmatmul.mubr.bf16.gmra.mxu0 %v1423
        %v2175 = vpop.f32.mrf.mxu0
        %v2176 = vadd.f32 %v1544, %v2175
        %v2177 = vpop.f32.mrf.mxu0
        %v2178 = vadd.f32 %v1548, %v2177
        %v2179 = vpop.f32.mrf.mxu0
        %v2180 = vadd.f32 %v1544, %v2179
        %v2181 = vpop.f32.mrf.mxu0
        %v2182 = vadd.f32 %v1548, %v2181
        %2183 = vmatprep.mubr.bf16.mxu0 %v1426
        %2184 = vmatmul.mubr.bf16.gmra.mxu0 %v1425
        %v2185 = vpop.f32.mrf.mxu0
        %v2186 = vadd.f32 %v1544, %v2185
        %v2187 = vpop.f32.mrf.mxu0
        %v2188 = vadd.f32 %v1548, %v2187
        %v2189 = vpop.f32.mrf.mxu0
        %v2190 = vadd.f32 %v1544, %v2189
        %v2191 = vpop.f32.mrf.mxu0
        %v2192 = vadd.f32 %v1548, %v2191
        %2193 = vdwg.mxu0
        %v2194 = vld [vmem:[%s1100] sm:$0xff]
        %v2195 = vld [vmem:[%s1100 + $0x8] sm:$0xff]
        %v2196 = vld [vmem:[%s1100 + $0x10] sm:$0xff]
        %v2197 = vld [vmem:[%s1100 + $0x18] sm:$0xff]
        %v2198 = vld [vmem:[%s1100 + $0x20] sm:$0xff]
        %v2199 = vld [vmem:[%s1100 + $0x28] sm:$0xff]
        %v2200 = vld [vmem:[%s1100 + $0x30] sm:$0xff]
        %v2201 = vld [vmem:[%s1100 + $0x38] sm:$0xff]
        %v2202 = vld [vmem:[%s1100 + $0x40] sm:$0xff]
        %v2203 = vld [vmem:[%s1100 + $0x48] sm:$0xff]
        %v2204 = vld [vmem:[%s1100 + $0x50] sm:$0xff]
        %v2205 = vld [vmem:[%s1100 + $0x58] sm:$0xff]
        %v2206 = vld [vmem:[%s1100 + $0x60] sm:$0xff]
        %v2207 = vld [vmem:[%s1100 + $0x68] sm:$0xff]
        %v2208 = vld [vmem:[%s1100 + $0x70] sm:$0xff]
        %v2209 = vld [vmem:[%s1100 + $0x78] sm:$0xff]
        %v2210 = vld [vmem:[%s1100 + $0x80] sm:$0xff]
        %v2211 = vld [vmem:[%s1100 + $0x88] sm:$0xff]
        %v2212 = vld [vmem:[%s1100 + $0x90] sm:$0xff]
        %v2213 = vld [vmem:[%s1100 + $0x98] sm:$0xff]
        %v2214 = vld [vmem:[%s1100 + $0xa0] sm:$0xff]
        %v2215 = vld [vmem:[%s1100 + $0xa8] sm:$0xff]
        %v2216 = vld [vmem:[%s1100 + $0xb0] sm:$0xff]
        %v2217 = vld [vmem:[%s1100 + $0xb8] sm:$0xff]
        %v2218 = vld [vmem:[%s1100 + $0xc0] sm:$0xff]
        %v2219 = vld [vmem:[%s1100 + $0xc8] sm:$0xff]
        %v2220 = vld [vmem:[%s1100 + $0xd0] sm:$0xff]
        %v2221 = vld [vmem:[%s1100 + $0xd8] sm:$0xff]
        %v2222 = vld [vmem:[%s1100 + $0xe0] sm:$0xff]
        %v2223 = vld [vmem:[%s1100 + $0xe8] sm:$0xff]
        %v2224 = vld [vmem:[%s1100 + $0xf0] sm:$0xff]
        %v2225 = vld [vmem:[%s1100 + $0xf8] sm:$0xff]
        %v2226 = vld [vmem:[%s1364] sm:$0x3]
        %v2227 = vpack.c.bf16 %v2074, %v2070
        %v2228 = vpack.c.bf16 %v2076, %v2072
        %v2229 = vpack.c.bf16 %v2084, %v2080
        %v2230 = vpack.c.bf16 %v2086, %v2082
        %v2231 = vpack.c.bf16 %v2127, %v2123
        %v2232 = vpack.c.bf16 %v2129, %v2125
        %v2233 = vpack.c.bf16 %v2137, %v2133
        %v2234 = vpack.c.bf16 %v2139, %v2135
        %v2235 = vpack.c.bf16 %v2180, %v2176
        %v2236 = vpack.c.bf16 %v2182, %v2178
        %v2237 = vpack.c.bf16 %v2190, %v2186
        %v2238 = vpack.c.bf16 %v2192, %v2188
        %2239 = vmatprep.subr.bf16.mxu0 0
        %2240 = vmatpush1.bf16.xpose.msra.mxu0 0
        %2241 = vmatprep.subr.bf16.mxu0 0
        %2242 = vmatpush1.bf16.xpose.msra.mxu0 0
        %2243 = vmatprep.subr.bf16.mxu0 0
        %2244 = vmatpush1.bf16.xpose.msra.mxu0 0
        %2245 = vmatprep.subr.bf16.mxu0 0
        %2246 = vmatpush1.bf16.xpose.msra.mxu0 0
        %2247 = vmatprep.subr.bf16.mxu0 0
        %2248 = vmatpush1.bf16.xpose.msra.mxu0 0
        %2249 = vmatprep.subr.bf16.mxu0 0
        %2250 = vmatpush1.bf16.xpose.msra.mxu0 0
        %2251 = vmatprep.subr.bf16.mxu0 0
        %2252 = vmatpush1.bf16.xpose.msra.mxu0 0
        %2253 = vmatprep.subr.bf16.mxu0 0
        %2254 = vmatpush1.bf16.xpose.msra.mxu0 %v2231
        %2255 = vmatprep.subr.bf16.mxu0 0
        %2256 = vmatpush2.bf16.xpose.msra.mxu0 0
        %2257 = vmatprep.subr.bf16.mxu0 0
        %2258 = vmatpush2.bf16.xpose.msra.mxu0 0
        %2259 = vmatprep.subr.bf16.mxu0 0
        %2260 = vmatpush2.bf16.xpose.msra.mxu0 0
        %2261 = vmatprep.subr.bf16.mxu0 0
        %2262 = vmatpush2.bf16.xpose.msra.mxu0 0
        %2263 = vmatprep.subr.bf16.mxu0 0
        %2264 = vmatpush2.bf16.xpose.msra.mxu0 0
        %2265 = vmatprep.subr.bf16.mxu0 0
        %2266 = vmatpush2.bf16.xpose.msra.mxu0 0
        %2267 = vmatprep.subr.bf16.mxu0 0
        %2268 = vmatpush2.bf16.xpose.msra.mxu0 0
        %2269 = vmatprep.subr.bf16.mxu0 0
        %2270 = vmatpush2.bf16.xpose.msra.mxu0 0
        %2271 = vmatprep.mubr.bf16.mxu0 0
        %2272 = vmatmul.mubr.bf16.gmra.mxu0 %v2227
        %v2273 = vpop.f32.mrf.mxu0
        %v2274 = vadd.f32 0.0, %v2273
        %v2275 = vpop.f32.mrf.mxu0
        %v2276 = vpop.f32.mrf.mxu0
        %v2277 = vadd.f32 0.0, %v2276
        %v2278 = vpop.f32.mrf.mxu0
        %2279 = vdwg.mxu0
        %2280 = vmatprep.subr.bf16.mxu0 0
        %2281 = vmatpush1.bf16.xpose.msra.mxu0 0
        %2282 = vmatprep.subr.bf16.mxu0 0
        %2283 = vmatpush1.bf16.xpose.msra.mxu0 0
        %2284 = vmatprep.subr.bf16.mxu0 0
        %2285 = vmatpush1.bf16.xpose.msra.mxu0 0
        %2286 = vmatprep.subr.bf16.mxu0 0
        %2287 = vmatpush1.bf16.xpose.msra.mxu0 0
        %2288 = vmatprep.subr.bf16.mxu0 0
        %2289 = vmatpush1.bf16.xpose.msra.mxu0 0
        %2290 = vmatprep.subr.bf16.mxu0 0
        %2291 = vmatpush1.bf16.xpose.msra.mxu0 0
        %2292 = vmatprep.subr.bf16.mxu0 0
        %2293 = vmatpush1.bf16.xpose.msra.mxu0 0
        %2294 = vmatprep.subr.bf16.mxu0 0
        %2295 = vmatpush1.bf16.xpose.msra.mxu0 %v2233
        %2296 = vmatprep.subr.bf16.mxu0 0
        %2297 = vmatpush2.bf16.xpose.msra.mxu0 0
        %2298 = vmatprep.subr.bf16.mxu0 0
        %2299 = vmatpush2.bf16.xpose.msra.mxu0 0
        %2300 = vmatprep.subr.bf16.mxu0 0
        %2301 = vmatpush2.bf16.xpose.msra.mxu0 0
        %2302 = vmatprep.subr.bf16.mxu0 0
        %2303 = vmatpush2.bf16.xpose.msra.mxu0 0
        %2304 = vmatprep.subr.bf16.mxu0 0
        %2305 = vmatpush2.bf16.xpose.msra.mxu0 0
        %2306 = vmatprep.subr.bf16.mxu0 0
        %2307 = vmatpush2.bf16.xpose.msra.mxu0 0
        %2308 = vmatprep.subr.bf16.mxu0 0
        %2309 = vmatpush2.bf16.xpose.msra.mxu0 0
        %2310 = vmatprep.subr.bf16.mxu0 0
        %2311 = vmatpush2.bf16.xpose.msra.mxu0 0
        %2312 = vmatprep.mubr.bf16.mxu0 0
        %2313 = vmatmul.mubr.bf16.gmra.mxu0 %v2229
        %v2314 = vpop.f32.mrf.mxu0
        %v2315 = vadd.f32 0.0, %v2314
        %v2316 = vpop.f32.mrf.mxu0
        %v2317 = vpop.f32.mrf.mxu0
        %v2318 = vadd.f32 0.0, %v2317
        %v2319 = vpop.f32.mrf.mxu0
        %2320 = vdwg.mxu0
        %2321 = vmatprep.subr.bf16.mxu0 0
        %2322 = vmatpush1.bf16.xpose.msra.mxu0 0
        %2323 = vmatprep.subr.bf16.mxu0 0
        %2324 = vmatpush1.bf16.xpose.msra.mxu0 0
        %2325 = vmatprep.subr.bf16.mxu0 0
        %2326 = vmatpush1.bf16.xpose.msra.mxu0 0
        %2327 = vmatprep.subr.bf16.mxu0 0
        %2328 = vmatpush1.bf16.xpose.msra.mxu0 0
        %2329 = vmatprep.subr.bf16.mxu0 0
        %2330 = vmatpush1.bf16.xpose.msra.mxu0 0
        %2331 = vmatprep.subr.bf16.mxu0 0
        %2332 = vmatpush1.bf16.xpose.msra.mxu0 0
        %2333 = vmatprep.subr.bf16.mxu0 0
        %2334 = vmatpush1.bf16.xpose.msra.mxu0 0
        %2335 = vmatprep.subr.bf16.mxu0 0
        %2336 = vmatpush1.bf16.xpose.msra.mxu0 %v2232
        %2337 = vmatprep.subr.bf16.mxu0 0
        %2338 = vmatpush2.bf16.xpose.msra.mxu0 0
        %2339 = vmatprep.subr.bf16.mxu0 0
        %2340 = vmatpush2.bf16.xpose.msra.mxu0 0
        %2341 = vmatprep.subr.bf16.mxu0 0
        %2342 = vmatpush2.bf16.xpose.msra.mxu0 0
        %2343 = vmatprep.subr.bf16.mxu0 0
        %2344 = vmatpush2.bf16.xpose.msra.mxu0 0
        %2345 = vmatprep.subr.bf16.mxu0 0
        %2346 = vmatpush2.bf16.xpose.msra.mxu0 0
        %2347 = vmatprep.subr.bf16.mxu0 0
        %2348 = vmatpush2.bf16.xpose.msra.mxu0 0
        %2349 = vmatprep.subr.bf16.mxu0 0
        %2350 = vmatpush2.bf16.xpose.msra.mxu0 0
        %2351 = vmatprep.subr.bf16.mxu0 0
        %2352 = vmatpush2.bf16.xpose.msra.mxu0 0
        %2353 = vmatprep.mubr.bf16.mxu0 0
        %2354 = vmatmul.mubr.bf16.gmra.mxu0 %v2228
        %v2355 = vpop.f32.mrf.mxu0
        %v2356 = vadd.f32 0.0, %v2355
        %v2357 = vpop.f32.mrf.mxu0
        %v2358 = vpop.f32.mrf.mxu0
        %v2359 = vadd.f32 0.0, %v2358
        %v2360 = vpop.f32.mrf.mxu0
        %2361 = vdwg.mxu0
        %2362 = vmatprep.subr.bf16.mxu0 0
        %2363 = vmatpush1.bf16.xpose.msra.mxu0 0
        %2364 = vmatprep.subr.bf16.mxu0 0
        %2365 = vmatpush1.bf16.xpose.msra.mxu0 0
        %2366 = vmatprep.subr.bf16.mxu0 0
        %2367 = vmatpush1.bf16.xpose.msra.mxu0 0
        %2368 = vmatprep.subr.bf16.mxu0 0
        %2369 = vmatpush1.bf16.xpose.msra.mxu0 0
        %2370 = vmatprep.subr.bf16.mxu0 0
        %2371 = vmatpush1.bf16.xpose.msra.mxu0 0
        %2372 = vmatprep.subr.bf16.mxu0 0
        %2373 = vmatpush1.bf16.xpose.msra.mxu0 0
        %2374 = vmatprep.subr.bf16.mxu0 0
        %2375 = vmatpush1.bf16.xpose.msra.mxu0 0
        %2376 = vmatprep.subr.bf16.mxu0 0
        %2377 = vmatpush1.bf16.xpose.msra.mxu0 %v2234
        %2378 = vmatprep.subr.bf16.mxu0 0
        %2379 = vmatpush2.bf16.xpose.msra.mxu0 0
        %2380 = vmatprep.subr.bf16.mxu0 0
        %2381 = vmatpush2.bf16.xpose.msra.mxu0 0
        %2382 = vmatprep.subr.bf16.mxu0 0
        %2383 = vmatpush2.bf16.xpose.msra.mxu0 0
        %2384 = vmatprep.subr.bf16.mxu0 0
        %2385 = vmatpush2.bf16.xpose.msra.mxu0 0
        %2386 = vmatprep.subr.bf16.mxu0 0
        %2387 = vmatpush2.bf16.xpose.msra.mxu0 0
        %2388 = vmatprep.subr.bf16.mxu0 0
        %2389 = vmatpush2.bf16.xpose.msra.mxu0 0
        %2390 = vmatprep.subr.bf16.mxu0 0
        %2391 = vmatpush2.bf16.xpose.msra.mxu0 0
        %2392 = vmatprep.subr.bf16.mxu0 0
        %2393 = vmatpush2.bf16.xpose.msra.mxu0 0
        %2394 = vmatprep.mubr.bf16.mxu0 0
        %2395 = vmatmul.mubr.bf16.gmra.mxu0 %v2230
        %v2396 = vpop.f32.mrf.mxu0
        %v2397 = vadd.f32 0.0, %v2396
        %v2398 = vpop.f32.mrf.mxu0
        %v2399 = vpop.f32.mrf.mxu0
        %v2400 = vadd.f32 0.0, %v2399
        %v2401 = vpop.f32.mrf.mxu0
        %2402 = vdwg.mxu0
        %vm2403 = vcmask 130048
        %v2404 = vsel %vm2403, %v2274, -inf
        %2405 = vmax.xlane.f32.xlu0 %v2404
        %v2406 = vpop.xlane.xlu0 %2405
        %v2407 = vsel %vm2403, %v2277, -inf
        %2408 = vmax.xlane.f32.xlu0 %v2407
        %v2409 = vpop.xlane.xlu0 %2408
        %v2410 = vsel %vm2403, %v2315, -inf
        %2411 = vmax.xlane.f32.xlu0 %v2410
        %v2412 = vpop.xlane.xlu0 %2411
        %v2413 = vsel %vm2403, %v2318, -inf
        %2414 = vmax.xlane.f32.xlu0 %v2413
        %v2415 = vpop.xlane.xlu0 %2414
        %v2416 = vsel %vm2403, %v2356, -inf
        %2417 = vmax.xlane.f32.xlu0 %v2416
        %v2418 = vpop.xlane.xlu0 %2417
        %v2419 = vsel %vm2403, %v2359, -inf
        %2420 = vmax.xlane.f32.xlu0 %v2419
        %v2421 = vpop.xlane.xlu0 %2420
        %v2422 = vsel %vm2403, %v2397, -inf
        %2423 = vmax.xlane.f32.xlu0 %v2422
        %v2424 = vpop.xlane.xlu0 %2423
        %v2425 = vsel %vm2403, %v2400, -inf
        %2426 = vmax.xlane.f32.xlu0 %v2425
        %v2427 = vpop.xlane.xlu0 %2426
        %v2428 = vsub.f32 %v2274, %v2406
        %v2429 = vsub.f32 %v2277, %v2409
        %v2430 = vsub.f32 %v2315, %v2412
        %v2431 = vsub.f32 %v2318, %v2415
        %v2432 = vsub.f32 %v2356, %v2418
        %v2433 = vsub.f32 %v2359, %v2421
        %v2434 = vsub.f32 %v2397, %v2424
        %v2435 = vsub.f32 %v2400, %v2427
        %v2436 = vmul.f32 %v2428, 1.442695
        %v2437 = vpow.pop %v2436
        %v2438 = vmul.f32 %v2429, 1.442695
        %v2439 = vpow.pop %v2438
        %v2440 = vmul.f32 %v2430, 1.442695
        %v2441 = vpow.pop %v2440
        %v2442 = vmul.f32 %v2431, 1.442695
        %v2443 = vpow.pop %v2442
        %v2444 = vmul.f32 %v2432, 1.442695
        %v2445 = vpow.pop %v2444
        %v2446 = vmul.f32 %v2433, 1.442695
        %v2447 = vpow.pop %v2446
        %v2448 = vmul.f32 %v2434, 1.442695
        %v2449 = vpow.pop %v2448
        %v2450 = vmul.f32 %v2435, 1.442695
        %v2451 = vpow.pop %v2450
        %v2452 = vsel %vm2403, %v2437, 0.0
        %2453 = vadd.xlane.f32.xlu0 %v2452
        %v2454 = vpop.xlane.xlu0 %2453
        %v2455 = vsel %vm2403, %v2439, 0.0
        %2456 = vadd.xlane.f32.xlu0 %v2455
        %v2457 = vpop.xlane.xlu0 %2456
        %v2458 = vsel %vm2403, %v2441, 0.0
        %2459 = vadd.xlane.f32.xlu0 %v2458
        %v2460 = vpop.xlane.xlu0 %2459
        %v2461 = vsel %vm2403, %v2443, 0.0
        %2462 = vadd.xlane.f32.xlu0 %v2461
        %v2463 = vpop.xlane.xlu0 %2462
        %v2464 = vsel %vm2403, %v2445, 0.0
        %2465 = vadd.xlane.f32.xlu0 %v2464
        %v2466 = vpop.xlane.xlu0 %2465
        %v2467 = vsel %vm2403, %v2447, 0.0
        %2468 = vadd.xlane.f32.xlu0 %v2467
        %v2469 = vpop.xlane.xlu0 %2468
        %v2470 = vsel %vm2403, %v2449, 0.0
        %2471 = vadd.xlane.f32.xlu0 %v2470
        %v2472 = vpop.xlane.xlu0 %2471
        %v2473 = vsel %vm2403, %v2451, 0.0
        %2474 = vadd.xlane.f32.xlu0 %v2473
        %v2475 = vpop.xlane.xlu0 %2474
        %v2476 = vrcp.pop %v2454
        %v2477 = vrcp.pop %v2457
        %v2478 = vrcp.pop %v2460
        %v2479 = vrcp.pop %v2463
        %v2480 = vrcp.pop %v2466
        %v2481 = vrcp.pop %v2469
        %v2482 = vrcp.pop %v2472
        %v2483 = vrcp.pop %v2475
        %v2484 = vmul.f32 %v2437, %v2476
        %v2485 = vmul.f32 %v2439, %v2477
        %v2486 = vmul.f32 %v2441, %v2478
        %v2487 = vmul.f32 %v2443, %v2479
        %v2488 = vmul.f32 %v2445, %v2480
        %v2489 = vmul.f32 %v2447, %v2481
        %v2490 = vmul.f32 %v2449, %v2482
        %v2491 = vmul.f32 %v2451, %v2483
        %v2492 = vpack.c.bf16 %v2485, %v2484
        %v2493 = vpack.c.bf16 %v2487, %v2486
        %v2494 = vpack.c.bf16 %v2489, %v2488
        %v2495 = vpack.c.bf16 %v2491, %v2490
        %v2497 = vsel %vm2403, %v2492, 0
        %2499 = vmatprep.subr.bf16.mxu0 0
        %2500 = vmatpush1.bf16.msra.mxu0 0
        %2501 = vmatprep.subr.bf16.mxu0 0
        %2502 = vmatpush1.bf16.msra.mxu0 0
        %2503 = vmatprep.subr.bf16.mxu0 0
        %2504 = vmatpush1.bf16.msra.mxu0 0
        %2505 = vmatprep.subr.bf16.mxu0 0
        %2506 = vmatpush1.bf16.msra.mxu0 0
        %2507 = vmatprep.subr.bf16.mxu0 0
        %2508 = vmatpush1.bf16.msra.mxu0 0
        %2509 = vmatprep.subr.bf16.mxu0 0
        %2510 = vmatpush1.bf16.msra.mxu0 0
        %2511 = vmatprep.subr.bf16.mxu0 0
        %2512 = vmatpush1.bf16.msra.mxu0 0
        %2513 = vmatprep.subr.bf16.mxu0 0
        %2514 = vmatpush1.bf16.msra.mxu0 %v2235
        %2515 = vmatprep.subr.bf16.mxu0 0
        %2516 = vmatpush2.bf16.msra.mxu0 0
        %2517 = vmatprep.subr.bf16.mxu0 0
        %2518 = vmatpush2.bf16.msra.mxu0 0
        %2519 = vmatprep.subr.bf16.mxu0 0
        %2520 = vmatpush2.bf16.msra.mxu0 0
        %2521 = vmatprep.subr.bf16.mxu0 0
        %2522 = vmatpush2.bf16.msra.mxu0 0
        %2523 = vmatprep.subr.bf16.mxu0 0
        %2524 = vmatpush2.bf16.msra.mxu0 0
        %2525 = vmatprep.subr.bf16.mxu0 0
        %2526 = vmatpush2.bf16.msra.mxu0 0
        %2527 = vmatprep.subr.bf16.mxu0 0
        %2528 = vmatpush2.bf16.msra.mxu0 0
        %2529 = vmatprep.subr.bf16.mxu0 0
        %2530 = vmatpush2.bf16.msra.mxu0 0
        %2531 = vmatprep.mubr.bf16.mxu0 0
        %2532 = vmatmul.mubr.bf16.gmra.mxu0 %v2497
        %v2533 = vpop.f32.mrf.mxu0
        %v2534 = vadd.f32 0.0, %v2533
        %v2535 = vpop.f32.mrf.mxu0
        %v2536 = vpop.f32.mrf.mxu0
        %v2537 = vadd.f32 0.0, %v2536
        %v2538 = vpop.f32.mrf.mxu0
        %2539 = vdwg.mxu0
        %v2541 = vsel %vm2403, %v2493, 0
        %2543 = vmatprep.subr.bf16.mxu0 0
        %2544 = vmatpush1.bf16.msra.mxu0 0
        %2545 = vmatprep.subr.bf16.mxu0 0
        %2546 = vmatpush1.bf16.msra.mxu0 0
        %2547 = vmatprep.subr.bf16.mxu0 0
        %2548 = vmatpush1.bf16.msra.mxu0 0
        %2549 = vmatprep.subr.bf16.mxu0 0
        %2550 = vmatpush1.bf16.msra.mxu0 0
        %2551 = vmatprep.subr.bf16.mxu0 0
        %2552 = vmatpush1.bf16.msra.mxu0 0
        %2553 = vmatprep.subr.bf16.mxu0 0
        %2554 = vmatpush1.bf16.msra.mxu0 0
        %2555 = vmatprep.subr.bf16.mxu0 0
        %2556 = vmatpush1.bf16.msra.mxu0 0
        %2557 = vmatprep.subr.bf16.mxu0 0
        %2558 = vmatpush1.bf16.msra.mxu0 %v2237
        %2559 = vmatprep.subr.bf16.mxu0 0
        %2560 = vmatpush2.bf16.msra.mxu0 0
        %2561 = vmatprep.subr.bf16.mxu0 0
        %2562 = vmatpush2.bf16.msra.mxu0 0
        %2563 = vmatprep.subr.bf16.mxu0 0
        %2564 = vmatpush2.bf16.msra.mxu0 0
        %2565 = vmatprep.subr.bf16.mxu0 0
        %2566 = vmatpush2.bf16.msra.mxu0 0
        %2567 = vmatprep.subr.bf16.mxu0 0
        %2568 = vmatpush2.bf16.msra.mxu0 0
        %2569 = vmatprep.subr.bf16.mxu0 0
        %2570 = vmatpush2.bf16.msra.mxu0 0
        %2571 = vmatprep.subr.bf16.mxu0 0
        %2572 = vmatpush2.bf16.msra.mxu0 0
        %2573 = vmatprep.subr.bf16.mxu0 0
        %2574 = vmatpush2.bf16.msra.mxu0 0
        %2575 = vmatprep.mubr.bf16.mxu0 0
        %2576 = vmatmul.mubr.bf16.gmra.mxu0 %v2541
        %v2577 = vpop.f32.mrf.mxu0
        %v2578 = vadd.f32 0.0, %v2577
        %v2579 = vpop.f32.mrf.mxu0
        %v2580 = vpop.f32.mrf.mxu0
        %v2581 = vadd.f32 0.0, %v2580
        %v2582 = vpop.f32.mrf.mxu0
        %2583 = vdwg.mxu0
        %v2585 = vsel %vm2403, %v2494, 0
        %2587 = vmatprep.subr.bf16.mxu0 0
        %2588 = vmatpush1.bf16.msra.mxu0 0
        %2589 = vmatprep.subr.bf16.mxu0 0
        %2590 = vmatpush1.bf16.msra.mxu0 0
        %2591 = vmatprep.subr.bf16.mxu0 0
        %2592 = vmatpush1.bf16.msra.mxu0 0
        %2593 = vmatprep.subr.bf16.mxu0 0
        %2594 = vmatpush1.bf16.msra.mxu0 0
        %2595 = vmatprep.subr.bf16.mxu0 0
        %2596 = vmatpush1.bf16.msra.mxu0 0
        %2597 = vmatprep.subr.bf16.mxu0 0
        %2598 = vmatpush1.bf16.msra.mxu0 0
        %2599 = vmatprep.subr.bf16.mxu0 0
        %2600 = vmatpush1.bf16.msra.mxu0 0
        %2601 = vmatprep.subr.bf16.mxu0 0
        %2602 = vmatpush1.bf16.msra.mxu0 %v2236
        %2603 = vmatprep.subr.bf16.mxu0 0
        %2604 = vmatpush2.bf16.msra.mxu0 0
        %2605 = vmatprep.subr.bf16.mxu0 0
        %2606 = vmatpush2.bf16.msra.mxu0 0
        %2607 = vmatprep.subr.bf16.mxu0 0
        %2608 = vmatpush2.bf16.msra.mxu0 0
        %2609 = vmatprep.subr.bf16.mxu0 0
        %2610 = vmatpush2.bf16.msra.mxu0 0
        %2611 = vmatprep.subr.bf16.mxu0 0
        %2612 = vmatpush2.bf16.msra.mxu0 0
        %2613 = vmatprep.subr.bf16.mxu0 0
        %2614 = vmatpush2.bf16.msra.mxu0 0
        %2615 = vmatprep.subr.bf16.mxu0 0
        %2616 = vmatpush2.bf16.msra.mxu0 0
        %2617 = vmatprep.subr.bf16.mxu0 0
        %2618 = vmatpush2.bf16.msra.mxu0 0
        %2619 = vmatprep.mubr.bf16.mxu0 0
        %2620 = vmatmul.mubr.bf16.gmra.mxu0 %v2585
        %v2621 = vpop.f32.mrf.mxu0
        %v2622 = vadd.f32 0.0, %v2621
        %v2623 = vpop.f32.mrf.mxu0
        %v2624 = vpop.f32.mrf.mxu0
        %v2625 = vadd.f32 0.0, %v2624
        %v2626 = vpop.f32.mrf.mxu0
        %2627 = vdwg.mxu0
        %v2629 = vsel %vm2403, %v2495, 0
        %2631 = vmatprep.subr.bf16.mxu0 0
        %2632 = vmatpush1.bf16.msra.mxu0 0
        %2633 = vmatprep.subr.bf16.mxu0 0
        %2634 = vmatpush1.bf16.msra.mxu0 0
        %2635 = vmatprep.subr.bf16.mxu0 0
        %2636 = vmatpush1.bf16.msra.mxu0 0
        %2637 = vmatprep.subr.bf16.mxu0 0
        %2638 = vmatpush1.bf16.msra.mxu0 0
        %2639 = vmatprep.subr.bf16.mxu0 0
        %2640 = vmatpush1.bf16.msra.mxu0 0
        %2641 = vmatprep.subr.bf16.mxu0 0
        %2642 = vmatpush1.bf16.msra.mxu0 0
        %2643 = vmatprep.subr.bf16.mxu0 0
        %2644 = vmatpush1.bf16.msra.mxu0 0
        %2645 = vmatprep.subr.bf16.mxu0 0
        %2646 = vmatpush1.bf16.msra.mxu0 %v2238
        %2647 = vmatprep.subr.bf16.mxu0 0
        %2648 = vmatpush2.bf16.msra.mxu0 0
        %2649 = vmatprep.subr.bf16.mxu0 0
        %2650 = vmatpush2.bf16.msra.mxu0 0
        %2651 = vmatprep.subr.bf16.mxu0 0
        %2652 = vmatpush2.bf16.msra.mxu0 0
        %2653 = vmatprep.subr.bf16.mxu0 0
        %2654 = vmatpush2.bf16.msra.mxu0 0
        %2655 = vmatprep.subr.bf16.mxu0 0
        %2656 = vmatpush2.bf16.msra.mxu0 0
        %2657 = vmatprep.subr.bf16.mxu0 0
        %2658 = vmatpush2.bf16.msra.mxu0 0
        %2659 = vmatprep.subr.bf16.mxu0 0
        %2660 = vmatpush2.bf16.msra.mxu0 0
        %2661 = vmatprep.subr.bf16.mxu0 0
        %2662 = vmatpush2.bf16.msra.mxu0 0
        %2663 = vmatprep.mubr.bf16.mxu0 0
        %2664 = vmatmul.mubr.bf16.gmra.mxu0 %v2629
        %v2665 = vpop.f32.mrf.mxu0
        %v2666 = vadd.f32 0.0, %v2665
        %v2667 = vpop.f32.mrf.mxu0
        %v2668 = vpop.f32.mrf.mxu0
        %v2669 = vadd.f32 0.0, %v2668
        %v2670 = vpop.f32.mrf.mxu0
        %2671 = vdwg.mxu0
        %v2672 = vpack.c.bf16 %v2537, %v2534
        %v2673 = vpack.c.bf16 %v2581, %v2578
        %v2674 = vpack.c.bf16 %v2625, %v2622
        %v2675 = vpack.c.bf16 %v2669, %v2666
        %v2677 = vlaneseq
        %v2678 = vshrl.u32 %v2677, 7
        %v2679 = vsub.s32 0, %v2678
        %v2680 = vrot.slane %v2226, %v2679
        %v2681 = vlaneseq
        %v2682 = vshrl.u32 %v2681, 7
        %v2683 = vsub.s32 1, %v2682
        %v2684 = vrot.slane %v2226, %v2683
        %v2719 = vunpack.c.l.b16 %v2194
        %v2720 = vunpack.c.h.b16 %v2194
        %v2721 = vunpack.c.l.b16 %v2195
        %v2722 = vunpack.c.h.b16 %v2195
        %v2723 = vunpack.c.l.b16 %v2196
        %v2724 = vunpack.c.h.b16 %v2196
        %v2725 = vunpack.c.l.b16 %v2197
        %v2726 = vunpack.c.h.b16 %v2197
        %v2727 = vunpack.c.l.b16 %v2198
        %v2728 = vunpack.c.h.b16 %v2198
        %v2729 = vunpack.c.l.b16 %v2199
        %v2730 = vunpack.c.h.b16 %v2199
        %v2731 = vunpack.c.l.b16 %v2200
        %v2732 = vunpack.c.h.b16 %v2200
        %v2733 = vunpack.c.l.b16 %v2201
        %v2734 = vunpack.c.h.b16 %v2201
        %v2735 = vunpack.c.l.b16 %v2202
        %v2736 = vunpack.c.h.b16 %v2202
        %v2737 = vunpack.c.l.b16 %v2203
        %v2738 = vunpack.c.h.b16 %v2203
        %v2739 = vunpack.c.l.b16 %v2204
        %v2740 = vunpack.c.h.b16 %v2204
        %v2741 = vunpack.c.l.b16 %v2205
        %v2742 = vunpack.c.h.b16 %v2205
        %v2743 = vunpack.c.l.b16 %v2206
        %v2744 = vunpack.c.h.b16 %v2206
        %v2745 = vunpack.c.l.b16 %v2207
        %v2746 = vunpack.c.h.b16 %v2207
        %v2747 = vunpack.c.l.b16 %v2208
        %v2748 = vunpack.c.h.b16 %v2208
        %v2749 = vunpack.c.l.b16 %v2209
        %v2750 = vunpack.c.h.b16 %v2209
        %v2751 = vunpack.c.l.b16 %v2210
        %v2752 = vunpack.c.h.b16 %v2210
        %v2753 = vunpack.c.l.b16 %v2211
        %v2754 = vunpack.c.h.b16 %v2211
        %v2755 = vunpack.c.l.b16 %v2212
        %v2756 = vunpack.c.h.b16 %v2212
        %v2757 = vunpack.c.l.b16 %v2213
        %v2758 = vunpack.c.h.b16 %v2213
        %v2759 = vunpack.c.l.b16 %v2214
        %v2760 = vunpack.c.h.b16 %v2214
        %v2761 = vunpack.c.l.b16 %v2215
        %v2762 = vunpack.c.h.b16 %v2215
        %v2763 = vunpack.c.l.b16 %v2216
        %v2764 = vunpack.c.h.b16 %v2216
        %v2765 = vunpack.c.l.b16 %v2217
        %v2766 = vunpack.c.h.b16 %v2217
        %v2767 = vunpack.c.l.b16 %v2218
        %v2768 = vunpack.c.h.b16 %v2218
        %v2769 = vunpack.c.l.b16 %v2219
        %v2770 = vunpack.c.h.b16 %v2219
        %v2771 = vunpack.c.l.b16 %v2220
        %v2772 = vunpack.c.h.b16 %v2220
        %v2773 = vunpack.c.l.b16 %v2221
        %v2774 = vunpack.c.h.b16 %v2221
        %v2775 = vunpack.c.l.b16 %v2222
        %v2776 = vunpack.c.h.b16 %v2222
        %v2777 = vunpack.c.l.b16 %v2223
        %v2778 = vunpack.c.h.b16 %v2223
        %v2779 = vunpack.c.l.b16 %v2224
        %v2780 = vunpack.c.h.b16 %v2224
        %v2781 = vunpack.c.l.b16 %v2225
        %v2782 = vunpack.c.h.b16 %v2225
        %v2783 = vpack.c.b16 %v2721, %v2719
        %v2784 = vpack.c.b16 %v2722, %v2720
        %v2785 = vpack.c.b16 %v2725, %v2723
        %v2786 = vpack.c.b16 %v2726, %v2724
        %v2787 = vpack.c.b16 %v2729, %v2727
        %v2788 = vpack.c.b16 %v2730, %v2728
        %v2789 = vpack.c.b16 %v2733, %v2731
        %v2790 = vpack.c.b16 %v2734, %v2732
        %v2791 = vpack.c.b16 %v2737, %v2735
        %v2792 = vpack.c.b16 %v2738, %v2736
        %v2793 = vpack.c.b16 %v2741, %v2739
        %v2794 = vpack.c.b16 %v2742, %v2740
        %v2795 = vpack.c.b16 %v2745, %v2743
        %v2796 = vpack.c.b16 %v2746, %v2744
        %v2797 = vpack.c.b16 %v2749, %v2747
        %v2798 = vpack.c.b16 %v2750, %v2748
        %v2799 = vpack.c.b16 %v2753, %v2751
        %v2800 = vpack.c.b16 %v2754, %v2752
        %v2801 = vpack.c.b16 %v2757, %v2755
        %v2802 = vpack.c.b16 %v2758, %v2756
        %v2803 = vpack.c.b16 %v2761, %v2759
        %v2804 = vpack.c.b16 %v2762, %v2760
        %v2805 = vpack.c.b16 %v2765, %v2763
        %v2806 = vpack.c.b16 %v2766, %v2764
        %v2807 = vpack.c.b16 %v2769, %v2767
        %v2808 = vpack.c.b16 %v2770, %v2768
        %v2809 = vpack.c.b16 %v2773, %v2771
        %v2810 = vpack.c.b16 %v2774, %v2772
        %v2811 = vpack.c.b16 %v2777, %v2775
        %v2812 = vpack.c.b16 %v2778, %v2776
        %v2813 = vpack.c.b16 %v2781, %v2779
        %v2814 = vpack.c.b16 %v2782, %v2780
        %2847 = vmatprep.subr.bf16.mxu0 %v2798
        %2848 = vmatpush1.bf16.msra.mxu0 %v2797
        %2849 = vmatprep.subr.bf16.mxu0 %v2796
        %2850 = vmatpush1.bf16.msra.mxu0 %v2795
        %2851 = vmatprep.subr.bf16.mxu0 %v2794
        %2852 = vmatpush1.bf16.msra.mxu0 %v2793
        %2853 = vmatprep.subr.bf16.mxu0 %v2792
        %2854 = vmatpush1.bf16.msra.mxu0 %v2791
        %2855 = vmatprep.subr.bf16.mxu0 %v2790
        %2856 = vmatpush1.bf16.msra.mxu0 %v2789
        %2857 = vmatprep.subr.bf16.mxu0 %v2788
        %2858 = vmatpush1.bf16.msra.mxu0 %v2787
        %2859 = vmatprep.subr.bf16.mxu0 %v2786
        %2860 = vmatpush1.bf16.msra.mxu0 %v2785
        %2861 = vmatprep.subr.bf16.mxu0 %v2784
        %2862 = vmatpush1.bf16.msra.mxu0 %v2783
        %2863 = vmatprep.subr.bf16.mxu0 %v2814
        %2864 = vmatpush2.bf16.msra.mxu0 %v2813
        %2865 = vmatprep.subr.bf16.mxu0 %v2812
        %2866 = vmatpush2.bf16.msra.mxu0 %v2811
        %2867 = vmatprep.subr.bf16.mxu0 %v2810
        %2868 = vmatpush2.bf16.msra.mxu0 %v2809
        %2869 = vmatprep.subr.bf16.mxu0 %v2808
        %2870 = vmatpush2.bf16.msra.mxu0 %v2807
        %2871 = vmatprep.subr.bf16.mxu0 %v2806
        %2872 = vmatpush2.bf16.msra.mxu0 %v2805
        %2873 = vmatprep.subr.bf16.mxu0 %v2804
        %2874 = vmatpush2.bf16.msra.mxu0 %v2803
        %2875 = vmatprep.subr.bf16.mxu0 %v2802
        %2876 = vmatpush2.bf16.msra.mxu0 %v2801
        %2877 = vmatprep.subr.bf16.mxu0 %v2800
        %2878 = vmatpush2.bf16.msra.mxu0 %v2799
        %2879 = vmatprep.mubr.bf16.mxu0 %v2674
        %2880 = vmatmul.mubr.bf16.gmra.mxu0 %v2672
        %v2881 = vpop.f32.mrf.mxu0
        %v2882 = vadd.f32 %v2680, %v2881
        %v2883 = vpop.f32.mrf.mxu0
        %v2884 = vadd.f32 %v2684, %v2883
        %v2885 = vpop.f32.mrf.mxu0
        %v2886 = vadd.f32 %v2680, %v2885
        %v2887 = vpop.f32.mrf.mxu0
        %v2888 = vadd.f32 %v2684, %v2887
        %2889 = vmatprep.mubr.bf16.mxu0 %v2675
        %2890 = vmatmul.mubr.bf16.gmra.mxu0 %v2673
        %v2891 = vpop.f32.mrf.mxu0
        %v2892 = vadd.f32 %v2680, %v2891
        %v2893 = vpop.f32.mrf.mxu0
        %v2894 = vadd.f32 %v2684, %v2893
        %v2895 = vpop.f32.mrf.mxu0
        %v2896 = vadd.f32 %v2680, %v2895
        %v2897 = vpop.f32.mrf.mxu0
        %v2898 = vadd.f32 %v2684, %v2897
        %2899 = vdwg.mxu0
        %v2900 = vadd.f32 %v1411, %v2882
        %v2901 = vadd.f32 %v1412, %v2884
        %v2902 = vadd.f32 %v1413, %v2886
        %v2903 = vadd.f32 %v1414, %v2888
        %v2904 = vadd.f32 %v1415, %v2892
        %v2905 = vadd.f32 %v1416, %v2894
        %v2906 = vadd.f32 %v1417, %v2896
        %v2907 = vadd.f32 %v1418, %v2898
        %v2908 = vld [vmem:[%s1376] sm:$0x3]
        %v2909 = vld [vmem:[%s1181] sm:$0x3]
        %v2910 = vadd.f32 %v2900, %v2901
        %2911 = vadd.xlane.f32.xlu0 %v2910
        %v2912 = vpop.xlane.xlu0 %2911
        %v2913 = vadd.f32 %v2902, %v2903
        %2914 = vadd.xlane.f32.xlu0 %v2913
        %v2915 = vpop.xlane.xlu0 %2914
        %v2916 = vadd.f32 %v2904, %v2905
        %2917 = vadd.xlane.f32.xlu0 %v2916
        %v2918 = vpop.xlane.xlu0 %2917
        %v2919 = vadd.f32 %v2906, %v2907
        %2920 = vadd.xlane.f32.xlu0 %v2919
        %v2921 = vpop.xlane.xlu0 %2920
        %v2922 = vrcp.pop 256.0
        %v2923 = vmul.f32 %v2912, %v2922
        %v2924 = vmul.f32 %v2915, %v2922
        %v2925 = vmul.f32 %v2918, %v2922
        %v2926 = vmul.f32 %v2921, %v2922
        %v2927 = vsub.f32 %v2900, %v2923
        %v2928 = vsub.f32 %v2901, %v2923
        %v2929 = vsub.f32 %v2902, %v2924
        %v2930 = vsub.f32 %v2903, %v2924
        %v2931 = vsub.f32 %v2904, %v2925
        %v2932 = vsub.f32 %v2905, %v2925
        %v2933 = vsub.f32 %v2906, %v2926
        %v2934 = vsub.f32 %v2907, %v2926
        %v2935 = vmul.f32 %v2927, %v2927
        %v2936 = vmul.f32 %v2928, %v2928
        %v2937 = vmul.f32 %v2929, %v2929
        %v2938 = vmul.f32 %v2930, %v2930
        %v2939 = vmul.f32 %v2931, %v2931
        %v2940 = vmul.f32 %v2932, %v2932
        %v2941 = vmul.f32 %v2933, %v2933
        %v2942 = vmul.f32 %v2934, %v2934
        %v2943 = vadd.f32 %v2935, %v2936
        %2944 = vadd.xlane.f32.xlu0 %v2943
        %v2945 = vpop.xlane.xlu0 %2944
        %v2946 = vadd.f32 %v2937, %v2938
        %2947 = vadd.xlane.f32.xlu0 %v2946
        %v2948 = vpop.xlane.xlu0 %2947
        %v2949 = vadd.f32 %v2939, %v2940
        %2950 = vadd.xlane.f32.xlu0 %v2949
        %v2951 = vpop.xlane.xlu0 %2950
        %v2952 = vadd.f32 %v2941, %v2942
        %2953 = vadd.xlane.f32.xlu0 %v2952
        %v2954 = vpop.xlane.xlu0 %2953
        %v2955 = vmul.f32 %v2945, %v2922
        %v2956 = vmul.f32 %v2948, %v2922
        %v2957 = vmul.f32 %v2951, %v2922
        %v2958 = vmul.f32 %v2954, %v2922
        %v2959 = vadd.f32 %v2955, 1e-05
        %v2960 = vadd.f32 %v2956, 1e-05
        %v2961 = vadd.f32 %v2957, 1e-05
        %v2962 = vadd.f32 %v2958, 1e-05
        %v2963 = vrsqrt.pop %v2959
        %v2964 = vrsqrt.pop %v2960
        %v2965 = vrsqrt.pop %v2961
        %v2966 = vrsqrt.pop %v2962
        %v2967 = vmul.f32 %v2927, %v2963
        %v2968 = vmul.f32 %v2928, %v2963
        %v2969 = vmul.f32 %v2929, %v2964
        %v2970 = vmul.f32 %v2930, %v2964
        %v2971 = vmul.f32 %v2931, %v2965
        %v2972 = vmul.f32 %v2932, %v2965
        %v2973 = vmul.f32 %v2933, %v2966
        %v2974 = vmul.f32 %v2934, %v2966
        %v2976 = vlaneseq
        %v2977 = vshrl.u32 %v2976, 7
        %v2978 = vsub.s32 0, %v2977
        %v2979 = vrot.slane %v2908, %v2978
        %v2980 = vlaneseq
        %v2981 = vshrl.u32 %v2980, 7
        %v2982 = vsub.s32 1, %v2981
        %v2983 = vrot.slane %v2908, %v2982
        %v2986 = vmul.f32 %v2967, %v2979
        %v2987 = vmul.f32 %v2968, %v2983
        %v2988 = vmul.f32 %v2969, %v2979
        %v2989 = vmul.f32 %v2970, %v2983
        %v2990 = vmul.f32 %v2971, %v2979
        %v2991 = vmul.f32 %v2972, %v2983
        %v2992 = vmul.f32 %v2973, %v2979
        %v2993 = vmul.f32 %v2974, %v2983
        %v2995 = vlaneseq
        %v2996 = vshrl.u32 %v2995, 7
        %v2997 = vsub.s32 0, %v2996
        %v2998 = vrot.slane %v2909, %v2997
        %v2999 = vlaneseq
        %v3000 = vshrl.u32 %v2999, 7
        %v3001 = vsub.s32 1, %v3000
        %v3002 = vrot.slane %v2909, %v3001
        %v3005 = vadd.f32 %v2986, %v2998
        %v3006 = vadd.f32 %v2987, %v3002
        %v3007 = vadd.f32 %v2988, %v2998
        %v3008 = vadd.f32 %v2989, %v3002
        %v3009 = vadd.f32 %v2990, %v2998
        %v3010 = vadd.f32 %v2991, %v3002
        %v3011 = vadd.f32 %v2992, %v2998
        %v3012 = vadd.f32 %v2993, %v3002
        %v3013 = vpack.c.bf16 %v3007, %v3005
        %v3014 = vpack.c.bf16 %v3008, %v3006
        %v3015 = vpack.c.bf16 %v3011, %v3009
        %v3016 = vpack.c.bf16 %v3012, %v3010
        %v3017 = vld [vmem:[%s1109] sm:$0xff]
        %v3018 = vld [vmem:[%s1109 + $0x8] sm:$0xff]
        %v3019 = vld [vmem:[%s1109 + $0x10] sm:$0xff]
        %v3020 = vld [vmem:[%s1109 + $0x18] sm:$0xff]
        %v3021 = vld [vmem:[%s1109 + $0x20] sm:$0xff]
        %v3022 = vld [vmem:[%s1109 + $0x28] sm:$0xff]
        %v3023 = vld [vmem:[%s1109 + $0x30] sm:$0xff]
        %v3024 = vld [vmem:[%s1109 + $0x38] sm:$0xff]
        %v3025 = vld [vmem:[%s1109 + $0x40] sm:$0xff]
        %v3026 = vld [vmem:[%s1109 + $0x48] sm:$0xff]
        %v3027 = vld [vmem:[%s1109 + $0x50] sm:$0xff]
        %v3028 = vld [vmem:[%s1109 + $0x58] sm:$0xff]
        %v3029 = vld [vmem:[%s1109 + $0x60] sm:$0xff]
        %v3030 = vld [vmem:[%s1109 + $0x68] sm:$0xff]
        %v3031 = vld [vmem:[%s1109 + $0x70] sm:$0xff]
        %v3032 = vld [vmem:[%s1109 + $0x78] sm:$0xff]
        %v3033 = vld [vmem:[%s1109 + $0x80] sm:$0xff]
        %v3034 = vld [vmem:[%s1109 + $0x88] sm:$0xff]
        %v3035 = vld [vmem:[%s1109 + $0x90] sm:$0xff]
        %v3036 = vld [vmem:[%s1109 + $0x98] sm:$0xff]
        %v3037 = vld [vmem:[%s1109 + $0xa0] sm:$0xff]
        %v3038 = vld [vmem:[%s1109 + $0xa8] sm:$0xff]
        %v3039 = vld [vmem:[%s1109 + $0xb0] sm:$0xff]
        %v3040 = vld [vmem:[%s1109 + $0xb8] sm:$0xff]
        %v3041 = vld [vmem:[%s1109 + $0xc0] sm:$0xff]
        %v3042 = vld [vmem:[%s1109 + $0xc8] sm:$0xff]
        %v3043 = vld [vmem:[%s1109 + $0xd0] sm:$0xff]
        %v3044 = vld [vmem:[%s1109 + $0xd8] sm:$0xff]
        %v3045 = vld [vmem:[%s1109 + $0xe0] sm:$0xff]
        %v3046 = vld [vmem:[%s1109 + $0xe8] sm:$0xff]
        %v3047 = vld [vmem:[%s1109 + $0xf0] sm:$0xff]
        %v3048 = vld [vmem:[%s1109 + $0xf8] sm:$0xff]
        %v3049 = vld [vmem:[%s1118] sm:$0x3]
        %v3051 = vlaneseq
        %v3052 = vshrl.u32 %v3051, 7
        %v3053 = vsub.s32 0, %v3052
        %v3054 = vrot.slane %v3049, %v3053
        %v3055 = vlaneseq
        %v3056 = vshrl.u32 %v3055, 7
        %v3057 = vsub.s32 1, %v3056
        %v3058 = vrot.slane %v3049, %v3057
        %v3093 = vunpack.c.l.b16 %v3017
        %v3094 = vunpack.c.h.b16 %v3017
        %v3095 = vunpack.c.l.b16 %v3018
        %v3096 = vunpack.c.h.b16 %v3018
        %v3097 = vunpack.c.l.b16 %v3019
        %v3098 = vunpack.c.h.b16 %v3019
        %v3099 = vunpack.c.l.b16 %v3020
        %v3100 = vunpack.c.h.b16 %v3020
        %v3101 = vunpack.c.l.b16 %v3021
        %v3102 = vunpack.c.h.b16 %v3021
        %v3103 = vunpack.c.l.b16 %v3022
        %v3104 = vunpack.c.h.b16 %v3022
        %v3105 = vunpack.c.l.b16 %v3023
        %v3106 = vunpack.c.h.b16 %v3023
        %v3107 = vunpack.c.l.b16 %v3024
        %v3108 = vunpack.c.h.b16 %v3024
        %v3109 = vunpack.c.l.b16 %v3025
        %v3110 = vunpack.c.h.b16 %v3025
        %v3111 = vunpack.c.l.b16 %v3026
        %v3112 = vunpack.c.h.b16 %v3026
        %v3113 = vunpack.c.l.b16 %v3027
        %v3114 = vunpack.c.h.b16 %v3027
        %v3115 = vunpack.c.l.b16 %v3028
        %v3116 = vunpack.c.h.b16 %v3028
        %v3117 = vunpack.c.l.b16 %v3029
        %v3118 = vunpack.c.h.b16 %v3029
        %v3119 = vunpack.c.l.b16 %v3030
        %v3120 = vunpack.c.h.b16 %v3030
        %v3121 = vunpack.c.l.b16 %v3031
        %v3122 = vunpack.c.h.b16 %v3031
        %v3123 = vunpack.c.l.b16 %v3032
        %v3124 = vunpack.c.h.b16 %v3032
        %v3125 = vunpack.c.l.b16 %v3033
        %v3126 = vunpack.c.h.b16 %v3033
        %v3127 = vunpack.c.l.b16 %v3034
        %v3128 = vunpack.c.h.b16 %v3034
        %v3129 = vunpack.c.l.b16 %v3035
        %v3130 = vunpack.c.h.b16 %v3035
        %v3131 = vunpack.c.l.b16 %v3036
        %v3132 = vunpack.c.h.b16 %v3036
        %v3133 = vunpack.c.l.b16 %v3037
        %v3134 = vunpack.c.h.b16 %v3037
        %v3135 = vunpack.c.l.b16 %v3038
        %v3136 = vunpack.c.h.b16 %v3038
        %v3137 = vunpack.c.l.b16 %v3039
        %v3138 = vunpack.c.h.b16 %v3039
        %v3139 = vunpack.c.l.b16 %v3040
        %v3140 = vunpack.c.h.b16 %v3040
        %v3141 = vunpack.c.l.b16 %v3041
        %v3142 = vunpack.c.h.b16 %v3041
        %v3143 = vunpack.c.l.b16 %v3042
        %v3144 = vunpack.c.h.b16 %v3042
        %v3145 = vunpack.c.l.b16 %v3043
        %v3146 = vunpack.c.h.b16 %v3043
        %v3147 = vunpack.c.l.b16 %v3044
        %v3148 = vunpack.c.h.b16 %v3044
        %v3149 = vunpack.c.l.b16 %v3045
        %v3150 = vunpack.c.h.b16 %v3045
        %v3151 = vunpack.c.l.b16 %v3046
        %v3152 = vunpack.c.h.b16 %v3046
        %v3153 = vunpack.c.l.b16 %v3047
        %v3154 = vunpack.c.h.b16 %v3047
        %v3155 = vunpack.c.l.b16 %v3048
        %v3156 = vunpack.c.h.b16 %v3048
        %v3157 = vpack.c.b16 %v3095, %v3093
        %v3158 = vpack.c.b16 %v3096, %v3094
        %v3159 = vpack.c.b16 %v3099, %v3097
        %v3160 = vpack.c.b16 %v3100, %v3098
        %v3161 = vpack.c.b16 %v3103, %v3101
        %v3162 = vpack.c.b16 %v3104, %v3102
        %v3163 = vpack.c.b16 %v3107, %v3105
        %v3164 = vpack.c.b16 %v3108, %v3106
        %v3165 = vpack.c.b16 %v3111, %v3109
        %v3166 = vpack.c.b16 %v3112, %v3110
        %v3167 = vpack.c.b16 %v3115, %v3113
        %v3168 = vpack.c.b16 %v3116, %v3114
        %v3169 = vpack.c.b16 %v3119, %v3117
        %v3170 = vpack.c.b16 %v3120, %v3118
        %v3171 = vpack.c.b16 %v3123, %v3121
        %v3172 = vpack.c.b16 %v3124, %v3122
        %v3173 = vpack.c.b16 %v3127, %v3125
        %v3174 = vpack.c.b16 %v3128, %v3126
        %v3175 = vpack.c.b16 %v3131, %v3129
        %v3176 = vpack.c.b16 %v3132, %v3130
        %v3177 = vpack.c.b16 %v3135, %v3133
        %v3178 = vpack.c.b16 %v3136, %v3134
        %v3179 = vpack.c.b16 %v3139, %v3137
        %v3180 = vpack.c.b16 %v3140, %v3138
        %v3181 = vpack.c.b16 %v3143, %v3141
        %v3182 = vpack.c.b16 %v3144, %v3142
        %v3183 = vpack.c.b16 %v3147, %v3145
        %v3184 = vpack.c.b16 %v3148, %v3146
        %v3185 = vpack.c.b16 %v3151, %v3149
        %v3186 = vpack.c.b16 %v3152, %v3150
        %v3187 = vpack.c.b16 %v3155, %v3153
        %v3188 = vpack.c.b16 %v3156, %v3154
        %3221 = vmatprep.subr.bf16.mxu0 %v3172
        %3222 = vmatpush1.bf16.msra.mxu0 %v3171
        %3223 = vmatprep.subr.bf16.mxu0 %v3170
        %3224 = vmatpush1.bf16.msra.mxu0 %v3169
        %3225 = vmatprep.subr.bf16.mxu0 %v3168
        %3226 = vmatpush1.bf16.msra.mxu0 %v3167
        %3227 = vmatprep.subr.bf16.mxu0 %v3166
        %3228 = vmatpush1.bf16.msra.mxu0 %v3165
        %3229 = vmatprep.subr.bf16.mxu0 %v3164
        %3230 = vmatpush1.bf16.msra.mxu0 %v3163
        %3231 = vmatprep.subr.bf16.mxu0 %v3162
        %3232 = vmatpush1.bf16.msra.mxu0 %v3161
        %3233 = vmatprep.subr.bf16.mxu0 %v3160
        %3234 = vmatpush1.bf16.msra.mxu0 %v3159
        %3235 = vmatprep.subr.bf16.mxu0 %v3158
        %3236 = vmatpush1.bf16.msra.mxu0 %v3157
        %3237 = vmatprep.subr.bf16.mxu0 %v3188
        %3238 = vmatpush2.bf16.msra.mxu0 %v3187
        %3239 = vmatprep.subr.bf16.mxu0 %v3186
        %3240 = vmatpush2.bf16.msra.mxu0 %v3185
        %3241 = vmatprep.subr.bf16.mxu0 %v3184
        %3242 = vmatpush2.bf16.msra.mxu0 %v3183
        %3243 = vmatprep.subr.bf16.mxu0 %v3182
        %3244 = vmatpush2.bf16.msra.mxu0 %v3181
        %3245 = vmatprep.subr.bf16.mxu0 %v3180
        %3246 = vmatpush2.bf16.msra.mxu0 %v3179
        %3247 = vmatprep.subr.bf16.mxu0 %v3178
        %3248 = vmatpush2.bf16.msra.mxu0 %v3177
        %3249 = vmatprep.subr.bf16.mxu0 %v3176
        %3250 = vmatpush2.bf16.msra.mxu0 %v3175
        %3251 = vmatprep.subr.bf16.mxu0 %v3174
        %3252 = vmatpush2.bf16.msra.mxu0 %v3173
        %3253 = vmatprep.mubr.bf16.mxu0 %v3014
        %3254 = vmatmul.mubr.bf16.gmra.mxu0 %v3013
        %v3255 = vpop.f32.mrf.mxu0
        %v3256 = vadd.f32 %v3054, %v3255
        %v3257 = vpop.f32.mrf.mxu0
        %v3258 = vadd.f32 %v3058, %v3257
        %v3259 = vpop.f32.mrf.mxu0
        %v3260 = vadd.f32 %v3054, %v3259
        %v3261 = vpop.f32.mrf.mxu0
        %v3262 = vadd.f32 %v3058, %v3261
        %3263 = vmatprep.mubr.bf16.mxu0 %v3016
        %3264 = vmatmul.mubr.bf16.gmra.mxu0 %v3015
        %v3265 = vpop.f32.mrf.mxu0
        %v3266 = vadd.f32 %v3054, %v3265
        %v3267 = vpop.f32.mrf.mxu0
        %v3268 = vadd.f32 %v3058, %v3267
        %v3269 = vpop.f32.mrf.mxu0
        %v3270 = vadd.f32 %v3054, %v3269
        %v3271 = vpop.f32.mrf.mxu0
        %v3272 = vadd.f32 %v3058, %v3271
        %3273 = vdwg.mxu0
        %v3274 = vld [vmem:[%s1127] sm:$0xff]
        %v3275 = vld [vmem:[%s1127 + $0x8] sm:$0xff]
        %v3276 = vld [vmem:[%s1127 + $0x10] sm:$0xff]
        %v3277 = vld [vmem:[%s1127 + $0x18] sm:$0xff]
        %v3278 = vld [vmem:[%s1127 + $0x20] sm:$0xff]
        %v3279 = vld [vmem:[%s1127 + $0x28] sm:$0xff]
        %v3280 = vld [vmem:[%s1127 + $0x30] sm:$0xff]
        %v3281 = vld [vmem:[%s1127 + $0x38] sm:$0xff]
        %v3282 = vld [vmem:[%s1127 + $0x40] sm:$0xff]
        %v3283 = vld [vmem:[%s1127 + $0x48] sm:$0xff]
        %v3284 = vld [vmem:[%s1127 + $0x50] sm:$0xff]
        %v3285 = vld [vmem:[%s1127 + $0x58] sm:$0xff]
        %v3286 = vld [vmem:[%s1127 + $0x60] sm:$0xff]
        %v3287 = vld [vmem:[%s1127 + $0x68] sm:$0xff]
        %v3288 = vld [vmem:[%s1127 + $0x70] sm:$0xff]
        %v3289 = vld [vmem:[%s1127 + $0x78] sm:$0xff]
        %v3290 = vld [vmem:[%s1127 + $0x80] sm:$0xff]
        %v3291 = vld [vmem:[%s1127 + $0x88] sm:$0xff]
        %v3292 = vld [vmem:[%s1127 + $0x90] sm:$0xff]
        %v3293 = vld [vmem:[%s1127 + $0x98] sm:$0xff]
        %v3294 = vld [vmem:[%s1127 + $0xa0] sm:$0xff]
        %v3295 = vld [vmem:[%s1127 + $0xa8] sm:$0xff]
        %v3296 = vld [vmem:[%s1127 + $0xb0] sm:$0xff]
        %v3297 = vld [vmem:[%s1127 + $0xb8] sm:$0xff]
        %v3298 = vld [vmem:[%s1127 + $0xc0] sm:$0xff]
        %v3299 = vld [vmem:[%s1127 + $0xc8] sm:$0xff]
        %v3300 = vld [vmem:[%s1127 + $0xd0] sm:$0xff]
        %v3301 = vld [vmem:[%s1127 + $0xd8] sm:$0xff]
        %v3302 = vld [vmem:[%s1127 + $0xe0] sm:$0xff]
        %v3303 = vld [vmem:[%s1127 + $0xe8] sm:$0xff]
        %v3304 = vld [vmem:[%s1127 + $0xf0] sm:$0xff]
        %v3305 = vld [vmem:[%s1127 + $0xf8] sm:$0xff]
        %v3306 = vld [vmem:[%s1127 + $0x100] sm:$0xff]
        %v3307 = vld [vmem:[%s1127 + $0x108] sm:$0xff]
        %v3308 = vld [vmem:[%s1127 + $0x110] sm:$0xff]
        %v3309 = vld [vmem:[%s1127 + $0x118] sm:$0xff]
        %v3310 = vld [vmem:[%s1127 + $0x120] sm:$0xff]
        %v3311 = vld [vmem:[%s1127 + $0x128] sm:$0xff]
        %v3312 = vld [vmem:[%s1127 + $0x130] sm:$0xff]
        %v3313 = vld [vmem:[%s1127 + $0x138] sm:$0xff]
        %v3314 = vld [vmem:[%s1127 + $0x140] sm:$0xff]
        %v3315 = vld [vmem:[%s1127 + $0x148] sm:$0xff]
        %v3316 = vld [vmem:[%s1127 + $0x150] sm:$0xff]
        %v3317 = vld [vmem:[%s1127 + $0x158] sm:$0xff]
        %v3318 = vld [vmem:[%s1127 + $0x160] sm:$0xff]
        %v3319 = vld [vmem:[%s1127 + $0x168] sm:$0xff]
        %v3320 = vld [vmem:[%s1127 + $0x170] sm:$0xff]
        %v3321 = vld [vmem:[%s1127 + $0x178] sm:$0xff]
        %v3322 = vld [vmem:[%s1127 + $0x180] sm:$0xff]
        %v3323 = vld [vmem:[%s1127 + $0x188] sm:$0xff]
        %v3324 = vld [vmem:[%s1127 + $0x190] sm:$0xff]
        %v3325 = vld [vmem:[%s1127 + $0x198] sm:$0xff]
        %v3326 = vld [vmem:[%s1127 + $0x1a0] sm:$0xff]
        %v3327 = vld [vmem:[%s1127 + $0x1a8] sm:$0xff]
        %v3328 = vld [vmem:[%s1127 + $0x1b0] sm:$0xff]
        %v3329 = vld [vmem:[%s1127 + $0x1b8] sm:$0xff]
        %v3330 = vld [vmem:[%s1127 + $0x1c0] sm:$0xff]
        %v3331 = vld [vmem:[%s1127 + $0x1c8] sm:$0xff]
        %v3332 = vld [vmem:[%s1127 + $0x1d0] sm:$0xff]
        %v3333 = vld [vmem:[%s1127 + $0x1d8] sm:$0xff]
        %v3334 = vld [vmem:[%s1127 + $0x1e0] sm:$0xff]
        %v3335 = vld [vmem:[%s1127 + $0x1e8] sm:$0xff]
        %v3336 = vld [vmem:[%s1127 + $0x1f0] sm:$0xff]
        %v3337 = vld [vmem:[%s1127 + $0x1f8] sm:$0xff]
        %v3338 = vld [vmem:[%s1136] sm:$0xf]
        %v3340 = vlaneseq
        %v3341 = vshrl.u32 %v3340, 7
        %v3342 = vsub.s32 0, %v3341
        %v3343 = vrot.slane %v3338, %v3342
        %v3344 = vlaneseq
        %v3345 = vshrl.u32 %v3344, 7
        %v3346 = vsub.s32 1, %v3345
        %v3347 = vrot.slane %v3338, %v3346
        %v3348 = vlaneseq
        %v3349 = vshrl.u32 %v3348, 7
        %v3350 = vsub.s32 2, %v3349
        %v3351 = vrot.slane %v3338, %v3350
        %v3352 = vlaneseq
        %v3353 = vshrl.u32 %v3352, 7
        %v3354 = vsub.s32 3, %v3353
        %v3355 = vrot.slane %v3338, %v3354
        %v3364 = vunpack.c.l.b16 %v1419
        %v3365 = vunpack.c.h.b16 %v1419
        %v3366 = vunpack.c.l.b16 %v1420
        %v3367 = vunpack.c.h.b16 %v1420
        %v3368 = vunpack.c.l.b16 %v1421
        %v3369 = vunpack.c.h.b16 %v1421
        %v3370 = vunpack.c.l.b16 %v1422
        %v3371 = vunpack.c.h.b16 %v1422
        %v3372 = vpack.c.b16 %v3366, %v3364
        %v3373 = vpack.c.b16 %v3367, %v3365
        %v3374 = vpack.c.b16 %v3370, %v3368
        %v3375 = vpack.c.b16 %v3371, %v3369
        %v3444 = vunpack.c.l.b16 %v3274
        %v3445 = vunpack.c.h.b16 %v3274
        %v3446 = vunpack.c.l.b16 %v3275
        %v3447 = vunpack.c.h.b16 %v3275
        %v3448 = vunpack.c.l.b16 %v3276
        %v3449 = vunpack.c.h.b16 %v3276
        %v3450 = vunpack.c.l.b16 %v3277
        %v3451 = vunpack.c.h.b16 %v3277
        %v3452 = vunpack.c.l.b16 %v3278
        %v3453 = vunpack.c.h.b16 %v3278
        %v3454 = vunpack.c.l.b16 %v3279
        %v3455 = vunpack.c.h.b16 %v3279
        %v3456 = vunpack.c.l.b16 %v3280
        %v3457 = vunpack.c.h.b16 %v3280
        %v3458 = vunpack.c.l.b16 %v3281
        %v3459 = vunpack.c.h.b16 %v3281
        %v3460 = vunpack.c.l.b16 %v3282
        %v3461 = vunpack.c.h.b16 %v3282
        %v3462 = vunpack.c.l.b16 %v3283
        %v3463 = vunpack.c.h.b16 %v3283
        %v3464 = vunpack.c.l.b16 %v3284
        %v3465 = vunpack.c.h.b16 %v3284
        %v3466 = vunpack.c.l.b16 %v3285
        %v3467 = vunpack.c.h.b16 %v3285
        %v3468 = vunpack.c.l.b16 %v3286
        %v3469 = vunpack.c.h.b16 %v3286
        %v3470 = vunpack.c.l.b16 %v3287
        %v3471 = vunpack.c.h.b16 %v3287
        %v3472 = vunpack.c.l.b16 %v3288
        %v3473 = vunpack.c.h.b16 %v3288
        %v3474 = vunpack.c.l.b16 %v3289
        %v3475 = vunpack.c.h.b16 %v3289
        %v3476 = vunpack.c.l.b16 %v3290
        %v3477 = vunpack.c.h.b16 %v3290
        %v3478 = vunpack.c.l.b16 %v3291
        %v3479 = vunpack.c.h.b16 %v3291
        %v3480 = vunpack.c.l.b16 %v3292
        %v3481 = vunpack.c.h.b16 %v3292
        %v3482 = vunpack.c.l.b16 %v3293
        %v3483 = vunpack.c.h.b16 %v3293
        %v3484 = vunpack.c.l.b16 %v3294
        %v3485 = vunpack.c.h.b16 %v3294
        %v3486 = vunpack.c.l.b16 %v3295
        %v3487 = vunpack.c.h.b16 %v3295
        %v3488 = vunpack.c.l.b16 %v3296
        %v3489 = vunpack.c.h.b16 %v3296
        %v3490 = vunpack.c.l.b16 %v3297
        %v3491 = vunpack.c.h.b16 %v3297
        %v3492 = vunpack.c.l.b16 %v3298
        %v3493 = vunpack.c.h.b16 %v3298
        %v3494 = vunpack.c.l.b16 %v3299
        %v3495 = vunpack.c.h.b16 %v3299
        %v3496 = vunpack.c.l.b16 %v3300
        %v3497 = vunpack.c.h.b16 %v3300
        %v3498 = vunpack.c.l.b16 %v3301
        %v3499 = vunpack.c.h.b16 %v3301
        %v3500 = vunpack.c.l.b16 %v3302
        %v3501 = vunpack.c.h.b16 %v3302
        %v3502 = vunpack.c.l.b16 %v3303
        %v3503 = vunpack.c.h.b16 %v3303
        %v3504 = vunpack.c.l.b16 %v3304
        %v3505 = vunpack.c.h.b16 %v3304
        %v3506 = vunpack.c.l.b16 %v3305
        %v3507 = vunpack.c.h.b16 %v3305
        %v3508 = vunpack.c.l.b16 %v3306
        %v3509 = vunpack.c.h.b16 %v3306
        %v3510 = vunpack.c.l.b16 %v3307
        %v3511 = vunpack.c.h.b16 %v3307
        %v3512 = vunpack.c.l.b16 %v3308
        %v3513 = vunpack.c.h.b16 %v3308
        %v3514 = vunpack.c.l.b16 %v3309
        %v3515 = vunpack.c.h.b16 %v3309
        %v3516 = vunpack.c.l.b16 %v3310
        %v3517 = vunpack.c.h.b16 %v3310
        %v3518 = vunpack.c.l.b16 %v3311
        %v3519 = vunpack.c.h.b16 %v3311
        %v3520 = vunpack.c.l.b16 %v3312
        %v3521 = vunpack.c.h.b16 %v3312
        %v3522 = vunpack.c.l.b16 %v3313
        %v3523 = vunpack.c.h.b16 %v3313
        %v3524 = vunpack.c.l.b16 %v3314
        %v3525 = vunpack.c.h.b16 %v3314
        %v3526 = vunpack.c.l.b16 %v3315
        %v3527 = vunpack.c.h.b16 %v3315
        %v3528 = vunpack.c.l.b16 %v3316
        %v3529 = vunpack.c.h.b16 %v3316
        %v3530 = vunpack.c.l.b16 %v3317
        %v3531 = vunpack.c.h.b16 %v3317
        %v3532 = vunpack.c.l.b16 %v3318
        %v3533 = vunpack.c.h.b16 %v3318
        %v3534 = vunpack.c.l.b16 %v3319
        %v3535 = vunpack.c.h.b16 %v3319
        %v3536 = vunpack.c.l.b16 %v3320
        %v3537 = vunpack.c.h.b16 %v3320
        %v3538 = vunpack.c.l.b16 %v3321
        %v3539 = vunpack.c.h.b16 %v3321
        %v3540 = vunpack.c.l.b16 %v3322
        %v3541 = vunpack.c.h.b16 %v3322
        %v3542 = vunpack.c.l.b16 %v3323
        %v3543 = vunpack.c.h.b16 %v3323
        %v3544 = vunpack.c.l.b16 %v3324
        %v3545 = vunpack.c.h.b16 %v3324
        %v3546 = vunpack.c.l.b16 %v3325
        %v3547 = vunpack.c.h.b16 %v3325
        %v3548 = vunpack.c.l.b16 %v3326
        %v3549 = vunpack.c.h.b16 %v3326
        %v3550 = vunpack.c.l.b16 %v3327
        %v3551 = vunpack.c.h.b16 %v3327
        %v3552 = vunpack.c.l.b16 %v3328
        %v3553 = vunpack.c.h.b16 %v3328
        %v3554 = vunpack.c.l.b16 %v3329
        %v3555 = vunpack.c.h.b16 %v3329
        %v3556 = vunpack.c.l.b16 %v3330
        %v3557 = vunpack.c.h.b16 %v3330
        %v3558 = vunpack.c.l.b16 %v3331
        %v3559 = vunpack.c.h.b16 %v3331
        %v3560 = vunpack.c.l.b16 %v3332
        %v3561 = vunpack.c.h.b16 %v3332
        %v3562 = vunpack.c.l.b16 %v3333
        %v3563 = vunpack.c.h.b16 %v3333
        %v3564 = vunpack.c.l.b16 %v3334
        %v3565 = vunpack.c.h.b16 %v3334
        %v3566 = vunpack.c.l.b16 %v3335
        %v3567 = vunpack.c.h.b16 %v3335
        %v3568 = vunpack.c.l.b16 %v3336
        %v3569 = vunpack.c.h.b16 %v3336
        %v3570 = vunpack.c.l.b16 %v3337
        %v3571 = vunpack.c.h.b16 %v3337
        %v3572 = vpack.c.b16 %v3448, %v3444
        %v3573 = vpack.c.b16 %v3449, %v3445
        %v3574 = vpack.c.b16 %v3450, %v3446
        %v3575 = vpack.c.b16 %v3451, %v3447
        %v3576 = vpack.c.b16 %v3456, %v3452
        %v3577 = vpack.c.b16 %v3457, %v3453
        %v3578 = vpack.c.b16 %v3458, %v3454
        %v3579 = vpack.c.b16 %v3459, %v3455
        %v3580 = vpack.c.b16 %v3464, %v3460
        %v3581 = vpack.c.b16 %v3465, %v3461
        %v3582 = vpack.c.b16 %v3466, %v3462
        %v3583 = vpack.c.b16 %v3467, %v3463
        %v3584 = vpack.c.b16 %v3472, %v3468
        %v3585 = vpack.c.b16 %v3473, %v3469
        %v3586 = vpack.c.b16 %v3474, %v3470
        %v3587 = vpack.c.b16 %v3475, %v3471
        %v3588 = vpack.c.b16 %v3480, %v3476
        %v3589 = vpack.c.b16 %v3481, %v3477
        %v3590 = vpack.c.b16 %v3482, %v3478
        %v3591 = vpack.c.b16 %v3483, %v3479
        %v3592 = vpack.c.b16 %v3488, %v3484
        %v3593 = vpack.c.b16 %v3489, %v3485
        %v3594 = vpack.c.b16 %v3490, %v3486
        %v3595 = vpack.c.b16 %v3491, %v3487
        %v3596 = vpack.c.b16 %v3496, %v3492
        %v3597 = vpack.c.b16 %v3497, %v3493
        %v3598 = vpack.c.b16 %v3498, %v3494
        %v3599 = vpack.c.b16 %v3499, %v3495
        %v3600 = vpack.c.b16 %v3504, %v3500
        %v3601 = vpack.c.b16 %v3505, %v3501
        %v3602 = vpack.c.b16 %v3506, %v3502
        %v3603 = vpack.c.b16 %v3507, %v3503
        %v3604 = vpack.c.b16 %v3512, %v3508
        %v3605 = vpack.c.b16 %v3513, %v3509
        %v3606 = vpack.c.b16 %v3514, %v3510
        %v3607 = vpack.c.b16 %v3515, %v3511
        %v3608 = vpack.c.b16 %v3520, %v3516
        %v3609 = vpack.c.b16 %v3521, %v3517
        %v3610 = vpack.c.b16 %v3522, %v3518
        %v3611 = vpack.c.b16 %v3523, %v3519
        %v3612 = vpack.c.b16 %v3528, %v3524
        %v3613 = vpack.c.b16 %v3529, %v3525
        %v3614 = vpack.c.b16 %v3530, %v3526
        %v3615 = vpack.c.b16 %v3531, %v3527
        %v3616 = vpack.c.b16 %v3536, %v3532
        %v3617 = vpack.c.b16 %v3537, %v3533
        %v3618 = vpack.c.b16 %v3538, %v3534
        %v3619 = vpack.c.b16 %v3539, %v3535
        %v3620 = vpack.c.b16 %v3544, %v3540
        %v3621 = vpack.c.b16 %v3545, %v3541
        %v3622 = vpack.c.b16 %v3546, %v3542
        %v3623 = vpack.c.b16 %v3547, %v3543
        %v3624 = vpack.c.b16 %v3552, %v3548
        %v3625 = vpack.c.b16 %v3553, %v3549
        %v3626 = vpack.c.b16 %v3554, %v3550
        %v3627 = vpack.c.b16 %v3555, %v3551
        %v3628 = vpack.c.b16 %v3560, %v3556
        %v3629 = vpack.c.b16 %v3561, %v3557
        %v3630 = vpack.c.b16 %v3562, %v3558
        %v3631 = vpack.c.b16 %v3563, %v3559
        %v3632 = vpack.c.b16 %v3568, %v3564
        %v3633 = vpack.c.b16 %v3569, %v3565
        %v3634 = vpack.c.b16 %v3570, %v3566
        %v3635 = vpack.c.b16 %v3571, %v3567
        %3700 = vmatprep.subr.bf16.mxu0 %v3601
        %3701 = vmatpush1.bf16.msra.mxu0 %v3600
        %3702 = vmatprep.subr.bf16.mxu0 %v3597
        %3703 = vmatpush1.bf16.msra.mxu0 %v3596
        %3704 = vmatprep.subr.bf16.mxu0 %v3593
        %3705 = vmatpush1.bf16.msra.mxu0 %v3592
        %3706 = vmatprep.subr.bf16.mxu0 %v3589
        %3707 = vmatpush1.bf16.msra.mxu0 %v3588
        %3708 = vmatprep.subr.bf16.mxu0 %v3585
        %3709 = vmatpush1.bf16.msra.mxu0 %v3584
        %3710 = vmatprep.subr.bf16.mxu0 %v3581
        %3711 = vmatpush1.bf16.msra.mxu0 %v3580
        %3712 = vmatprep.subr.bf16.mxu0 %v3577
        %3713 = vmatpush1.bf16.msra.mxu0 %v3576
        %3714 = vmatprep.subr.bf16.mxu0 %v3573
        %3715 = vmatpush1.bf16.msra.mxu0 %v3572
        %3716 = vmatprep.subr.bf16.mxu0 %v3633
        %3717 = vmatpush2.bf16.msra.mxu0 %v3632
        %3718 = vmatprep.subr.bf16.mxu0 %v3629
        %3719 = vmatpush2.bf16.msra.mxu0 %v3628
        %3720 = vmatprep.subr.bf16.mxu0 %v3625
        %3721 = vmatpush2.bf16.msra.mxu0 %v3624
        %3722 = vmatprep.subr.bf16.mxu0 %v3621
        %3723 = vmatpush2.bf16.msra.mxu0 %v3620
        %3724 = vmatprep.subr.bf16.mxu0 %v3617
        %3725 = vmatpush2.bf16.msra.mxu0 %v3616
        %3726 = vmatprep.subr.bf16.mxu0 %v3613
        %3727 = vmatpush2.bf16.msra.mxu0 %v3612
        %3728 = vmatprep.subr.bf16.mxu0 %v3609
        %3729 = vmatpush2.bf16.msra.mxu0 %v3608
        %3730 = vmatprep.subr.bf16.mxu0 %v3605
        %3731 = vmatpush2.bf16.msra.mxu0 %v3604
        %3732 = vmatprep.mubr.bf16.mxu0 %v3373
        %3733 = vmatmul.mubr.bf16.gmra.mxu0 %v3372
        %v3734 = vpop.f32.mrf.mxu0
        %v3735 = vadd.f32 %v3343, %v3734
        %v3736 = vpop.f32.mrf.mxu0
        %v3737 = vadd.f32 %v3347, %v3736
        %v3738 = vpop.f32.mrf.mxu0
        %v3739 = vadd.f32 %v3343, %v3738
        %v3740 = vpop.f32.mrf.mxu0
        %v3741 = vadd.f32 %v3347, %v3740
        %3742 = vmatprep.mubr.bf16.mxu0 %v3375
        %3743 = vmatmul.mubr.bf16.gmra.mxu0 %v3374
        %v3744 = vpop.f32.mrf.mxu0
        %v3745 = vadd.f32 %v3343, %v3744
        %v3746 = vpop.f32.mrf.mxu0
        %v3747 = vadd.f32 %v3347, %v3746
        %v3748 = vpop.f32.mrf.mxu0
        %v3749 = vadd.f32 %v3343, %v3748
        %v3750 = vpop.f32.mrf.mxu0
        %v3751 = vadd.f32 %v3347, %v3750
        %3752 = vdwg.mxu0
        %3753 = vmatprep.subr.bf16.mxu0 %v3603
        %3754 = vmatpush1.bf16.msra.mxu0 %v3602
        %3755 = vmatprep.subr.bf16.mxu0 %v3599
        %3756 = vmatpush1.bf16.msra.mxu0 %v3598
        %3757 = vmatprep.subr.bf16.mxu0 %v3595
        %3758 = vmatpush1.bf16.msra.mxu0 %v3594
        %3759 = vmatprep.subr.bf16.mxu0 %v3591
        %3760 = vmatpush1.bf16.msra.mxu0 %v3590
        %3761 = vmatprep.subr.bf16.mxu0 %v3587
        %3762 = vmatpush1.bf16.msra.mxu0 %v3586
        %3763 = vmatprep.subr.bf16.mxu0 %v3583
        %3764 = vmatpush1.bf16.msra.mxu0 %v3582
        %3765 = vmatprep.subr.bf16.mxu0 %v3579
        %3766 = vmatpush1.bf16.msra.mxu0 %v3578
        %3767 = vmatprep.subr.bf16.mxu0 %v3575
        %3768 = vmatpush1.bf16.msra.mxu0 %v3574
        %3769 = vmatprep.subr.bf16.mxu0 %v3635
        %3770 = vmatpush2.bf16.msra.mxu0 %v3634
        %3771 = vmatprep.subr.bf16.mxu0 %v3631
        %3772 = vmatpush2.bf16.msra.mxu0 %v3630
        %3773 = vmatprep.subr.bf16.mxu0 %v3627
        %3774 = vmatpush2.bf16.msra.mxu0 %v3626
        %3775 = vmatprep.subr.bf16.mxu0 %v3623
        %3776 = vmatpush2.bf16.msra.mxu0 %v3622
        %3777 = vmatprep.subr.bf16.mxu0 %v3619
        %3778 = vmatpush2.bf16.msra.mxu0 %v3618
        %3779 = vmatprep.subr.bf16.mxu0 %v3615
        %3780 = vmatpush2.bf16.msra.mxu0 %v3614
        %3781 = vmatprep.subr.bf16.mxu0 %v3611
        %3782 = vmatpush2.bf16.msra.mxu0 %v3610
        %3783 = vmatprep.subr.bf16.mxu0 %v3607
        %3784 = vmatpush2.bf16.msra.mxu0 %v3606
        %3785 = vmatprep.mubr.bf16.mxu0 %v3373
        %3786 = vmatmul.mubr.bf16.gmra.mxu0 %v3372
        %v3787 = vpop.f32.mrf.mxu0
        %v3788 = vadd.f32 %v3351, %v3787
        %v3789 = vpop.f32.mrf.mxu0
        %v3790 = vadd.f32 %v3355, %v3789
        %v3791 = vpop.f32.mrf.mxu0
        %v3792 = vadd.f32 %v3351, %v3791
        %v3793 = vpop.f32.mrf.mxu0
        %v3794 = vadd.f32 %v3355, %v3793
        %3795 = vmatprep.mubr.bf16.mxu0 %v3375
        %3796 = vmatmul.mubr.bf16.gmra.mxu0 %v3374
        %v3797 = vpop.f32.mrf.mxu0
        %v3798 = vadd.f32 %v3351, %v3797
        %v3799 = vpop.f32.mrf.mxu0
        %v3800 = vadd.f32 %v3355, %v3799
        %v3801 = vpop.f32.mrf.mxu0
        %v3802 = vadd.f32 %v3351, %v3801
        %v3803 = vpop.f32.mrf.mxu0
        %v3804 = vadd.f32 %v3355, %v3803
        %3805 = vdwg.mxu0
        %v3806 = vld [vmem:[%s1145] sm:$0xff]
        %v3807 = vld [vmem:[%s1145 + $0x8] sm:$0xff]
        %v3808 = vld [vmem:[%s1145 + $0x10] sm:$0xff]
        %v3809 = vld [vmem:[%s1145 + $0x18] sm:$0xff]
        %v3810 = vld [vmem:[%s1145 + $0x20] sm:$0xff]
        %v3811 = vld [vmem:[%s1145 + $0x28] sm:$0xff]
        %v3812 = vld [vmem:[%s1145 + $0x30] sm:$0xff]
        %v3813 = vld [vmem:[%s1145 + $0x38] sm:$0xff]
        %v3814 = vld [vmem:[%s1145 + $0x40] sm:$0xff]
        %v3815 = vld [vmem:[%s1145 + $0x48] sm:$0xff]
        %v3816 = vld [vmem:[%s1145 + $0x50] sm:$0xff]
        %v3817 = vld [vmem:[%s1145 + $0x58] sm:$0xff]
        %v3818 = vld [vmem:[%s1145 + $0x60] sm:$0xff]
        %v3819 = vld [vmem:[%s1145 + $0x68] sm:$0xff]
        %v3820 = vld [vmem:[%s1145 + $0x70] sm:$0xff]
        %v3821 = vld [vmem:[%s1145 + $0x78] sm:$0xff]
        %v3822 = vld [vmem:[%s1145 + $0x80] sm:$0xff]
        %v3823 = vld [vmem:[%s1145 + $0x88] sm:$0xff]
        %v3824 = vld [vmem:[%s1145 + $0x90] sm:$0xff]
        %v3825 = vld [vmem:[%s1145 + $0x98] sm:$0xff]
        %v3826 = vld [vmem:[%s1145 + $0xa0] sm:$0xff]
        %v3827 = vld [vmem:[%s1145 + $0xa8] sm:$0xff]
        %v3828 = vld [vmem:[%s1145 + $0xb0] sm:$0xff]
        %v3829 = vld [vmem:[%s1145 + $0xb8] sm:$0xff]
        %v3830 = vld [vmem:[%s1145 + $0xc0] sm:$0xff]
        %v3831 = vld [vmem:[%s1145 + $0xc8] sm:$0xff]
        %v3832 = vld [vmem:[%s1145 + $0xd0] sm:$0xff]
        %v3833 = vld [vmem:[%s1145 + $0xd8] sm:$0xff]
        %v3834 = vld [vmem:[%s1145 + $0xe0] sm:$0xff]
        %v3835 = vld [vmem:[%s1145 + $0xe8] sm:$0xff]
        %v3836 = vld [vmem:[%s1145 + $0xf0] sm:$0xff]
        %v3837 = vld [vmem:[%s1145 + $0xf8] sm:$0xff]
        %v3838 = vld [vmem:[%s1154] sm:$0x3]
        %v3839 = vpack.c.bf16 %v3260, %v3256
        %v3840 = vpack.c.bf16 %v3262, %v3258
        %v3841 = vpack.c.bf16 %v3270, %v3266
        %v3842 = vpack.c.bf16 %v3272, %v3268
        %v3843 = vpack.c.bf16 %v3739, %v3735
        %v3844 = vpack.c.bf16 %v3741, %v3737
        %v3845 = vpack.c.bf16 %v3749, %v3745
        %v3846 = vpack.c.bf16 %v3751, %v3747
        %v3847 = vpack.c.bf16 %v3792, %v3788
        %v3848 = vpack.c.bf16 %v3794, %v3790
        %v3849 = vpack.c.bf16 %v3802, %v3798
        %v3850 = vpack.c.bf16 %v3804, %v3800
        %3851 = vmatprep.subr.bf16.mxu0 0
        %3852 = vmatpush1.bf16.xpose.msra.mxu0 0
        %3853 = vmatprep.subr.bf16.mxu0 0
        %3854 = vmatpush1.bf16.xpose.msra.mxu0 0
        %3855 = vmatprep.subr.bf16.mxu0 0
        %3856 = vmatpush1.bf16.xpose.msra.mxu0 0
        %3857 = vmatprep.subr.bf16.mxu0 0
        %3858 = vmatpush1.bf16.xpose.msra.mxu0 0
        %3859 = vmatprep.subr.bf16.mxu0 0
        %3860 = vmatpush1.bf16.xpose.msra.mxu0 0
        %3861 = vmatprep.subr.bf16.mxu0 0
        %3862 = vmatpush1.bf16.xpose.msra.mxu0 0
        %3863 = vmatprep.subr.bf16.mxu0 0
        %3864 = vmatpush1.bf16.xpose.msra.mxu0 0
        %3865 = vmatprep.subr.bf16.mxu0 0
        %3866 = vmatpush1.bf16.xpose.msra.mxu0 %v3843
        %3867 = vmatprep.subr.bf16.mxu0 0
        %3868 = vmatpush2.bf16.xpose.msra.mxu0 0
        %3869 = vmatprep.subr.bf16.mxu0 0
        %3870 = vmatpush2.bf16.xpose.msra.mxu0 0
        %3871 = vmatprep.subr.bf16.mxu0 0
        %3872 = vmatpush2.bf16.xpose.msra.mxu0 0
        %3873 = vmatprep.subr.bf16.mxu0 0
        %3874 = vmatpush2.bf16.xpose.msra.mxu0 0
        %3875 = vmatprep.subr.bf16.mxu0 0
        %3876 = vmatpush2.bf16.xpose.msra.mxu0 0
        %3877 = vmatprep.subr.bf16.mxu0 0
        %3878 = vmatpush2.bf16.xpose.msra.mxu0 0
        %3879 = vmatprep.subr.bf16.mxu0 0
        %3880 = vmatpush2.bf16.xpose.msra.mxu0 0
        %3881 = vmatprep.subr.bf16.mxu0 0
        %3882 = vmatpush2.bf16.xpose.msra.mxu0 0
        %3883 = vmatprep.mubr.bf16.mxu0 0
        %3884 = vmatmul.mubr.bf16.gmra.mxu0 %v3839
        %v3885 = vpop.f32.mrf.mxu0
        %v3886 = vadd.f32 0.0, %v3885
        %v3887 = vpop.f32.mrf.mxu0
        %v3888 = vpop.f32.mrf.mxu0
        %v3889 = vadd.f32 0.0, %v3888
        %v3890 = vpop.f32.mrf.mxu0
        %3891 = vdwg.mxu0
        %3892 = vmatprep.subr.bf16.mxu0 0
        %3893 = vmatpush1.bf16.xpose.msra.mxu0 0
        %3894 = vmatprep.subr.bf16.mxu0 0
        %3895 = vmatpush1.bf16.xpose.msra.mxu0 0
        %3896 = vmatprep.subr.bf16.mxu0 0
        %3897 = vmatpush1.bf16.xpose.msra.mxu0 0
        %3898 = vmatprep.subr.bf16.mxu0 0
        %3899 = vmatpush1.bf16.xpose.msra.mxu0 0
        %3900 = vmatprep.subr.bf16.mxu0 0
        %3901 = vmatpush1.bf16.xpose.msra.mxu0 0
        %3902 = vmatprep.subr.bf16.mxu0 0
        %3903 = vmatpush1.bf16.xpose.msra.mxu0 0
        %3904 = vmatprep.subr.bf16.mxu0 0
        %3905 = vmatpush1.bf16.xpose.msra.mxu0 0
        %3906 = vmatprep.subr.bf16.mxu0 0
        %3907 = vmatpush1.bf16.xpose.msra.mxu0 %v3845
        %3908 = vmatprep.subr.bf16.mxu0 0
        %3909 = vmatpush2.bf16.xpose.msra.mxu0 0
        %3910 = vmatprep.subr.bf16.mxu0 0
        %3911 = vmatpush2.bf16.xpose.msra.mxu0 0
        %3912 = vmatprep.subr.bf16.mxu0 0
        %3913 = vmatpush2.bf16.xpose.msra.mxu0 0
        %3914 = vmatprep.subr.bf16.mxu0 0
        %3915 = vmatpush2.bf16.xpose.msra.mxu0 0
        %3916 = vmatprep.subr.bf16.mxu0 0
        %3917 = vmatpush2.bf16.xpose.msra.mxu0 0
        %3918 = vmatprep.subr.bf16.mxu0 0
        %3919 = vmatpush2.bf16.xpose.msra.mxu0 0
        %3920 = vmatprep.subr.bf16.mxu0 0
        %3921 = vmatpush2.bf16.xpose.msra.mxu0 0
        %3922 = vmatprep.subr.bf16.mxu0 0
        %3923 = vmatpush2.bf16.xpose.msra.mxu0 0
        %3924 = vmatprep.mubr.bf16.mxu0 0
        %3925 = vmatmul.mubr.bf16.gmra.mxu0 %v3841
        %v3926 = vpop.f32.mrf.mxu0
        %v3927 = vadd.f32 0.0, %v3926
        %v3928 = vpop.f32.mrf.mxu0
        %v3929 = vpop.f32.mrf.mxu0
        %v3930 = vadd.f32 0.0, %v3929
        %v3931 = vpop.f32.mrf.mxu0
        %3932 = vdwg.mxu0
        %3933 = vmatprep.subr.bf16.mxu0 0
        %3934 = vmatpush1.bf16.xpose.msra.mxu0 0
        %3935 = vmatprep.subr.bf16.mxu0 0
        %3936 = vmatpush1.bf16.xpose.msra.mxu0 0
        %3937 = vmatprep.subr.bf16.mxu0 0
        %3938 = vmatpush1.bf16.xpose.msra.mxu0 0
        %3939 = vmatprep.subr.bf16.mxu0 0
        %3940 = vmatpush1.bf16.xpose.msra.mxu0 0
        %3941 = vmatprep.subr.bf16.mxu0 0
        %3942 = vmatpush1.bf16.xpose.msra.mxu0 0
        %3943 = vmatprep.subr.bf16.mxu0 0
        %3944 = vmatpush1.bf16.xpose.msra.mxu0 0
        %3945 = vmatprep.subr.bf16.mxu0 0
        %3946 = vmatpush1.bf16.xpose.msra.mxu0 0
        %3947 = vmatprep.subr.bf16.mxu0 0
        %3948 = vmatpush1.bf16.xpose.msra.mxu0 %v3844
        %3949 = vmatprep.subr.bf16.mxu0 0
        %3950 = vmatpush2.bf16.xpose.msra.mxu0 0
        %3951 = vmatprep.subr.bf16.mxu0 0
        %3952 = vmatpush2.bf16.xpose.msra.mxu0 0
        %3953 = vmatprep.subr.bf16.mxu0 0
        %3954 = vmatpush2.bf16.xpose.msra.mxu0 0
        %3955 = vmatprep.subr.bf16.mxu0 0
        %3956 = vmatpush2.bf16.xpose.msra.mxu0 0
        %3957 = vmatprep.subr.bf16.mxu0 0
        %3958 = vmatpush2.bf16.xpose.msra.mxu0 0
        %3959 = vmatprep.subr.bf16.mxu0 0
        %3960 = vmatpush2.bf16.xpose.msra.mxu0 0
        %3961 = vmatprep.subr.bf16.mxu0 0
        %3962 = vmatpush2.bf16.xpose.msra.mxu0 0
        %3963 = vmatprep.subr.bf16.mxu0 0
        %3964 = vmatpush2.bf16.xpose.msra.mxu0 0
        %3965 = vmatprep.mubr.bf16.mxu0 0
        %3966 = vmatmul.mubr.bf16.gmra.mxu0 %v3840
        %v3967 = vpop.f32.mrf.mxu0
        %v3968 = vadd.f32 0.0, %v3967
        %v3969 = vpop.f32.mrf.mxu0
        %v3970 = vpop.f32.mrf.mxu0
        %v3971 = vadd.f32 0.0, %v3970
        %v3972 = vpop.f32.mrf.mxu0
        %3973 = vdwg.mxu0
        %3974 = vmatprep.subr.bf16.mxu0 0
        %3975 = vmatpush1.bf16.xpose.msra.mxu0 0
        %3976 = vmatprep.subr.bf16.mxu0 0
        %3977 = vmatpush1.bf16.xpose.msra.mxu0 0
        %3978 = vmatprep.subr.bf16.mxu0 0
        %3979 = vmatpush1.bf16.xpose.msra.mxu0 0
        %3980 = vmatprep.subr.bf16.mxu0 0
        %3981 = vmatpush1.bf16.xpose.msra.mxu0 0
        %3982 = vmatprep.subr.bf16.mxu0 0
        %3983 = vmatpush1.bf16.xpose.msra.mxu0 0
        %3984 = vmatprep.subr.bf16.mxu0 0
        %3985 = vmatpush1.bf16.xpose.msra.mxu0 0
        %3986 = vmatprep.subr.bf16.mxu0 0
        %3987 = vmatpush1.bf16.xpose.msra.mxu0 0
        %3988 = vmatprep.subr.bf16.mxu0 0
        %3989 = vmatpush1.bf16.xpose.msra.mxu0 %v3846
        %3990 = vmatprep.subr.bf16.mxu0 0
        %3991 = vmatpush2.bf16.xpose.msra.mxu0 0
        %3992 = vmatprep.subr.bf16.mxu0 0
        %3993 = vmatpush2.bf16.xpose.msra.mxu0 0
        %3994 = vmatprep.subr.bf16.mxu0 0
        %3995 = vmatpush2.bf16.xpose.msra.mxu0 0
        %3996 = vmatprep.subr.bf16.mxu0 0
        %3997 = vmatpush2.bf16.xpose.msra.mxu0 0
        %3998 = vmatprep.subr.bf16.mxu0 0
        %3999 = vmatpush2.bf16.xpose.msra.mxu0 0
        %4000 = vmatprep.subr.bf16.mxu0 0
        %4001 = vmatpush2.bf16.xpose.msra.mxu0 0
        %4002 = vmatprep.subr.bf16.mxu0 0
        %4003 = vmatpush2.bf16.xpose.msra.mxu0 0
        %4004 = vmatprep.subr.bf16.mxu0 0
        %4005 = vmatpush2.bf16.xpose.msra.mxu0 0
        %4006 = vmatprep.mubr.bf16.mxu0 0
        %4007 = vmatmul.mubr.bf16.gmra.mxu0 %v3842
        %v4008 = vpop.f32.mrf.mxu0
        %v4009 = vadd.f32 0.0, %v4008
        %v4010 = vpop.f32.mrf.mxu0
        %v4011 = vpop.f32.mrf.mxu0
        %v4012 = vadd.f32 0.0, %v4011
        %v4013 = vpop.f32.mrf.mxu0
        %4014 = vdwg.mxu0
        %v4015 = vsel %vm2403, %v3886, -inf
        %4016 = vmax.xlane.f32.xlu0 %v4015
        %v4017 = vpop.xlane.xlu0 %4016
        %v4018 = vsel %vm2403, %v3889, -inf
        %4019 = vmax.xlane.f32.xlu0 %v4018
        %v4020 = vpop.xlane.xlu0 %4019
        %v4021 = vsel %vm2403, %v3927, -inf
        %4022 = vmax.xlane.f32.xlu0 %v4021
        %v4023 = vpop.xlane.xlu0 %4022
        %v4024 = vsel %vm2403, %v3930, -inf
        %4025 = vmax.xlane.f32.xlu0 %v4024
        %v4026 = vpop.xlane.xlu0 %4025
        %v4027 = vsel %vm2403, %v3968, -inf
        %4028 = vmax.xlane.f32.xlu0 %v4027
        %v4029 = vpop.xlane.xlu0 %4028
        %v4030 = vsel %vm2403, %v3971, -inf
        %4031 = vmax.xlane.f32.xlu0 %v4030
        %v4032 = vpop.xlane.xlu0 %4031
        %v4033 = vsel %vm2403, %v4009, -inf
        %4034 = vmax.xlane.f32.xlu0 %v4033
        %v4035 = vpop.xlane.xlu0 %4034
        %v4036 = vsel %vm2403, %v4012, -inf
        %4037 = vmax.xlane.f32.xlu0 %v4036
        %v4038 = vpop.xlane.xlu0 %4037
        %v4039 = vsub.f32 %v3886, %v4017
        %v4040 = vsub.f32 %v3889, %v4020
        %v4041 = vsub.f32 %v3927, %v4023
        %v4042 = vsub.f32 %v3930, %v4026
        %v4043 = vsub.f32 %v3968, %v4029
        %v4044 = vsub.f32 %v3971, %v4032
        %v4045 = vsub.f32 %v4009, %v4035
        %v4046 = vsub.f32 %v4012, %v4038
        %v4047 = vmul.f32 %v4039, 1.442695
        %v4048 = vpow.pop %v4047
        %v4049 = vmul.f32 %v4040, 1.442695
        %v4050 = vpow.pop %v4049
        %v4051 = vmul.f32 %v4041, 1.442695
        %v4052 = vpow.pop %v4051
        %v4053 = vmul.f32 %v4042, 1.442695
        %v4054 = vpow.pop %v4053
        %v4055 = vmul.f32 %v4043, 1.442695
        %v4056 = vpow.pop %v4055
        %v4057 = vmul.f32 %v4044, 1.442695
        %v4058 = vpow.pop %v4057
        %v4059 = vmul.f32 %v4045, 1.442695
        %v4060 = vpow.pop %v4059
        %v4061 = vmul.f32 %v4046, 1.442695
        %v4062 = vpow.pop %v4061
        %v4063 = vsel %vm2403, %v4048, 0.0
        %4064 = vadd.xlane.f32.xlu0 %v4063
        %v4065 = vpop.xlane.xlu0 %4064
        %v4066 = vsel %vm2403, %v4050, 0.0
        %4067 = vadd.xlane.f32.xlu0 %v4066
        %v4068 = vpop.xlane.xlu0 %4067
        %v4069 = vsel %vm2403, %v4052, 0.0
        %4070 = vadd.xlane.f32.xlu0 %v4069
        %v4071 = vpop.xlane.xlu0 %4070
        %v4072 = vsel %vm2403, %v4054, 0.0
        %4073 = vadd.xlane.f32.xlu0 %v4072
        %v4074 = vpop.xlane.xlu0 %4073
        %v4075 = vsel %vm2403, %v4056, 0.0
        %4076 = vadd.xlane.f32.xlu0 %v4075
        %v4077 = vpop.xlane.xlu0 %4076
        %v4078 = vsel %vm2403, %v4058, 0.0
        %4079 = vadd.xlane.f32.xlu0 %v4078
        %v4080 = vpop.xlane.xlu0 %4079
        %v4081 = vsel %vm2403, %v4060, 0.0
        %4082 = vadd.xlane.f32.xlu0 %v4081
        %v4083 = vpop.xlane.xlu0 %4082
        %v4084 = vsel %vm2403, %v4062, 0.0
        %4085 = vadd.xlane.f32.xlu0 %v4084
        %v4086 = vpop.xlane.xlu0 %4085
        %v4087 = vrcp.pop %v4065
        %v4088 = vrcp.pop %v4068
        %v4089 = vrcp.pop %v4071
        %v4090 = vrcp.pop %v4074
        %v4091 = vrcp.pop %v4077
        %v4092 = vrcp.pop %v4080
        %v4093 = vrcp.pop %v4083
        %v4094 = vrcp.pop %v4086
        %v4095 = vmul.f32 %v4048, %v4087
        %v4096 = vmul.f32 %v4050, %v4088
        %v4097 = vmul.f32 %v4052, %v4089
        %v4098 = vmul.f32 %v4054, %v4090
        %v4099 = vmul.f32 %v4056, %v4091
        %v4100 = vmul.f32 %v4058, %v4092
        %v4101 = vmul.f32 %v4060, %v4093
        %v4102 = vmul.f32 %v4062, %v4094
        %v4103 = vpack.c.bf16 %v4096, %v4095
        %v4104 = vpack.c.bf16 %v4098, %v4097
        %v4105 = vpack.c.bf16 %v4100, %v4099
        %v4106 = vpack.c.bf16 %v4102, %v4101
        %v4108 = vsel %vm2403, %v4103, 0
        %4110 = vmatprep.subr.bf16.mxu0 0
        %4111 = vmatpush1.bf16.msra.mxu0 0
        %4112 = vmatprep.subr.bf16.mxu0 0
        %4113 = vmatpush1.bf16.msra.mxu0 0
        %4114 = vmatprep.subr.bf16.mxu0 0
        %4115 = vmatpush1.bf16.msra.mxu0 0
        %4116 = vmatprep.subr.bf16.mxu0 0
        %4117 = vmatpush1.bf16.msra.mxu0 0
        %4118 = vmatprep.subr.bf16.mxu0 0
        %4119 = vmatpush1.bf16.msra.mxu0 0
        %4120 = vmatprep.subr.bf16.mxu0 0
        %4121 = vmatpush1.bf16.msra.mxu0 0
        %4122 = vmatprep.subr.bf16.mxu0 0
        %4123 = vmatpush1.bf16.msra.mxu0 0
        %4124 = vmatprep.subr.bf16.mxu0 0
        %4125 = vmatpush1.bf16.msra.mxu0 %v3847
        %4126 = vmatprep.subr.bf16.mxu0 0
        %4127 = vmatpush2.bf16.msra.mxu0 0
        %4128 = vmatprep.subr.bf16.mxu0 0
        %4129 = vmatpush2.bf16.msra.mxu0 0
        %4130 = vmatprep.subr.bf16.mxu0 0
        %4131 = vmatpush2.bf16.msra.mxu0 0
        %4132 = vmatprep.subr.bf16.mxu0 0
        %4133 = vmatpush2.bf16.msra.mxu0 0
        %4134 = vmatprep.subr.bf16.mxu0 0
        %4135 = vmatpush2.bf16.msra.mxu0 0
        %4136 = vmatprep.subr.bf16.mxu0 0
        %4137 = vmatpush2.bf16.msra.mxu0 0
        %4138 = vmatprep.subr.bf16.mxu0 0
        %4139 = vmatpush2.bf16.msra.mxu0 0
        %4140 = vmatprep.subr.bf16.mxu0 0
        %4141 = vmatpush2.bf16.msra.mxu0 0
        %4142 = vmatprep.mubr.bf16.mxu0 0
        %4143 = vmatmul.mubr.bf16.gmra.mxu0 %v4108
        %v4144 = vpop.f32.mrf.mxu0
        %v4145 = vadd.f32 0.0, %v4144
        %v4146 = vpop.f32.mrf.mxu0
        %v4147 = vpop.f32.mrf.mxu0
        %v4148 = vadd.f32 0.0, %v4147
        %v4149 = vpop.f32.mrf.mxu0
        %4150 = vdwg.mxu0
        %v4152 = vsel %vm2403, %v4104, 0
        %4154 = vmatprep.subr.bf16.mxu0 0
        %4155 = vmatpush1.bf16.msra.mxu0 0
        %4156 = vmatprep.subr.bf16.mxu0 0
        %4157 = vmatpush1.bf16.msra.mxu0 0
        %4158 = vmatprep.subr.bf16.mxu0 0
        %4159 = vmatpush1.bf16.msra.mxu0 0
        %4160 = vmatprep.subr.bf16.mxu0 0
        %4161 = vmatpush1.bf16.msra.mxu0 0
        %4162 = vmatprep.subr.bf16.mxu0 0
        %4163 = vmatpush1.bf16.msra.mxu0 0
        %4164 = vmatprep.subr.bf16.mxu0 0
        %4165 = vmatpush1.bf16.msra.mxu0 0
        %4166 = vmatprep.subr.bf16.mxu0 0
        %4167 = vmatpush1.bf16.msra.mxu0 0
        %4168 = vmatprep.subr.bf16.mxu0 0
        %4169 = vmatpush1.bf16.msra.mxu0 %v3849
        %4170 = vmatprep.subr.bf16.mxu0 0
        %4171 = vmatpush2.bf16.msra.mxu0 0
        %4172 = vmatprep.subr.bf16.mxu0 0
        %4173 = vmatpush2.bf16.msra.mxu0 0
        %4174 = vmatprep.subr.bf16.mxu0 0
        %4175 = vmatpush2.bf16.msra.mxu0 0
        %4176 = vmatprep.subr.bf16.mxu0 0
        %4177 = vmatpush2.bf16.msra.mxu0 0
        %4178 = vmatprep.subr.bf16.mxu0 0
        %4179 = vmatpush2.bf16.msra.mxu0 0
        %4180 = vmatprep.subr.bf16.mxu0 0
        %4181 = vmatpush2.bf16.msra.mxu0 0
        %4182 = vmatprep.subr.bf16.mxu0 0
        %4183 = vmatpush2.bf16.msra.mxu0 0
        %4184 = vmatprep.subr.bf16.mxu0 0
        %4185 = vmatpush2.bf16.msra.mxu0 0
        %4186 = vmatprep.mubr.bf16.mxu0 0
        %4187 = vmatmul.mubr.bf16.gmra.mxu0 %v4152
        %v4188 = vpop.f32.mrf.mxu0
        %v4189 = vadd.f32 0.0, %v4188
        %v4190 = vpop.f32.mrf.mxu0
        %v4191 = vpop.f32.mrf.mxu0
        %v4192 = vadd.f32 0.0, %v4191
        %v4193 = vpop.f32.mrf.mxu0
        %4194 = vdwg.mxu0
        %v4196 = vsel %vm2403, %v4105, 0
        %4198 = vmatprep.subr.bf16.mxu0 0
        %4199 = vmatpush1.bf16.msra.mxu0 0
        %4200 = vmatprep.subr.bf16.mxu0 0
        %4201 = vmatpush1.bf16.msra.mxu0 0
        %4202 = vmatprep.subr.bf16.mxu0 0
        %4203 = vmatpush1.bf16.msra.mxu0 0
        %4204 = vmatprep.subr.bf16.mxu0 0
        %4205 = vmatpush1.bf16.msra.mxu0 0
        %4206 = vmatprep.subr.bf16.mxu0 0
        %4207 = vmatpush1.bf16.msra.mxu0 0
        %4208 = vmatprep.subr.bf16.mxu0 0
        %4209 = vmatpush1.bf16.msra.mxu0 0
        %4210 = vmatprep.subr.bf16.mxu0 0
        %4211 = vmatpush1.bf16.msra.mxu0 0
        %4212 = vmatprep.subr.bf16.mxu0 0
        %4213 = vmatpush1.bf16.msra.mxu0 %v3848
        %4214 = vmatprep.subr.bf16.mxu0 0
        %4215 = vmatpush2.bf16.msra.mxu0 0
        %4216 = vmatprep.subr.bf16.mxu0 0
        %4217 = vmatpush2.bf16.msra.mxu0 0
        %4218 = vmatprep.subr.bf16.mxu0 0
        %4219 = vmatpush2.bf16.msra.mxu0 0
        %4220 = vmatprep.subr.bf16.mxu0 0
        %4221 = vmatpush2.bf16.msra.mxu0 0
        %4222 = vmatprep.subr.bf16.mxu0 0
        %4223 = vmatpush2.bf16.msra.mxu0 0
        %4224 = vmatprep.subr.bf16.mxu0 0
        %4225 = vmatpush2.bf16.msra.mxu0 0
        %4226 = vmatprep.subr.bf16.mxu0 0
        %4227 = vmatpush2.bf16.msra.mxu0 0
        %4228 = vmatprep.subr.bf16.mxu0 0
        %4229 = vmatpush2.bf16.msra.mxu0 0
        %4230 = vmatprep.mubr.bf16.mxu0 0
        %4231 = vmatmul.mubr.bf16.gmra.mxu0 %v4196
        %v4232 = vpop.f32.mrf.mxu0
        %v4233 = vadd.f32 0.0, %v4232
        %v4234 = vpop.f32.mrf.mxu0
        %v4235 = vpop.f32.mrf.mxu0
        %v4236 = vadd.f32 0.0, %v4235
        %v4237 = vpop.f32.mrf.mxu0
        %4238 = vdwg.mxu0
        %v4240 = vsel %vm2403, %v4106, 0
        %4242 = vmatprep.subr.bf16.mxu0 0
        %4243 = vmatpush1.bf16.msra.mxu0 0
        %4244 = vmatprep.subr.bf16.mxu0 0
        %4245 = vmatpush1.bf16.msra.mxu0 0
        %4246 = vmatprep.subr.bf16.mxu0 0
        %4247 = vmatpush1.bf16.msra.mxu0 0
        %4248 = vmatprep.subr.bf16.mxu0 0
        %4249 = vmatpush1.bf16.msra.mxu0 0
        %4250 = vmatprep.subr.bf16.mxu0 0
        %4251 = vmatpush1.bf16.msra.mxu0 0
        %4252 = vmatprep.subr.bf16.mxu0 0
        %4253 = vmatpush1.bf16.msra.mxu0 0
        %4254 = vmatprep.subr.bf16.mxu0 0
        %4255 = vmatpush1.bf16.msra.mxu0 0
        %4256 = vmatprep.subr.bf16.mxu0 0
        %4257 = vmatpush1.bf16.msra.mxu0 %v3850
        %4258 = vmatprep.subr.bf16.mxu0 0
        %4259 = vmatpush2.bf16.msra.mxu0 0
        %4260 = vmatprep.subr.bf16.mxu0 0
        %4261 = vmatpush2.bf16.msra.mxu0 0
        %4262 = vmatprep.subr.bf16.mxu0 0
        %4263 = vmatpush2.bf16.msra.mxu0 0
        %4264 = vmatprep.subr.bf16.mxu0 0
        %4265 = vmatpush2.bf16.msra.mxu0 0
        %4266 = vmatprep.subr.bf16.mxu0 0
        %4267 = vmatpush2.bf16.msra.mxu0 0
        %4268 = vmatprep.subr.bf16.mxu0 0
        %4269 = vmatpush2.bf16.msra.mxu0 0
        %4270 = vmatprep.subr.bf16.mxu0 0
        %4271 = vmatpush2.bf16.msra.mxu0 0
        %4272 = vmatprep.subr.bf16.mxu0 0
        %4273 = vmatpush2.bf16.msra.mxu0 0
        %4274 = vmatprep.mubr.bf16.mxu0 0
        %4275 = vmatmul.mubr.bf16.gmra.mxu0 %v4240
        %v4276 = vpop.f32.mrf.mxu0
        %v4277 = vadd.f32 0.0, %v4276
        %v4278 = vpop.f32.mrf.mxu0
        %v4279 = vpop.f32.mrf.mxu0
        %v4280 = vadd.f32 0.0, %v4279
        %v4281 = vpop.f32.mrf.mxu0
        %4282 = vdwg.mxu0
        %v4283 = vpack.c.bf16 %v4148, %v4145
        %v4284 = vpack.c.bf16 %v4192, %v4189
        %v4285 = vpack.c.bf16 %v4236, %v4233
        %v4286 = vpack.c.bf16 %v4280, %v4277
        %v4288 = vlaneseq
        %v4289 = vshrl.u32 %v4288, 7
        %v4290 = vsub.s32 0, %v4289
        %v4291 = vrot.slane %v3838, %v4290
        %v4292 = vlaneseq
        %v4293 = vshrl.u32 %v4292, 7
        %v4294 = vsub.s32 1, %v4293
        %v4295 = vrot.slane %v3838, %v4294
        %v4330 = vunpack.c.l.b16 %v3806
        %v4331 = vunpack.c.h.b16 %v3806
        %v4332 = vunpack.c.l.b16 %v3807
        %v4333 = vunpack.c.h.b16 %v3807
        %v4334 = vunpack.c.l.b16 %v3808
        %v4335 = vunpack.c.h.b16 %v3808
        %v4336 = vunpack.c.l.b16 %v3809
        %v4337 = vunpack.c.h.b16 %v3809
        %v4338 = vunpack.c.l.b16 %v3810
        %v4339 = vunpack.c.h.b16 %v3810
        %v4340 = vunpack.c.l.b16 %v3811
        %v4341 = vunpack.c.h.b16 %v3811
        %v4342 = vunpack.c.l.b16 %v3812
        %v4343 = vunpack.c.h.b16 %v3812
        %v4344 = vunpack.c.l.b16 %v3813
        %v4345 = vunpack.c.h.b16 %v3813
        %v4346 = vunpack.c.l.b16 %v3814
        %v4347 = vunpack.c.h.b16 %v3814
        %v4348 = vunpack.c.l.b16 %v3815
        %v4349 = vunpack.c.h.b16 %v3815
        %v4350 = vunpack.c.l.b16 %v3816
        %v4351 = vunpack.c.h.b16 %v3816
        %v4352 = vunpack.c.l.b16 %v3817
        %v4353 = vunpack.c.h.b16 %v3817
        %v4354 = vunpack.c.l.b16 %v3818
        %v4355 = vunpack.c.h.b16 %v3818
        %v4356 = vunpack.c.l.b16 %v3819
        %v4357 = vunpack.c.h.b16 %v3819
        %v4358 = vunpack.c.l.b16 %v3820
        %v4359 = vunpack.c.h.b16 %v3820
        %v4360 = vunpack.c.l.b16 %v3821
        %v4361 = vunpack.c.h.b16 %v3821
        %v4362 = vunpack.c.l.b16 %v3822
        %v4363 = vunpack.c.h.b16 %v3822
        %v4364 = vunpack.c.l.b16 %v3823
        %v4365 = vunpack.c.h.b16 %v3823
        %v4366 = vunpack.c.l.b16 %v3824
        %v4367 = vunpack.c.h.b16 %v3824
        %v4368 = vunpack.c.l.b16 %v3825
        %v4369 = vunpack.c.h.b16 %v3825
        %v4370 = vunpack.c.l.b16 %v3826
        %v4371 = vunpack.c.h.b16 %v3826
        %v4372 = vunpack.c.l.b16 %v3827
        %v4373 = vunpack.c.h.b16 %v3827
        %v4374 = vunpack.c.l.b16 %v3828
        %v4375 = vunpack.c.h.b16 %v3828
        %v4376 = vunpack.c.l.b16 %v3829
        %v4377 = vunpack.c.h.b16 %v3829
        %v4378 = vunpack.c.l.b16 %v3830
        %v4379 = vunpack.c.h.b16 %v3830
        %v4380 = vunpack.c.l.b16 %v3831
        %v4381 = vunpack.c.h.b16 %v3831
        %v4382 = vunpack.c.l.b16 %v3832
        %v4383 = vunpack.c.h.b16 %v3832
        %v4384 = vunpack.c.l.b16 %v3833
        %v4385 = vunpack.c.h.b16 %v3833
        %v4386 = vunpack.c.l.b16 %v3834
        %v4387 = vunpack.c.h.b16 %v3834
        %v4388 = vunpack.c.l.b16 %v3835
        %v4389 = vunpack.c.h.b16 %v3835
        %v4390 = vunpack.c.l.b16 %v3836
        %v4391 = vunpack.c.h.b16 %v3836
        %v4392 = vunpack.c.l.b16 %v3837
        %v4393 = vunpack.c.h.b16 %v3837
        %v4394 = vpack.c.b16 %v4332, %v4330
        %v4395 = vpack.c.b16 %v4333, %v4331
        %v4396 = vpack.c.b16 %v4336, %v4334
        %v4397 = vpack.c.b16 %v4337, %v4335
        %v4398 = vpack.c.b16 %v4340, %v4338
        %v4399 = vpack.c.b16 %v4341, %v4339
        %v4400 = vpack.c.b16 %v4344, %v4342
        %v4401 = vpack.c.b16 %v4345, %v4343
        %v4402 = vpack.c.b16 %v4348, %v4346
        %v4403 = vpack.c.b16 %v4349, %v4347
        %v4404 = vpack.c.b16 %v4352, %v4350
        %v4405 = vpack.c.b16 %v4353, %v4351
        %v4406 = vpack.c.b16 %v4356, %v4354
        %v4407 = vpack.c.b16 %v4357, %v4355
        %v4408 = vpack.c.b16 %v4360, %v4358
        %v4409 = vpack.c.b16 %v4361, %v4359
        %v4410 = vpack.c.b16 %v4364, %v4362
        %v4411 = vpack.c.b16 %v4365, %v4363
        %v4412 = vpack.c.b16 %v4368, %v4366
        %v4413 = vpack.c.b16 %v4369, %v4367
        %v4414 = vpack.c.b16 %v4372, %v4370
        %v4415 = vpack.c.b16 %v4373, %v4371
        %v4416 = vpack.c.b16 %v4376, %v4374
        %v4417 = vpack.c.b16 %v4377, %v4375
        %v4418 = vpack.c.b16 %v4380, %v4378
        %v4419 = vpack.c.b16 %v4381, %v4379
        %v4420 = vpack.c.b16 %v4384, %v4382
        %v4421 = vpack.c.b16 %v4385, %v4383
        %v4422 = vpack.c.b16 %v4388, %v4386
        %v4423 = vpack.c.b16 %v4389, %v4387
        %v4424 = vpack.c.b16 %v4392, %v4390
        %v4425 = vpack.c.b16 %v4393, %v4391
        %4458 = vmatprep.subr.bf16.mxu0 %v4409
        %4459 = vmatpush1.bf16.msra.mxu0 %v4408
        %4460 = vmatprep.subr.bf16.mxu0 %v4407
        %4461 = vmatpush1.bf16.msra.mxu0 %v4406
        %4462 = vmatprep.subr.bf16.mxu0 %v4405
        %4463 = vmatpush1.bf16.msra.mxu0 %v4404
        %4464 = vmatprep.subr.bf16.mxu0 %v4403
        %4465 = vmatpush1.bf16.msra.mxu0 %v4402
        %4466 = vmatprep.subr.bf16.mxu0 %v4401
        %4467 = vmatpush1.bf16.msra.mxu0 %v4400
        %4468 = vmatprep.subr.bf16.mxu0 %v4399
        %4469 = vmatpush1.bf16.msra.mxu0 %v4398
        %4470 = vmatprep.subr.bf16.mxu0 %v4397
        %4471 = vmatpush1.bf16.msra.mxu0 %v4396
        %4472 = vmatprep.subr.bf16.mxu0 %v4395
        %4473 = vmatpush1.bf16.msra.mxu0 %v4394
        %4474 = vmatprep.subr.bf16.mxu0 %v4425
        %4475 = vmatpush2.bf16.msra.mxu0 %v4424
        %4476 = vmatprep.subr.bf16.mxu0 %v4423
        %4477 = vmatpush2.bf16.msra.mxu0 %v4422
        %4478 = vmatprep.subr.bf16.mxu0 %v4421
        %4479 = vmatpush2.bf16.msra.mxu0 %v4420
        %4480 = vmatprep.subr.bf16.mxu0 %v4419
        %4481 = vmatpush2.bf16.msra.mxu0 %v4418
        %4482 = vmatprep.subr.bf16.mxu0 %v4417
        %4483 = vmatpush2.bf16.msra.mxu0 %v4416
        %4484 = vmatprep.subr.bf16.mxu0 %v4415
        %4485 = vmatpush2.bf16.msra.mxu0 %v4414
        %4486 = vmatprep.subr.bf16.mxu0 %v4413
        %4487 = vmatpush2.bf16.msra.mxu0 %v4412
        %4488 = vmatprep.subr.bf16.mxu0 %v4411
        %4489 = vmatpush2.bf16.msra.mxu0 %v4410
        %4490 = vmatprep.mubr.bf16.mxu0 %v4285
        %4491 = vmatmul.mubr.bf16.gmra.mxu0 %v4283
        %v4492 = vpop.f32.mrf.mxu0
        %v4493 = vadd.f32 %v4291, %v4492
        %v4494 = vpop.f32.mrf.mxu0
        %v4495 = vadd.f32 %v4295, %v4494
        %v4496 = vpop.f32.mrf.mxu0
        %v4497 = vadd.f32 %v4291, %v4496
        %v4498 = vpop.f32.mrf.mxu0
        %v4499 = vadd.f32 %v4295, %v4498
        %4500 = vmatprep.mubr.bf16.mxu0 %v4286
        %4501 = vmatmul.mubr.bf16.gmra.mxu0 %v4284
        %v4502 = vpop.f32.mrf.mxu0
        %v4503 = vadd.f32 %v4291, %v4502
        %v4504 = vpop.f32.mrf.mxu0
        %v4505 = vadd.f32 %v4295, %v4504
        %v4506 = vpop.f32.mrf.mxu0
        %v4507 = vadd.f32 %v4291, %v4506
        %v4508 = vpop.f32.mrf.mxu0
        %v4509 = vadd.f32 %v4295, %v4508
        %4510 = vdwg.mxu0
        %v4511 = vadd.f32 %v3005, %v4493
        %v4512 = vadd.f32 %v3006, %v4495
        %v4513 = vadd.f32 %v3007, %v4497
        %v4514 = vadd.f32 %v3008, %v4499
        %v4515 = vadd.f32 %v3009, %v4503
        %v4516 = vadd.f32 %v3010, %v4505
        %v4517 = vadd.f32 %v3011, %v4507
        %v4518 = vadd.f32 %v3012, %v4509
        %v4519 = vld [vmem:[%s1380] sm:$0x3]
        %v4520 = vld [vmem:[%s1190] sm:$0x3]
        %v4521 = vadd.f32 %v4511, %v4512
        %4522 = vadd.xlane.f32.xlu0 %v4521
        %v4523 = vpop.xlane.xlu0 %4522
        %v4524 = vadd.f32 %v4513, %v4514
        %4525 = vadd.xlane.f32.xlu0 %v4524
        %v4526 = vpop.xlane.xlu0 %4525
        %v4527 = vadd.f32 %v4515, %v4516
        %4528 = vadd.xlane.f32.xlu0 %v4527
        %v4529 = vpop.xlane.xlu0 %4528
        %v4530 = vadd.f32 %v4517, %v4518
        %4531 = vadd.xlane.f32.xlu0 %v4530
        %v4532 = vpop.xlane.xlu0 %4531
        %v4533 = vmul.f32 %v4523, %v2922
        %v4534 = vmul.f32 %v4526, %v2922
        %v4535 = vmul.f32 %v4529, %v2922
        %v4536 = vmul.f32 %v4532, %v2922
        %v4537 = vsub.f32 %v4511, %v4533
        %v4538 = vsub.f32 %v4512, %v4533
        %v4539 = vsub.f32 %v4513, %v4534
        %v4540 = vsub.f32 %v4514, %v4534
        %v4541 = vsub.f32 %v4515, %v4535
        %v4542 = vsub.f32 %v4516, %v4535
        %v4543 = vsub.f32 %v4517, %v4536
        %v4544 = vsub.f32 %v4518, %v4536
        %v4545 = vmul.f32 %v4537, %v4537
        %v4546 = vmul.f32 %v4538, %v4538
        %v4547 = vmul.f32 %v4539, %v4539
        %v4548 = vmul.f32 %v4540, %v4540
        %v4549 = vmul.f32 %v4541, %v4541
        %v4550 = vmul.f32 %v4542, %v4542
        %v4551 = vmul.f32 %v4543, %v4543
        %v4552 = vmul.f32 %v4544, %v4544
        %v4553 = vadd.f32 %v4545, %v4546
        %4554 = vadd.xlane.f32.xlu0 %v4553
        %v4555 = vpop.xlane.xlu0 %4554
        %v4556 = vadd.f32 %v4547, %v4548
        %4557 = vadd.xlane.f32.xlu0 %v4556
        %v4558 = vpop.xlane.xlu0 %4557
        %v4559 = vadd.f32 %v4549, %v4550
        %4560 = vadd.xlane.f32.xlu0 %v4559
        %v4561 = vpop.xlane.xlu0 %4560
        %v4562 = vadd.f32 %v4551, %v4552
        %4563 = vadd.xlane.f32.xlu0 %v4562
        %v4564 = vpop.xlane.xlu0 %4563
        %v4565 = vmul.f32 %v4555, %v2922
        %v4566 = vmul.f32 %v4558, %v2922
        %v4567 = vmul.f32 %v4561, %v2922
        %v4568 = vmul.f32 %v4564, %v2922
        %v4569 = vadd.f32 %v4565, 1e-05
        %v4570 = vadd.f32 %v4566, 1e-05
        %v4571 = vadd.f32 %v4567, 1e-05
        %v4572 = vadd.f32 %v4568, 1e-05
        %v4573 = vrsqrt.pop %v4569
        %v4574 = vrsqrt.pop %v4570
        %v4575 = vrsqrt.pop %v4571
        %v4576 = vrsqrt.pop %v4572
        %v4577 = vmul.f32 %v4537, %v4573
        %v4578 = vmul.f32 %v4538, %v4573
        %v4579 = vmul.f32 %v4539, %v4574
        %v4580 = vmul.f32 %v4540, %v4574
        %v4581 = vmul.f32 %v4541, %v4575
        %v4582 = vmul.f32 %v4542, %v4575
        %v4583 = vmul.f32 %v4543, %v4576
        %v4584 = vmul.f32 %v4544, %v4576
        %v4586 = vlaneseq
        %v4587 = vshrl.u32 %v4586, 7
        %v4588 = vsub.s32 0, %v4587
        %v4589 = vrot.slane %v4519, %v4588
        %v4590 = vlaneseq
        %v4591 = vshrl.u32 %v4590, 7
        %v4592 = vsub.s32 1, %v4591
        %v4593 = vrot.slane %v4519, %v4592
        %v4596 = vmul.f32 %v4577, %v4589
        %v4597 = vmul.f32 %v4578, %v4593
        %v4598 = vmul.f32 %v4579, %v4589
        %v4599 = vmul.f32 %v4580, %v4593
        %v4600 = vmul.f32 %v4581, %v4589
        %v4601 = vmul.f32 %v4582, %v4593
        %v4602 = vmul.f32 %v4583, %v4589
        %v4603 = vmul.f32 %v4584, %v4593
        %v4605 = vlaneseq
        %v4606 = vshrl.u32 %v4605, 7
        %v4607 = vsub.s32 0, %v4606
        %v4608 = vrot.slane %v4520, %v4607
        %v4609 = vlaneseq
        %v4610 = vshrl.u32 %v4609, 7
        %v4611 = vsub.s32 1, %v4610
        %v4612 = vrot.slane %v4520, %v4611
        %v4615 = vadd.f32 %v4596, %v4608
        %v4616 = vadd.f32 %v4597, %v4612
        %v4617 = vadd.f32 %v4598, %v4608
        %v4618 = vadd.f32 %v4599, %v4612
        %v4619 = vadd.f32 %v4600, %v4608
        %v4620 = vadd.f32 %v4601, %v4612
        %v4621 = vadd.f32 %v4602, %v4608
        %v4622 = vadd.f32 %v4603, %v4612
        %v4623 = vpack.c.bf16 %v4617, %v4615
        %v4624 = vpack.c.bf16 %v4618, %v4616
        %v4625 = vpack.c.bf16 %v4621, %v4619
        %v4626 = vpack.c.bf16 %v4622, %v4620
        %v4627 = vld [vmem:[%s1163] sm:$0xff]
        %v4628 = vld [vmem:[%s1163 + $0x8] sm:$0xff]
        %v4629 = vld [vmem:[%s1163 + $0x10] sm:$0xff]
        %v4630 = vld [vmem:[%s1163 + $0x18] sm:$0xff]
        %v4631 = vld [vmem:[%s1163 + $0x20] sm:$0xff]
        %v4632 = vld [vmem:[%s1163 + $0x28] sm:$0xff]
        %v4633 = vld [vmem:[%s1163 + $0x30] sm:$0xff]
        %v4634 = vld [vmem:[%s1163 + $0x38] sm:$0xff]
        %v4635 = vld [vmem:[%s1163 + $0x40] sm:$0xff]
        %v4636 = vld [vmem:[%s1163 + $0x48] sm:$0xff]
        %v4637 = vld [vmem:[%s1163 + $0x50] sm:$0xff]
        %v4638 = vld [vmem:[%s1163 + $0x58] sm:$0xff]
        %v4639 = vld [vmem:[%s1163 + $0x60] sm:$0xff]
        %v4640 = vld [vmem:[%s1163 + $0x68] sm:$0xff]
        %v4641 = vld [vmem:[%s1163 + $0x70] sm:$0xff]
        %v4642 = vld [vmem:[%s1163 + $0x78] sm:$0xff]
        %v4643 = vld [vmem:[%s1163 + $0x80] sm:$0xff]
        %v4644 = vld [vmem:[%s1163 + $0x88] sm:$0xff]
        %v4645 = vld [vmem:[%s1163 + $0x90] sm:$0xff]
        %v4646 = vld [vmem:[%s1163 + $0x98] sm:$0xff]
        %v4647 = vld [vmem:[%s1163 + $0xa0] sm:$0xff]
        %v4648 = vld [vmem:[%s1163 + $0xa8] sm:$0xff]
        %v4649 = vld [vmem:[%s1163 + $0xb0] sm:$0xff]
        %v4650 = vld [vmem:[%s1163 + $0xb8] sm:$0xff]
        %v4651 = vld [vmem:[%s1163 + $0xc0] sm:$0xff]
        %v4652 = vld [vmem:[%s1163 + $0xc8] sm:$0xff]
        %v4653 = vld [vmem:[%s1163 + $0xd0] sm:$0xff]
        %v4654 = vld [vmem:[%s1163 + $0xd8] sm:$0xff]
        %v4655 = vld [vmem:[%s1163 + $0xe0] sm:$0xff]
        %v4656 = vld [vmem:[%s1163 + $0xe8] sm:$0xff]
        %v4657 = vld [vmem:[%s1163 + $0xf0] sm:$0xff]
        %v4658 = vld [vmem:[%s1163 + $0xf8] sm:$0xff]
        %v4659 = vld [vmem:[%s1163 + $0x100] sm:$0xff]
        %v4660 = vld [vmem:[%s1163 + $0x108] sm:$0xff]
        %v4661 = vld [vmem:[%s1163 + $0x110] sm:$0xff]
        %v4662 = vld [vmem:[%s1163 + $0x118] sm:$0xff]
        %v4663 = vld [vmem:[%s1163 + $0x120] sm:$0xff]
        %v4664 = vld [vmem:[%s1163 + $0x128] sm:$0xff]
        %v4665 = vld [vmem:[%s1163 + $0x130] sm:$0xff]
        %v4666 = vld [vmem:[%s1163 + $0x138] sm:$0xff]
        %v4667 = vld [vmem:[%s1163 + $0x140] sm:$0xff]
        %v4668 = vld [vmem:[%s1163 + $0x148] sm:$0xff]
        %v4669 = vld [vmem:[%s1163 + $0x150] sm:$0xff]
        %v4670 = vld [vmem:[%s1163 + $0x158] sm:$0xff]
        %v4671 = vld [vmem:[%s1163 + $0x160] sm:$0xff]
        %v4672 = vld [vmem:[%s1163 + $0x168] sm:$0xff]
        %v4673 = vld [vmem:[%s1163 + $0x170] sm:$0xff]
        %v4674 = vld [vmem:[%s1163 + $0x178] sm:$0xff]
        %v4675 = vld [vmem:[%s1163 + $0x180] sm:$0xff]
        %v4676 = vld [vmem:[%s1163 + $0x188] sm:$0xff]
        %v4677 = vld [vmem:[%s1163 + $0x190] sm:$0xff]
        %v4678 = vld [vmem:[%s1163 + $0x198] sm:$0xff]
        %v4679 = vld [vmem:[%s1163 + $0x1a0] sm:$0xff]
        %v4680 = vld [vmem:[%s1163 + $0x1a8] sm:$0xff]
        %v4681 = vld [vmem:[%s1163 + $0x1b0] sm:$0xff]
        %v4682 = vld [vmem:[%s1163 + $0x1b8] sm:$0xff]
        %v4683 = vld [vmem:[%s1163 + $0x1c0] sm:$0xff]
        %v4684 = vld [vmem:[%s1163 + $0x1c8] sm:$0xff]
        %v4685 = vld [vmem:[%s1163 + $0x1d0] sm:$0xff]
        %v4686 = vld [vmem:[%s1163 + $0x1d8] sm:$0xff]
        %v4687 = vld [vmem:[%s1163 + $0x1e0] sm:$0xff]
        %v4688 = vld [vmem:[%s1163 + $0x1e8] sm:$0xff]
        %v4689 = vld [vmem:[%s1163 + $0x1f0] sm:$0xff]
        %v4690 = vld [vmem:[%s1163 + $0x1f8] sm:$0xff]
        %v4691 = vld [vmem:[%s1163 + $0x200] sm:$0xff]
        %v4692 = vld [vmem:[%s1163 + $0x208] sm:$0xff]
        %v4693 = vld [vmem:[%s1163 + $0x210] sm:$0xff]
        %v4694 = vld [vmem:[%s1163 + $0x218] sm:$0xff]
        %v4695 = vld [vmem:[%s1163 + $0x220] sm:$0xff]
        %v4696 = vld [vmem:[%s1163 + $0x228] sm:$0xff]
        %v4697 = vld [vmem:[%s1163 + $0x230] sm:$0xff]
        %v4698 = vld [vmem:[%s1163 + $0x238] sm:$0xff]
        %v4699 = vld [vmem:[%s1163 + $0x240] sm:$0xff]
        %v4700 = vld [vmem:[%s1163 + $0x248] sm:$0xff]
        %v4701 = vld [vmem:[%s1163 + $0x250] sm:$0xff]
        %v4702 = vld [vmem:[%s1163 + $0x258] sm:$0xff]
        %v4703 = vld [vmem:[%s1163 + $0x260] sm:$0xff]
        %v4704 = vld [vmem:[%s1163 + $0x268] sm:$0xff]
        %v4705 = vld [vmem:[%s1163 + $0x270] sm:$0xff]
        %v4706 = vld [vmem:[%s1163 + $0x278] sm:$0xff]
        %v4707 = vld [vmem:[%s1163 + $0x280] sm:$0xff]
        %v4708 = vld [vmem:[%s1163 + $0x288] sm:$0xff]
        %v4709 = vld [vmem:[%s1163 + $0x290] sm:$0xff]
        %v4710 = vld [vmem:[%s1163 + $0x298] sm:$0xff]
        %v4711 = vld [vmem:[%s1163 + $0x2a0] sm:$0xff]
        %v4712 = vld [vmem:[%s1163 + $0x2a8] sm:$0xff]
        %v4713 = vld [vmem:[%s1163 + $0x2b0] sm:$0xff]
        %v4714 = vld [vmem:[%s1163 + $0x2b8] sm:$0xff]
        %v4715 = vld [vmem:[%s1163 + $0x2c0] sm:$0xff]
        %v4716 = vld [vmem:[%s1163 + $0x2c8] sm:$0xff]
        %v4717 = vld [vmem:[%s1163 + $0x2d0] sm:$0xff]
        %v4718 = vld [vmem:[%s1163 + $0x2d8] sm:$0xff]
        %v4719 = vld [vmem:[%s1163 + $0x2e0] sm:$0xff]
        %v4720 = vld [vmem:[%s1163 + $0x2e8] sm:$0xff]
        %v4721 = vld [vmem:[%s1163 + $0x2f0] sm:$0xff]
        %v4722 = vld [vmem:[%s1163 + $0x2f8] sm:$0xff]
        %v4723 = vld [vmem:[%s1163 + $0x300] sm:$0xff]
        %v4724 = vld [vmem:[%s1163 + $0x308] sm:$0xff]
        %v4725 = vld [vmem:[%s1163 + $0x310] sm:$0xff]
        %v4726 = vld [vmem:[%s1163 + $0x318] sm:$0xff]
        %v4727 = vld [vmem:[%s1163 + $0x320] sm:$0xff]
        %v4728 = vld [vmem:[%s1163 + $0x328] sm:$0xff]
        %v4729 = vld [vmem:[%s1163 + $0x330] sm:$0xff]
        %v4730 = vld [vmem:[%s1163 + $0x338] sm:$0xff]
        %v4731 = vld [vmem:[%s1163 + $0x340] sm:$0xff]
        %v4732 = vld [vmem:[%s1163 + $0x348] sm:$0xff]
        %v4733 = vld [vmem:[%s1163 + $0x350] sm:$0xff]
        %v4734 = vld [vmem:[%s1163 + $0x358] sm:$0xff]
        %v4735 = vld [vmem:[%s1163 + $0x360] sm:$0xff]
        %v4736 = vld [vmem:[%s1163 + $0x368] sm:$0xff]
        %v4737 = vld [vmem:[%s1163 + $0x370] sm:$0xff]
        %v4738 = vld [vmem:[%s1163 + $0x378] sm:$0xff]
        %v4739 = vld [vmem:[%s1163 + $0x380] sm:$0xff]
        %v4740 = vld [vmem:[%s1163 + $0x388] sm:$0xff]
        %v4741 = vld [vmem:[%s1163 + $0x390] sm:$0xff]
        %v4742 = vld [vmem:[%s1163 + $0x398] sm:$0xff]
        %v4743 = vld [vmem:[%s1163 + $0x3a0] sm:$0xff]
        %v4744 = vld [vmem:[%s1163 + $0x3a8] sm:$0xff]
        %v4745 = vld [vmem:[%s1163 + $0x3b0] sm:$0xff]
        %v4746 = vld [vmem:[%s1163 + $0x3b8] sm:$0xff]
        %v4747 = vld [vmem:[%s1163 + $0x3c0] sm:$0xff]
        %v4748 = vld [vmem:[%s1163 + $0x3c8] sm:$0xff]
        %v4749 = vld [vmem:[%s1163 + $0x3d0] sm:$0xff]
        %v4750 = vld [vmem:[%s1163 + $0x3d8] sm:$0xff]
        %v4751 = vld [vmem:[%s1163 + $0x3e0] sm:$0xff]
        %v4752 = vld [vmem:[%s1163 + $0x3e8] sm:$0xff]
        %v4753 = vld [vmem:[%s1163 + $0x3f0] sm:$0xff]
        %v4754 = vld [vmem:[%s1163 + $0x3f8] sm:$0xff]
        %v4755 = vld [vmem:[%s1368] sm:$0xff]
        %v4757 = vlaneseq
        %v4758 = vshrl.u32 %v4757, 7
        %v4759 = vsub.s32 0, %v4758
        %v4760 = vrot.slane %v4755, %v4759
        %v4761 = vlaneseq
        %v4762 = vshrl.u32 %v4761, 7
        %v4763 = vsub.s32 1, %v4762
        %v4764 = vrot.slane %v4755, %v4763
        %v4765 = vlaneseq
        %v4766 = vshrl.u32 %v4765, 7
        %v4767 = vsub.s32 2, %v4766
        %v4768 = vrot.slane %v4755, %v4767
        %v4769 = vlaneseq
        %v4770 = vshrl.u32 %v4769, 7
        %v4771 = vsub.s32 3, %v4770
        %v4772 = vrot.slane %v4755, %v4771
        %v4773 = vlaneseq
        %v4774 = vshrl.u32 %v4773, 7
        %v4775 = vsub.s32 4, %v4774
        %v4776 = vrot.slane %v4755, %v4775
        %v4777 = vlaneseq
        %v4778 = vshrl.u32 %v4777, 7
        %v4779 = vsub.s32 5, %v4778
        %v4780 = vrot.slane %v4755, %v4779
        %v4781 = vlaneseq
        %v4782 = vshrl.u32 %v4781, 7
        %v4783 = vsub.s32 6, %v4782
        %v4784 = vrot.slane %v4755, %v4783
        %v4785 = vlaneseq
        %v4786 = vshrl.u32 %v4785, 7
        %v4787 = vsub.s32 7, %v4786
        %v4788 = vrot.slane %v4755, %v4787
        %v4925 = vunpack.c.l.b16 %v4627
        %v4926 = vunpack.c.h.b16 %v4627
        %v4927 = vunpack.c.l.b16 %v4628
        %v4928 = vunpack.c.h.b16 %v4628
        %v4929 = vunpack.c.l.b16 %v4629
        %v4930 = vunpack.c.h.b16 %v4629
        %v4931 = vunpack.c.l.b16 %v4630
        %v4932 = vunpack.c.h.b16 %v4630
        %v4933 = vunpack.c.l.b16 %v4631
        %v4934 = vunpack.c.h.b16 %v4631
        %v4935 = vunpack.c.l.b16 %v4632
        %v4936 = vunpack.c.h.b16 %v4632
        %v4937 = vunpack.c.l.b16 %v4633
        %v4938 = vunpack.c.h.b16 %v4633
        %v4939 = vunpack.c.l.b16 %v4634
        %v4940 = vunpack.c.h.b16 %v4634
        %v4941 = vunpack.c.l.b16 %v4635
        %v4942 = vunpack.c.h.b16 %v4635
        %v4943 = vunpack.c.l.b16 %v4636
        %v4944 = vunpack.c.h.b16 %v4636
        %v4945 = vunpack.c.l.b16 %v4637
        %v4946 = vunpack.c.h.b16 %v4637
        %v4947 = vunpack.c.l.b16 %v4638
        %v4948 = vunpack.c.h.b16 %v4638
        %v4949 = vunpack.c.l.b16 %v4639
        %v4950 = vunpack.c.h.b16 %v4639
        %v4951 = vunpack.c.l.b16 %v4640
        %v4952 = vunpack.c.h.b16 %v4640
        %v4953 = vunpack.c.l.b16 %v4641
        %v4954 = vunpack.c.h.b16 %v4641
        %v4955 = vunpack.c.l.b16 %v4642
        %v4956 = vunpack.c.h.b16 %v4642
        %v4957 = vunpack.c.l.b16 %v4643
        %v4958 = vunpack.c.h.b16 %v4643
        %v4959 = vunpack.c.l.b16 %v4644
        %v4960 = vunpack.c.h.b16 %v4644
        %v4961 = vunpack.c.l.b16 %v4645
        %v4962 = vunpack.c.h.b16 %v4645
        %v4963 = vunpack.c.l.b16 %v4646
        %v4964 = vunpack.c.h.b16 %v4646
        %v4965 = vunpack.c.l.b16 %v4647
        %v4966 = vunpack.c.h.b16 %v4647
        %v4967 = vunpack.c.l.b16 %v4648
        %v4968 = vunpack.c.h.b16 %v4648
        %v4969 = vunpack.c.l.b16 %v4649
        %v4970 = vunpack.c.h.b16 %v4649
        %v4971 = vunpack.c.l.b16 %v4650
        %v4972 = vunpack.c.h.b16 %v4650
        %v4973 = vunpack.c.l.b16 %v4651
        %v4974 = vunpack.c.h.b16 %v4651
        %v4975 = vunpack.c.l.b16 %v4652
        %v4976 = vunpack.c.h.b16 %v4652
        %v4977 = vunpack.c.l.b16 %v4653
        %v4978 = vunpack.c.h.b16 %v4653
        %v4979 = vunpack.c.l.b16 %v4654
        %v4980 = vunpack.c.h.b16 %v4654
        %v4981 = vunpack.c.l.b16 %v4655
        %v4982 = vunpack.c.h.b16 %v4655
        %v4983 = vunpack.c.l.b16 %v4656
        %v4984 = vunpack.c.h.b16 %v4656
        %v4985 = vunpack.c.l.b16 %v4657
        %v4986 = vunpack.c.h.b16 %v4657
        %v4987 = vunpack.c.l.b16 %v4658
        %v4988 = vunpack.c.h.b16 %v4658
        %v4989 = vunpack.c.l.b16 %v4659
        %v4990 = vunpack.c.h.b16 %v4659
        %v4991 = vunpack.c.l.b16 %v4660
        %v4992 = vunpack.c.h.b16 %v4660
        %v4993 = vunpack.c.l.b16 %v4661
        %v4994 = vunpack.c.h.b16 %v4661
        %v4995 = vunpack.c.l.b16 %v4662
        %v4996 = vunpack.c.h.b16 %v4662
        %v4997 = vunpack.c.l.b16 %v4663
        %v4998 = vunpack.c.h.b16 %v4663
        %v4999 = vunpack.c.l.b16 %v4664
        %v5000 = vunpack.c.h.b16 %v4664
        %v5001 = vunpack.c.l.b16 %v4665
        %v5002 = vunpack.c.h.b16 %v4665
        %v5003 = vunpack.c.l.b16 %v4666
        %v5004 = vunpack.c.h.b16 %v4666
        %v5005 = vunpack.c.l.b16 %v4667
        %v5006 = vunpack.c.h.b16 %v4667
        %v5007 = vunpack.c.l.b16 %v4668
        %v5008 = vunpack.c.h.b16 %v4668
        %v5009 = vunpack.c.l.b16 %v4669
        %v5010 = vunpack.c.h.b16 %v4669
        %v5011 = vunpack.c.l.b16 %v4670
        %v5012 = vunpack.c.h.b16 %v4670
        %v5013 = vunpack.c.l.b16 %v4671
        %v5014 = vunpack.c.h.b16 %v4671
        %v5015 = vunpack.c.l.b16 %v4672
        %v5016 = vunpack.c.h.b16 %v4672
        %v5017 = vunpack.c.l.b16 %v4673
        %v5018 = vunpack.c.h.b16 %v4673
        %v5019 = vunpack.c.l.b16 %v4674
        %v5020 = vunpack.c.h.b16 %v4674
        %v5021 = vunpack.c.l.b16 %v4675
        %v5022 = vunpack.c.h.b16 %v4675
        %v5023 = vunpack.c.l.b16 %v4676
        %v5024 = vunpack.c.h.b16 %v4676
        %v5025 = vunpack.c.l.b16 %v4677
        %v5026 = vunpack.c.h.b16 %v4677
        %v5027 = vunpack.c.l.b16 %v4678
        %v5028 = vunpack.c.h.b16 %v4678
        %v5029 = vunpack.c.l.b16 %v4679
        %v5030 = vunpack.c.h.b16 %v4679
        %v5031 = vunpack.c.l.b16 %v4680
        %v5032 = vunpack.c.h.b16 %v4680
        %v5033 = vunpack.c.l.b16 %v4681
        %v5034 = vunpack.c.h.b16 %v4681
        %v5035 = vunpack.c.l.b16 %v4682
        %v5036 = vunpack.c.h.b16 %v4682
        %v5037 = vunpack.c.l.b16 %v4683
        %v5038 = vunpack.c.h.b16 %v4683
        %v5039 = vunpack.c.l.b16 %v4684
        %v5040 = vunpack.c.h.b16 %v4684
        %v5041 = vunpack.c.l.b16 %v4685
        %v5042 = vunpack.c.h.b16 %v4685
        %v5043 = vunpack.c.l.b16 %v4686
        %v5044 = vunpack.c.h.b16 %v4686
        %v5045 = vunpack.c.l.b16 %v4687
        %v5046 = vunpack.c.h.b16 %v4687
        %v5047 = vunpack.c.l.b16 %v4688
        %v5048 = vunpack.c.h.b16 %v4688
        %v5049 = vunpack.c.l.b16 %v4689
        %v5050 = vunpack.c.h.b16 %v4689
        %v5051 = vunpack.c.l.b16 %v4690
        %v5052 = vunpack.c.h.b16 %v4690
        %v5053 = vunpack.c.l.b16 %v4691
        %v5054 = vunpack.c.h.b16 %v4691
        %v5055 = vunpack.c.l.b16 %v4692
        %v5056 = vunpack.c.h.b16 %v4692
        %v5057 = vunpack.c.l.b16 %v4693
        %v5058 = vunpack.c.h.b16 %v4693
        %v5059 = vunpack.c.l.b16 %v4694
        %v5060 = vunpack.c.h.b16 %v4694
        %v5061 = vunpack.c.l.b16 %v4695
        %v5062 = vunpack.c.h.b16 %v4695
        %v5063 = vunpack.c.l.b16 %v4696
        %v5064 = vunpack.c.h.b16 %v4696
        %v5065 = vunpack.c.l.b16 %v4697
        %v5066 = vunpack.c.h.b16 %v4697
        %v5067 = vunpack.c.l.b16 %v4698
        %v5068 = vunpack.c.h.b16 %v4698
        %v5069 = vunpack.c.l.b16 %v4699
        %v5070 = vunpack.c.h.b16 %v4699
        %v5071 = vunpack.c.l.b16 %v4700
        %v5072 = vunpack.c.h.b16 %v4700
        %v5073 = vunpack.c.l.b16 %v4701
        %v5074 = vunpack.c.h.b16 %v4701
        %v5075 = vunpack.c.l.b16 %v4702
        %v5076 = vunpack.c.h.b16 %v4702
        %v5077 = vunpack.c.l.b16 %v4703
        %v5078 = vunpack.c.h.b16 %v4703
        %v5079 = vunpack.c.l.b16 %v4704
        %v5080 = vunpack.c.h.b16 %v4704
        %v5081 = vunpack.c.l.b16 %v4705
        %v5082 = vunpack.c.h.b16 %v4705
        %v5083 = vunpack.c.l.b16 %v4706
        %v5084 = vunpack.c.h.b16 %v4706
        %v5085 = vunpack.c.l.b16 %v4707
        %v5086 = vunpack.c.h.b16 %v4707
        %v5087 = vunpack.c.l.b16 %v4708
        %v5088 = vunpack.c.h.b16 %v4708
        %v5089 = vunpack.c.l.b16 %v4709
        %v5090 = vunpack.c.h.b16 %v4709
        %v5091 = vunpack.c.l.b16 %v4710
        %v5092 = vunpack.c.h.b16 %v4710
        %v5093 = vunpack.c.l.b16 %v4711
        %v5094 = vunpack.c.h.b16 %v4711
        %v5095 = vunpack.c.l.b16 %v4712
        %v5096 = vunpack.c.h.b16 %v4712
        %v5097 = vunpack.c.l.b16 %v4713
        %v5098 = vunpack.c.h.b16 %v4713
        %v5099 = vunpack.c.l.b16 %v4714
        %v5100 = vunpack.c.h.b16 %v4714
        %v5101 = vunpack.c.l.b16 %v4715
        %v5102 = vunpack.c.h.b16 %v4715
        %v5103 = vunpack.c.l.b16 %v4716
        %v5104 = vunpack.c.h.b16 %v4716
        %v5105 = vunpack.c.l.b16 %v4717
        %v5106 = vunpack.c.h.b16 %v4717
        %v5107 = vunpack.c.l.b16 %v4718
        %v5108 = vunpack.c.h.b16 %v4718
        %v5109 = vunpack.c.l.b16 %v4719
        %v5110 = vunpack.c.h.b16 %v4719
        %v5111 = vunpack.c.l.b16 %v4720
        %v5112 = vunpack.c.h.b16 %v4720
        %v5113 = vunpack.c.l.b16 %v4721
        %v5114 = vunpack.c.h.b16 %v4721
        %v5115 = vunpack.c.l.b16 %v4722
        %v5116 = vunpack.c.h.b16 %v4722
        %v5117 = vunpack.c.l.b16 %v4723
        %v5118 = vunpack.c.h.b16 %v4723
        %v5119 = vunpack.c.l.b16 %v4724
        %v5120 = vunpack.c.h.b16 %v4724
        %v5121 = vunpack.c.l.b16 %v4725
        %v5122 = vunpack.c.h.b16 %v4725
        %v5123 = vunpack.c.l.b16 %v4726
        %v5124 = vunpack.c.h.b16 %v4726
        %v5125 = vunpack.c.l.b16 %v4727
        %v5126 = vunpack.c.h.b16 %v4727
        %v5127 = vunpack.c.l.b16 %v4728
        %v5128 = vunpack.c.h.b16 %v4728
        %v5129 = vunpack.c.l.b16 %v4729
        %v5130 = vunpack.c.h.b16 %v4729
        %v5131 = vunpack.c.l.b16 %v4730
        %v5132 = vunpack.c.h.b16 %v4730
        %v5133 = vunpack.c.l.b16 %v4731
        %v5134 = vunpack.c.h.b16 %v4731
        %v5135 = vunpack.c.l.b16 %v4732
        %v5136 = vunpack.c.h.b16 %v4732
        %v5137 = vunpack.c.l.b16 %v4733
        %v5138 = vunpack.c.h.b16 %v4733
        %v5139 = vunpack.c.l.b16 %v4734
        %v5140 = vunpack.c.h.b16 %v4734
        %v5141 = vunpack.c.l.b16 %v4735
        %v5142 = vunpack.c.h.b16 %v4735
        %v5143 = vunpack.c.l.b16 %v4736
        %v5144 = vunpack.c.h.b16 %v4736
        %v5145 = vunpack.c.l.b16 %v4737
        %v5146 = vunpack.c.h.b16 %v4737
        %v5147 = vunpack.c.l.b16 %v4738
        %v5148 = vunpack.c.h.b16 %v4738
        %v5149 = vunpack.c.l.b16 %v4739
        %v5150 = vunpack.c.h.b16 %v4739
        %v5151 = vunpack.c.l.b16 %v4740
        %v5152 = vunpack.c.h.b16 %v4740
        %v5153 = vunpack.c.l.b16 %v4741
        %v5154 = vunpack.c.h.b16 %v4741
        %v5155 = vunpack.c.l.b16 %v4742
        %v5156 = vunpack.c.h.b16 %v4742
        %v5157 = vunpack.c.l.b16 %v4743
        %v5158 = vunpack.c.h.b16 %v4743
        %v5159 = vunpack.c.l.b16 %v4744
        %v5160 = vunpack.c.h.b16 %v4744
        %v5161 = vunpack.c.l.b16 %v4745
        %v5162 = vunpack.c.h.b16 %v4745
        %v5163 = vunpack.c.l.b16 %v4746
        %v5164 = vunpack.c.h.b16 %v4746
        %v5165 = vunpack.c.l.b16 %v4747
        %v5166 = vunpack.c.h.b16 %v4747
        %v5167 = vunpack.c.l.b16 %v4748
        %v5168 = vunpack.c.h.b16 %v4748
        %v5169 = vunpack.c.l.b16 %v4749
        %v5170 = vunpack.c.h.b16 %v4749
        %v5171 = vunpack.c.l.b16 %v4750
        %v5172 = vunpack.c.h.b16 %v4750
        %v5173 = vunpack.c.l.b16 %v4751
        %v5174 = vunpack.c.h.b16 %v4751
        %v5175 = vunpack.c.l.b16 %v4752
        %v5176 = vunpack.c.h.b16 %v4752
        %v5177 = vunpack.c.l.b16 %v4753
        %v5178 = vunpack.c.h.b16 %v4753
        %v5179 = vunpack.c.l.b16 %v4754
        %v5180 = vunpack.c.h.b16 %v4754
        %v5181 = vpack.c.b16 %v4933, %v4925
        %v5182 = vpack.c.b16 %v4934, %v4926
        %v5183 = vpack.c.b16 %v4935, %v4927
        %v5184 = vpack.c.b16 %v4936, %v4928
        %v5185 = vpack.c.b16 %v4937, %v4929
        %v5186 = vpack.c.b16 %v4938, %v4930
        %v5187 = vpack.c.b16 %v4939, %v4931
        %v5188 = vpack.c.b16 %v4940, %v4932
        %v5189 = vpack.c.b16 %v4949, %v4941
        %v5190 = vpack.c.b16 %v4950, %v4942
        %v5191 = vpack.c.b16 %v4951, %v4943
        %v5192 = vpack.c.b16 %v4952, %v4944
        %v5193 = vpack.c.b16 %v4953, %v4945
        %v5194 = vpack.c.b16 %v4954, %v4946
        %v5195 = vpack.c.b16 %v4955, %v4947
        %v5196 = vpack.c.b16 %v4956, %v4948
        %v5197 = vpack.c.b16 %v4965, %v4957
        %v5198 = vpack.c.b16 %v4966, %v4958
        %v5199 = vpack.c.b16 %v4967, %v4959
        %v5200 = vpack.c.b16 %v4968, %v4960
        %v5201 = vpack.c.b16 %v4969, %v4961
        %v5202 = vpack.c.b16 %v4970, %v4962
        %v5203 = vpack.c.b16 %v4971, %v4963
        %v5204 = vpack.c.b16 %v4972, %v4964
        %v5205 = vpack.c.b16 %v4981, %v4973
        %v5206 = vpack.c.b16 %v4982, %v4974
        %v5207 = vpack.c.b16 %v4983, %v4975
        %v5208 = vpack.c.b16 %v4984, %v4976
        %v5209 = vpack.c.b16 %v4985, %v4977
        %v5210 = vpack.c.b16 %v4986, %v4978
        %v5211 = vpack.c.b16 %v4987, %v4979
        %v5212 = vpack.c.b16 %v4988, %v4980
        %v5213 = vpack.c.b16 %v4997, %v4989
        %v5214 = vpack.c.b16 %v4998, %v4990
        %v5215 = vpack.c.b16 %v4999, %v4991
        %v5216 = vpack.c.b16 %v5000, %v4992
        %v5217 = vpack.c.b16 %v5001, %v4993
        %v5218 = vpack.c.b16 %v5002, %v4994
        %v5219 = vpack.c.b16 %v5003, %v4995
        %v5220 = vpack.c.b16 %v5004, %v4996
        %v5221 = vpack.c.b16 %v5013, %v5005
        %v5222 = vpack.c.b16 %v5014, %v5006
        %v5223 = vpack.c.b16 %v5015, %v5007
        %v5224 = vpack.c.b16 %v5016, %v5008
        %v5225 = vpack.c.b16 %v5017, %v5009
        %v5226 = vpack.c.b16 %v5018, %v5010
        %v5227 = vpack.c.b16 %v5019, %v5011
        %v5228 = vpack.c.b16 %v5020, %v5012
        %v5229 = vpack.c.b16 %v5029, %v5021
        %v5230 = vpack.c.b16 %v5030, %v5022
        %v5231 = vpack.c.b16 %v5031, %v5023
        %v5232 = vpack.c.b16 %v5032, %v5024
        %v5233 = vpack.c.b16 %v5033, %v5025
        %v5234 = vpack.c.b16 %v5034, %v5026
        %v5235 = vpack.c.b16 %v5035, %v5027
        %v5236 = vpack.c.b16 %v5036, %v5028
        %v5237 = vpack.c.b16 %v5045, %v5037
        %v5238 = vpack.c.b16 %v5046, %v5038
        %v5239 = vpack.c.b16 %v5047, %v5039
        %v5240 = vpack.c.b16 %v5048, %v5040
        %v5241 = vpack.c.b16 %v5049, %v5041
        %v5242 = vpack.c.b16 %v5050, %v5042
        %v5243 = vpack.c.b16 %v5051, %v5043
        %v5244 = vpack.c.b16 %v5052, %v5044
        %v5245 = vpack.c.b16 %v5061, %v5053
        %v5246 = vpack.c.b16 %v5062, %v5054
        %v5247 = vpack.c.b16 %v5063, %v5055
        %v5248 = vpack.c.b16 %v5064, %v5056
        %v5249 = vpack.c.b16 %v5065, %v5057
        %v5250 = vpack.c.b16 %v5066, %v5058
        %v5251 = vpack.c.b16 %v5067, %v5059
        %v5252 = vpack.c.b16 %v5068, %v5060
        %v5253 = vpack.c.b16 %v5077, %v5069
        %v5254 = vpack.c.b16 %v5078, %v5070
        %v5255 = vpack.c.b16 %v5079, %v5071
        %v5256 = vpack.c.b16 %v5080, %v5072
        %v5257 = vpack.c.b16 %v5081, %v5073
        %v5258 = vpack.c.b16 %v5082, %v5074
        %v5259 = vpack.c.b16 %v5083, %v5075
        %v5260 = vpack.c.b16 %v5084, %v5076
        %v5261 = vpack.c.b16 %v5093, %v5085
        %v5262 = vpack.c.b16 %v5094, %v5086
        %v5263 = vpack.c.b16 %v5095, %v5087
        %v5264 = vpack.c.b16 %v5096, %v5088
        %v5265 = vpack.c.b16 %v5097, %v5089
        %v5266 = vpack.c.b16 %v5098, %v5090
        %v5267 = vpack.c.b16 %v5099, %v5091
        %v5268 = vpack.c.b16 %v5100, %v5092
        %v5269 = vpack.c.b16 %v5109, %v5101
        %v5270 = vpack.c.b16 %v5110, %v5102
        %v5271 = vpack.c.b16 %v5111, %v5103
        %v5272 = vpack.c.b16 %v5112, %v5104
        %v5273 = vpack.c.b16 %v5113, %v5105
        %v5274 = vpack.c.b16 %v5114, %v5106
        %v5275 = vpack.c.b16 %v5115, %v5107
        %v5276 = vpack.c.b16 %v5116, %v5108
        %v5277 = vpack.c.b16 %v5125, %v5117
        %v5278 = vpack.c.b16 %v5126, %v5118
        %v5279 = vpack.c.b16 %v5127, %v5119
        %v5280 = vpack.c.b16 %v5128, %v5120
        %v5281 = vpack.c.b16 %v5129, %v5121
        %v5282 = vpack.c.b16 %v5130, %v5122
        %v5283 = vpack.c.b16 %v5131, %v5123
        %v5284 = vpack.c.b16 %v5132, %v5124
        %v5285 = vpack.c.b16 %v5141, %v5133
        %v5286 = vpack.c.b16 %v5142, %v5134
        %v5287 = vpack.c.b16 %v5143, %v5135
        %v5288 = vpack.c.b16 %v5144, %v5136
        %v5289 = vpack.c.b16 %v5145, %v5137
        %v5290 = vpack.c.b16 %v5146, %v5138
        %v5291 = vpack.c.b16 %v5147, %v5139
        %v5292 = vpack.c.b16 %v5148, %v5140
        %v5293 = vpack.c.b16 %v5157, %v5149
        %v5294 = vpack.c.b16 %v5158, %v5150
        %v5295 = vpack.c.b16 %v5159, %v5151
        %v5296 = vpack.c.b16 %v5160, %v5152
        %v5297 = vpack.c.b16 %v5161, %v5153
        %v5298 = vpack.c.b16 %v5162, %v5154
        %v5299 = vpack.c.b16 %v5163, %v5155
        %v5300 = vpack.c.b16 %v5164, %v5156
        %v5301 = vpack.c.b16 %v5173, %v5165
        %v5302 = vpack.c.b16 %v5174, %v5166
        %v5303 = vpack.c.b16 %v5175, %v5167
        %v5304 = vpack.c.b16 %v5176, %v5168
        %v5305 = vpack.c.b16 %v5177, %v5169
        %v5306 = vpack.c.b16 %v5178, %v5170
        %v5307 = vpack.c.b16 %v5179, %v5171
        %v5308 = vpack.c.b16 %v5180, %v5172
        %5437 = vmatprep.subr.bf16.mxu0 %v5238
        %5438 = vmatpush1.bf16.msra.mxu0 %v5237
        %5439 = vmatprep.subr.bf16.mxu0 %v5230
        %5440 = vmatpush1.bf16.msra.mxu0 %v5229
        %5441 = vmatprep.subr.bf16.mxu0 %v5222
        %5442 = vmatpush1.bf16.msra.mxu0 %v5221
        %5443 = vmatprep.subr.bf16.mxu0 %v5214
        %5444 = vmatpush1.bf16.msra.mxu0 %v5213
        %5445 = vmatprep.subr.bf16.mxu0 %v5206
        %5446 = vmatpush1.bf16.msra.mxu0 %v5205
        %5447 = vmatprep.subr.bf16.mxu0 %v5198
        %5448 = vmatpush1.bf16.msra.mxu0 %v5197
        %5449 = vmatprep.subr.bf16.mxu0 %v5190
        %5450 = vmatpush1.bf16.msra.mxu0 %v5189
        %5451 = vmatprep.subr.bf16.mxu0 %v5182
        %5452 = vmatpush1.bf16.msra.mxu0 %v5181
        %5453 = vmatprep.subr.bf16.mxu0 %v5302
        %5454 = vmatpush2.bf16.msra.mxu0 %v5301
        %5455 = vmatprep.subr.bf16.mxu0 %v5294
        %5456 = vmatpush2.bf16.msra.mxu0 %v5293
        %5457 = vmatprep.subr.bf16.mxu0 %v5286
        %5458 = vmatpush2.bf16.msra.mxu0 %v5285
        %5459 = vmatprep.subr.bf16.mxu0 %v5278
        %5460 = vmatpush2.bf16.msra.mxu0 %v5277
        %5461 = vmatprep.subr.bf16.mxu0 %v5270
        %5462 = vmatpush2.bf16.msra.mxu0 %v5269
        %5463 = vmatprep.subr.bf16.mxu0 %v5262
        %5464 = vmatpush2.bf16.msra.mxu0 %v5261
        %5465 = vmatprep.subr.bf16.mxu0 %v5254
        %5466 = vmatpush2.bf16.msra.mxu0 %v5253
        %5467 = vmatprep.subr.bf16.mxu0 %v5246
        %5468 = vmatpush2.bf16.msra.mxu0 %v5245
        %5469 = vmatprep.mubr.bf16.mxu0 %v4624
        %5470 = vmatmul.mubr.bf16.gmra.mxu0 %v4623
        %v5471 = vpop.f32.mrf.mxu0
        %v5472 = vadd.f32 %v4760, %v5471
        %v5473 = vpop.f32.mrf.mxu0
        %v5474 = vadd.f32 %v4764, %v5473
        %v5475 = vpop.f32.mrf.mxu0
        %v5476 = vadd.f32 %v4760, %v5475
        %v5477 = vpop.f32.mrf.mxu0
        %v5478 = vadd.f32 %v4764, %v5477
        %5479 = vmatprep.mubr.bf16.mxu0 %v4626
        %5480 = vmatmul.mubr.bf16.gmra.mxu0 %v4625
        %v5481 = vpop.f32.mrf.mxu0
        %v5482 = vadd.f32 %v4760, %v5481
        %v5483 = vpop.f32.mrf.mxu0
        %v5484 = vadd.f32 %v4764, %v5483
        %v5485 = vpop.f32.mrf.mxu0
        %v5486 = vadd.f32 %v4760, %v5485
        %v5487 = vpop.f32.mrf.mxu0
        %v5488 = vadd.f32 %v4764, %v5487
        %5489 = vdwg.mxu0
        %5490 = vmatprep.subr.bf16.mxu0 %v5240
        %5491 = vmatpush1.bf16.msra.mxu0 %v5239
        %5492 = vmatprep.subr.bf16.mxu0 %v5232
        %5493 = vmatpush1.bf16.msra.mxu0 %v5231
        %5494 = vmatprep.subr.bf16.mxu0 %v5224
        %5495 = vmatpush1.bf16.msra.mxu0 %v5223
        %5496 = vmatprep.subr.bf16.mxu0 %v5216
        %5497 = vmatpush1.bf16.msra.mxu0 %v5215
        %5498 = vmatprep.subr.bf16.mxu0 %v5208
        %5499 = vmatpush1.bf16.msra.mxu0 %v5207
        %5500 = vmatprep.subr.bf16.mxu0 %v5200
        %5501 = vmatpush1.bf16.msra.mxu0 %v5199
        %5502 = vmatprep.subr.bf16.mxu0 %v5192
        %5503 = vmatpush1.bf16.msra.mxu0 %v5191
        %5504 = vmatprep.subr.bf16.mxu0 %v5184
        %5505 = vmatpush1.bf16.msra.mxu0 %v5183
        %5506 = vmatprep.subr.bf16.mxu0 %v5304
        %5507 = vmatpush2.bf16.msra.mxu0 %v5303
        %5508 = vmatprep.subr.bf16.mxu0 %v5296
        %5509 = vmatpush2.bf16.msra.mxu0 %v5295
        %5510 = vmatprep.subr.bf16.mxu0 %v5288
        %5511 = vmatpush2.bf16.msra.mxu0 %v5287
        %5512 = vmatprep.subr.bf16.mxu0 %v5280
        %5513 = vmatpush2.bf16.msra.mxu0 %v5279
        %5514 = vmatprep.subr.bf16.mxu0 %v5272
        %5515 = vmatpush2.bf16.msra.mxu0 %v5271
        %5516 = vmatprep.subr.bf16.mxu0 %v5264
        %5517 = vmatpush2.bf16.msra.mxu0 %v5263
        %5518 = vmatprep.subr.bf16.mxu0 %v5256
        %5519 = vmatpush2.bf16.msra.mxu0 %v5255
        %5520 = vmatprep.subr.bf16.mxu0 %v5248
        %5521 = vmatpush2.bf16.msra.mxu0 %v5247
        %5522 = vmatprep.mubr.bf16.mxu0 %v4624
        %5523 = vmatmul.mubr.bf16.gmra.mxu0 %v4623
        %v5524 = vpop.f32.mrf.mxu0
        %v5525 = vadd.f32 %v4768, %v5524
        %v5526 = vpop.f32.mrf.mxu0
        %v5527 = vadd.f32 %v4772, %v5526
        %v5528 = vpop.f32.mrf.mxu0
        %v5529 = vadd.f32 %v4768, %v5528
        %v5530 = vpop.f32.mrf.mxu0
        %v5531 = vadd.f32 %v4772, %v5530
        %5532 = vmatprep.mubr.bf16.mxu0 %v4626
        %5533 = vmatmul.mubr.bf16.gmra.mxu0 %v4625
        %v5534 = vpop.f32.mrf.mxu0
        %v5535 = vadd.f32 %v4768, %v5534
        %v5536 = vpop.f32.mrf.mxu0
        %v5537 = vadd.f32 %v4772, %v5536
        %v5538 = vpop.f32.mrf.mxu0
        %v5539 = vadd.f32 %v4768, %v5538
        %v5540 = vpop.f32.mrf.mxu0
        %v5541 = vadd.f32 %v4772, %v5540
        %5542 = vdwg.mxu0
        %5543 = vmatprep.subr.bf16.mxu0 %v5242
        %5544 = vmatpush1.bf16.msra.mxu0 %v5241
        %5545 = vmatprep.subr.bf16.mxu0 %v5234
        %5546 = vmatpush1.bf16.msra.mxu0 %v5233
        %5547 = vmatprep.subr.bf16.mxu0 %v5226
        %5548 = vmatpush1.bf16.msra.mxu0 %v5225
        %5549 = vmatprep.subr.bf16.mxu0 %v5218
        %5550 = vmatpush1.bf16.msra.mxu0 %v5217
        %5551 = vmatprep.subr.bf16.mxu0 %v5210
        %5552 = vmatpush1.bf16.msra.mxu0 %v5209
        %5553 = vmatprep.subr.bf16.mxu0 %v5202
        %5554 = vmatpush1.bf16.msra.mxu0 %v5201
        %5555 = vmatprep.subr.bf16.mxu0 %v5194
        %5556 = vmatpush1.bf16.msra.mxu0 %v5193
        %5557 = vmatprep.subr.bf16.mxu0 %v5186
        %5558 = vmatpush1.bf16.msra.mxu0 %v5185
        %5559 = vmatprep.subr.bf16.mxu0 %v5306
        %5560 = vmatpush2.bf16.msra.mxu0 %v5305
        %5561 = vmatprep.subr.bf16.mxu0 %v5298
        %5562 = vmatpush2.bf16.msra.mxu0 %v5297
        %5563 = vmatprep.subr.bf16.mxu0 %v5290
        %5564 = vmatpush2.bf16.msra.mxu0 %v5289
        %5565 = vmatprep.subr.bf16.mxu0 %v5282
        %5566 = vmatpush2.bf16.msra.mxu0 %v5281
        %5567 = vmatprep.subr.bf16.mxu0 %v5274
        %5568 = vmatpush2.bf16.msra.mxu0 %v5273
        %5569 = vmatprep.subr.bf16.mxu0 %v5266
        %5570 = vmatpush2.bf16.msra.mxu0 %v5265
        %5571 = vmatprep.subr.bf16.mxu0 %v5258
        %5572 = vmatpush2.bf16.msra.mxu0 %v5257
        %5573 = vmatprep.subr.bf16.mxu0 %v5250
        %5574 = vmatpush2.bf16.msra.mxu0 %v5249
        %5575 = vmatprep.mubr.bf16.mxu0 %v4624
        %5576 = vmatmul.mubr.bf16.gmra.mxu0 %v4623
        %v5577 = vpop.f32.mrf.mxu0
        %v5578 = vadd.f32 %v4776, %v5577
        %v5579 = vpop.f32.mrf.mxu0
        %v5580 = vadd.f32 %v4780, %v5579
        %v5581 = vpop.f32.mrf.mxu0
        %v5582 = vadd.f32 %v4776, %v5581
        %v5583 = vpop.f32.mrf.mxu0
        %v5584 = vadd.f32 %v4780, %v5583
        %5585 = vmatprep.mubr.bf16.mxu0 %v4626
        %5586 = vmatmul.mubr.bf16.gmra.mxu0 %v4625
        %v5587 = vpop.f32.mrf.mxu0
        %v5588 = vadd.f32 %v4776, %v5587
        %v5589 = vpop.f32.mrf.mxu0
        %v5590 = vadd.f32 %v4780, %v5589
        %v5591 = vpop.f32.mrf.mxu0
        %v5592 = vadd.f32 %v4776, %v5591
        %v5593 = vpop.f32.mrf.mxu0
        %v5594 = vadd.f32 %v4780, %v5593
        %5595 = vdwg.mxu0
        %5596 = vmatprep.subr.bf16.mxu0 %v5244
        %5597 = vmatpush1.bf16.msra.mxu0 %v5243
        %5598 = vmatprep.subr.bf16.mxu0 %v5236
        %5599 = vmatpush1.bf16.msra.mxu0 %v5235
        %5600 = vmatprep.subr.bf16.mxu0 %v5228
        %5601 = vmatpush1.bf16.msra.mxu0 %v5227
        %5602 = vmatprep.subr.bf16.mxu0 %v5220
        %5603 = vmatpush1.bf16.msra.mxu0 %v5219
        %5604 = vmatprep.subr.bf16.mxu0 %v5212
        %5605 = vmatpush1.bf16.msra.mxu0 %v5211
        %5606 = vmatprep.subr.bf16.mxu0 %v5204
        %5607 = vmatpush1.bf16.msra.mxu0 %v5203
        %5608 = vmatprep.subr.bf16.mxu0 %v5196
        %5609 = vmatpush1.bf16.msra.mxu0 %v5195
        %5610 = vmatprep.subr.bf16.mxu0 %v5188
        %5611 = vmatpush1.bf16.msra.mxu0 %v5187
        %5612 = vmatprep.subr.bf16.mxu0 %v5308
        %5613 = vmatpush2.bf16.msra.mxu0 %v5307
        %5614 = vmatprep.subr.bf16.mxu0 %v5300
        %5615 = vmatpush2.bf16.msra.mxu0 %v5299
        %5616 = vmatprep.subr.bf16.mxu0 %v5292
        %5617 = vmatpush2.bf16.msra.mxu0 %v5291
        %5618 = vmatprep.subr.bf16.mxu0 %v5284
        %5619 = vmatpush2.bf16.msra.mxu0 %v5283
        %5620 = vmatprep.subr.bf16.mxu0 %v5276
        %5621 = vmatpush2.bf16.msra.mxu0 %v5275
        %5622 = vmatprep.subr.bf16.mxu0 %v5268
        %5623 = vmatpush2.bf16.msra.mxu0 %v5267
        %5624 = vmatprep.subr.bf16.mxu0 %v5260
        %5625 = vmatpush2.bf16.msra.mxu0 %v5259
        %5626 = vmatprep.subr.bf16.mxu0 %v5252
        %5627 = vmatpush2.bf16.msra.mxu0 %v5251
        %5628 = vmatprep.mubr.bf16.mxu0 %v4624
        %5629 = vmatmul.mubr.bf16.gmra.mxu0 %v4623
        %v5630 = vpop.f32.mrf.mxu0
        %v5631 = vadd.f32 %v4784, %v5630
        %v5632 = vpop.f32.mrf.mxu0
        %v5633 = vadd.f32 %v4788, %v5632
        %v5634 = vpop.f32.mrf.mxu0
        %v5635 = vadd.f32 %v4784, %v5634
        %v5636 = vpop.f32.mrf.mxu0
        %v5637 = vadd.f32 %v4788, %v5636
        %5638 = vmatprep.mubr.bf16.mxu0 %v4626
        %5639 = vmatmul.mubr.bf16.gmra.mxu0 %v4625
        %v5640 = vpop.f32.mrf.mxu0
        %v5641 = vadd.f32 %v4784, %v5640
        %v5642 = vpop.f32.mrf.mxu0
        %v5643 = vadd.f32 %v4788, %v5642
        %v5644 = vpop.f32.mrf.mxu0
        %v5645 = vadd.f32 %v4784, %v5644
        %v5646 = vpop.f32.mrf.mxu0
        %v5647 = vadd.f32 %v4788, %v5646
        %5648 = vdwg.mxu0
        %v5649 = vmax.f32 %v5472, 0.0
        %v5650 = vmax.f32 %v5474, 0.0
        %v5651 = vmax.f32 %v5525, 0.0
        %v5652 = vmax.f32 %v5527, 0.0
        %v5653 = vmax.f32 %v5578, 0.0
        %v5654 = vmax.f32 %v5580, 0.0
        %v5655 = vmax.f32 %v5631, 0.0
        %v5656 = vmax.f32 %v5633, 0.0
        %v5657 = vmax.f32 %v5476, 0.0
        %v5658 = vmax.f32 %v5478, 0.0
        %v5659 = vmax.f32 %v5529, 0.0
        %v5660 = vmax.f32 %v5531, 0.0
        %v5661 = vmax.f32 %v5582, 0.0
        %v5662 = vmax.f32 %v5584, 0.0
        %v5663 = vmax.f32 %v5635, 0.0
        %v5664 = vmax.f32 %v5637, 0.0
        %v5665 = vmax.f32 %v5482, 0.0
        %v5666 = vmax.f32 %v5484, 0.0
        %v5667 = vmax.f32 %v5535, 0.0
        %v5668 = vmax.f32 %v5537, 0.0
        %v5669 = vmax.f32 %v5588, 0.0
        %v5670 = vmax.f32 %v5590, 0.0
        %v5671 = vmax.f32 %v5641, 0.0
        %v5672 = vmax.f32 %v5643, 0.0
        %v5673 = vmax.f32 %v5486, 0.0
        %v5674 = vmax.f32 %v5488, 0.0
        %v5675 = vmax.f32 %v5539, 0.0
        %v5676 = vmax.f32 %v5541, 0.0
        %v5677 = vmax.f32 %v5592, 0.0
        %v5678 = vmax.f32 %v5594, 0.0
        %v5679 = vmax.f32 %v5645, 0.0
        %v5680 = vmax.f32 %v5647, 0.0
        %v5681 = vpack.c.bf16 %v5657, %v5649
        %v5682 = vpack.c.bf16 %v5658, %v5650
        %v5683 = vpack.c.bf16 %v5659, %v5651
        %v5684 = vpack.c.bf16 %v5660, %v5652
        %v5685 = vpack.c.bf16 %v5661, %v5653
        %v5686 = vpack.c.bf16 %v5662, %v5654
        %v5687 = vpack.c.bf16 %v5663, %v5655
        %v5688 = vpack.c.bf16 %v5664, %v5656
        %v5689 = vpack.c.bf16 %v5673, %v5665
        %v5690 = vpack.c.bf16 %v5674, %v5666
        %v5691 = vpack.c.bf16 %v5675, %v5667
        %v5692 = vpack.c.bf16 %v5676, %v5668
        %v5693 = vpack.c.bf16 %v5677, %v5669
        %v5694 = vpack.c.bf16 %v5678, %v5670
        %v5695 = vpack.c.bf16 %v5679, %v5671
        %v5696 = vpack.c.bf16 %v5680, %v5672
        %v5697 = vld [vmem:[%s1172] sm:$0xff]
        %v5698 = vld [vmem:[%s1172 + $0x8] sm:$0xff]
        %v5699 = vld [vmem:[%s1172 + $0x10] sm:$0xff]
        %v5700 = vld [vmem:[%s1172 + $0x18] sm:$0xff]
        %v5701 = vld [vmem:[%s1172 + $0x20] sm:$0xff]
        %v5702 = vld [vmem:[%s1172 + $0x28] sm:$0xff]
        %v5703 = vld [vmem:[%s1172 + $0x30] sm:$0xff]
        %v5704 = vld [vmem:[%s1172 + $0x38] sm:$0xff]
        %v5705 = vld [vmem:[%s1172 + $0x40] sm:$0xff]
        %v5706 = vld [vmem:[%s1172 + $0x48] sm:$0xff]
        %v5707 = vld [vmem:[%s1172 + $0x50] sm:$0xff]
        %v5708 = vld [vmem:[%s1172 + $0x58] sm:$0xff]
        %v5709 = vld [vmem:[%s1172 + $0x60] sm:$0xff]
        %v5710 = vld [vmem:[%s1172 + $0x68] sm:$0xff]
        %v5711 = vld [vmem:[%s1172 + $0x70] sm:$0xff]
        %v5712 = vld [vmem:[%s1172 + $0x78] sm:$0xff]
        %v5713 = vld [vmem:[%s1172 + $0x80] sm:$0xff]
        %v5714 = vld [vmem:[%s1172 + $0x88] sm:$0xff]
        %v5715 = vld [vmem:[%s1172 + $0x90] sm:$0xff]
        %v5716 = vld [vmem:[%s1172 + $0x98] sm:$0xff]
        %v5717 = vld [vmem:[%s1172 + $0xa0] sm:$0xff]
        %v5718 = vld [vmem:[%s1172 + $0xa8] sm:$0xff]
        %v5719 = vld [vmem:[%s1172 + $0xb0] sm:$0xff]
        %v5720 = vld [vmem:[%s1172 + $0xb8] sm:$0xff]
        %v5721 = vld [vmem:[%s1172 + $0xc0] sm:$0xff]
        %v5722 = vld [vmem:[%s1172 + $0xc8] sm:$0xff]
        %v5723 = vld [vmem:[%s1172 + $0xd0] sm:$0xff]
        %v5724 = vld [vmem:[%s1172 + $0xd8] sm:$0xff]
        %v5725 = vld [vmem:[%s1172 + $0xe0] sm:$0xff]
        %v5726 = vld [vmem:[%s1172 + $0xe8] sm:$0xff]
        %v5727 = vld [vmem:[%s1172 + $0xf0] sm:$0xff]
        %v5728 = vld [vmem:[%s1172 + $0xf8] sm:$0xff]
        %v5729 = vld [vmem:[%s1172 + $0x100] sm:$0xff]
        %v5730 = vld [vmem:[%s1172 + $0x108] sm:$0xff]
        %v5731 = vld [vmem:[%s1172 + $0x110] sm:$0xff]
        %v5732 = vld [vmem:[%s1172 + $0x118] sm:$0xff]
        %v5733 = vld [vmem:[%s1172 + $0x120] sm:$0xff]
        %v5734 = vld [vmem:[%s1172 + $0x128] sm:$0xff]
        %v5735 = vld [vmem:[%s1172 + $0x130] sm:$0xff]
        %v5736 = vld [vmem:[%s1172 + $0x138] sm:$0xff]
        %v5737 = vld [vmem:[%s1172 + $0x140] sm:$0xff]
        %v5738 = vld [vmem:[%s1172 + $0x148] sm:$0xff]
        %v5739 = vld [vmem:[%s1172 + $0x150] sm:$0xff]
        %v5740 = vld [vmem:[%s1172 + $0x158] sm:$0xff]
        %v5741 = vld [vmem:[%s1172 + $0x160] sm:$0xff]
        %v5742 = vld [vmem:[%s1172 + $0x168] sm:$0xff]
        %v5743 = vld [vmem:[%s1172 + $0x170] sm:$0xff]
        %v5744 = vld [vmem:[%s1172 + $0x178] sm:$0xff]
        %v5745 = vld [vmem:[%s1172 + $0x180] sm:$0xff]
        %v5746 = vld [vmem:[%s1172 + $0x188] sm:$0xff]
        %v5747 = vld [vmem:[%s1172 + $0x190] sm:$0xff]
        %v5748 = vld [vmem:[%s1172 + $0x198] sm:$0xff]
        %v5749 = vld [vmem:[%s1172 + $0x1a0] sm:$0xff]
        %v5750 = vld [vmem:[%s1172 + $0x1a8] sm:$0xff]
        %v5751 = vld [vmem:[%s1172 + $0x1b0] sm:$0xff]
        %v5752 = vld [vmem:[%s1172 + $0x1b8] sm:$0xff]
        %v5753 = vld [vmem:[%s1172 + $0x1c0] sm:$0xff]
        %v5754 = vld [vmem:[%s1172 + $0x1c8] sm:$0xff]
        %v5755 = vld [vmem:[%s1172 + $0x1d0] sm:$0xff]
        %v5756 = vld [vmem:[%s1172 + $0x1d8] sm:$0xff]
        %v5757 = vld [vmem:[%s1172 + $0x1e0] sm:$0xff]
        %v5758 = vld [vmem:[%s1172 + $0x1e8] sm:$0xff]
        %v5759 = vld [vmem:[%s1172 + $0x1f0] sm:$0xff]
        %v5760 = vld [vmem:[%s1172 + $0x1f8] sm:$0xff]
        %v5761 = vld [vmem:[%s1172 + $0x200] sm:$0xff]
        %v5762 = vld [vmem:[%s1172 + $0x208] sm:$0xff]
        %v5763 = vld [vmem:[%s1172 + $0x210] sm:$0xff]
        %v5764 = vld [vmem:[%s1172 + $0x218] sm:$0xff]
        %v5765 = vld [vmem:[%s1172 + $0x220] sm:$0xff]
        %v5766 = vld [vmem:[%s1172 + $0x228] sm:$0xff]
        %v5767 = vld [vmem:[%s1172 + $0x230] sm:$0xff]
        %v5768 = vld [vmem:[%s1172 + $0x238] sm:$0xff]
        %v5769 = vld [vmem:[%s1172 + $0x240] sm:$0xff]
        %v5770 = vld [vmem:[%s1172 + $0x248] sm:$0xff]
        %v5771 = vld [vmem:[%s1172 + $0x250] sm:$0xff]
        %v5772 = vld [vmem:[%s1172 + $0x258] sm:$0xff]
        %v5773 = vld [vmem:[%s1172 + $0x260] sm:$0xff]
        %v5774 = vld [vmem:[%s1172 + $0x268] sm:$0xff]
        %v5775 = vld [vmem:[%s1172 + $0x270] sm:$0xff]
        %v5776 = vld [vmem:[%s1172 + $0x278] sm:$0xff]
        %v5777 = vld [vmem:[%s1172 + $0x280] sm:$0xff]
        %v5778 = vld [vmem:[%s1172 + $0x288] sm:$0xff]
        %v5779 = vld [vmem:[%s1172 + $0x290] sm:$0xff]
        %v5780 = vld [vmem:[%s1172 + $0x298] sm:$0xff]
        %v5781 = vld [vmem:[%s1172 + $0x2a0] sm:$0xff]
        %v5782 = vld [vmem:[%s1172 + $0x2a8] sm:$0xff]
        %v5783 = vld [vmem:[%s1172 + $0x2b0] sm:$0xff]
        %v5784 = vld [vmem:[%s1172 + $0x2b8] sm:$0xff]
        %v5785 = vld [vmem:[%s1172 + $0x2c0] sm:$0xff]
        %v5786 = vld [vmem:[%s1172 + $0x2c8] sm:$0xff]
        %v5787 = vld [vmem:[%s1172 + $0x2d0] sm:$0xff]
        %v5788 = vld [vmem:[%s1172 + $0x2d8] sm:$0xff]
        %v5789 = vld [vmem:[%s1172 + $0x2e0] sm:$0xff]
        %v5790 = vld [vmem:[%s1172 + $0x2e8] sm:$0xff]
        %v5791 = vld [vmem:[%s1172 + $0x2f0] sm:$0xff]
        %v5792 = vld [vmem:[%s1172 + $0x2f8] sm:$0xff]
        %v5793 = vld [vmem:[%s1172 + $0x300] sm:$0xff]
        %v5794 = vld [vmem:[%s1172 + $0x308] sm:$0xff]
        %v5795 = vld [vmem:[%s1172 + $0x310] sm:$0xff]
        %v5796 = vld [vmem:[%s1172 + $0x318] sm:$0xff]
        %v5797 = vld [vmem:[%s1172 + $0x320] sm:$0xff]
        %v5798 = vld [vmem:[%s1172 + $0x328] sm:$0xff]
        %v5799 = vld [vmem:[%s1172 + $0x330] sm:$0xff]
        %v5800 = vld [vmem:[%s1172 + $0x338] sm:$0xff]
        %v5801 = vld [vmem:[%s1172 + $0x340] sm:$0xff]
        %v5802 = vld [vmem:[%s1172 + $0x348] sm:$0xff]
        %v5803 = vld [vmem:[%s1172 + $0x350] sm:$0xff]
        %v5804 = vld [vmem:[%s1172 + $0x358] sm:$0xff]
        %v5805 = vld [vmem:[%s1172 + $0x360] sm:$0xff]
        %v5806 = vld [vmem:[%s1172 + $0x368] sm:$0xff]
        %v5807 = vld [vmem:[%s1172 + $0x370] sm:$0xff]
        %v5808 = vld [vmem:[%s1172 + $0x378] sm:$0xff]
        %v5809 = vld [vmem:[%s1172 + $0x380] sm:$0xff]
        %v5810 = vld [vmem:[%s1172 + $0x388] sm:$0xff]
        %v5811 = vld [vmem:[%s1172 + $0x390] sm:$0xff]
        %v5812 = vld [vmem:[%s1172 + $0x398] sm:$0xff]
        %v5813 = vld [vmem:[%s1172 + $0x3a0] sm:$0xff]
        %v5814 = vld [vmem:[%s1172 + $0x3a8] sm:$0xff]
        %v5815 = vld [vmem:[%s1172 + $0x3b0] sm:$0xff]
        %v5816 = vld [vmem:[%s1172 + $0x3b8] sm:$0xff]
        %v5817 = vld [vmem:[%s1172 + $0x3c0] sm:$0xff]
        %v5818 = vld [vmem:[%s1172 + $0x3c8] sm:$0xff]
        %v5819 = vld [vmem:[%s1172 + $0x3d0] sm:$0xff]
        %v5820 = vld [vmem:[%s1172 + $0x3d8] sm:$0xff]
        %v5821 = vld [vmem:[%s1172 + $0x3e0] sm:$0xff]
        %v5822 = vld [vmem:[%s1172 + $0x3e8] sm:$0xff]
        %v5823 = vld [vmem:[%s1172 + $0x3f0] sm:$0xff]
        %v5824 = vld [vmem:[%s1172 + $0x3f8] sm:$0xff]
        %v5825 = vld [vmem:[%s1372] sm:$0x3]
        %v5827 = vlaneseq
        %v5828 = vshrl.u32 %v5827, 7
        %v5829 = vsub.s32 0, %v5828
        %v5830 = vrot.slane %v5825, %v5829
        %v5831 = vlaneseq
        %v5832 = vshrl.u32 %v5831, 7
        %v5833 = vsub.s32 1, %v5832
        %v5834 = vrot.slane %v5825, %v5833
        %v5965 = vunpack.c.l.b16 %v5697
        %v5966 = vunpack.c.h.b16 %v5697
        %v5967 = vunpack.c.l.b16 %v5698
        %v5968 = vunpack.c.h.b16 %v5698
        %v5969 = vunpack.c.l.b16 %v5699
        %v5970 = vunpack.c.h.b16 %v5699
        %v5971 = vunpack.c.l.b16 %v5700
        %v5972 = vunpack.c.h.b16 %v5700
        %v5973 = vunpack.c.l.b16 %v5701
        %v5974 = vunpack.c.h.b16 %v5701
        %v5975 = vunpack.c.l.b16 %v5702
        %v5976 = vunpack.c.h.b16 %v5702
        %v5977 = vunpack.c.l.b16 %v5703
        %v5978 = vunpack.c.h.b16 %v5703
        %v5979 = vunpack.c.l.b16 %v5704
        %v5980 = vunpack.c.h.b16 %v5704
        %v5981 = vunpack.c.l.b16 %v5705
        %v5982 = vunpack.c.h.b16 %v5705
        %v5983 = vunpack.c.l.b16 %v5706
        %v5984 = vunpack.c.h.b16 %v5706
        %v5985 = vunpack.c.l.b16 %v5707
        %v5986 = vunpack.c.h.b16 %v5707
        %v5987 = vunpack.c.l.b16 %v5708
        %v5988 = vunpack.c.h.b16 %v5708
        %v5989 = vunpack.c.l.b16 %v5709
        %v5990 = vunpack.c.h.b16 %v5709
        %v5991 = vunpack.c.l.b16 %v5710
        %v5992 = vunpack.c.h.b16 %v5710
        %v5993 = vunpack.c.l.b16 %v5711
        %v5994 = vunpack.c.h.b16 %v5711
        %v5995 = vunpack.c.l.b16 %v5712
        %v5996 = vunpack.c.h.b16 %v5712
        %v5997 = vunpack.c.l.b16 %v5713
        %v5998 = vunpack.c.h.b16 %v5713
        %v5999 = vunpack.c.l.b16 %v5714
        %v6000 = vunpack.c.h.b16 %v5714
        %v6001 = vunpack.c.l.b16 %v5715
        %v6002 = vunpack.c.h.b16 %v5715
        %v6003 = vunpack.c.l.b16 %v5716
        %v6004 = vunpack.c.h.b16 %v5716
        %v6005 = vunpack.c.l.b16 %v5717
        %v6006 = vunpack.c.h.b16 %v5717
        %v6007 = vunpack.c.l.b16 %v5718
        %v6008 = vunpack.c.h.b16 %v5718
        %v6009 = vunpack.c.l.b16 %v5719
        %v6010 = vunpack.c.h.b16 %v5719
        %v6011 = vunpack.c.l.b16 %v5720
        %v6012 = vunpack.c.h.b16 %v5720
        %v6013 = vunpack.c.l.b16 %v5721
        %v6014 = vunpack.c.h.b16 %v5721
        %v6015 = vunpack.c.l.b16 %v5722
        %v6016 = vunpack.c.h.b16 %v5722
        %v6017 = vunpack.c.l.b16 %v5723
        %v6018 = vunpack.c.h.b16 %v5723
        %v6019 = vunpack.c.l.b16 %v5724
        %v6020 = vunpack.c.h.b16 %v5724
        %v6021 = vunpack.c.l.b16 %v5725
        %v6022 = vunpack.c.h.b16 %v5725
        %v6023 = vunpack.c.l.b16 %v5726
        %v6024 = vunpack.c.h.b16 %v5726
        %v6025 = vunpack.c.l.b16 %v5727
        %v6026 = vunpack.c.h.b16 %v5727
        %v6027 = vunpack.c.l.b16 %v5728
        %v6028 = vunpack.c.h.b16 %v5728
        %v6029 = vunpack.c.l.b16 %v5729
        %v6030 = vunpack.c.h.b16 %v5729
        %v6031 = vunpack.c.l.b16 %v5730
        %v6032 = vunpack.c.h.b16 %v5730
        %v6033 = vunpack.c.l.b16 %v5731
        %v6034 = vunpack.c.h.b16 %v5731
        %v6035 = vunpack.c.l.b16 %v5732
        %v6036 = vunpack.c.h.b16 %v5732
        %v6037 = vunpack.c.l.b16 %v5733
        %v6038 = vunpack.c.h.b16 %v5733
        %v6039 = vunpack.c.l.b16 %v5734
        %v6040 = vunpack.c.h.b16 %v5734
        %v6041 = vunpack.c.l.b16 %v5735
        %v6042 = vunpack.c.h.b16 %v5735
        %v6043 = vunpack.c.l.b16 %v5736
        %v6044 = vunpack.c.h.b16 %v5736
        %v6045 = vunpack.c.l.b16 %v5737
        %v6046 = vunpack.c.h.b16 %v5737
        %v6047 = vunpack.c.l.b16 %v5738
        %v6048 = vunpack.c.h.b16 %v5738
        %v6049 = vunpack.c.l.b16 %v5739
        %v6050 = vunpack.c.h.b16 %v5739
        %v6051 = vunpack.c.l.b16 %v5740
        %v6052 = vunpack.c.h.b16 %v5740
        %v6053 = vunpack.c.l.b16 %v5741
        %v6054 = vunpack.c.h.b16 %v5741
        %v6055 = vunpack.c.l.b16 %v5742
        %v6056 = vunpack.c.h.b16 %v5742
        %v6057 = vunpack.c.l.b16 %v5743
        %v6058 = vunpack.c.h.b16 %v5743
        %v6059 = vunpack.c.l.b16 %v5744
        %v6060 = vunpack.c.h.b16 %v5744
        %v6061 = vunpack.c.l.b16 %v5745
        %v6062 = vunpack.c.h.b16 %v5745
        %v6063 = vunpack.c.l.b16 %v5746
        %v6064 = vunpack.c.h.b16 %v5746
        %v6065 = vunpack.c.l.b16 %v5747
        %v6066 = vunpack.c.h.b16 %v5747
        %v6067 = vunpack.c.l.b16 %v5748
        %v6068 = vunpack.c.h.b16 %v5748
        %v6069 = vunpack.c.l.b16 %v5749
        %v6070 = vunpack.c.h.b16 %v5749
        %v6071 = vunpack.c.l.b16 %v5750
        %v6072 = vunpack.c.h.b16 %v5750
        %v6073 = vunpack.c.l.b16 %v5751
        %v6074 = vunpack.c.h.b16 %v5751
        %v6075 = vunpack.c.l.b16 %v5752
        %v6076 = vunpack.c.h.b16 %v5752
        %v6077 = vunpack.c.l.b16 %v5753
        %v6078 = vunpack.c.h.b16 %v5753
        %v6079 = vunpack.c.l.b16 %v5754
        %v6080 = vunpack.c.h.b16 %v5754
        %v6081 = vunpack.c.l.b16 %v5755
        %v6082 = vunpack.c.h.b16 %v5755
        %v6083 = vunpack.c.l.b16 %v5756
        %v6084 = vunpack.c.h.b16 %v5756
        %v6085 = vunpack.c.l.b16 %v5757
        %v6086 = vunpack.c.h.b16 %v5757
        %v6087 = vunpack.c.l.b16 %v5758
        %v6088 = vunpack.c.h.b16 %v5758
        %v6089 = vunpack.c.l.b16 %v5759
        %v6090 = vunpack.c.h.b16 %v5759
        %v6091 = vunpack.c.l.b16 %v5760
        %v6092 = vunpack.c.h.b16 %v5760
        %v6093 = vunpack.c.l.b16 %v5761
        %v6094 = vunpack.c.h.b16 %v5761
        %v6095 = vunpack.c.l.b16 %v5762
        %v6096 = vunpack.c.h.b16 %v5762
        %v6097 = vunpack.c.l.b16 %v5763
        %v6098 = vunpack.c.h.b16 %v5763
        %v6099 = vunpack.c.l.b16 %v5764
        %v6100 = vunpack.c.h.b16 %v5764
        %v6101 = vunpack.c.l.b16 %v5765
        %v6102 = vunpack.c.h.b16 %v5765
        %v6103 = vunpack.c.l.b16 %v5766
        %v6104 = vunpack.c.h.b16 %v5766
        %v6105 = vunpack.c.l.b16 %v5767
        %v6106 = vunpack.c.h.b16 %v5767
        %v6107 = vunpack.c.l.b16 %v5768
        %v6108 = vunpack.c.h.b16 %v5768
        %v6109 = vunpack.c.l.b16 %v5769
        %v6110 = vunpack.c.h.b16 %v5769
        %v6111 = vunpack.c.l.b16 %v5770
        %v6112 = vunpack.c.h.b16 %v5770
        %v6113 = vunpack.c.l.b16 %v5771
        %v6114 = vunpack.c.h.b16 %v5771
        %v6115 = vunpack.c.l.b16 %v5772
        %v6116 = vunpack.c.h.b16 %v5772
        %v6117 = vunpack.c.l.b16 %v5773
        %v6118 = vunpack.c.h.b16 %v5773
        %v6119 = vunpack.c.l.b16 %v5774
        %v6120 = vunpack.c.h.b16 %v5774
        %v6121 = vunpack.c.l.b16 %v5775
        %v6122 = vunpack.c.h.b16 %v5775
        %v6123 = vunpack.c.l.b16 %v5776
        %v6124 = vunpack.c.h.b16 %v5776
        %v6125 = vunpack.c.l.b16 %v5777
        %v6126 = vunpack.c.h.b16 %v5777
        %v6127 = vunpack.c.l.b16 %v5778
        %v6128 = vunpack.c.h.b16 %v5778
        %v6129 = vunpack.c.l.b16 %v5779
        %v6130 = vunpack.c.h.b16 %v5779
        %v6131 = vunpack.c.l.b16 %v5780
        %v6132 = vunpack.c.h.b16 %v5780
        %v6133 = vunpack.c.l.b16 %v5781
        %v6134 = vunpack.c.h.b16 %v5781
        %v6135 = vunpack.c.l.b16 %v5782
        %v6136 = vunpack.c.h.b16 %v5782
        %v6137 = vunpack.c.l.b16 %v5783
        %v6138 = vunpack.c.h.b16 %v5783
        %v6139 = vunpack.c.l.b16 %v5784
        %v6140 = vunpack.c.h.b16 %v5784
        %v6141 = vunpack.c.l.b16 %v5785
        %v6142 = vunpack.c.h.b16 %v5785
        %v6143 = vunpack.c.l.b16 %v5786
        %v6144 = vunpack.c.h.b16 %v5786
        %v6145 = vunpack.c.l.b16 %v5787
        %v6146 = vunpack.c.h.b16 %v5787
        %v6147 = vunpack.c.l.b16 %v5788
        %v6148 = vunpack.c.h.b16 %v5788
        %v6149 = vunpack.c.l.b16 %v5789
        %v6150 = vunpack.c.h.b16 %v5789
        %v6151 = vunpack.c.l.b16 %v5790
        %v6152 = vunpack.c.h.b16 %v5790
        %v6153 = vunpack.c.l.b16 %v5791
        %v6154 = vunpack.c.h.b16 %v5791
        %v6155 = vunpack.c.l.b16 %v5792
        %v6156 = vunpack.c.h.b16 %v5792
        %v6157 = vunpack.c.l.b16 %v5793
        %v6158 = vunpack.c.h.b16 %v5793
        %v6159 = vunpack.c.l.b16 %v5794
        %v6160 = vunpack.c.h.b16 %v5794
        %v6161 = vunpack.c.l.b16 %v5795
        %v6162 = vunpack.c.h.b16 %v5795
        %v6163 = vunpack.c.l.b16 %v5796
        %v6164 = vunpack.c.h.b16 %v5796
        %v6165 = vunpack.c.l.b16 %v5797
        %v6166 = vunpack.c.h.b16 %v5797
        %v6167 = vunpack.c.l.b16 %v5798
        %v6168 = vunpack.c.h.b16 %v5798
        %v6169 = vunpack.c.l.b16 %v5799
        %v6170 = vunpack.c.h.b16 %v5799
        %v6171 = vunpack.c.l.b16 %v5800
        %v6172 = vunpack.c.h.b16 %v5800
        %v6173 = vunpack.c.l.b16 %v5801
        %v6174 = vunpack.c.h.b16 %v5801
        %v6175 = vunpack.c.l.b16 %v5802
        %v6176 = vunpack.c.h.b16 %v5802
        %v6177 = vunpack.c.l.b16 %v5803
        %v6178 = vunpack.c.h.b16 %v5803
        %v6179 = vunpack.c.l.b16 %v5804
        %v6180 = vunpack.c.h.b16 %v5804
        %v6181 = vunpack.c.l.b16 %v5805
        %v6182 = vunpack.c.h.b16 %v5805
        %v6183 = vunpack.c.l.b16 %v5806
        %v6184 = vunpack.c.h.b16 %v5806
        %v6185 = vunpack.c.l.b16 %v5807
        %v6186 = vunpack.c.h.b16 %v5807
        %v6187 = vunpack.c.l.b16 %v5808
        %v6188 = vunpack.c.h.b16 %v5808
        %v6189 = vunpack.c.l.b16 %v5809
        %v6190 = vunpack.c.h.b16 %v5809
        %v6191 = vunpack.c.l.b16 %v5810
        %v6192 = vunpack.c.h.b16 %v5810
        %v6193 = vunpack.c.l.b16 %v5811
        %v6194 = vunpack.c.h.b16 %v5811
        %v6195 = vunpack.c.l.b16 %v5812
        %v6196 = vunpack.c.h.b16 %v5812
        %v6197 = vunpack.c.l.b16 %v5813
        %v6198 = vunpack.c.h.b16 %v5813
        %v6199 = vunpack.c.l.b16 %v5814
        %v6200 = vunpack.c.h.b16 %v5814
        %v6201 = vunpack.c.l.b16 %v5815
        %v6202 = vunpack.c.h.b16 %v5815
        %v6203 = vunpack.c.l.b16 %v5816
        %v6204 = vunpack.c.h.b16 %v5816
        %v6205 = vunpack.c.l.b16 %v5817
        %v6206 = vunpack.c.h.b16 %v5817
        %v6207 = vunpack.c.l.b16 %v5818
        %v6208 = vunpack.c.h.b16 %v5818
        %v6209 = vunpack.c.l.b16 %v5819
        %v6210 = vunpack.c.h.b16 %v5819
        %v6211 = vunpack.c.l.b16 %v5820
        %v6212 = vunpack.c.h.b16 %v5820
        %v6213 = vunpack.c.l.b16 %v5821
        %v6214 = vunpack.c.h.b16 %v5821
        %v6215 = vunpack.c.l.b16 %v5822
        %v6216 = vunpack.c.h.b16 %v5822
        %v6217 = vunpack.c.l.b16 %v5823
        %v6218 = vunpack.c.h.b16 %v5823
        %v6219 = vunpack.c.l.b16 %v5824
        %v6220 = vunpack.c.h.b16 %v5824
        %v6221 = vpack.c.b16 %v5967, %v5965
        %v6222 = vpack.c.b16 %v5968, %v5966
        %v6223 = vpack.c.b16 %v5971, %v5969
        %v6224 = vpack.c.b16 %v5972, %v5970
        %v6225 = vpack.c.b16 %v5975, %v5973
        %v6226 = vpack.c.b16 %v5976, %v5974
        %v6227 = vpack.c.b16 %v5979, %v5977
        %v6228 = vpack.c.b16 %v5980, %v5978
        %v6229 = vpack.c.b16 %v5983, %v5981
        %v6230 = vpack.c.b16 %v5984, %v5982
        %v6231 = vpack.c.b16 %v5987, %v5985
        %v6232 = vpack.c.b16 %v5988, %v5986
        %v6233 = vpack.c.b16 %v5991, %v5989
        %v6234 = vpack.c.b16 %v5992, %v5990
        %v6235 = vpack.c.b16 %v5995, %v5993
        %v6236 = vpack.c.b16 %v5996, %v5994
        %v6237 = vpack.c.b16 %v5999, %v5997
        %v6238 = vpack.c.b16 %v6000, %v5998
        %v6239 = vpack.c.b16 %v6003, %v6001
        %v6240 = vpack.c.b16 %v6004, %v6002
        %v6241 = vpack.c.b16 %v6007, %v6005
        %v6242 = vpack.c.b16 %v6008, %v6006
        %v6243 = vpack.c.b16 %v6011, %v6009
        %v6244 = vpack.c.b16 %v6012, %v6010
        %v6245 = vpack.c.b16 %v6015, %v6013
        %v6246 = vpack.c.b16 %v6016, %v6014
        %v6247 = vpack.c.b16 %v6019, %v6017
        %v6248 = vpack.c.b16 %v6020, %v6018
        %v6249 = vpack.c.b16 %v6023, %v6021
        %v6250 = vpack.c.b16 %v6024, %v6022
        %v6251 = vpack.c.b16 %v6027, %v6025
        %v6252 = vpack.c.b16 %v6028, %v6026
        %v6253 = vpack.c.b16 %v6031, %v6029
        %v6254 = vpack.c.b16 %v6032, %v6030
        %v6255 = vpack.c.b16 %v6035, %v6033
        %v6256 = vpack.c.b16 %v6036, %v6034
        %v6257 = vpack.c.b16 %v6039, %v6037
        %v6258 = vpack.c.b16 %v6040, %v6038
        %v6259 = vpack.c.b16 %v6043, %v6041
        %v6260 = vpack.c.b16 %v6044, %v6042
        %v6261 = vpack.c.b16 %v6047, %v6045
        %v6262 = vpack.c.b16 %v6048, %v6046
        %v6263 = vpack.c.b16 %v6051, %v6049
        %v6264 = vpack.c.b16 %v6052, %v6050
        %v6265 = vpack.c.b16 %v6055, %v6053
        %v6266 = vpack.c.b16 %v6056, %v6054
        %v6267 = vpack.c.b16 %v6059, %v6057
        %v6268 = vpack.c.b16 %v6060, %v6058
        %v6269 = vpack.c.b16 %v6063, %v6061
        %v6270 = vpack.c.b16 %v6064, %v6062
        %v6271 = vpack.c.b16 %v6067, %v6065
        %v6272 = vpack.c.b16 %v6068, %v6066
        %v6273 = vpack.c.b16 %v6071, %v6069
        %v6274 = vpack.c.b16 %v6072, %v6070
        %v6275 = vpack.c.b16 %v6075, %v6073
        %v6276 = vpack.c.b16 %v6076, %v6074
        %v6277 = vpack.c.b16 %v6079, %v6077
        %v6278 = vpack.c.b16 %v6080, %v6078
        %v6279 = vpack.c.b16 %v6083, %v6081
        %v6280 = vpack.c.b16 %v6084, %v6082
        %v6281 = vpack.c.b16 %v6087, %v6085
        %v6282 = vpack.c.b16 %v6088, %v6086
        %v6283 = vpack.c.b16 %v6091, %v6089
        %v6284 = vpack.c.b16 %v6092, %v6090
        %v6285 = vpack.c.b16 %v6095, %v6093
        %v6286 = vpack.c.b16 %v6096, %v6094
        %v6287 = vpack.c.b16 %v6099, %v6097
        %v6288 = vpack.c.b16 %v6100, %v6098
        %v6289 = vpack.c.b16 %v6103, %v6101
        %v6290 = vpack.c.b16 %v6104, %v6102
        %v6291 = vpack.c.b16 %v6107, %v6105
        %v6292 = vpack.c.b16 %v6108, %v6106
        %v6293 = vpack.c.b16 %v6111, %v6109
        %v6294 = vpack.c.b16 %v6112, %v6110
        %v6295 = vpack.c.b16 %v6115, %v6113
        %v6296 = vpack.c.b16 %v6116, %v6114
        %v6297 = vpack.c.b16 %v6119, %v6117
        %v6298 = vpack.c.b16 %v6120, %v6118
        %v6299 = vpack.c.b16 %v6123, %v6121
        %v6300 = vpack.c.b16 %v6124, %v6122
        %v6301 = vpack.c.b16 %v6127, %v6125
        %v6302 = vpack.c.b16 %v6128, %v6126
        %v6303 = vpack.c.b16 %v6131, %v6129
        %v6304 = vpack.c.b16 %v6132, %v6130
        %v6305 = vpack.c.b16 %v6135, %v6133
        %v6306 = vpack.c.b16 %v6136, %v6134
        %v6307 = vpack.c.b16 %v6139, %v6137
        %v6308 = vpack.c.b16 %v6140, %v6138
        %v6309 = vpack.c.b16 %v6143, %v6141
        %v6310 = vpack.c.b16 %v6144, %v6142
        %v6311 = vpack.c.b16 %v6147, %v6145
        %v6312 = vpack.c.b16 %v6148, %v6146
        %v6313 = vpack.c.b16 %v6151, %v6149
        %v6314 = vpack.c.b16 %v6152, %v6150
        %v6315 = vpack.c.b16 %v6155, %v6153
        %v6316 = vpack.c.b16 %v6156, %v6154
        %v6317 = vpack.c.b16 %v6159, %v6157
        %v6318 = vpack.c.b16 %v6160, %v6158
        %v6319 = vpack.c.b16 %v6163, %v6161
        %v6320 = vpack.c.b16 %v6164, %v6162
        %v6321 = vpack.c.b16 %v6167, %v6165
        %v6322 = vpack.c.b16 %v6168, %v6166
        %v6323 = vpack.c.b16 %v6171, %v6169
        %v6324 = vpack.c.b16 %v6172, %v6170
        %v6325 = vpack.c.b16 %v6175, %v6173
        %v6326 = vpack.c.b16 %v6176, %v6174
        %v6327 = vpack.c.b16 %v6179, %v6177
        %v6328 = vpack.c.b16 %v6180, %v6178
        %v6329 = vpack.c.b16 %v6183, %v6181
        %v6330 = vpack.c.b16 %v6184, %v6182
        %v6331 = vpack.c.b16 %v6187, %v6185
        %v6332 = vpack.c.b16 %v6188, %v6186
        %v6333 = vpack.c.b16 %v6191, %v6189
        %v6334 = vpack.c.b16 %v6192, %v6190
        %v6335 = vpack.c.b16 %v6195, %v6193
        %v6336 = vpack.c.b16 %v6196, %v6194
        %v6337 = vpack.c.b16 %v6199, %v6197
        %v6338 = vpack.c.b16 %v6200, %v6198
        %v6339 = vpack.c.b16 %v6203, %v6201
        %v6340 = vpack.c.b16 %v6204, %v6202
        %v6341 = vpack.c.b16 %v6207, %v6205
        %v6342 = vpack.c.b16 %v6208, %v6206
        %v6343 = vpack.c.b16 %v6211, %v6209
        %v6344 = vpack.c.b16 %v6212, %v6210
        %v6345 = vpack.c.b16 %v6215, %v6213
        %v6346 = vpack.c.b16 %v6216, %v6214
        %v6347 = vpack.c.b16 %v6219, %v6217
        %v6348 = vpack.c.b16 %v6220, %v6218
        %6477 = vmatprep.subr.bf16.mxu0 %v6236
        %6478 = vmatpush1.bf16.msra.mxu0 %v6235
        %6479 = vmatprep.subr.bf16.mxu0 %v6234
        %6480 = vmatpush1.bf16.msra.mxu0 %v6233
        %6481 = vmatprep.subr.bf16.mxu0 %v6232
        %6482 = vmatpush1.bf16.msra.mxu0 %v6231
        %6483 = vmatprep.subr.bf16.mxu0 %v6230
        %6484 = vmatpush1.bf16.msra.mxu0 %v6229
        %6485 = vmatprep.subr.bf16.mxu0 %v6228
        %6486 = vmatpush1.bf16.msra.mxu0 %v6227
        %6487 = vmatprep.subr.bf16.mxu0 %v6226
        %6488 = vmatpush1.bf16.msra.mxu0 %v6225
        %6489 = vmatprep.subr.bf16.mxu0 %v6224
        %6490 = vmatpush1.bf16.msra.mxu0 %v6223
        %6491 = vmatprep.subr.bf16.mxu0 %v6222
        %6492 = vmatpush1.bf16.msra.mxu0 %v6221
        %6493 = vmatprep.subr.bf16.mxu0 %v6252
        %6494 = vmatpush2.bf16.msra.mxu0 %v6251
        %6495 = vmatprep.subr.bf16.mxu0 %v6250
        %6496 = vmatpush2.bf16.msra.mxu0 %v6249
        %6497 = vmatprep.subr.bf16.mxu0 %v6248
        %6498 = vmatpush2.bf16.msra.mxu0 %v6247
        %6499 = vmatprep.subr.bf16.mxu0 %v6246
        %6500 = vmatpush2.bf16.msra.mxu0 %v6245
        %6501 = vmatprep.subr.bf16.mxu0 %v6244
        %6502 = vmatpush2.bf16.msra.mxu0 %v6243
        %6503 = vmatprep.subr.bf16.mxu0 %v6242
        %6504 = vmatpush2.bf16.msra.mxu0 %v6241
        %6505 = vmatprep.subr.bf16.mxu0 %v6240
        %6506 = vmatpush2.bf16.msra.mxu0 %v6239
        %6507 = vmatprep.subr.bf16.mxu0 %v6238
        %6508 = vmatpush2.bf16.msra.mxu0 %v6237
        %6509 = vmatprep.mubr.bf16.mxu0 %v5682
        %6510 = vmatmul.mubr.bf16.gmra.mxu0 %v5681
        %v6511 = vpop.f32.mrf.mxu0
        %v6512 = vadd.f32 %v5830, %v6511
        %v6513 = vpop.f32.mrf.mxu0
        %v6514 = vadd.f32 %v5834, %v6513
        %v6515 = vpop.f32.mrf.mxu0
        %v6516 = vadd.f32 %v5830, %v6515
        %v6517 = vpop.f32.mrf.mxu0
        %v6518 = vadd.f32 %v5834, %v6517
        %6519 = vmatprep.mubr.bf16.mxu0 %v5690
        %6520 = vmatmul.mubr.bf16.gmra.mxu0 %v5689
        %v6521 = vpop.f32.mrf.mxu0
        %v6522 = vadd.f32 %v5830, %v6521
        %v6523 = vpop.f32.mrf.mxu0
        %v6524 = vadd.f32 %v5834, %v6523
        %v6525 = vpop.f32.mrf.mxu0
        %v6526 = vadd.f32 %v5830, %v6525
        %v6527 = vpop.f32.mrf.mxu0
        %v6528 = vadd.f32 %v5834, %v6527
        %6529 = vdwg.mxu0
        %6530 = vmatprep.subr.bf16.mxu0 %v6268
        %6531 = vmatpush1.bf16.msra.mxu0 %v6267
        %6532 = vmatprep.subr.bf16.mxu0 %v6266
        %6533 = vmatpush1.bf16.msra.mxu0 %v6265
        %6534 = vmatprep.subr.bf16.mxu0 %v6264
        %6535 = vmatpush1.bf16.msra.mxu0 %v6263
        %6536 = vmatprep.subr.bf16.mxu0 %v6262
        %6537 = vmatpush1.bf16.msra.mxu0 %v6261
        %6538 = vmatprep.subr.bf16.mxu0 %v6260
        %6539 = vmatpush1.bf16.msra.mxu0 %v6259
        %6540 = vmatprep.subr.bf16.mxu0 %v6258
        %6541 = vmatpush1.bf16.msra.mxu0 %v6257
        %6542 = vmatprep.subr.bf16.mxu0 %v6256
        %6543 = vmatpush1.bf16.msra.mxu0 %v6255
        %6544 = vmatprep.subr.bf16.mxu0 %v6254
        %6545 = vmatpush1.bf16.msra.mxu0 %v6253
        %6546 = vmatprep.subr.bf16.mxu0 %v6284
        %6547 = vmatpush2.bf16.msra.mxu0 %v6283
        %6548 = vmatprep.subr.bf16.mxu0 %v6282
        %6549 = vmatpush2.bf16.msra.mxu0 %v6281
        %6550 = vmatprep.subr.bf16.mxu0 %v6280
        %6551 = vmatpush2.bf16.msra.mxu0 %v6279
        %6552 = vmatprep.subr.bf16.mxu0 %v6278
        %6553 = vmatpush2.bf16.msra.mxu0 %v6277
        %6554 = vmatprep.subr.bf16.mxu0 %v6276
        %6555 = vmatpush2.bf16.msra.mxu0 %v6275
        %6556 = vmatprep.subr.bf16.mxu0 %v6274
        %6557 = vmatpush2.bf16.msra.mxu0 %v6273
        %6558 = vmatprep.subr.bf16.mxu0 %v6272
        %6559 = vmatpush2.bf16.msra.mxu0 %v6271
        %6560 = vmatprep.subr.bf16.mxu0 %v6270
        %6561 = vmatpush2.bf16.msra.mxu0 %v6269
        %6562 = vmatprep.mubr.bf16.mxu0 %v5684
        %6563 = vmatmul.mubr.bf16.gmra.mxu0 %v5683
        %v6564 = vpop.f32.mrf.mxu0
        %v6565 = vadd.f32 %v6512, %v6564
        %v6566 = vpop.f32.mrf.mxu0
        %v6567 = vadd.f32 %v6514, %v6566
        %v6568 = vpop.f32.mrf.mxu0
        %v6569 = vadd.f32 %v6516, %v6568
        %v6570 = vpop.f32.mrf.mxu0
        %v6571 = vadd.f32 %v6518, %v6570
        %6572 = vmatprep.mubr.bf16.mxu0 %v5692
        %6573 = vmatmul.mubr.bf16.gmra.mxu0 %v5691
        %v6574 = vpop.f32.mrf.mxu0
        %v6575 = vadd.f32 %v6522, %v6574
        %v6576 = vpop.f32.mrf.mxu0
        %v6577 = vadd.f32 %v6524, %v6576
        %v6578 = vpop.f32.mrf.mxu0
        %v6579 = vadd.f32 %v6526, %v6578
        %v6580 = vpop.f32.mrf.mxu0
        %v6581 = vadd.f32 %v6528, %v6580
        %6582 = vdwg.mxu0
        %6583 = vmatprep.subr.bf16.mxu0 %v6300
        %6584 = vmatpush1.bf16.msra.mxu0 %v6299
        %6585 = vmatprep.subr.bf16.mxu0 %v6298
        %6586 = vmatpush1.bf16.msra.mxu0 %v6297
        %6587 = vmatprep.subr.bf16.mxu0 %v6296
        %6588 = vmatpush1.bf16.msra.mxu0 %v6295
        %6589 = vmatprep.subr.bf16.mxu0 %v6294
        %6590 = vmatpush1.bf16.msra.mxu0 %v6293
        %6591 = vmatprep.subr.bf16.mxu0 %v6292
        %6592 = vmatpush1.bf16.msra.mxu0 %v6291
        %6593 = vmatprep.subr.bf16.mxu0 %v6290
        %6594 = vmatpush1.bf16.msra.mxu0 %v6289
        %6595 = vmatprep.subr.bf16.mxu0 %v6288
        %6596 = vmatpush1.bf16.msra.mxu0 %v6287
        %6597 = vmatprep.subr.bf16.mxu0 %v6286
        %6598 = vmatpush1.bf16.msra.mxu0 %v6285
        %6599 = vmatprep.subr.bf16.mxu0 %v6316
        %6600 = vmatpush2.bf16.msra.mxu0 %v6315
        %6601 = vmatprep.subr.bf16.mxu0 %v6314
        %6602 = vmatpush2.bf16.msra.mxu0 %v6313
        %6603 = vmatprep.subr.bf16.mxu0 %v6312
        %6604 = vmatpush2.bf16.msra.mxu0 %v6311
        %6605 = vmatprep.subr.bf16.mxu0 %v6310
        %6606 = vmatpush2.bf16.msra.mxu0 %v6309
        %6607 = vmatprep.subr.bf16.mxu0 %v6308
        %6608 = vmatpush2.bf16.msra.mxu0 %v6307
        %6609 = vmatprep.subr.bf16.mxu0 %v6306
        %6610 = vmatpush2.bf16.msra.mxu0 %v6305
        %6611 = vmatprep.subr.bf16.mxu0 %v6304
        %6612 = vmatpush2.bf16.msra.mxu0 %v6303
        %6613 = vmatprep.subr.bf16.mxu0 %v6302
        %6614 = vmatpush2.bf16.msra.mxu0 %v6301
        %6615 = vmatprep.mubr.bf16.mxu0 %v5686
        %6616 = vmatmul.mubr.bf16.gmra.mxu0 %v5685
        %v6617 = vpop.f32.mrf.mxu0
        %v6618 = vadd.f32 %v6565, %v6617
        %v6619 = vpop.f32.mrf.mxu0
        %v6620 = vadd.f32 %v6567, %v6619
        %v6621 = vpop.f32.mrf.mxu0
        %v6622 = vadd.f32 %v6569, %v6621
        %v6623 = vpop.f32.mrf.mxu0
        %v6624 = vadd.f32 %v6571, %v6623
        %6625 = vmatprep.mubr.bf16.mxu0 %v5694
        %6626 = vmatmul.mubr.bf16.gmra.mxu0 %v5693
        %v6627 = vpop.f32.mrf.mxu0
        %v6628 = vadd.f32 %v6575, %v6627
        %v6629 = vpop.f32.mrf.mxu0
        %v6630 = vadd.f32 %v6577, %v6629
        %v6631 = vpop.f32.mrf.mxu0
        %v6632 = vadd.f32 %v6579, %v6631
        %v6633 = vpop.f32.mrf.mxu0
        %v6634 = vadd.f32 %v6581, %v6633
        %6635 = vdwg.mxu0
        %6636 = vmatprep.subr.bf16.mxu0 %v6332
        %6637 = vmatpush1.bf16.msra.mxu0 %v6331
        %6638 = vmatprep.subr.bf16.mxu0 %v6330
        %6639 = vmatpush1.bf16.msra.mxu0 %v6329
        %6640 = vmatprep.subr.bf16.mxu0 %v6328
        %6641 = vmatpush1.bf16.msra.mxu0 %v6327
        %6642 = vmatprep.subr.bf16.mxu0 %v6326
        %6643 = vmatpush1.bf16.msra.mxu0 %v6325
        %6644 = vmatprep.subr.bf16.mxu0 %v6324
        %6645 = vmatpush1.bf16.msra.mxu0 %v6323
        %6646 = vmatprep.subr.bf16.mxu0 %v6322
        %6647 = vmatpush1.bf16.msra.mxu0 %v6321
        %6648 = vmatprep.subr.bf16.mxu0 %v6320
        %6649 = vmatpush1.bf16.msra.mxu0 %v6319
        %6650 = vmatprep.subr.bf16.mxu0 %v6318
        %6651 = vmatpush1.bf16.msra.mxu0 %v6317
        %6652 = vmatprep.subr.bf16.mxu0 %v6348
        %6653 = vmatpush2.bf16.msra.mxu0 %v6347
        %6654 = vmatprep.subr.bf16.mxu0 %v6346
        %6655 = vmatpush2.bf16.msra.mxu0 %v6345
        %6656 = vmatprep.subr.bf16.mxu0 %v6344
        %6657 = vmatpush2.bf16.msra.mxu0 %v6343
        %6658 = vmatprep.subr.bf16.mxu0 %v6342
        %6659 = vmatpush2.bf16.msra.mxu0 %v6341
        %6660 = vmatprep.subr.bf16.mxu0 %v6340
        %6661 = vmatpush2.bf16.msra.mxu0 %v6339
        %6662 = vmatprep.subr.bf16.mxu0 %v6338
        %6663 = vmatpush2.bf16.msra.mxu0 %v6337
        %6664 = vmatprep.subr.bf16.mxu0 %v6336
        %6665 = vmatpush2.bf16.msra.mxu0 %v6335
        %6666 = vmatprep.subr.bf16.mxu0 %v6334
        %6667 = vmatpush2.bf16.msra.mxu0 %v6333
        %6668 = vmatprep.mubr.bf16.mxu0 %v5688
        %6669 = vmatmul.mubr.bf16.gmra.mxu0 %v5687
        %v6670 = vpop.f32.mrf.mxu0
        %v6671 = vadd.f32 %v6618, %v6670
        %v6672 = vpop.f32.mrf.mxu0
        %v6673 = vadd.f32 %v6620, %v6672
        %v6674 = vpop.f32.mrf.mxu0
        %v6675 = vadd.f32 %v6622, %v6674
        %v6676 = vpop.f32.mrf.mxu0
        %v6677 = vadd.f32 %v6624, %v6676
        %6678 = vmatprep.mubr.bf16.mxu0 %v5696
        %6679 = vmatmul.mubr.bf16.gmra.mxu0 %v5695
        %v6680 = vpop.f32.mrf.mxu0
        %v6681 = vadd.f32 %v6628, %v6680
        %v6682 = vpop.f32.mrf.mxu0
        %v6683 = vadd.f32 %v6630, %v6682
        %v6684 = vpop.f32.mrf.mxu0
        %v6685 = vadd.f32 %v6632, %v6684
        %v6686 = vpop.f32.mrf.mxu0
        %v6687 = vadd.f32 %v6634, %v6686
        %6688 = vdwg.mxu0
        %v6689 = vadd.f32 %v4615, %v6671
        %v6690 = vadd.f32 %v4616, %v6673
        %v6691 = vadd.f32 %v4617, %v6675
        %v6692 = vadd.f32 %v4618, %v6677
        %v6693 = vadd.f32 %v4619, %v6681
        %v6694 = vadd.f32 %v4620, %v6683
        %v6695 = vadd.f32 %v4621, %v6685
        %v6696 = vadd.f32 %v4622, %v6687
        %v6697 = vld [vmem:[%s1384] sm:$0x3]
        %v6698 = vld [vmem:[%s1199] sm:$0x3]
        %v6699 = vadd.f32 %v6689, %v6690
        %6700 = vadd.xlane.f32.xlu0 %v6699
        %v6701 = vpop.xlane.xlu0 %6700
        %v6702 = vadd.f32 %v6691, %v6692
        %6703 = vadd.xlane.f32.xlu0 %v6702
        %v6704 = vpop.xlane.xlu0 %6703
        %v6705 = vadd.f32 %v6693, %v6694
        %6706 = vadd.xlane.f32.xlu0 %v6705
        %v6707 = vpop.xlane.xlu0 %6706
        %v6708 = vadd.f32 %v6695, %v6696
        %6709 = vadd.xlane.f32.xlu0 %v6708
        %v6710 = vpop.xlane.xlu0 %6709
        %v6711 = vmul.f32 %v6701, %v2922
        %v6712 = vmul.f32 %v6704, %v2922
        %v6713 = vmul.f32 %v6707, %v2922
        %v6714 = vmul.f32 %v6710, %v2922
        %v6715 = vsub.f32 %v6689, %v6711
        %v6716 = vsub.f32 %v6690, %v6711
        %v6717 = vsub.f32 %v6691, %v6712
        %v6718 = vsub.f32 %v6692, %v6712
        %v6719 = vsub.f32 %v6693, %v6713
        %v6720 = vsub.f32 %v6694, %v6713
        %v6721 = vsub.f32 %v6695, %v6714
        %v6722 = vsub.f32 %v6696, %v6714
        %v6723 = vmul.f32 %v6715, %v6715
        %v6724 = vmul.f32 %v6716, %v6716
        %v6725 = vmul.f32 %v6717, %v6717
        %v6726 = vmul.f32 %v6718, %v6718
        %v6727 = vmul.f32 %v6719, %v6719
        %v6728 = vmul.f32 %v6720, %v6720
        %v6729 = vmul.f32 %v6721, %v6721
        %v6730 = vmul.f32 %v6722, %v6722
        %v6731 = vadd.f32 %v6723, %v6724
        %6732 = vadd.xlane.f32.xlu0 %v6731
        %v6733 = vpop.xlane.xlu0 %6732
        %v6734 = vadd.f32 %v6725, %v6726
        %6735 = vadd.xlane.f32.xlu0 %v6734
        %v6736 = vpop.xlane.xlu0 %6735
        %v6737 = vadd.f32 %v6727, %v6728
        %6738 = vadd.xlane.f32.xlu0 %v6737
        %v6739 = vpop.xlane.xlu0 %6738
        %v6740 = vadd.f32 %v6729, %v6730
        %6741 = vadd.xlane.f32.xlu0 %v6740
        %v6742 = vpop.xlane.xlu0 %6741
        %v6743 = vmul.f32 %v6733, %v2922
        %v6744 = vmul.f32 %v6736, %v2922
        %v6745 = vmul.f32 %v6739, %v2922
        %v6746 = vmul.f32 %v6742, %v2922
        %v6747 = vadd.f32 %v6743, 1e-05
        %v6748 = vadd.f32 %v6744, 1e-05
        %v6749 = vadd.f32 %v6745, 1e-05
        %v6750 = vadd.f32 %v6746, 1e-05
        %v6751 = vrsqrt.pop %v6747
        %v6752 = vrsqrt.pop %v6748
        %v6753 = vrsqrt.pop %v6749
        %v6754 = vrsqrt.pop %v6750
        %v6755 = vmul.f32 %v6715, %v6751
        %v6756 = vmul.f32 %v6716, %v6751
        %v6757 = vmul.f32 %v6717, %v6752
        %v6758 = vmul.f32 %v6718, %v6752
        %v6759 = vmul.f32 %v6719, %v6753
        %v6760 = vmul.f32 %v6720, %v6753
        %v6761 = vmul.f32 %v6721, %v6754
        %v6762 = vmul.f32 %v6722, %v6754
        %v6764 = vlaneseq
        %v6765 = vshrl.u32 %v6764, 7
        %v6766 = vsub.s32 0, %v6765
        %v6767 = vrot.slane %v6697, %v6766
        %v6768 = vlaneseq
        %v6769 = vshrl.u32 %v6768, 7
        %v6770 = vsub.s32 1, %v6769
        %v6771 = vrot.slane %v6697, %v6770
        %v6774 = vmul.f32 %v6755, %v6767
        %v6775 = vmul.f32 %v6756, %v6771
        %v6776 = vmul.f32 %v6757, %v6767
        %v6777 = vmul.f32 %v6758, %v6771
        %v6778 = vmul.f32 %v6759, %v6767
        %v6779 = vmul.f32 %v6760, %v6771
        %v6780 = vmul.f32 %v6761, %v6767
        %v6781 = vmul.f32 %v6762, %v6771
        %v6783 = vlaneseq
        %v6784 = vshrl.u32 %v6783, 7
        %v6785 = vsub.s32 0, %v6784
        %v6786 = vrot.slane %v6698, %v6785
        %v6787 = vlaneseq
        %v6788 = vshrl.u32 %v6787, 7
        %v6789 = vsub.s32 1, %v6788
        %v6790 = vrot.slane %v6698, %v6789
        %v6793 = vadd.f32 %v6774, %v6786
        %v6794 = vadd.f32 %v6775, %v6790
        %v6795 = vadd.f32 %v6776, %v6786
        %v6796 = vadd.f32 %v6777, %v6790
        %v6797 = vadd.f32 %v6778, %v6786
        %v6798 = vadd.f32 %v6779, %v6790
        %v6799 = vadd.f32 %v6780, %v6786
        %v6800 = vadd.f32 %v6781, %v6790
        %6801 = vst [vmem:[#allocation2] sm:$0xff] %v6793
        %6802 = vst [vmem:[#allocation2 + $0x8] sm:$0xff] %v6794
        %6803 = vst [vmem:[#allocation2 + $0x10] sm:$0xff] %v6795
        %6804 = vst [vmem:[#allocation2 + $0x18] sm:$0xff] %v6796
        %6805 = vst [vmem:[#allocation2 + $0x20] sm:$0xff] %v6797
        %6806 = vst [vmem:[#allocation2 + $0x28] sm:$0xff] %v6798
        %6807 = vst [vmem:[#allocation2 + $0x30] sm:$0xff] %v6799
        %6808 = vst [vmem:[#allocation2 + $0x38] sm:$0xff] %v6800
        %p6809 = scmp.eq.s32.totalorder %s68, 1
        // Predicated region
        $region177: #{tpu_custom_call.1} parent=107 // pred_check
          %p6810 = pneg %p6809
        $region178: #{tpu_custom_call.1} parent=107 // pred_check_branch
          %6812 = sbr.rel (%p6810) target = $region180
        $region179: #{tpu_custom_call.1} parent=107 // pred_region
          %6813 = vst [vmem:[%s1358] sm:$0xff] %v6793
          %6814 = vst [vmem:[%s1358 + $0x8] sm:$0xff] %v6794
          %6815 = vst [vmem:[%s1358 + $0x10] sm:$0xff] %v6795
          %6816 = vst [vmem:[%s1358 + $0x18] sm:$0xff] %v6796
          %6817 = vst [vmem:[%s1358 + $0x20] sm:$0xff] %v6797
          %6818 = vst [vmem:[%s1358 + $0x28] sm:$0xff] %v6798
          %6819 = vst [vmem:[%s1358 + $0x30] sm:$0xff] %v6799
          %6820 = vst [vmem:[%s1358 + $0x38] sm:$0xff] %v6800
        $region180: #{tpu_custom_call.1} parent=107 // pred_fallthru
          _
        %s6821 = sand.u32 %s655, 1
        %s6822 = scalar_lea.sflag [#allocation5], %s6821
        %s6823 = sand.u32 %s655, 1
        %s6824 = smul.addr %s6823, 64
        %s6825 = scalar_lea.vmem [#allocation29], %s6824
        // Predicated region
        $region181: #{tpu_custom_call.1} parent=107 // pred_check
          %p6826 = pneg %p665
        $region182: #{tpu_custom_call.1} parent=107 // pred_check_branch
          %6828 = sbr.rel (%p6826) target = $region184
        $region183: #{tpu_custom_call.1} parent=107 // pred_region
          %s6829 = smul.u32 2, %s67
          %s6831 = ssub.s32 1024, 1024
          %6832 = vsyncadd %s6822, %s6831
          %s6833 = smul.addr %s6829, 4
          %s6834 = smul.addr %s6833, 128
          %s6835 = scalar_lea.hbm %s22, %s6834
          %s6836 = sshll.u32 %s6825, 4
          %s6837 = int_to_ptr.vmem [resolvable:$true] %s6836
          %6842 = dma.vmem_to_hbm [thread:$0]  %s6837, 1024, %s6835, %s6822, 256, 256, 16
        $region184: #{tpu_custom_call.1} parent=107 // pred_fallthru
          _
      $region108: #{tpu_custom_call.1} parent=5 // pred_fallthru
        _
      %p6843 = scmp.le.s32.totalorder 2, %s58
      // Predicated region
      $region185: #{tpu_custom_call.1} parent=5 // pred_check
        %p6844 = pneg %p6843
      $region186: #{tpu_custom_call.1} parent=5 // pred_check_branch
        %6846 = sbr.rel (%p6844) target = $region188
      $region187: #{tpu_custom_call.1} parent=5 // pred_region
        %s6847 = ssub.s32 %s58, 2
        // Predicated region
        $region189: #{tpu_custom_call.1} parent=187 // pred_check
          %p6848 = pneg %p671
        $region190: #{tpu_custom_call.1} parent=187 // pred_check_branch
          %6850 = sbr.rel (%p6848) target = $region192
        $region191: #{tpu_custom_call.1} parent=187 // pred_region
          %s6851 = sand.u32 %s656, 1
          %s6852 = scalar_lea.sflag [#allocation5], %s6851
          %s6853 = sand.u32 %s656, 1
          %s6854 = smul.addr %s6853, 64
          %s6855 = scalar_lea.vmem [#allocation29], %s6854
          %6856 = dma.done %s6852, 1024
        $region192: #{tpu_custom_call.1} parent=187 // pred_fallthru
          _
      $region188: #{tpu_custom_call.1} parent=5 // pred_fallthru
        _
    $region6: #{tpu_custom_call.1} parent=1 // loop_footer
      %s62 = sadd.s32 1, %s58
    $region7: #{tpu_custom_call.1} parent=1 // loop_footer_branch
      %57 = sbr.rel target = $region3
    $region8: #{tpu_custom_call.1} parent=1 // loop_exit
      _
    %6857 = vsyncpa [#allocation4], 1
    %s6858 = scalar_lea.sflag [#allocation4], 1
    %6859 = vsyncpa %s6858, 1
    %6860 = vsyncpa [#allocation7], 1
    %s6861 = scalar_lea.sflag [#allocation7], 1
    %6862 = vsyncpa %s6861, 1
    %6863 = vsyncpa [#allocation10], 1
    %s6864 = scalar_lea.sflag [#allocation10], 1
    %6865 = vsyncpa %s6864, 1
    %6866 = vsyncpa [#allocation13], 1
    %s6867 = scalar_lea.sflag [#allocation13], 1
    %6868 = vsyncpa %s6867, 1
    %6869 = vsyncpa [#allocation16], 1
    %s6870 = scalar_lea.sflag [#allocation16], 1
    %6871 = vsyncpa %s6870, 1
    %6872 = vsyncpa [#allocation19], 1
    %s6873 = scalar_lea.sflag [#allocation19], 1
    %6874 = vsyncpa %s6873, 1
    %6875 = vsyncpa [#allocation22], 1
    %s6876 = scalar_lea.sflag [#allocation22], 1
    %6877 = vsyncpa %s6876, 1
    %6878 = vsyncpa [#allocation25], 1
    %s6879 = scalar_lea.sflag [#allocation25], 1
    %6880 = vsyncpa %s6879, 1
    %6881 = vsyncpa [#allocation28], 1
    %s6882 = scalar_lea.sflag [#allocation28], 1
    %6883 = vsyncpa %s6882, 1
    %6884 = vsyncpa [#allocation5], 1
    %s6885 = scalar_lea.sflag [#allocation5], 1
    %6886 = vsyncpa %s6885, 1

</llo_original>
